<compile_context>
chip_gen: v6e
topology: v6e:2x2x1
jax: 0.10.0
libtpu: 0.0.40
codegen_flags: <defaults>
</compile_context>

<pallas_src>
import functools

import jax
import jax.numpy as jnp
from jax.experimental import pallas as pl
from jax.experimental.pallas import tpu as pltpu

VMEM = pltpu.MemorySpace.VMEM


# ---------------------------------------------------------------------------
# Stage A kernel: conv1(3x3) + ReLU + MaxPool2d(2) + conv2(3x3, stride 2)
# ---------------------------------------------------------------------------
def _stage_a_kernel(bt, xp_ref, k1_ref, b1_ref, k2_ref, b2_ref, o_ref):
    # xp_ref: (bt, 4, 7, 28)   input rows split by (row mod 4) phase
    # k1_ref: (3, 2, 28, 416)  conv1 banded weights [ky, w-parity]; cols = (wo, co)
    # b1_ref: (1, 416)         conv1 bias tiled over wo
    # k2_ref: (3, 416, 192)    conv2 banded weights [ky]; rows = (wo, ci), cols = (j, co)
    # b2_ref: (1, 192)         conv2 bias tiled over j
    # o_ref : (bt, 6, 192)     conv2 output (pre-BN); rows = i, cols = (j, co)
    b1t = b1_ref[...]
    b2t = b2_ref[...]

    def c1(lhs, ky, pw):
        return jnp.dot(lhs, k1_ref[ky, pw, :, :],
                       preferred_element_type=jnp.float32)

    for i in range(bt):
        x0 = xp_ref[i, 0, :, :]   # image rows 0,4,...,24   (7, 28)
        x1 = xp_ref[i, 1, :, :]   # image rows 1,5,...,25
        x2 = xp_ref[i, 2, :, :]   # image rows 2,6,...,26
        x3 = xp_ref[i, 3, :, :]   # image rows 3,7,...,27

        # pooled rows ho = 2u (u = 0..6): max over conv rows 4u and 4u+1
        pe = None
        for pw in range(2):
            ca = c1(x0, 0, pw) + c1(x1, 1, pw) + c1(x2, 2, pw)     # conv row 4u
            cb = c1(x1, 0, pw) + c1(x2, 1, pw) + c1(x3, 2, pw)     # conv row 4u+1
            m = jnp.maximum(ca, cb)
            pe = m if pe is None else jnp.maximum(pe, m)
        pe = jnp.maximum(pe + b1t, 0.0)                            # (7, 416)

        # pooled rows ho = 2u+1 (u = 0..5): max over conv rows 4u+2 and 4u+3
        x0s, x1s = x0[1:7, :], x1[1:7, :]
        x2s, x3s = x2[0:6, :], x3[0:6, :]
        po = None
        for pw in range(2):
            ca = c1(x2s, 0, pw) + c1(x3s, 1, pw) + c1(x0s, 2, pw)  # conv row 4u+2
            cb = c1(x3s, 0, pw) + c1(x0s, 1, pw) + c1(x1s, 2, pw)  # conv row 4u+3
            m = jnp.maximum(ca, cb)
            po = m if po is None else jnp.maximum(po, m)
        po = jnp.maximum(po + b1t, 0.0)                            # (6, 416)

        # conv2 (stride 2): output row i uses pooled rows 2i, 2i+1, 2i+2
        y2 = (jnp.dot(pe[0:6, :], k2_ref[0, :, :], preferred_element_type=jnp.float32)
              + jnp.dot(po, k2_ref[1, :, :], preferred_element_type=jnp.float32)
              + jnp.dot(pe[1:7, :], k2_ref[2, :, :], preferred_element_type=jnp.float32)
              + b2t)                                               # (6, 192)
        o_ref[i, :, :] = y2


# ---------------------------------------------------------------------------
# Stage B kernel: BatchNorm2d (batch stats) + Linear (padded to 128) + log_softmax
# ---------------------------------------------------------------------------
def _stage_b_kernel(inv_count, y_ref, p_ref, pt_ref, w_ref, bfc_ref,
                    g_ref, beta_ref, o_ref):
    # y_ref : (B, 1152)  conv2 output flattened in (h, w, c) order
    # p_ref : (32, 1152) channel-replication matrix, pt_ref = its transpose
    # w_ref : (1152, 128) FC weight, rows pre-permuted to (h, w, c), cols padded to 128
    y = y_ref[...]
    rs = jnp.sum(y, axis=0, keepdims=True)                          # (1, 1152)
    rss = jnp.sum(y * y, axis=0, keepdims=True)                     # (1, 1152)
    csum = jnp.dot(rs, pt_ref[...], preferred_element_type=jnp.float32)    # (1, 32)
    csqsum = jnp.dot(rss, pt_ref[...], preferred_element_type=jnp.float32) # (1, 32)
    mean = csum * inv_count
    var = csqsum * inv_count - mean * mean            # biased var (torch train fwd)
    inv = jax.lax.rsqrt(var + 1e-5)
    a = g_ref[...] * inv                              # per-channel scale
    d = beta_ref[...] - mean * a                      # per-channel shift
    a_t = jnp.dot(a, p_ref[...], preferred_element_type=jnp.float32)   # (1, 1152)
    d_t = jnp.dot(d, p_ref[...], preferred_element_type=jnp.float32)   # (1, 1152)
    xb = y * a_t + d_t                                # normalized activations

    logits = jnp.dot(xb, w_ref[...], preferred_element_type=jnp.float32) + bfc_ref[...]
    col = jax.lax.broadcasted_iota(jnp.int32, logits.shape, 1)
    logits = jnp.where(col < 10, logits, -1e30)       # mask padded lanes
    m = jnp.max(logits, axis=-1, keepdims=True)
    z = logits - m
    lse = jnp.log(jnp.sum(jnp.exp(z), axis=-1, keepdims=True))
    o_ref[...] = z - lse                              # (B, 128), lane-dense store


# ---------------------------------------------------------------------------
# Parameter-side weight transforms (all tiny, on constants/params, not activations)
# ---------------------------------------------------------------------------
def _conv1_band_weights(w1):
    # w1: (32, 1, 3, 3) = (co, ci=1, ky, kx)
    f32 = jnp.float32
    w1k = w1[:, 0].astype(f32)                       # (32, 3, 3) [co, ky, kx]
    win = jnp.arange(28)[:, None, None, None]        # input W position
    wo = jnp.arange(13)[None, :, None, None]         # pooled-pair W index
    kx = jnp.arange(3)[None, None, :, None]
    mats = []
    for ky in range(3):
        tap = jnp.transpose(w1k[:, ky, :], (1, 0))[None, None]   # (1,1,3,32) [kx, co]
        per_pw = []
        for pw in range(2):                          # output w = 2*wo + pw
            sel = (win == 2 * wo + pw + kx).astype(f32)          # (28,13,3,1)
            per_pw.append(jnp.sum(sel * tap, axis=2).reshape(28, 13 * 32))
        mats.append(jnp.stack(per_pw, axis=0))
    return jnp.stack(mats, axis=0)                   # (3, 2, 28, 416)


def _conv2_band_weights(w2):
    # w2: (32, 32, 3, 3) = (co, ci, ky, kx); stride-2 band along W baked in.
    f32 = jnp.float32
    wo = jnp.arange(13)[:, None, None]
    jj = jnp.arange(6)[None, :, None]
    kx = jnp.arange(3)[None, None, :]
    sel = (wo == 2 * jj + kx).astype(f32)            # (13, 6, 3)
    mats = []
    for ky in range(3):
        wt = jnp.transpose(w2[:, :, ky, :].astype(f32), (2, 1, 0))   # (3,32,32) [kx,ci,co]
        blk = jnp.einsum('wjx,xco->wcjo', sel, wt)   # (13, 32, 6, 32) [wo,ci,j,co]
        mats.append(blk.reshape(13 * 32, 6 * 32))
    return jnp.stack(mats, axis=0)                   # (3, 416, 192)


def _fc_weight(wfc, bfc):
    # torch flatten order is (c, h, w); reorder weight rows to the kernel's (h, w, c)
    # and pad the 10 output columns to 128 for lane-dense MXU / stores.
    f32 = jnp.float32
    w = wfc.astype(f32).reshape(10, 32, 6, 6).transpose(0, 2, 3, 1).reshape(10, 1152).T
    w_pad = jnp.concatenate([w, jnp.zeros((1152, 118), f32)], axis=1)      # (1152, 128)
    b_pad = jnp.concatenate([bfc.astype(f32), jnp.zeros((118,), f32)]).reshape(1, 128)
    return w_pad, b_pad


# ---------------------------------------------------------------------------
# Forward
# ---------------------------------------------------------------------------
def mnist_net_forward(x_nchw, params):
    (w1, b1, w2, b2, gamma, beta, wfc, bfc) = params
    f32 = jnp.float32
    B = x_nchw.shape[0]

    # images per grid step (static); the batch grid axis is "parallel" (megacore).
    bt = next(d for d in (8, 4, 2, 1) if B % d == 0)
    grid = (B // bt,)

    x = x_nchw[:, 0].astype(f32)                                    # (B, 28, 28)
    # split rows by (row mod 4) so conv1 + 2x2 pooling need only contiguous slices
    xp = jnp.stack([x[:, p::4, :] for p in range(4)], axis=1)       # (B, 4, 7, 28)

    k1 = _conv1_band_weights(w1)                                    # (3, 2, 28, 416)
    b1t = jnp.tile(b1.astype(f32), 13).reshape(1, 416)
    k2 = _conv2_band_weights(w2)                                    # (3, 416, 192)
    b2t = jnp.tile(b2.astype(f32), 6).reshape(1, 192)

    y2 = pl.pallas_call(
        functools.partial(_stage_a_kernel, bt),
        out_shape=jax.ShapeDtypeStruct((B, 6, 192), f32),
        grid_spec=pltpu.PrefetchScalarGridSpec(
            num_scalar_prefetch=0,
            grid=grid,
            in_specs=[
                pl.BlockSpec((bt, 4, 7, 28), lambda g: (g, 0, 0, 0)),
                pl.BlockSpec((3, 2, 28, 416), lambda g: (0, 0, 0, 0)),
                pl.BlockSpec((1, 416), lambda g: (0, 0)),
                pl.BlockSpec((3, 416, 192), lambda g: (0, 0, 0)),
                pl.BlockSpec((1, 192), lambda g: (0, 0)),
            ],
            out_specs=pl.BlockSpec((bt, 6, 192), lambda g: (g, 0, 0)),
        ),
        compiler_params=pltpu.CompilerParams(
            dimension_semantics=("parallel",)),
    )(xp, k1, b1t, k2, b2t)

    # Free row-major reshape: (B, 6, 192) -> (B, 1152), already (h, w, c) order.
    y_flat = y2.reshape(B, 6 * 192)

    p_mat = jnp.tile(jnp.eye(32, dtype=f32), (1, 36))               # (32, 1152)
    pt_mat = p_mat.T                                                # (1152, 32)
    w_pad, b_pad = _fc_weight(wfc, bfc)

    out128 = pl.pallas_call(
        functools.partial(_stage_b_kernel, 1.0 / float(B * 36)),
        out_shape=jax.ShapeDtypeStruct((B, 128), f32),
        in_specs=[pl.BlockSpec(memory_space=VMEM)] * 7,
        out_specs=pl.BlockSpec(memory_space=VMEM),
    )(y_flat, p_mat, pt_mat, w_pad, b_pad,
      gamma.astype(f32).reshape(1, 32), beta.astype(f32).reshape(1, 32))

    return out128[:, :10]


if __name__ == "__main__":
    key = jax.random.PRNGKey(0)
    ks = jax.random.split(key, 9)
    # MNIST-shaped input (28x28 is required by the 32*6*6 fc layer); small batch.
    x = jax.random.normal(ks[0], (2, 1, 28, 28), jnp.float32)

    # Deterministic synthetic parameters (same shapes as the torch module).
    w1 = 0.1 * jax.random.normal(ks[1], (32, 1, 3, 3), jnp.float32)    # conv1 weight
    b1 = 0.1 * jax.random.normal(ks[2], (32,), jnp.float32)            # conv1 bias
    w2 = 0.1 * jax.random.normal(ks[3], (32, 32, 3, 3), jnp.float32)   # conv2 weight
    b2 = 0.1 * jax.random.normal(ks[4], (32,), jnp.float32)            # conv2 bias
    gamma = 1.0 + 0.1 * jax.random.normal(ks[5], (32,), jnp.float32)   # BN weight
    beta = 0.1 * jax.random.normal(ks[6], (32,), jnp.float32)          # BN bias
    wfc = 0.1 * jax.random.normal(ks[7], (10, 32 * 6 * 6), jnp.float32)
    bfc = 0.1 * jax.random.normal(ks[8], (10,), jnp.float32)
    params = (w1, b1, w2, b2, gamma, beta, wfc, bfc)

    out = jax.jit(mnist_net_forward)(x, params)
    jax.block_until_ready(out)
    assert out.shape == (2, 10)
    print("KERNEL_OK")
</pallas_src>

<mosaic_0001>
module attributes {stable_mosaic.version = 11 : i64} {
  func.func @_stage_a_kernel(%arg0: i32, %arg1: memref<2x4x7x28xf32, #tpu.memory_space<vmem>>, %arg2: memref<3x2x28x416xf32, #tpu.memory_space<vmem>>, %arg3: memref<1x416xf32, #tpu.memory_space<vmem>>, %arg4: memref<3x416x192xf32, #tpu.memory_space<vmem>>, %arg5: memref<1x192xf32, #tpu.memory_space<vmem>>, %arg6: memref<2x6x192xf32, #tpu.memory_space<vmem>>) attributes {dimension_semantics = [#tpu.dimension_semantics<parallel>], iteration_bounds = array<i64: 1>, scalar_prefetch = 0 : i64, scratch_operands = 0 : i64, tpu.core_type = #tpu.core_type<tc>, window_params = [{transform_indices = @transform_0, window_bounds = array<i64: 2, 4, 7, 28>}, {pipeline_mode = #tpu.pipeline_mode<synchronous>, transform_indices = @transform_1, window_bounds = array<i64: 3, 2, 28, 416>}, {pipeline_mode = #tpu.pipeline_mode<synchronous>, transform_indices = @transform_2, window_bounds = array<i64: 1, 416>}, {pipeline_mode = #tpu.pipeline_mode<synchronous>, transform_indices = @transform_3, window_bounds = array<i64: 3, 416, 192>}, {pipeline_mode = #tpu.pipeline_mode<synchronous>, transform_indices = @transform_4, window_bounds = array<i64: 1, 192>}, {transform_indices = @transform_5, window_bounds = array<i64: 2, 6, 192>}]} {
    %c0 = arith.constant 0 : index
    %c0_0 = arith.constant 0 : index
    %0 = vector.load %arg3[%c0, %c0_0] : memref<1x416xf32, #tpu.memory_space<vmem>>, vector<1x416xf32>
    %c0_1 = arith.constant 0 : index
    %c0_2 = arith.constant 0 : index
    %1 = vector.load %arg5[%c0_1, %c0_2] : memref<1x192xf32, #tpu.memory_space<vmem>>, vector<1x192xf32>
    %c0_3 = arith.constant 0 : index
    %c0_4 = arith.constant 0 : index
    %c0_5 = arith.constant 0 : index
    %c0_6 = arith.constant 0 : index
    %2 = vector.load %arg1[%c0_3, %c0_4, %c0_5, %c0_6] : memref<2x4x7x28xf32, #tpu.memory_space<vmem>>, vector<1x1x7x28xf32>
    %3 = vector.shape_cast %2 : vector<1x1x7x28xf32> to vector<7x28xf32>
    %c0_7 = arith.constant 0 : index
    %c1 = arith.constant 1 : index
    %c0_8 = arith.constant 0 : index
    %c0_9 = arith.constant 0 : index
    %4 = vector.load %arg1[%c0_7, %c1, %c0_8, %c0_9] : memref<2x4x7x28xf32, #tpu.memory_space<vmem>>, vector<1x1x7x28xf32>
    %5 = vector.shape_cast %4 : vector<1x1x7x28xf32> to vector<7x28xf32>
    %c0_10 = arith.constant 0 : index
    %c2 = arith.constant 2 : index
    %c0_11 = arith.constant 0 : index
    %c0_12 = arith.constant 0 : index
    %6 = vector.load %arg1[%c0_10, %c2, %c0_11, %c0_12] : memref<2x4x7x28xf32, #tpu.memory_space<vmem>>, vector<1x1x7x28xf32>
    %7 = vector.shape_cast %6 : vector<1x1x7x28xf32> to vector<7x28xf32>
    %c0_13 = arith.constant 0 : index
    %c3 = arith.constant 3 : index
    %c0_14 = arith.constant 0 : index
    %c0_15 = arith.constant 0 : index
    %8 = vector.load %arg1[%c0_13, %c3, %c0_14, %c0_15] : memref<2x4x7x28xf32, #tpu.memory_space<vmem>>, vector<1x1x7x28xf32>
    %9 = vector.shape_cast %8 : vector<1x1x7x28xf32> to vector<7x28xf32>
    %c0_16 = arith.constant 0 : index
    %c0_17 = arith.constant 0 : index
    %c0_18 = arith.constant 0 : index
    %c0_19 = arith.constant 0 : index
    %10 = vector.load %arg2[%c0_16, %c0_17, %c0_18, %c0_19] : memref<3x2x28x416xf32, #tpu.memory_space<vmem>>, vector<1x1x28x416xf32>
    %11 = vector.shape_cast %10 : vector<1x1x28x416xf32> to vector<28x416xf32>
    %cst = arith.constant dense<0.000000e+00> : vector<7x416xf32>
    %12 = tpu.matmul %3, %11, %cst {dimension_numbers = #tpu.dot_dimension_numbers<[1], [0], [0], [1], [0, 0, 1, 1], [], []>} : vector<7x28xf32>, vector<28x416xf32>, vector<7x416xf32> -> vector<7x416xf32>
    %c1_20 = arith.constant 1 : index
    %c0_21 = arith.constant 0 : index
    %c0_22 = arith.constant 0 : index
    %c0_23 = arith.constant 0 : index
    %13 = vector.load %arg2[%c1_20, %c0_21, %c0_22, %c0_23] : memref<3x2x28x416xf32, #tpu.memory_space<vmem>>, vector<1x1x28x416xf32>
    %14 = vector.shape_cast %13 : vector<1x1x28x416xf32> to vector<28x416xf32>
    %cst_24 = arith.constant dense<0.000000e+00> : vector<7x416xf32>
    %15 = tpu.matmul %5, %14, %cst_24 {dimension_numbers = #tpu.dot_dimension_numbers<[1], [0], [0], [1], [0, 0, 1, 1], [], []>} : vector<7x28xf32>, vector<28x416xf32>, vector<7x416xf32> -> vector<7x416xf32>
    %16 = arith.addf %12, %15 : vector<7x416xf32>
    %c2_25 = arith.constant 2 : index
    %c0_26 = arith.constant 0 : index
    %c0_27 = arith.constant 0 : index
    %c0_28 = arith.constant 0 : index
    %17 = vector.load %arg2[%c2_25, %c0_26, %c0_27, %c0_28] : memref<3x2x28x416xf32, #tpu.memory_space<vmem>>, vector<1x1x28x416xf32>
    %18 = vector.shape_cast %17 : vector<1x1x28x416xf32> to vector<28x416xf32>
    %cst_29 = arith.constant dense<0.000000e+00> : vector<7x416xf32>
    %19 = tpu.matmul %7, %18, %cst_29 {dimension_numbers = #tpu.dot_dimension_numbers<[1], [0], [0], [1], [0, 0, 1, 1], [], []>} : vector<7x28xf32>, vector<28x416xf32>, vector<7x416xf32> -> vector<7x416xf32>
    %20 = arith.addf %16, %19 : vector<7x416xf32>
    %c0_30 = arith.constant 0 : index
    %c0_31 = arith.constant 0 : index
    %c0_32 = arith.constant 0 : index
    %c0_33 = arith.constant 0 : index
    %21 = vector.load %arg2[%c0_30, %c0_31, %c0_32, %c0_33] : memref<3x2x28x416xf32, #tpu.memory_space<vmem>>, vector<1x1x28x416xf32>
    %22 = vector.shape_cast %21 : vector<1x1x28x416xf32> to vector<28x416xf32>
    %cst_34 = arith.constant dense<0.000000e+00> : vector<7x416xf32>
    %23 = tpu.matmul %5, %22, %cst_34 {dimension_numbers = #tpu.dot_dimension_numbers<[1], [0], [0], [1], [0, 0, 1, 1], [], []>} : vector<7x28xf32>, vector<28x416xf32>, vector<7x416xf32> -> vector<7x416xf32>
    %c1_35 = arith.constant 1 : index
    %c0_36 = arith.constant 0 : index
    %c0_37 = arith.constant 0 : index
    %c0_38 = arith.constant 0 : index
    %24 = vector.load %arg2[%c1_35, %c0_36, %c0_37, %c0_38] : memref<3x2x28x416xf32, #tpu.memory_space<vmem>>, vector<1x1x28x416xf32>
    %25 = vector.shape_cast %24 : vector<1x1x28x416xf32> to vector<28x416xf32>
    %cst_39 = arith.constant dense<0.000000e+00> : vector<7x416xf32>
    %26 = tpu.matmul %7, %25, %cst_39 {dimension_numbers = #tpu.dot_dimension_numbers<[1], [0], [0], [1], [0, 0, 1, 1], [], []>} : vector<7x28xf32>, vector<28x416xf32>, vector<7x416xf32> -> vector<7x416xf32>
    %27 = arith.addf %23, %26 : vector<7x416xf32>
    %c2_40 = arith.constant 2 : index
    %c0_41 = arith.constant 0 : index
    %c0_42 = arith.constant 0 : index
    %c0_43 = arith.constant 0 : index
    %28 = vector.load %arg2[%c2_40, %c0_41, %c0_42, %c0_43] : memref<3x2x28x416xf32, #tpu.memory_space<vmem>>, vector<1x1x28x416xf32>
    %29 = vector.shape_cast %28 : vector<1x1x28x416xf32> to vector<28x416xf32>
    %cst_44 = arith.constant dense<0.000000e+00> : vector<7x416xf32>
    %30 = tpu.matmul %9, %29, %cst_44 {dimension_numbers = #tpu.dot_dimension_numbers<[1], [0], [0], [1], [0, 0, 1, 1], [], []>} : vector<7x28xf32>, vector<28x416xf32>, vector<7x416xf32> -> vector<7x416xf32>
    %31 = arith.addf %27, %30 : vector<7x416xf32>
    %32 = arith.maximumf %20, %31 : vector<7x416xf32>
    %c0_45 = arith.constant 0 : index
    %c1_46 = arith.constant 1 : index
    %c0_47 = arith.constant 0 : index
    %c0_48 = arith.constant 0 : index
    %33 = vector.load %arg2[%c0_45, %c1_46, %c0_47, %c0_48] : memref<3x2x28x416xf32, #tpu.memory_space<vmem>>, vector<1x1x28x416xf32>
    %34 = vector.shape_cast %33 : vector<1x1x28x416xf32> to vector<28x416xf32>
    %cst_49 = arith.constant dense<0.000000e+00> : vector<7x416xf32>
    %35 = tpu.matmul %3, %34, %cst_49 {dimension_numbers = #tpu.dot_dimension_numbers<[1], [0], [0], [1], [0, 0, 1, 1], [], []>} : vector<7x28xf32>, vector<28x416xf32>, vector<7x416xf32> -> vector<7x416xf32>
    %c1_50 = arith.constant 1 : index
    %c1_51 = arith.constant 1 : index
    %c0_52 = arith.constant 0 : index
    %c0_53 = arith.constant 0 : index
    %36 = vector.load %arg2[%c1_50, %c1_51, %c0_52, %c0_53] : memref<3x2x28x416xf32, #tpu.memory_space<vmem>>, vector<1x1x28x416xf32>
    %37 = vector.shape_cast %36 : vector<1x1x28x416xf32> to vector<28x416xf32>
    %cst_54 = arith.constant dense<0.000000e+00> : vector<7x416xf32>
    %38 = tpu.matmul %5, %37, %cst_54 {dimension_numbers = #tpu.dot_dimension_numbers<[1], [0], [0], [1], [0, 0, 1, 1], [], []>} : vector<7x28xf32>, vector<28x416xf32>, vector<7x416xf32> -> vector<7x416xf32>
    %39 = arith.addf %35, %38 : vector<7x416xf32>
    %c2_55 = arith.constant 2 : index
    %c1_56 = arith.constant 1 : index
    %c0_57 = arith.constant 0 : index
    %c0_58 = arith.constant 0 : index
    %40 = vector.load %arg2[%c2_55, %c1_56, %c0_57, %c0_58] : memref<3x2x28x416xf32, #tpu.memory_space<vmem>>, vector<1x1x28x416xf32>
    %41 = vector.shape_cast %40 : vector<1x1x28x416xf32> to vector<28x416xf32>
    %cst_59 = arith.constant dense<0.000000e+00> : vector<7x416xf32>
    %42 = tpu.matmul %7, %41, %cst_59 {dimension_numbers = #tpu.dot_dimension_numbers<[1], [0], [0], [1], [0, 0, 1, 1], [], []>} : vector<7x28xf32>, vector<28x416xf32>, vector<7x416xf32> -> vector<7x416xf32>
    %43 = arith.addf %39, %42 : vector<7x416xf32>
    %c0_60 = arith.constant 0 : index
    %c1_61 = arith.constant 1 : index
    %c0_62 = arith.constant 0 : index
    %c0_63 = arith.constant 0 : index
    %44 = vector.load %arg2[%c0_60, %c1_61, %c0_62, %c0_63] : memref<3x2x28x416xf32, #tpu.memory_space<vmem>>, vector<1x1x28x416xf32>
    %45 = vector.shape_cast %44 : vector<1x1x28x416xf32> to vector<28x416xf32>
    %cst_64 = arith.constant dense<0.000000e+00> : vector<7x416xf32>
    %46 = tpu.matmul %5, %45, %cst_64 {dimension_numbers = #tpu.dot_dimension_numbers<[1], [0], [0], [1], [0, 0, 1, 1], [], []>} : vector<7x28xf32>, vector<28x416xf32>, vector<7x416xf32> -> vector<7x416xf32>
    %c1_65 = arith.constant 1 : index
    %c1_66 = arith.constant 1 : index
    %c0_67 = arith.constant 0 : index
    %c0_68 = arith.constant 0 : index
    %47 = vector.load %arg2[%c1_65, %c1_66, %c0_67, %c0_68] : memref<3x2x28x416xf32, #tpu.memory_space<vmem>>, vector<1x1x28x416xf32>
    %48 = vector.shape_cast %47 : vector<1x1x28x416xf32> to vector<28x416xf32>
    %cst_69 = arith.constant dense<0.000000e+00> : vector<7x416xf32>
    %49 = tpu.matmul %7, %48, %cst_69 {dimension_numbers = #tpu.dot_dimension_numbers<[1], [0], [0], [1], [0, 0, 1, 1], [], []>} : vector<7x28xf32>, vector<28x416xf32>, vector<7x416xf32> -> vector<7x416xf32>
    %50 = arith.addf %46, %49 : vector<7x416xf32>
    %c2_70 = arith.constant 2 : index
    %c1_71 = arith.constant 1 : index
    %c0_72 = arith.constant 0 : index
    %c0_73 = arith.constant 0 : index
    %51 = vector.load %arg2[%c2_70, %c1_71, %c0_72, %c0_73] : memref<3x2x28x416xf32, #tpu.memory_space<vmem>>, vector<1x1x28x416xf32>
    %52 = vector.shape_cast %51 : vector<1x1x28x416xf32> to vector<28x416xf32>
    %cst_74 = arith.constant dense<0.000000e+00> : vector<7x416xf32>
    %53 = tpu.matmul %9, %52, %cst_74 {dimension_numbers = #tpu.dot_dimension_numbers<[1], [0], [0], [1], [0, 0, 1, 1], [], []>} : vector<7x28xf32>, vector<28x416xf32>, vector<7x416xf32> -> vector<7x416xf32>
    %54 = arith.addf %50, %53 : vector<7x416xf32>
    %55 = arith.maximumf %43, %54 : vector<7x416xf32>
    %56 = arith.maximumf %32, %55 : vector<7x416xf32>
    %57 = vector.broadcast %0 : vector<1x416xf32> to vector<7x416xf32>
    %58 = arith.addf %56, %57 : vector<7x416xf32>
    %cst_75 = arith.constant 0.000000e+00 : f32
    %59 = vector.broadcast %cst_75 : f32 to vector<7x416xf32>
    %60 = arith.maximumf %58, %59 : vector<7x416xf32>
    %61 = vector.extract_strided_slice %3 {offsets = [1, 0], sizes = [6, 28], strides = [1, 1]} : vector<7x28xf32> to vector<6x28xf32>
    %62 = vector.extract_strided_slice %5 {offsets = [1, 0], sizes = [6, 28], strides = [1, 1]} : vector<7x28xf32> to vector<6x28xf32>
    %63 = vector.extract_strided_slice %7 {offsets = [0, 0], sizes = [6, 28], strides = [1, 1]} : vector<7x28xf32> to vector<6x28xf32>
    %64 = vector.extract_strided_slice %9 {offsets = [0, 0], sizes = [6, 28], strides = [1, 1]} : vector<7x28xf32> to vector<6x28xf32>
    %c0_76 = arith.constant 0 : index
    %c0_77 = arith.constant 0 : index
    %c0_78 = arith.constant 0 : index
    %c0_79 = arith.constant 0 : index
    %65 = vector.load %arg2[%c0_76, %c0_77, %c0_78, %c0_79] : memref<3x2x28x416xf32, #tpu.memory_space<vmem>>, vector<1x1x28x416xf32>
    %66 = vector.shape_cast %65 : vector<1x1x28x416xf32> to vector<28x416xf32>
    %cst_80 = arith.constant dense<0.000000e+00> : vector<6x416xf32>
    %67 = tpu.matmul %63, %66, %cst_80 {dimension_numbers = #tpu.dot_dimension_numbers<[1], [0], [0], [1], [0, 0, 1, 1], [], []>} : vector<6x28xf32>, vector<28x416xf32>, vector<6x416xf32> -> vector<6x416xf32>
    %c1_81 = arith.constant 1 : index
    %c0_82 = arith.constant 0 : index
    %c0_83 = arith.constant 0 : index
    %c0_84 = arith.constant 0 : index
    %68 = vector.load %arg2[%c1_81, %c0_82, %c0_83, %c0_84] : memref<3x2x28x416xf32, #tpu.memory_space<vmem>>, vector<1x1x28x416xf32>
    %69 = vector.shape_cast %68 : vector<1x1x28x416xf32> to vector<28x416xf32>
    %cst_85 = arith.constant dense<0.000000e+00> : vector<6x416xf32>
    %70 = tpu.matmul %64, %69, %cst_85 {dimension_numbers = #tpu.dot_dimension_numbers<[1], [0], [0], [1], [0, 0, 1, 1], [], []>} : vector<6x28xf32>, vector<28x416xf32>, vector<6x416xf32> -> vector<6x416xf32>
    %71 = arith.addf %67, %70 : vector<6x416xf32>
    %c2_86 = arith.constant 2 : index
    %c0_87 = arith.constant 0 : index
    %c0_88 = arith.constant 0 : index
    %c0_89 = arith.constant 0 : index
    %72 = vector.load %arg2[%c2_86, %c0_87, %c0_88, %c0_89] : memref<3x2x28x416xf32, #tpu.memory_space<vmem>>, vector<1x1x28x416xf32>
    %73 = vector.shape_cast %72 : vector<1x1x28x416xf32> to vector<28x416xf32>
    %cst_90 = arith.constant dense<0.000000e+00> : vector<6x416xf32>
    %74 = tpu.matmul %61, %73, %cst_90 {dimension_numbers = #tpu.dot_dimension_numbers<[1], [0], [0], [1], [0, 0, 1, 1], [], []>} : vector<6x28xf32>, vector<28x416xf32>, vector<6x416xf32> -> vector<6x416xf32>
    %75 = arith.addf %71, %74 : vector<6x416xf32>
    %c0_91 = arith.constant 0 : index
    %c0_92 = arith.constant 0 : index
    %c0_93 = arith.constant 0 : index
    %c0_94 = arith.constant 0 : index
    %76 = vector.load %arg2[%c0_91, %c0_92, %c0_93, %c0_94] : memref<3x2x28x416xf32, #tpu.memory_space<vmem>>, vector<1x1x28x416xf32>
    %77 = vector.shape_cast %76 : vector<1x1x28x416xf32> to vector<28x416xf32>
    %cst_95 = arith.constant dense<0.000000e+00> : vector<6x416xf32>
    %78 = tpu.matmul %64, %77, %cst_95 {dimension_numbers = #tpu.dot_dimension_numbers<[1], [0], [0], [1], [0, 0, 1, 1], [], []>} : vector<6x28xf32>, vector<28x416xf32>, vector<6x416xf32> -> vector<6x416xf32>
    %c1_96 = arith.constant 1 : index
    %c0_97 = arith.constant 0 : index
    %c0_98 = arith.constant 0 : index
    %c0_99 = arith.constant 0 : index
    %79 = vector.load %arg2[%c1_96, %c0_97, %c0_98, %c0_99] : memref<3x2x28x416xf32, #tpu.memory_space<vmem>>, vector<1x1x28x416xf32>
    %80 = vector.shape_cast %79 : vector<1x1x28x416xf32> to vector<28x416xf32>
    %cst_100 = arith.constant dense<0.000000e+00> : vector<6x416xf32>
    %81 = tpu.matmul %61, %80, %cst_100 {dimension_numbers = #tpu.dot_dimension_numbers<[1], [0], [0], [1], [0, 0, 1, 1], [], []>} : vector<6x28xf32>, vector<28x416xf32>, vector<6x416xf32> -> vector<6x416xf32>
    %82 = arith.addf %78, %81 : vector<6x416xf32>
    %c2_101 = arith.constant 2 : index
    %c0_102 = arith.constant 0 : index
    %c0_103 = arith.constant 0 : index
    %c0_104 = arith.constant 0 : index
    %83 = vector.load %arg2[%c2_101, %c0_102, %c0_103, %c0_104] : memref<3x2x28x416xf32, #tpu.memory_space<vmem>>, vector<1x1x28x416xf32>
    %84 = vector.shape_cast %83 : vector<1x1x28x416xf32> to vector<28x416xf32>
    %cst_105 = arith.constant dense<0.000000e+00> : vector<6x416xf32>
    %85 = tpu.matmul %62, %84, %cst_105 {dimension_numbers = #tpu.dot_dimension_numbers<[1], [0], [0], [1], [0, 0, 1, 1], [], []>} : vector<6x28xf32>, vector<28x416xf32>, vector<6x416xf32> -> vector<6x416xf32>
    %86 = arith.addf %82, %85 : vector<6x416xf32>
    %87 = arith.maximumf %75, %86 : vector<6x416xf32>
    %c0_106 = arith.constant 0 : index
    %c1_107 = arith.constant 1 : index
    %c0_108 = arith.constant 0 : index
    %c0_109 = arith.constant 0 : index
    %88 = vector.load %arg2[%c0_106, %c1_107, %c0_108, %c0_109] : memref<3x2x28x416xf32, #tpu.memory_space<vmem>>, vector<1x1x28x416xf32>
    %89 = vector.shape_cast %88 : vector<1x1x28x416xf32> to vector<28x416xf32>
    %cst_110 = arith.constant dense<0.000000e+00> : vector<6x416xf32>
    %90 = tpu.matmul %63, %89, %cst_110 {dimension_numbers = #tpu.dot_dimension_numbers<[1], [0], [0], [1], [0, 0, 1, 1], [], []>} : vector<6x28xf32>, vector<28x416xf32>, vector<6x416xf32> -> vector<6x416xf32>
    %c1_111 = arith.constant 1 : index
    %c1_112 = arith.constant 1 : index
    %c0_113 = arith.constant 0 : index
    %c0_114 = arith.constant 0 : index
    %91 = vector.load %arg2[%c1_111, %c1_112, %c0_113, %c0_114] : memref<3x2x28x416xf32, #tpu.memory_space<vmem>>, vector<1x1x28x416xf32>
    %92 = vector.shape_cast %91 : vector<1x1x28x416xf32> to vector<28x416xf32>
    %cst_115 = arith.constant dense<0.000000e+00> : vector<6x416xf32>
    %93 = tpu.matmul %64, %92, %cst_115 {dimension_numbers = #tpu.dot_dimension_numbers<[1], [0], [0], [1], [0, 0, 1, 1], [], []>} : vector<6x28xf32>, vector<28x416xf32>, vector<6x416xf32> -> vector<6x416xf32>
    %94 = arith.addf %90, %93 : vector<6x416xf32>
    %c2_116 = arith.constant 2 : index
    %c1_117 = arith.constant 1 : index
    %c0_118 = arith.constant 0 : index
    %c0_119 = arith.constant 0 : index
    %95 = vector.load %arg2[%c2_116, %c1_117, %c0_118, %c0_119] : memref<3x2x28x416xf32, #tpu.memory_space<vmem>>, vector<1x1x28x416xf32>
    %96 = vector.shape_cast %95 : vector<1x1x28x416xf32> to vector<28x416xf32>
    %cst_120 = arith.constant dense<0.000000e+00> : vector<6x416xf32>
    %97 = tpu.matmul %61, %96, %cst_120 {dimension_numbers = #tpu.dot_dimension_numbers<[1], [0], [0], [1], [0, 0, 1, 1], [], []>} : vector<6x28xf32>, vector<28x416xf32>, vector<6x416xf32> -> vector<6x416xf32>
    %98 = arith.addf %94, %97 : vector<6x416xf32>
    %c0_121 = arith.constant 0 : index
    %c1_122 = arith.constant 1 : index
    %c0_123 = arith.constant 0 : index
    %c0_124 = arith.constant 0 : index
    %99 = vector.load %arg2[%c0_121, %c1_122, %c0_123, %c0_124] : memref<3x2x28x416xf32, #tpu.memory_space<vmem>>, vector<1x1x28x416xf32>
    %100 = vector.shape_cast %99 : vector<1x1x28x416xf32> to vector<28x416xf32>
    %cst_125 = arith.constant dense<0.000000e+00> : vector<6x416xf32>
    %101 = tpu.matmul %64, %100, %cst_125 {dimension_numbers = #tpu.dot_dimension_numbers<[1], [0], [0], [1], [0, 0, 1, 1], [], []>} : vector<6x28xf32>, vector<28x416xf32>, vector<6x416xf32> -> vector<6x416xf32>
    %c1_126 = arith.constant 1 : index
    %c1_127 = arith.constant 1 : index
    %c0_128 = arith.constant 0 : index
    %c0_129 = arith.constant 0 : index
    %102 = vector.load %arg2[%c1_126, %c1_127, %c0_128, %c0_129] : memref<3x2x28x416xf32, #tpu.memory_space<vmem>>, vector<1x1x28x416xf32>
    %103 = vector.shape_cast %102 : vector<1x1x28x416xf32> to vector<28x416xf32>
    %cst_130 = arith.constant dense<0.000000e+00> : vector<6x416xf32>
    %104 = tpu.matmul %61, %103, %cst_130 {dimension_numbers = #tpu.dot_dimension_numbers<[1], [0], [0], [1], [0, 0, 1, 1], [], []>} : vector<6x28xf32>, vector<28x416xf32>, vector<6x416xf32> -> vector<6x416xf32>
    %105 = arith.addf %101, %104 : vector<6x416xf32>
    %c2_131 = arith.constant 2 : index
    %c1_132 = arith.constant 1 : index
    %c0_133 = arith.constant 0 : index
    %c0_134 = arith.constant 0 : index
    %106 = vector.load %arg2[%c2_131, %c1_132, %c0_133, %c0_134] : memref<3x2x28x416xf32, #tpu.memory_space<vmem>>, vector<1x1x28x416xf32>
    %107 = vector.shape_cast %106 : vector<1x1x28x416xf32> to vector<28x416xf32>
    %cst_135 = arith.constant dense<0.000000e+00> : vector<6x416xf32>
    %108 = tpu.matmul %62, %107, %cst_135 {dimension_numbers = #tpu.dot_dimension_numbers<[1], [0], [0], [1], [0, 0, 1, 1], [], []>} : vector<6x28xf32>, vector<28x416xf32>, vector<6x416xf32> -> vector<6x416xf32>
    %109 = arith.addf %105, %108 : vector<6x416xf32>
    %110 = arith.maximumf %98, %109 : vector<6x416xf32>
    %111 = arith.maximumf %87, %110 : vector<6x416xf32>
    %112 = vector.broadcast %0 : vector<1x416xf32> to vector<6x416xf32>
    %113 = arith.addf %111, %112 : vector<6x416xf32>
    %cst_136 = arith.constant 0.000000e+00 : f32
    %114 = vector.broadcast %cst_136 : f32 to vector<6x416xf32>
    %115 = arith.maximumf %113, %114 : vector<6x416xf32>
    %116 = vector.extract_strided_slice %60 {offsets = [0, 0], sizes = [6, 416], strides = [1, 1]} : vector<7x416xf32> to vector<6x416xf32>
    %c0_137 = arith.constant 0 : index
    %c0_138 = arith.constant 0 : index
    %c0_139 = arith.constant 0 : index
    %117 = vector.load %arg4[%c0_137, %c0_138, %c0_139] : memref<3x416x192xf32, #tpu.memory_space<vmem>>, vector<1x416x192xf32>
    %118 = vector.shape_cast %117 : vector<1x416x192xf32> to vector<416x192xf32>
    %cst_140 = arith.constant dense<0.000000e+00> : vector<6x192xf32>
    %119 = tpu.matmul %116, %118, %cst_140 {dimension_numbers = #tpu.dot_dimension_numbers<[1], [0], [0], [1], [0, 0, 1, 1], [], []>} : vector<6x416xf32>, vector<416x192xf32>, vector<6x192xf32> -> vector<6x192xf32>
    %c1_141 = arith.constant 1 : index
    %c0_142 = arith.constant 0 : index
    %c0_143 = arith.constant 0 : index
    %120 = vector.load %arg4[%c1_141, %c0_142, %c0_143] : memref<3x416x192xf32, #tpu.memory_space<vmem>>, vector<1x416x192xf32>
    %121 = vector.shape_cast %120 : vector<1x416x192xf32> to vector<416x192xf32>
    %cst_144 = arith.constant dense<0.000000e+00> : vector<6x192xf32>
    %122 = tpu.matmul %115, %121, %cst_144 {dimension_numbers = #tpu.dot_dimension_numbers<[1], [0], [0], [1], [0, 0, 1, 1], [], []>} : vector<6x416xf32>, vector<416x192xf32>, vector<6x192xf32> -> vector<6x192xf32>
    %123 = arith.addf %119, %122 : vector<6x192xf32>
    %124 = vector.extract_strided_slice %60 {offsets = [1, 0], sizes = [6, 416], strides = [1, 1]} : vector<7x416xf32> to vector<6x416xf32>
    %c2_145 = arith.constant 2 : index
    %c0_146 = arith.constant 0 : index
    %c0_147 = arith.constant 0 : index
    %125 = vector.load %arg4[%c2_145, %c0_146, %c0_147] : memref<3x416x192xf32, #tpu.memory_space<vmem>>, vector<1x416x192xf32>
    %126 = vector.shape_cast %125 : vector<1x416x192xf32> to vector<416x192xf32>
    %cst_148 = arith.constant dense<0.000000e+00> : vector<6x192xf32>
    %127 = tpu.matmul %124, %126, %cst_148 {dimension_numbers = #tpu.dot_dimension_numbers<[1], [0], [0], [1], [0, 0, 1, 1], [], []>} : vector<6x416xf32>, vector<416x192xf32>, vector<6x192xf32> -> vector<6x192xf32>
    %128 = arith.addf %123, %127 : vector<6x192xf32>
    %129 = vector.broadcast %1 : vector<1x192xf32> to vector<6x192xf32>
    %130 = arith.addf %128, %129 : vector<6x192xf32>
    %c0_149 = arith.constant 0 : index
    %c0_150 = arith.constant 0 : index
    %c0_151 = arith.constant 0 : index
    %131 = vector.load %arg6[%c0_149, %c0_150, %c0_151] : memref<2x6x192xf32, #tpu.memory_space<vmem>>, vector<1x6x192xf32>
    %132 = vector.shape_cast %131 : vector<1x6x192xf32> to vector<6x192xf32>
    %133 = vector.shape_cast %130 : vector<6x192xf32> to vector<1x6x192xf32>
    tpu.vector_store %arg6[%c0_149, %c0_150, %c0_151], %133 {strides = array<i32>} : memref<2x6x192xf32, #tpu.memory_space<vmem>>, vector<1x6x192xf32>,
    %c1_152 = arith.constant 1 : index
    %c0_153 = arith.constant 0 : index
    %c0_154 = arith.constant 0 : index
    %c0_155 = arith.constant 0 : index
    %134 = vector.load %arg1[%c1_152, %c0_153, %c0_154, %c0_155] : memref<2x4x7x28xf32, #tpu.memory_space<vmem>>, vector<1x1x7x28xf32>
    %135 = vector.shape_cast %134 : vector<1x1x7x28xf32> to vector<7x28xf32>
    %c1_156 = arith.constant 1 : index
    %c1_157 = arith.constant 1 : index
    %c0_158 = arith.constant 0 : index
    %c0_159 = arith.constant 0 : index
    %136 = vector.load %arg1[%c1_156, %c1_157, %c0_158, %c0_159] : memref<2x4x7x28xf32, #tpu.memory_space<vmem>>, vector<1x1x7x28xf32>
    %137 = vector.shape_cast %136 : vector<1x1x7x28xf32> to vector<7x28xf32>
    %c1_160 = arith.constant 1 : index
    %c2_161 = arith.constant 2 : index
    %c0_162 = arith.constant 0 : index
    %c0_163 = arith.constant 0 : index
    %138 = vector.load %arg1[%c1_160, %c2_161, %c0_162, %c0_163] : memref<2x4x7x28xf32, #tpu.memory_space<vmem>>, vector<1x1x7x28xf32>
    %139 = vector.shape_cast %138 : vector<1x1x7x28xf32> to vector<7x28xf32>
    %c1_164 = arith.constant 1 : index
    %c3_165 = arith.constant 3 : index
    %c0_166 = arith.constant 0 : index
    %c0_167 = arith.constant 0 : index
    %140 = vector.load %arg1[%c1_164, %c3_165, %c0_166, %c0_167] : memref<2x4x7x28xf32, #tpu.memory_space<vmem>>, vector<1x1x7x28xf32>
    %141 = vector.shape_cast %140 : vector<1x1x7x28xf32> to vector<7x28xf32>
    %c0_168 = arith.constant 0 : index
    %c0_169 = arith.constant 0 : index
    %c0_170 = arith.constant 0 : index
    %c0_171 = arith.constant 0 : index
    %142 = vector.load %arg2[%c0_168, %c0_169, %c0_170, %c0_171] : memref<3x2x28x416xf32, #tpu.memory_space<vmem>>, vector<1x1x28x416xf32>
    %143 = vector.shape_cast %142 : vector<1x1x28x416xf32> to vector<28x416xf32>
    %cst_172 = arith.constant dense<0.000000e+00> : vector<7x416xf32>
    %144 = tpu.matmul %135, %143, %cst_172 {dimension_numbers = #tpu.dot_dimension_numbers<[1], [0], [0], [1], [0, 0, 1, 1], [], []>} : vector<7x28xf32>, vector<28x416xf32>, vector<7x416xf32> -> vector<7x416xf32>
    %c1_173 = arith.constant 1 : index
    %c0_174 = arith.constant 0 : index
    %c0_175 = arith.constant 0 : index
    %c0_176 = arith.constant 0 : index
    %145 = vector.load %arg2[%c1_173, %c0_174, %c0_175, %c0_176] : memref<3x2x28x416xf32, #tpu.memory_space<vmem>>, vector<1x1x28x416xf32>
    %146 = vector.shape_cast %145 : vector<1x1x28x416xf32> to vector<28x416xf32>
    %cst_177 = arith.constant dense<0.000000e+00> : vector<7x416xf32>
    %147 = tpu.matmul %137, %146, %cst_177 {dimension_numbers = #tpu.dot_dimension_numbers<[1], [0], [0], [1], [0, 0, 1, 1], [], []>} : vector<7x28xf32>, vector<28x416xf32>, vector<7x416xf32> -> vector<7x416xf32>
    %148 = arith.addf %144, %147 : vector<7x416xf32>
    %c2_178 = arith.constant 2 : index
    %c0_179 = arith.constant 0 : index
    %c0_180 = arith.constant 0 : index
    %c0_181 = arith.constant 0 : index
    %149 = vector.load %arg2[%c2_178, %c0_179, %c0_180, %c0_181] : memref<3x2x28x416xf32, #tpu.memory_space<vmem>>, vector<1x1x28x416xf32>
    %150 = vector.shape_cast %149 : vector<1x1x28x416xf32> to vector<28x416xf32>
    %cst_182 = arith.constant dense<0.000000e+00> : vector<7x416xf32>
    %151 = tpu.matmul %139, %150, %cst_182 {dimension_numbers = #tpu.dot_dimension_numbers<[1], [0], [0], [1], [0, 0, 1, 1], [], []>} : vector<7x28xf32>, vector<28x416xf32>, vector<7x416xf32> -> vector<7x416xf32>
    %152 = arith.addf %148, %151 : vector<7x416xf32>
    %c0_183 = arith.constant 0 : index
    %c0_184 = arith.constant 0 : index
    %c0_185 = arith.constant 0 : index
    %c0_186 = arith.constant 0 : index
    %153 = vector.load %arg2[%c0_183, %c0_184, %c0_185, %c0_186] : memref<3x2x28x416xf32, #tpu.memory_space<vmem>>, vector<1x1x28x416xf32>
    %154 = vector.shape_cast %153 : vector<1x1x28x416xf32> to vector<28x416xf32>
    %cst_187 = arith.constant dense<0.000000e+00> : vector<7x416xf32>
    %155 = tpu.matmul %137, %154, %cst_187 {dimension_numbers = #tpu.dot_dimension_numbers<[1], [0], [0], [1], [0, 0, 1, 1], [], []>} : vector<7x28xf32>, vector<28x416xf32>, vector<7x416xf32> -> vector<7x416xf32>
    %c1_188 = arith.constant 1 : index
    %c0_189 = arith.constant 0 : index
    %c0_190 = arith.constant 0 : index
    %c0_191 = arith.constant 0 : index
    %156 = vector.load %arg2[%c1_188, %c0_189, %c0_190, %c0_191] : memref<3x2x28x416xf32, #tpu.memory_space<vmem>>, vector<1x1x28x416xf32>
    %157 = vector.shape_cast %156 : vector<1x1x28x416xf32> to vector<28x416xf32>
    %cst_192 = arith.constant dense<0.000000e+00> : vector<7x416xf32>
    %158 = tpu.matmul %139, %157, %cst_192 {dimension_numbers = #tpu.dot_dimension_numbers<[1], [0], [0], [1], [0, 0, 1, 1], [], []>} : vector<7x28xf32>, vector<28x416xf32>, vector<7x416xf32> -> vector<7x416xf32>
    %159 = arith.addf %155, %158 : vector<7x416xf32>
    %c2_193 = arith.constant 2 : index
    %c0_194 = arith.constant 0 : index
    %c0_195 = arith.constant 0 : index
    %c0_196 = arith.constant 0 : index
    %160 = vector.load %arg2[%c2_193, %c0_194, %c0_195, %c0_196] : memref<3x2x28x416xf32, #tpu.memory_space<vmem>>, vector<1x1x28x416xf32>
    %161 = vector.shape_cast %160 : vector<1x1x28x416xf32> to vector<28x416xf32>
    %cst_197 = arith.constant dense<0.000000e+00> : vector<7x416xf32>
    %162 = tpu.matmul %141, %161, %cst_197 {dimension_numbers = #tpu.dot_dimension_numbers<[1], [0], [0], [1], [0, 0, 1, 1], [], []>} : vector<7x28xf32>, vector<28x416xf32>, vector<7x416xf32> -> vector<7x416xf32>
    %163 = arith.addf %159, %162 : vector<7x416xf32>
    %164 = arith.maximumf %152, %163 : vector<7x416xf32>
    %c0_198 = arith.constant 0 : index
    %c1_199 = arith.constant 1 : index
    %c0_200 = arith.constant 0 : index
    %c0_201 = arith.constant 0 : index
    %165 = vector.load %arg2[%c0_198, %c1_199, %c0_200, %c0_201] : memref<3x2x28x416xf32, #tpu.memory_space<vmem>>, vector<1x1x28x416xf32>
    %166 = vector.shape_cast %165 : vector<1x1x28x416xf32> to vector<28x416xf32>
    %cst_202 = arith.constant dense<0.000000e+00> : vector<7x416xf32>
    %167 = tpu.matmul %135, %166, %cst_202 {dimension_numbers = #tpu.dot_dimension_numbers<[1], [0], [0], [1], [0, 0, 1, 1], [], []>} : vector<7x28xf32>, vector<28x416xf32>, vector<7x416xf32> -> vector<7x416xf32>
    %c1_203 = arith.constant 1 : index
    %c1_204 = arith.constant 1 : index
    %c0_205 = arith.constant 0 : index
    %c0_206 = arith.constant 0 : index
    %168 = vector.load %arg2[%c1_203, %c1_204, %c0_205, %c0_206] : memref<3x2x28x416xf32, #tpu.memory_space<vmem>>, vector<1x1x28x416xf32>
    %169 = vector.shape_cast %168 : vector<1x1x28x416xf32> to vector<28x416xf32>
    %cst_207 = arith.constant dense<0.000000e+00> : vector<7x416xf32>
    %170 = tpu.matmul %137, %169, %cst_207 {dimension_numbers = #tpu.dot_dimension_numbers<[1], [0], [0], [1], [0, 0, 1, 1], [], []>} : vector<7x28xf32>, vector<28x416xf32>, vector<7x416xf32> -> vector<7x416xf32>
    %171 = arith.addf %167, %170 : vector<7x416xf32>
    %c2_208 = arith.constant 2 : index
    %c1_209 = arith.constant 1 : index
    %c0_210 = arith.constant 0 : index
    %c0_211 = arith.constant 0 : index
    %172 = vector.load %arg2[%c2_208, %c1_209, %c0_210, %c0_211] : memref<3x2x28x416xf32, #tpu.memory_space<vmem>>, vector<1x1x28x416xf32>
    %173 = vector.shape_cast %172 : vector<1x1x28x416xf32> to vector<28x416xf32>
    %cst_212 = arith.constant dense<0.000000e+00> : vector<7x416xf32>
    %174 = tpu.matmul %139, %173, %cst_212 {dimension_numbers = #tpu.dot_dimension_numbers<[1], [0], [0], [1], [0, 0, 1, 1], [], []>} : vector<7x28xf32>, vector<28x416xf32>, vector<7x416xf32> -> vector<7x416xf32>
    %175 = arith.addf %171, %174 : vector<7x416xf32>
    %c0_213 = arith.constant 0 : index
    %c1_214 = arith.constant 1 : index
    %c0_215 = arith.constant 0 : index
    %c0_216 = arith.constant 0 : index
    %176 = vector.load %arg2[%c0_213, %c1_214, %c0_215, %c0_216] : memref<3x2x28x416xf32, #tpu.memory_space<vmem>>, vector<1x1x28x416xf32>
    %177 = vector.shape_cast %176 : vector<1x1x28x416xf32> to vector<28x416xf32>
    %cst_217 = arith.constant dense<0.000000e+00> : vector<7x416xf32>
    %178 = tpu.matmul %137, %177, %cst_217 {dimension_numbers = #tpu.dot_dimension_numbers<[1], [0], [0], [1], [0, 0, 1, 1], [], []>} : vector<7x28xf32>, vector<28x416xf32>, vector<7x416xf32> -> vector<7x416xf32>
    %c1_218 = arith.constant 1 : index
    %c1_219 = arith.constant 1 : index
    %c0_220 = arith.constant 0 : index
    %c0_221 = arith.constant 0 : index
    %179 = vector.load %arg2[%c1_218, %c1_219, %c0_220, %c0_221] : memref<3x2x28x416xf32, #tpu.memory_space<vmem>>, vector<1x1x28x416xf32>
    %180 = vector.shape_cast %179 : vector<1x1x28x416xf32> to vector<28x416xf32>
    %cst_222 = arith.constant dense<0.000000e+00> : vector<7x416xf32>
    %181 = tpu.matmul %139, %180, %cst_222 {dimension_numbers = #tpu.dot_dimension_numbers<[1], [0], [0], [1], [0, 0, 1, 1], [], []>} : vector<7x28xf32>, vector<28x416xf32>, vector<7x416xf32> -> vector<7x416xf32>
    %182 = arith.addf %178, %181 : vector<7x416xf32>
    %c2_223 = arith.constant 2 : index
    %c1_224 = arith.constant 1 : index
    %c0_225 = arith.constant 0 : index
    %c0_226 = arith.constant 0 : index
    %183 = vector.load %arg2[%c2_223, %c1_224, %c0_225, %c0_226] : memref<3x2x28x416xf32, #tpu.memory_space<vmem>>, vector<1x1x28x416xf32>
    %184 = vector.shape_cast %183 : vector<1x1x28x416xf32> to vector<28x416xf32>
    %cst_227 = arith.constant dense<0.000000e+00> : vector<7x416xf32>
    %185 = tpu.matmul %141, %184, %cst_227 {dimension_numbers = #tpu.dot_dimension_numbers<[1], [0], [0], [1], [0, 0, 1, 1], [], []>} : vector<7x28xf32>, vector<28x416xf32>, vector<7x416xf32> -> vector<7x416xf32>
    %186 = arith.addf %182, %185 : vector<7x416xf32>
    %187 = arith.maximumf %175, %186 : vector<7x416xf32>
    %188 = arith.maximumf %164, %187 : vector<7x416xf32>
    %189 = vector.broadcast %0 : vector<1x416xf32> to vector<7x416xf32>
    %190 = arith.addf %188, %189 : vector<7x416xf32>
    %cst_228 = arith.constant 0.000000e+00 : f32
    %191 = vector.broadcast %cst_228 : f32 to vector<7x416xf32>
    %192 = arith.maximumf %190, %191 : vector<7x416xf32>
    %193 = vector.extract_strided_slice %135 {offsets = [1, 0], sizes = [6, 28], strides = [1, 1]} : vector<7x28xf32> to vector<6x28xf32>
    %194 = vector.extract_strided_slice %137 {offsets = [1, 0], sizes = [6, 28], strides = [1, 1]} : vector<7x28xf32> to vector<6x28xf32>
    %195 = vector.extract_strided_slice %139 {offsets = [0, 0], sizes = [6, 28], strides = [1, 1]} : vector<7x28xf32> to vector<6x28xf32>
    %196 = vector.extract_strided_slice %141 {offsets = [0, 0], sizes = [6, 28], strides = [1, 1]} : vector<7x28xf32> to vector<6x28xf32>
    %c0_229 = arith.constant 0 : index
    %c0_230 = arith.constant 0 : index
    %c0_231 = arith.constant 0 : index
    %c0_232 = arith.constant 0 : index
    %197 = vector.load %arg2[%c0_229, %c0_230, %c0_231, %c0_232] : memref<3x2x28x416xf32, #tpu.memory_space<vmem>>, vector<1x1x28x416xf32>
    %198 = vector.shape_cast %197 : vector<1x1x28x416xf32> to vector<28x416xf32>
    %cst_233 = arith.constant dense<0.000000e+00> : vector<6x416xf32>
    %199 = tpu.matmul %195, %198, %cst_233 {dimension_numbers = #tpu.dot_dimension_numbers<[1], [0], [0], [1], [0, 0, 1, 1], [], []>} : vector<6x28xf32>, vector<28x416xf32>, vector<6x416xf32> -> vector<6x416xf32>
    %c1_234 = arith.constant 1 : index
    %c0_235 = arith.constant 0 : index
    %c0_236 = arith.constant 0 : index
    %c0_237 = arith.constant 0 : index
    %200 = vector.load %arg2[%c1_234, %c0_235, %c0_236, %c0_237] : memref<3x2x28x416xf32, #tpu.memory_space<vmem>>, vector<1x1x28x416xf32>
    %201 = vector.shape_cast %200 : vector<1x1x28x416xf32> to vector<28x416xf32>
    %cst_238 = arith.constant dense<0.000000e+00> : vector<6x416xf32>
    %202 = tpu.matmul %196, %201, %cst_238 {dimension_numbers = #tpu.dot_dimension_numbers<[1], [0], [0], [1], [0, 0, 1, 1], [], []>} : vector<6x28xf32>, vector<28x416xf32>, vector<6x416xf32> -> vector<6x416xf32>
    %203 = arith.addf %199, %202 : vector<6x416xf32>
    %c2_239 = arith.constant 2 : index
    %c0_240 = arith.constant 0 : index
    %c0_241 = arith.constant 0 : index
    %c0_242 = arith.constant 0 : index
    %204 = vector.load %arg2[%c2_239, %c0_240, %c0_241, %c0_242] : memref<3x2x28x416xf32, #tpu.memory_space<vmem>>, vector<1x1x28x416xf32>
    %205 = vector.shape_cast %204 : vector<1x1x28x416xf32> to vector<28x416xf32>
    %cst_243 = arith.constant dense<0.000000e+00> : vector<6x416xf32>
    %206 = tpu.matmul %193, %205, %cst_243 {dimension_numbers = #tpu.dot_dimension_numbers<[1], [0], [0], [1], [0, 0, 1, 1], [], []>} : vector<6x28xf32>, vector<28x416xf32>, vector<6x416xf32> -> vector<6x416xf32>
    %207 = arith.addf %203, %206 : vector<6x416xf32>
    %c0_244 = arith.constant 0 : index
    %c0_245 = arith.constant 0 : index
    %c0_246 = arith.constant 0 : index
    %c0_247 = arith.constant 0 : index
    %208 = vector.load %arg2[%c0_244, %c0_245, %c0_246, %c0_247] : memref<3x2x28x416xf32, #tpu.memory_space<vmem>>, vector<1x1x28x416xf32>
    %209 = vector.shape_cast %208 : vector<1x1x28x416xf32> to vector<28x416xf32>
    %cst_248 = arith.constant dense<0.000000e+00> : vector<6x416xf32>
    %210 = tpu.matmul %196, %209, %cst_248 {dimension_numbers = #tpu.dot_dimension_numbers<[1], [0], [0], [1], [0, 0, 1, 1], [], []>} : vector<6x28xf32>, vector<28x416xf32>, vector<6x416xf32> -> vector<6x416xf32>
    %c1_249 = arith.constant 1 : index
    %c0_250 = arith.constant 0 : index
    %c0_251 = arith.constant 0 : index
    %c0_252 = arith.constant 0 : index
    %211 = vector.load %arg2[%c1_249, %c0_250, %c0_251, %c0_252] : memref<3x2x28x416xf32, #tpu.memory_space<vmem>>, vector<1x1x28x416xf32>
    %212 = vector.shape_cast %211 : vector<1x1x28x416xf32> to vector<28x416xf32>
    %cst_253 = arith.constant dense<0.000000e+00> : vector<6x416xf32>
    %213 = tpu.matmul %193, %212, %cst_253 {dimension_numbers = #tpu.dot_dimension_numbers<[1], [0], [0], [1], [0, 0, 1, 1], [], []>} : vector<6x28xf32>, vector<28x416xf32>, vector<6x416xf32> -> vector<6x416xf32>
    %214 = arith.addf %210, %213 : vector<6x416xf32>
    %c2_254 = arith.constant 2 : index
    %c0_255 = arith.constant 0 : index
    %c0_256 = arith.constant 0 : index
    %c0_257 = arith.constant 0 : index
    %215 = vector.load %arg2[%c2_254, %c0_255, %c0_256, %c0_257] : memref<3x2x28x416xf32, #tpu.memory_space<vmem>>, vector<1x1x28x416xf32>
    %216 = vector.shape_cast %215 : vector<1x1x28x416xf32> to vector<28x416xf32>
    %cst_258 = arith.constant dense<0.000000e+00> : vector<6x416xf32>
    %217 = tpu.matmul %194, %216, %cst_258 {dimension_numbers = #tpu.dot_dimension_numbers<[1], [0], [0], [1], [0, 0, 1, 1], [], []>} : vector<6x28xf32>, vector<28x416xf32>, vector<6x416xf32> -> vector<6x416xf32>
    %218 = arith.addf %214, %217 : vector<6x416xf32>
    %219 = arith.maximumf %207, %218 : vector<6x416xf32>
    %c0_259 = arith.constant 0 : index
    %c1_260 = arith.constant 1 : index
    %c0_261 = arith.constant 0 : index
    %c0_262 = arith.constant 0 : index
    %220 = vector.load %arg2[%c0_259, %c1_260, %c0_261, %c0_262] : memref<3x2x28x416xf32, #tpu.memory_space<vmem>>, vector<1x1x28x416xf32>
    %221 = vector.shape_cast %220 : vector<1x1x28x416xf32> to vector<28x416xf32>
    %cst_263 = arith.constant dense<0.000000e+00> : vector<6x416xf32>
    %222 = tpu.matmul %195, %221, %cst_263 {dimension_numbers = #tpu.dot_dimension_numbers<[1], [0], [0], [1], [0, 0, 1, 1], [], []>} : vector<6x28xf32>, vector<28x416xf32>, vector<6x416xf32> -> vector<6x416xf32>
    %c1_264 = arith.constant 1 : index
    %c1_265 = arith.constant 1 : index
    %c0_266 = arith.constant 0 : index
    %c0_267 = arith.constant 0 : index
    %223 = vector.load %arg2[%c1_264, %c1_265, %c0_266, %c0_267] : memref<3x2x28x416xf32, #tpu.memory_space<vmem>>, vector<1x1x28x416xf32>
    %224 = vector.shape_cast %223 : vector<1x1x28x416xf32> to vector<28x416xf32>
    %cst_268 = arith.constant dense<0.000000e+00> : vector<6x416xf32>
    %225 = tpu.matmul %196, %224, %cst_268 {dimension_numbers = #tpu.dot_dimension_numbers<[1], [0], [0], [1], [0, 0, 1, 1], [], []>} : vector<6x28xf32>, vector<28x416xf32>, vector<6x416xf32> -> vector<6x416xf32>
    %226 = arith.addf %222, %225 : vector<6x416xf32>
    %c2_269 = arith.constant 2 : index
    %c1_270 = arith.constant 1 : index
    %c0_271 = arith.constant 0 : index
    %c0_272 = arith.constant 0 : index
    %227 = vector.load %arg2[%c2_269, %c1_270, %c0_271, %c0_272] : memref<3x2x28x416xf32, #tpu.memory_space<vmem>>, vector<1x1x28x416xf32>
    %228 = vector.shape_cast %227 : vector<1x1x28x416xf32> to vector<28x416xf32>
    %cst_273 = arith.constant dense<0.000000e+00> : vector<6x416xf32>
    %229 = tpu.matmul %193, %228, %cst_273 {dimension_numbers = #tpu.dot_dimension_numbers<[1], [0], [0], [1], [0, 0, 1, 1], [], []>} : vector<6x28xf32>, vector<28x416xf32>, vector<6x416xf32> -> vector<6x416xf32>
    %230 = arith.addf %226, %229 : vector<6x416xf32>
    %c0_274 = arith.constant 0 : index
    %c1_275 = arith.constant 1 : index
    %c0_276 = arith.constant 0 : index
    %c0_277 = arith.constant 0 : index
    %231 = vector.load %arg2[%c0_274, %c1_275, %c0_276, %c0_277] : memref<3x2x28x416xf32, #tpu.memory_space<vmem>>, vector<1x1x28x416xf32>
    %232 = vector.shape_cast %231 : vector<1x1x28x416xf32> to vector<28x416xf32>
    %cst_278 = arith.constant dense<0.000000e+00> : vector<6x416xf32>
    %233 = tpu.matmul %196, %232, %cst_278 {dimension_numbers = #tpu.dot_dimension_numbers<[1], [0], [0], [1], [0, 0, 1, 1], [], []>} : vector<6x28xf32>, vector<28x416xf32>, vector<6x416xf32> -> vector<6x416xf32>
    %c1_279 = arith.constant 1 : index
    %c1_280 = arith.constant 1 : index
    %c0_281 = arith.constant 0 : index
    %c0_282 = arith.constant 0 : index
    %234 = vector.load %arg2[%c1_279, %c1_280, %c0_281, %c0_282] : memref<3x2x28x416xf32, #tpu.memory_space<vmem>>, vector<1x1x28x416xf32>
    %235 = vector.shape_cast %234 : vector<1x1x28x416xf32> to vector<28x416xf32>
    %cst_283 = arith.constant dense<0.000000e+00> : vector<6x416xf32>
    %236 = tpu.matmul %193, %235, %cst_283 {dimension_numbers = #tpu.dot_dimension_numbers<[1], [0], [0], [1], [0, 0, 1, 1], [], []>} : vector<6x28xf32>, vector<28x416xf32>, vector<6x416xf32> -> vector<6x416xf32>
    %237 = arith.addf %233, %236 : vector<6x416xf32>
    %c2_284 = arith.constant 2 : index
    %c1_285 = arith.constant 1 : index
    %c0_286 = arith.constant 0 : index
    %c0_287 = arith.constant 0 : index
    %238 = vector.load %arg2[%c2_284, %c1_285, %c0_286, %c0_287] : memref<3x2x28x416xf32, #tpu.memory_space<vmem>>, vector<1x1x28x416xf32>
    %239 = vector.shape_cast %238 : vector<1x1x28x416xf32> to vector<28x416xf32>
    %cst_288 = arith.constant dense<0.000000e+00> : vector<6x416xf32>
    %240 = tpu.matmul %194, %239, %cst_288 {dimension_numbers = #tpu.dot_dimension_numbers<[1], [0], [0], [1], [0, 0, 1, 1], [], []>} : vector<6x28xf32>, vector<28x416xf32>, vector<6x416xf32> -> vector<6x416xf32>
    %241 = arith.addf %237, %240 : vector<6x416xf32>
    %242 = arith.maximumf %230, %241 : vector<6x416xf32>
    %243 = arith.maximumf %219, %242 : vector<6x416xf32>
    %244 = vector.broadcast %0 : vector<1x416xf32> to vector<6x416xf32>
    %245 = arith.addf %243, %244 : vector<6x416xf32>
    %cst_289 = arith.constant 0.000000e+00 : f32
    %246 = vector.broadcast %cst_289 : f32 to vector<6x416xf32>
    %247 = arith.maximumf %245, %246 : vector<6x416xf32>
    %248 = vector.extract_strided_slice %192 {offsets = [0, 0], sizes = [6, 416], strides = [1, 1]} : vector<7x416xf32> to vector<6x416xf32>
    %c0_290 = arith.constant 0 : index
    %c0_291 = arith.constant 0 : index
    %c0_292 = arith.constant 0 : index
    %249 = vector.load %arg4[%c0_290, %c0_291, %c0_292] : memref<3x416x192xf32, #tpu.memory_space<vmem>>, vector<1x416x192xf32>
    %250 = vector.shape_cast %249 : vector<1x416x192xf32> to vector<416x192xf32>
    %cst_293 = arith.constant dense<0.000000e+00> : vector<6x192xf32>
    %251 = tpu.matmul %248, %250, %cst_293 {dimension_numbers = #tpu.dot_dimension_numbers<[1], [0], [0], [1], [0, 0, 1, 1], [], []>} : vector<6x416xf32>, vector<416x192xf32>, vector<6x192xf32> -> vector<6x192xf32>
    %c1_294 = arith.constant 1 : index
    %c0_295 = arith.constant 0 : index
    %c0_296 = arith.constant 0 : index
    %252 = vector.load %arg4[%c1_294, %c0_295, %c0_296] : memref<3x416x192xf32, #tpu.memory_space<vmem>>, vector<1x416x192xf32>
    %253 = vector.shape_cast %252 : vector<1x416x192xf32> to vector<416x192xf32>
    %cst_297 = arith.constant dense<0.000000e+00> : vector<6x192xf32>
    %254 = tpu.matmul %247, %253, %cst_297 {dimension_numbers = #tpu.dot_dimension_numbers<[1], [0], [0], [1], [0, 0, 1, 1], [], []>} : vector<6x416xf32>, vector<416x192xf32>, vector<6x192xf32> -> vector<6x192xf32>
    %255 = arith.addf %251, %254 : vector<6x192xf32>
    %256 = vector.extract_strided_slice %192 {offsets = [1, 0], sizes = [6, 416], strides = [1, 1]} : vector<7x416xf32> to vector<6x416xf32>
    %c2_298 = arith.constant 2 : index
    %c0_299 = arith.constant 0 : index
    %c0_300 = arith.constant 0 : index
    %257 = vector.load %arg4[%c2_298, %c0_299, %c0_300] : memref<3x416x192xf32, #tpu.memory_space<vmem>>, vector<1x416x192xf32>
    %258 = vector.shape_cast %257 : vector<1x416x192xf32> to vector<416x192xf32>
    %cst_301 = arith.constant dense<0.000000e+00> : vector<6x192xf32>
    %259 = tpu.matmul %256, %258, %cst_301 {dimension_numbers = #tpu.dot_dimension_numbers<[1], [0], [0], [1], [0, 0, 1, 1], [], []>} : vector<6x416xf32>, vector<416x192xf32>, vector<6x192xf32> -> vector<6x192xf32>
    %260 = arith.addf %255, %259 : vector<6x192xf32>
    %261 = vector.broadcast %1 : vector<1x192xf32> to vector<6x192xf32>
    %262 = arith.addf %260, %261 : vector<6x192xf32>
    %c1_302 = arith.constant 1 : index
    %c0_303 = arith.constant 0 : index
    %c0_304 = arith.constant 0 : index
    %263 = vector.load %arg6[%c1_302, %c0_303, %c0_304] : memref<2x6x192xf32, #tpu.memory_space<vmem>>, vector<1x6x192xf32>
    %264 = vector.shape_cast %263 : vector<1x6x192xf32> to vector<6x192xf32>
    %265 = vector.shape_cast %262 : vector<6x192xf32> to vector<1x6x192xf32>
    tpu.vector_store %arg6[%c1_302, %c0_303, %c0_304], %265 {strides = array<i32>} : memref<2x6x192xf32, #tpu.memory_space<vmem>>, vector<1x6x192xf32>,
    return
  }
  func.func @transform_0(%arg0: i32) -> (i32, i32, i32, i32) {
    %c0_i32 = arith.constant 0 : i32
    %c0_i32_0 = arith.constant 0 : i32
    %c0_i32_1 = arith.constant 0 : i32
    %c0_i32_2 = arith.constant 0 : i32
    return %arg0, %c0_i32, %c0_i32_0, %c0_i32_1 : i32, i32, i32, i32
  }
  func.func @transform_1(%arg0: i32) -> (i32, i32, i32, i32) {
    %c0_i32 = arith.constant 0 : i32
    %c0_i32_0 = arith.constant 0 : i32
    %c0_i32_1 = arith.constant 0 : i32
    %c0_i32_2 = arith.constant 0 : i32
    %c0_i32_3 = arith.constant 0 : i32
    return %c0_i32, %c0_i32_0, %c0_i32_1, %c0_i32_2 : i32, i32, i32, i32
  }
  func.func @transform_2(%arg0: i32) -> (i32, i32) {
    %c0_i32 = arith.constant 0 : i32
    %c0_i32_0 = arith.constant 0 : i32
    %c0_i32_1 = arith.constant 0 : i32
    return %c0_i32, %c0_i32_0 : i32, i32
  }
  func.func @transform_3(%arg0: i32) -> (i32, i32, i32) {
    %c0_i32 = arith.constant 0 : i32
    %c0_i32_0 = arith.constant 0 : i32
    %c0_i32_1 = arith.constant 0 : i32
    %c0_i32_2 = arith.constant 0 : i32
    return %c0_i32, %c0_i32_0, %c0_i32_1 : i32, i32, i32
  }
  func.func @transform_4(%arg0: i32) -> (i32, i32) {
    %c0_i32 = arith.constant 0 : i32
    %c0_i32_0 = arith.constant 0 : i32
    %c0_i32_1 = arith.constant 0 : i32
    return %c0_i32, %c0_i32_0 : i32, i32
  }
  func.func @transform_5(%arg0: i32) -> (i32, i32, i32) {
    %c0_i32 = arith.constant 0 : i32
    %c0_i32_0 = arith.constant 0 : i32
    %c0_i32_1 = arith.constant 0 : i32
    return %arg0, %c0_i32, %c0_i32_0 : i32, i32, i32
  }
}

module attributes {stable_mosaic.version = 11 : i64} {
  func.func @_stage_b_kernel(%arg0: memref<2x1152xf32, #tpu.memory_space<vmem>>, %arg1: memref<32x1152xf32, #tpu.memory_space<vmem>>, %arg2: memref<1152x32xf32, #tpu.memory_space<vmem>>, %arg3: memref<1152x128xf32, #tpu.memory_space<vmem>>, %arg4: memref<1x128xf32, #tpu.memory_space<vmem>>, %arg5: memref<1x32xf32, #tpu.memory_space<vmem>>, %arg6: memref<1x32xf32, #tpu.memory_space<vmem>>, %arg7: memref<2x128xf32, #tpu.memory_space<vmem>>) attributes {dimension_semantics = [], scalar_prefetch = 0 : i64, scratch_operands = 0 : i64, tpu.core_type = #tpu.core_type<tc>} {
    %c0 = arith.constant 0 : index
    %c0_0 = arith.constant 0 : index
    %0 = vector.load %arg0[%c0, %c0_0] : memref<2x1152xf32, #tpu.memory_space<vmem>>, vector<2x1152xf32>
    %cst = arith.constant dense<0.000000e+00> : vector<1152xf32>
    %1 = vector.multi_reduction <add>, %0, %cst [0] : vector<2x1152xf32> to vector<1152xf32>
    %2 = vector.shape_cast %1 : vector<1152xf32> to vector<1x1152xf32>
    %3 = arith.mulf %0, %0 : vector<2x1152xf32>
    %cst_1 = arith.constant dense<0.000000e+00> : vector<1152xf32>
    %4 = vector.multi_reduction <add>, %3, %cst_1 [0] : vector<2x1152xf32> to vector<1152xf32>
    %5 = vector.shape_cast %4 : vector<1152xf32> to vector<1x1152xf32>
    %c0_2 = arith.constant 0 : index
    %c0_3 = arith.constant 0 : index
    %6 = vector.load %arg2[%c0_2, %c0_3] : memref<1152x32xf32, #tpu.memory_space<vmem>>, vector<1152x32xf32>
    %cst_4 = arith.constant dense<0.000000e+00> : vector<1x32xf32>
    %7 = tpu.matmul %2, %6, %cst_4 {dimension_numbers = #tpu.dot_dimension_numbers<[1], [0], [0], [1], [0, 0, 1, 1], [], []>} : vector<1x1152xf32>, vector<1152x32xf32>, vector<1x32xf32> -> vector<1x32xf32>
    %c0_5 = arith.constant 0 : index
    %c0_6 = arith.constant 0 : index
    %8 = vector.load %arg2[%c0_5, %c0_6] : memref<1152x32xf32, #tpu.memory_space<vmem>>, vector<1152x32xf32>
    %cst_7 = arith.constant dense<0.000000e+00> : vector<1x32xf32>
    %9 = tpu.matmul %5, %8, %cst_7 {dimension_numbers = #tpu.dot_dimension_numbers<[1], [0], [0], [1], [0, 0, 1, 1], [], []>} : vector<1x1152xf32>, vector<1152x32xf32>, vector<1x32xf32> -> vector<1x32xf32>
    %cst_8 = arith.constant 0.013888889 : f32
    %10 = vector.broadcast %cst_8 : f32 to vector<1x32xf32>
    %11 = arith.mulf %7, %10 : vector<1x32xf32>
    %cst_9 = arith.constant 0.013888889 : f32
    %12 = vector.broadcast %cst_9 : f32 to vector<1x32xf32>
    %13 = arith.mulf %9, %12 : vector<1x32xf32>
    %14 = arith.mulf %11, %11 : vector<1x32xf32>
    %15 = arith.subf %13, %14 : vector<1x32xf32>
    %cst_10 = arith.constant 9.99999974E-6 : f32
    %16 = vector.broadcast %cst_10 : f32 to vector<1x32xf32>
    %17 = arith.addf %15, %16 : vector<1x32xf32>
    %18 = math.rsqrt %17 : vector<1x32xf32>
    %c0_11 = arith.constant 0 : index
    %c0_12 = arith.constant 0 : index
    %19 = vector.load %arg5[%c0_11, %c0_12] : memref<1x32xf32, #tpu.memory_space<vmem>>, vector<1x32xf32>
    %20 = arith.mulf %19, %18 : vector<1x32xf32>
    %c0_13 = arith.constant 0 : index
    %c0_14 = arith.constant 0 : index
    %21 = vector.load %arg6[%c0_13, %c0_14] : memref<1x32xf32, #tpu.memory_space<vmem>>, vector<1x32xf32>
    %22 = arith.mulf %11, %20 : vector<1x32xf32>
    %23 = arith.subf %21, %22 : vector<1x32xf32>
    %c0_15 = arith.constant 0 : index
    %c0_16 = arith.constant 0 : index
    %24 = vector.load %arg1[%c0_15, %c0_16] : memref<32x1152xf32, #tpu.memory_space<vmem>>, vector<32x1152xf32>
    %cst_17 = arith.constant dense<0.000000e+00> : vector<1x1152xf32>
    %25 = tpu.matmul %20, %24, %cst_17 {dimension_numbers = #tpu.dot_dimension_numbers<[1], [0], [0], [1], [0, 0, 1, 1], [], []>} : vector<1x32xf32>, vector<32x1152xf32>, vector<1x1152xf32> -> vector<1x1152xf32>
    %c0_18 = arith.constant 0 : index
    %c0_19 = arith.constant 0 : index
    %26 = vector.load %arg1[%c0_18, %c0_19] : memref<32x1152xf32, #tpu.memory_space<vmem>>, vector<32x1152xf32>
    %cst_20 = arith.constant dense<0.000000e+00> : vector<1x1152xf32>
    %27 = tpu.matmul %23, %26, %cst_20 {dimension_numbers = #tpu.dot_dimension_numbers<[1], [0], [0], [1], [0, 0, 1, 1], [], []>} : vector<1x32xf32>, vector<32x1152xf32>, vector<1x1152xf32> -> vector<1x1152xf32>
    %28 = vector.broadcast %25 : vector<1x1152xf32> to vector<2x1152xf32>
    %29 = arith.mulf %0, %28 : vector<2x1152xf32>
    %30 = vector.broadcast %27 : vector<1x1152xf32> to vector<2x1152xf32>
    %31 = arith.addf %29, %30 : vector<2x1152xf32>
    %c0_21 = arith.constant 0 : index
    %c0_22 = arith.constant 0 : index
    %32 = vector.load %arg3[%c0_21, %c0_22] : memref<1152x128xf32, #tpu.memory_space<vmem>>, vector<1152x128xf32>
    %cst_23 = arith.constant dense<0.000000e+00> : vector<2x128xf32>
    %33 = tpu.matmul %31, %32, %cst_23 {dimension_numbers = #tpu.dot_dimension_numbers<[1], [0], [0], [1], [0, 0, 1, 1], [], []>} : vector<2x1152xf32>, vector<1152x128xf32>, vector<2x128xf32> -> vector<2x128xf32>
    %c0_24 = arith.constant 0 : index
    %c0_25 = arith.constant 0 : index
    %34 = vector.load %arg4[%c0_24, %c0_25] : memref<1x128xf32, #tpu.memory_space<vmem>>, vector<1x128xf32>
    %35 = vector.broadcast %34 : vector<1x128xf32> to vector<2x128xf32>
    %36 = arith.addf %33, %35 : vector<2x128xf32>
    %37 = tpu.iota {dimensions = array<i32: 1>} : vector<2x128xi32>
    %c10_i32 = arith.constant 10 : i32
    %38 = vector.broadcast %c10_i32 : i32 to vector<2x128xi32>
    %39 = arith.cmpi slt, %37, %38 : vector<2x128xi32>
    %cst_26 = arith.constant -1.000000e+30 : f32
    %40 = vector.broadcast %cst_26 : f32 to vector<2x128xf32>
    %41 = arith.select %39, %36, %40 : vector<2x128xi1>, vector<2x128xf32>
    %cst_27 = arith.constant dense<0xFF800000> : vector<2xf32>
    %42 = vector.multi_reduction <maximumf>, %41, %cst_27 [1] : vector<2x128xf32> to vector<2xf32>
    %43 = vector.shape_cast %42 : vector<2xf32> to vector<2x1xf32>
    %44 = vector.broadcast %43 : vector<2x1xf32> to vector<2x128xf32>
    %45 = arith.subf %41, %44 : vector<2x128xf32>
    %46 = math.exp %45 : vector<2x128xf32>
    %cst_28 = arith.constant dense<0.000000e+00> : vector<2xf32>
    %47 = vector.multi_reduction <add>, %46, %cst_28 [1] : vector<2x128xf32> to vector<2xf32>
    %48 = vector.shape_cast %47 : vector<2xf32> to vector<2x1xf32>
    %49 = math.log %48 : vector<2x1xf32>
    %50 = vector.broadcast %49 : vector<2x1xf32> to vector<2x128xf32>
    %51 = arith.subf %45, %50 : vector<2x128xf32>
    %c0_29 = arith.constant 0 : index
    %c0_30 = arith.constant 0 : index
    %52 = vector.load %arg7[%c0_29, %c0_30] : memref<2x128xf32, #tpu.memory_space<vmem>>, vector<2x128xf32>
    tpu.vector_store %arg7[%c0_29, %c0_30], %51 {strides = array<i32>} : memref<2x128xf32, #tpu.memory_space<vmem>>, vector<2x128xf32>,
    return
  }
}

</mosaic_0001>

<llo_original>
// kernel: tile.18
$region0: #{tile.18}
  #allocation0 [shape = 's32[1]{0}', space=sflag, size = 0x4, scoped, tag = 'scoped memory for tile.18']
  %s0 = inlined_call_operand.vmem [shape: f32[32], index: 0, kind: input, shape index: {}]
  %s1 = inlined_call_operand.vmem [shape: f32[13,32], index: 1, kind: output, shape index: {}]
  // Predicated region
  $region2: #{tile.18} parent=0 // pred_check
    _
  $region3: #{tile.18} parent=0 // pred_check_branch
    %3 = sbr.rel (0) target = $region5
  $region4: #{tile.18} parent=0 // pred_region
    _
  $region5: #{tile.18} parent=0 // pred_fallthru
    _
  %v4 = vld [vmem:[%s0] ss:$0 sm:$0xff]
  %5 = vst [vmem:[%s1] sm:$0xff] %v4
  %s6 = scalar_lea.vmem %s1, 8
  %7 = vst [vmem:[%s6] sm:$0xff] %v4

// kernel: tile.19
$region0: #{tile.19}
  %s0 = inlined_call_operand.vmem [shape: f32[13,32], index: 0, kind: input, shape index: {}]
  %s1 = inlined_call_operand.vmem [shape: f32[1,416], index: 1, kind: output, shape index: {}]
  $region1: #{tile.19} parent=0
    #allocation0 [shape = 'u8[16384]{0}', space=vmem, size = 0x4000, scoped, tag = 'scoped mem for output reshape']
    %v2 = vld [vmem:[%s0] ss:$4 sm:$0xf]
    %vm3 = vcmask 261120
    %4 = vst.msk [vmem:[#allocation0] ss:$8 sm:$0xf] %vm3, %v2
    %s5 = scalar_lea.vmem %s0, 3
    %v6 = vld [vmem:[%s5] ss:$4 sm:$0x7]
    %7 = vrot.lane.b32.xlu0 %v6, 96
    %v8 = vpop.permute.xlu0 %7
    %vm9 = vcmask 1048320
    %10 = vst.msk [vmem:[#allocation0] ss:$8 sm:$0x7] %vm9, %v8
    %s11 = scalar_lea.vmem %s0, 2
    %v12 = vld [vmem:[%s11] ss:$4 sm:$0x7]
    %13 = vrot.lane.b32.xlu0 %v12, 64
    %v14 = vpop.permute.xlu0 %13
    %vm15 = vcmask 785920
    %16 = vst.msk [vmem:[#allocation0] ss:$8 sm:$0x7] %vm15, %v14
    %s17 = scalar_lea.vmem %s0, 1
    %v18 = vld [vmem:[%s17] ss:$4 sm:$0x7]
    %19 = vrot.lane.b32.xlu0 %v18, 32
    %v20 = vpop.permute.xlu0 %19
    %vm21 = vcmask 523520
    %22 = vst.msk [vmem:[#allocation0] ss:$8 sm:$0x7] %vm21, %v20
    %s24 = sshll.u32 1, 1
    %s25 = ssub.s32 %s24, 1
    %v27 = vld [vmem:[#allocation0] sm:%s25]
    %s28 = sshll.u32 1, 1
    %s29 = ssub.s32 %s28, 1
    %30 = vst [vmem:[%s1] sm:%s29] %v27
    %s31 = scalar_lea.vmem [#allocation0], 8
    %v32 = vld [vmem:[%s31] sm:%s25]
    %s33 = sshll.u32 1, 1
    %s34 = ssub.s32 %s33, 1
    %s35 = scalar_lea.vmem %s1, 1
    %36 = vst [vmem:[%s35] sm:%s34] %v32
    %s37 = scalar_lea.vmem [#allocation0], 16
    %v38 = vld [vmem:[%s37] sm:%s25]
    %s39 = sshll.u32 1, 1
    %s40 = ssub.s32 %s39, 1
    %s41 = smul.addr 1, 2
    %s42 = scalar_lea.vmem %s1, %s41
    %43 = vst [vmem:[%s42] sm:%s40] %v38
    %s44 = scalar_lea.vmem [#allocation0], 24
    %v45 = vld [vmem:[%s44] sm:%s25]
    %s46 = sshll.u32 1, 1
    %s47 = ssub.s32 %s46, 1
    %s48 = smul.addr 1, 3
    %s49 = scalar_lea.vmem %s1, %s48
    %50 = vst [vmem:[%s49] sm:%s47] %v45

// kernel: tile.23
$region0: #{tile.23}
  #allocation0 [shape = 's32[1]{0}', space=sflag, size = 0x4, scoped, tag = 'scoped memory for tile.23']
  %s0 = inlined_call_operand.vmem [shape: f32[32], index: 0, kind: input, shape index: {}]
  %s1 = inlined_call_operand.vmem [shape: f32[6,32], index: 1, kind: output, shape index: {}]
  // Predicated region
  $region2: #{tile.23} parent=0 // pred_check
    _
  $region3: #{tile.23} parent=0 // pred_check_branch
    %3 = sbr.rel (0) target = $region5
  $region4: #{tile.23} parent=0 // pred_region
    _
  $region5: #{tile.23} parent=0 // pred_fallthru
    _
  %v4 = vld [vmem:[%s0] ss:$0 sm:$0xff]
  %5 = vst [vmem:[%s1] sm:$0xff] %v4

// kernel: tile.24
$region0: #{tile.24}
  %s0 = inlined_call_operand.vmem [shape: f32[6,32], index: 0, kind: input, shape index: {}]
  %s1 = inlined_call_operand.vmem [shape: f32[1,192], index: 1, kind: output, shape index: {}]
  $region1: #{tile.24} parent=0
    #allocation0 [shape = 'u8[8192]{0}', space=vmem, size = 0x2000, scoped, tag = 'scoped mem for output reshape']
    %s2 = smov 3
    %v3 = vld [vmem:[%s0] ss:$4 sm:%s2]
    %vm4 = vcmask 261120
    %5 = vst.msk [vmem:[#allocation0] ss:$8 sm:$0x3] %vm4, %v3
    %s6 = scalar_lea.vmem %s0, 3
    %v7 = vld [vmem:[%s6] sm:$0x1]
    %8 = vrot.lane.b32.xlu0 %v7, 96
    %v9 = vpop.permute.xlu0 %8
    %vm10 = vcmask 1048320
    %11 = vst.msk [vmem:[#allocation0] sm:$0x1] %vm10, %v9
    %s12 = scalar_lea.vmem %s0, 2
    %v13 = vld [vmem:[%s12] sm:$0x1]
    %14 = vrot.lane.b32.xlu0 %v13, 64
    %v15 = vpop.permute.xlu0 %14
    %vm16 = vcmask 785920
    %17 = vst.msk [vmem:[#allocation0] sm:$0x1] %vm16, %v15
    %s18 = scalar_lea.vmem %s0, 1
    %s19 = smov 3
    %v20 = vld [vmem:[%s18] ss:$4 sm:%s19]
    %21 = vrot.lane.b32.xlu0 %v20, 32
    %v22 = vpop.permute.xlu0 %21
    %vm23 = vcmask 523520
    %24 = vst.msk [vmem:[#allocation0] ss:$8 sm:$0x3] %vm23, %v22
    %s26 = sshll.u32 1, 1
    %s27 = ssub.s32 %s26, 1
    %v29 = vld [vmem:[#allocation0] sm:%s27]
    %s30 = sshll.u32 1, 1
    %s31 = ssub.s32 %s30, 1
    %32 = vst [vmem:[%s1] sm:%s31] %v29
    %s33 = scalar_lea.vmem [#allocation0], 8
    %v34 = vld [vmem:[%s33] sm:%s27]
    %s35 = sshll.u32 1, 1
    %s36 = ssub.s32 %s35, 1
    %s37 = scalar_lea.vmem %s1, 1
    %38 = vst [vmem:[%s37] sm:%s36] %v34

// kernel: mnist_net_forward.3
$region0: #{mnist_net_forward.3}
  #allocation0 [shape = 'u32[]', space=smem, size = 0x4, offset = 0x4, fixed_abs, tag = 'smem constant byte address 0x4 - core index']
  #allocation1 [shape = 'u32[144,128]{1,0:T(1,128)}', space=vmem, size = 0x12000, scoped, tag = 'internal scratch']
  %s0 = inlined_call_operand.vmem [shape: f32[2,1152], index: 0, kind: input, shape index: {}]
  %s1 = inlined_call_operand.vmem [shape: f32[32,1152], index: 1, kind: input, shape index: {}]
  %s2 = inlined_call_operand.vmem [shape: f32[1152,32], index: 2, kind: input, shape index: {}]
  %s3 = inlined_call_operand.vmem [shape: f32[1152,128], index: 3, kind: input, shape index: {}]
  %s4 = inlined_call_operand.vmem [shape: f32[1,128], index: 4, kind: input, shape index: {}]
  %s5 = inlined_call_operand.vmem [shape: f32[1,32], index: 5, kind: input, shape index: {}]
  %s6 = inlined_call_operand.vmem [shape: f32[1,32], index: 6, kind: input, shape index: {}]
  %s7 = inlined_call_operand.hbm [shape: f32[2,128], index: 7, kind: output, shape index: {}]
  %s8 = sld [smem:[#allocation0]]
  $region38: #{mnist_net_forward.3} parent=0
    _
  %s10 = ssub.s32 1, %s8
  %s11 = scalar_select 0, %s10, %s8
  $region1: #{mnist_net_forward.3} parent=0
    #allocation2 [shape = 'u8[1024]{0}', space=vmem, size = 0x400, scoped, tag = 'output window, operand 0, single buffered']
    #allocation3 [shape = 's32[1]{0}', space=sflag, size = 0x4, scoped, tag = 'scoped memory for mnist_net_forward.3']
    %12 = vsyncpa [#allocation3], 0
    // Predicated region
    $region2: #{mnist_net_forward.3} parent=1 // pred_check
      _
    $region3: #{mnist_net_forward.3} parent=1 // pred_check_branch
      %14 = sbr.rel (0) target = $region5
    $region4: #{mnist_net_forward.3} parent=1 // pred_region
      _
    $region5: #{mnist_net_forward.3} parent=1 // pred_fallthru
      _
    // Predicated region
    $region6: #{mnist_net_forward.3} parent=1 // pred_check
      _
    $region7: #{mnist_net_forward.3} parent=1 // pred_check_branch
      %16 = sbr.rel (0) target = $region9
    $region8: #{mnist_net_forward.3} parent=1 // pred_region
      _
    $region9: #{mnist_net_forward.3} parent=1 // pred_fallthru
      _
    // Predicated region
    $region10: #{mnist_net_forward.3} parent=1 // pred_check
      _
    $region11: #{mnist_net_forward.3} parent=1 // pred_check_branch
      %18 = sbr.rel (0) target = $region13
    $region12: #{mnist_net_forward.3} parent=1 // pred_region
      _
    $region13: #{mnist_net_forward.3} parent=1 // pred_fallthru
      _
    // Predicated region
    $region14: #{mnist_net_forward.3} parent=1 // pred_check
      _
    $region15: #{mnist_net_forward.3} parent=1 // pred_check_branch
      %20 = sbr.rel (0) target = $region17
    $region16: #{mnist_net_forward.3} parent=1 // pred_region
      _
    $region17: #{mnist_net_forward.3} parent=1 // pred_fallthru
      _
    // Predicated region
    $region18: #{mnist_net_forward.3} parent=1 // pred_check
      _
    $region19: #{mnist_net_forward.3} parent=1 // pred_check_branch
      %22 = sbr.rel (0) target = $region21
    $region20: #{mnist_net_forward.3} parent=1 // pred_region
      _
    $region21: #{mnist_net_forward.3} parent=1 // pred_fallthru
      _
    // Predicated region
    $region22: #{mnist_net_forward.3} parent=1 // pred_check
      _
    $region23: #{mnist_net_forward.3} parent=1 // pred_check_branch
      %24 = sbr.rel (0) target = $region25
    $region24: #{mnist_net_forward.3} parent=1 // pred_region
      _
    $region25: #{mnist_net_forward.3} parent=1 // pred_fallthru
      _
    // Predicated region
    $region26: #{mnist_net_forward.3} parent=1 // pred_check
      _
    $region27: #{mnist_net_forward.3} parent=1 // pred_check_branch
      %26 = sbr.rel (0) target = $region29
    $region28: #{mnist_net_forward.3} parent=1 // pred_region
      _
    $region29: #{mnist_net_forward.3} parent=1 // pred_fallthru
      _
    %v27 = vld [vmem:[%s0] sm:$0xff]
    %v28 = vld [vmem:[%s0 + $0x8] sm:$0xff]
    %v29 = vld [vmem:[%s0 + $0x10] sm:$0x3]
    %v33 = vcombine.high %v27, %v27
    %v35 = vunpack.c.l.s4 1983009808
    %v36 = vunpack.c.0.s8 %v35
    %v37 = vlaneseq
    %v38 = vshrl.u32 %v37, 7
    %v39 = vsub.s32 %v36, %v38
    %v40 = vrot.slane %v27, %v39
    %v42 = vunpack.c.l.s4 1983009808
    %v43 = vunpack.c.0.s8 %v42
    %v44 = vlaneseq
    %v45 = vshrl.u32 %v44, 7
    %v46 = vsub.s32 %v43, %v45
    %v47 = vrot.slane %v33, %v46
    %v48 = vcombine.high %v40, %v40
    %v49 = vcombine.high %v47, %v47
    %v50 = vcombine.high %v28, %v28
    %v52 = vunpack.c.l.s4 1983009808
    %v53 = vunpack.c.0.s8 %v52
    %v54 = vlaneseq
    %v55 = vshrl.u32 %v54, 7
    %v56 = vsub.s32 %v53, %v55
    %v57 = vrot.slane %v28, %v56
    %v59 = vunpack.c.l.s4 1983009808
    %v60 = vunpack.c.0.s8 %v59
    %v61 = vlaneseq
    %v62 = vshrl.u32 %v61, 7
    %v63 = vsub.s32 %v60, %v62
    %v64 = vrot.slane %v50, %v63
    %v65 = vcombine.high %v57, %v57
    %v66 = vcombine.high %v64, %v64
    %v68 = vunpack.c.l.s4 1983009808
    %v69 = vunpack.c.0.s8 %v68
    %v70 = vlaneseq
    %v71 = vshrl.u32 %v70, 7
    %v72 = vsub.s32 %v69, %v71
    %v73 = vrot.slane %v29, %v72
    %vm83 = vcmask 1041408
    %v84 = vsel %vm83, %v40, 0.0
    %v85 = vrot.slane %v84, 4
    %v86 = vadd.f32 %v84, %v85
    %v87 = vrot.slane %v86, 2
    %v88 = vadd.f32 %v86, %v87
    %v89 = vrot.slane %v88, 1
    %v90 = vadd.f32 %v88, %v89
    %v91 = vsel %vm83, %v48, 0.0
    %v92 = vrot.slane %v91, 4
    %v93 = vadd.f32 %v91, %v92
    %v94 = vrot.slane %v93, 2
    %v95 = vadd.f32 %v93, %v94
    %v96 = vrot.slane %v95, 1
    %v97 = vadd.f32 %v95, %v96
    %v98 = vsel %vm83, %v47, 0.0
    %v99 = vrot.slane %v98, 4
    %v100 = vadd.f32 %v98, %v99
    %v101 = vrot.slane %v100, 2
    %v102 = vadd.f32 %v100, %v101
    %v103 = vrot.slane %v102, 1
    %v104 = vadd.f32 %v102, %v103
    %v105 = vsel %vm83, %v49, 0.0
    %v106 = vrot.slane %v105, 4
    %v107 = vadd.f32 %v105, %v106
    %v108 = vrot.slane %v107, 2
    %v109 = vadd.f32 %v107, %v108
    %v110 = vrot.slane %v109, 1
    %v111 = vadd.f32 %v109, %v110
    %v112 = vsel %vm83, %v57, 0.0
    %v113 = vrot.slane %v112, 4
    %v114 = vadd.f32 %v112, %v113
    %v115 = vrot.slane %v114, 2
    %v116 = vadd.f32 %v114, %v115
    %v117 = vrot.slane %v116, 1
    %v118 = vadd.f32 %v116, %v117
    %v119 = vsel %vm83, %v65, 0.0
    %v120 = vrot.slane %v119, 4
    %v121 = vadd.f32 %v119, %v120
    %v122 = vrot.slane %v121, 2
    %v123 = vadd.f32 %v121, %v122
    %v124 = vrot.slane %v123, 1
    %v125 = vadd.f32 %v123, %v124
    %v126 = vsel %vm83, %v64, 0.0
    %v127 = vrot.slane %v126, 4
    %v128 = vadd.f32 %v126, %v127
    %v129 = vrot.slane %v128, 2
    %v130 = vadd.f32 %v128, %v129
    %v131 = vrot.slane %v130, 1
    %v132 = vadd.f32 %v130, %v131
    %v133 = vsel %vm83, %v66, 0.0
    %v134 = vrot.slane %v133, 4
    %v135 = vadd.f32 %v133, %v134
    %v136 = vrot.slane %v135, 2
    %v137 = vadd.f32 %v135, %v136
    %v138 = vrot.slane %v137, 1
    %v139 = vadd.f32 %v137, %v138
    %v140 = vsel %vm83, %v73, 0.0
    %v141 = vrot.slane %v140, 4
    %v142 = vadd.f32 %v140, %v141
    %v143 = vrot.slane %v142, 2
    %v144 = vadd.f32 %v142, %v143
    %v145 = vrot.slane %v144, 1
    %v146 = vadd.f32 %v144, %v145
    %v147 = vmul.f32 %v27, %v27
    %v148 = vmul.f32 %v28, %v28
    %v149 = vmul.f32 %v29, %v29
    %v153 = vcombine.high %v147, %v147
    %v155 = vunpack.c.l.s4 1983009808
    %v156 = vunpack.c.0.s8 %v155
    %v157 = vlaneseq
    %v158 = vshrl.u32 %v157, 7
    %v159 = vsub.s32 %v156, %v158
    %v160 = vrot.slane %v147, %v159
    %v162 = vunpack.c.l.s4 1983009808
    %v163 = vunpack.c.0.s8 %v162
    %v164 = vlaneseq
    %v165 = vshrl.u32 %v164, 7
    %v166 = vsub.s32 %v163, %v165
    %v167 = vrot.slane %v153, %v166
    %v168 = vcombine.high %v160, %v160
    %v169 = vcombine.high %v167, %v167
    %v170 = vcombine.high %v148, %v148
    %v172 = vunpack.c.l.s4 1983009808
    %v173 = vunpack.c.0.s8 %v172
    %v174 = vlaneseq
    %v175 = vshrl.u32 %v174, 7
    %v176 = vsub.s32 %v173, %v175
    %v177 = vrot.slane %v148, %v176
    %v179 = vunpack.c.l.s4 1983009808
    %v180 = vunpack.c.0.s8 %v179
    %v181 = vlaneseq
    %v182 = vshrl.u32 %v181, 7
    %v183 = vsub.s32 %v180, %v182
    %v184 = vrot.slane %v170, %v183
    %v185 = vcombine.high %v177, %v177
    %v186 = vcombine.high %v184, %v184
    %v188 = vunpack.c.l.s4 1983009808
    %v189 = vunpack.c.0.s8 %v188
    %v190 = vlaneseq
    %v191 = vshrl.u32 %v190, 7
    %v192 = vsub.s32 %v189, %v191
    %v193 = vrot.slane %v149, %v192
    %v203 = vsel %vm83, %v160, 0.0
    %v204 = vrot.slane %v203, 4
    %v205 = vadd.f32 %v203, %v204
    %v206 = vrot.slane %v205, 2
    %v207 = vadd.f32 %v205, %v206
    %v208 = vrot.slane %v207, 1
    %v209 = vadd.f32 %v207, %v208
    %v210 = vsel %vm83, %v168, 0.0
    %v211 = vrot.slane %v210, 4
    %v212 = vadd.f32 %v210, %v211
    %v213 = vrot.slane %v212, 2
    %v214 = vadd.f32 %v212, %v213
    %v215 = vrot.slane %v214, 1
    %v216 = vadd.f32 %v214, %v215
    %v217 = vsel %vm83, %v167, 0.0
    %v218 = vrot.slane %v217, 4
    %v219 = vadd.f32 %v217, %v218
    %v220 = vrot.slane %v219, 2
    %v221 = vadd.f32 %v219, %v220
    %v222 = vrot.slane %v221, 1
    %v223 = vadd.f32 %v221, %v222
    %v224 = vsel %vm83, %v169, 0.0
    %v225 = vrot.slane %v224, 4
    %v226 = vadd.f32 %v224, %v225
    %v227 = vrot.slane %v226, 2
    %v228 = vadd.f32 %v226, %v227
    %v229 = vrot.slane %v228, 1
    %v230 = vadd.f32 %v228, %v229
    %v231 = vsel %vm83, %v177, 0.0
    %v232 = vrot.slane %v231, 4
    %v233 = vadd.f32 %v231, %v232
    %v234 = vrot.slane %v233, 2
    %v235 = vadd.f32 %v233, %v234
    %v236 = vrot.slane %v235, 1
    %v237 = vadd.f32 %v235, %v236
    %v238 = vsel %vm83, %v185, 0.0
    %v239 = vrot.slane %v238, 4
    %v240 = vadd.f32 %v238, %v239
    %v241 = vrot.slane %v240, 2
    %v242 = vadd.f32 %v240, %v241
    %v243 = vrot.slane %v242, 1
    %v244 = vadd.f32 %v242, %v243
    %v245 = vsel %vm83, %v184, 0.0
    %v246 = vrot.slane %v245, 4
    %v247 = vadd.f32 %v245, %v246
    %v248 = vrot.slane %v247, 2
    %v249 = vadd.f32 %v247, %v248
    %v250 = vrot.slane %v249, 1
    %v251 = vadd.f32 %v249, %v250
    %v252 = vsel %vm83, %v186, 0.0
    %v253 = vrot.slane %v252, 4
    %v254 = vadd.f32 %v252, %v253
    %v255 = vrot.slane %v254, 2
    %v256 = vadd.f32 %v254, %v255
    %v257 = vrot.slane %v256, 1
    %v258 = vadd.f32 %v256, %v257
    %v259 = vsel %vm83, %v193, 0.0
    %v260 = vrot.slane %v259, 4
    %v261 = vadd.f32 %v259, %v260
    %v262 = vrot.slane %v261, 2
    %v263 = vadd.f32 %v261, %v262
    %v264 = vrot.slane %v263, 1
    %v265 = vadd.f32 %v263, %v264
    %v266 = vld [vmem:[%s2] sm:$0xff]
    %v267 = vld [vmem:[%s2 + $0x8] sm:$0xff]
    %v268 = vld [vmem:[%s2 + $0x10] sm:$0xff]
    %v269 = vld [vmem:[%s2 + $0x18] sm:$0xff]
    %v270 = vld [vmem:[%s2 + $0x20] sm:$0xff]
    %v271 = vld [vmem:[%s2 + $0x28] sm:$0xff]
    %v272 = vld [vmem:[%s2 + $0x30] sm:$0xff]
    %v273 = vld [vmem:[%s2 + $0x38] sm:$0xff]
    %v274 = vld [vmem:[%s2 + $0x40] sm:$0xff]
    %v275 = vld [vmem:[%s2 + $0x48] sm:$0xff]
    %v276 = vld [vmem:[%s2 + $0x50] sm:$0xff]
    %v277 = vld [vmem:[%s2 + $0x58] sm:$0xff]
    %v278 = vld [vmem:[%s2 + $0x60] sm:$0xff]
    %v279 = vld [vmem:[%s2 + $0x68] sm:$0xff]
    %v280 = vld [vmem:[%s2 + $0x70] sm:$0xff]
    %v281 = vld [vmem:[%s2 + $0x78] sm:$0xff]
    %v282 = vld [vmem:[%s2 + $0x80] sm:$0xff]
    %v283 = vld [vmem:[%s2 + $0x88] sm:$0xff]
    %v284 = vld [vmem:[%s2 + $0x90] sm:$0xff]
    %v285 = vld [vmem:[%s2 + $0x98] sm:$0xff]
    %v286 = vld [vmem:[%s2 + $0xa0] sm:$0xff]
    %v287 = vld [vmem:[%s2 + $0xa8] sm:$0xff]
    %v288 = vld [vmem:[%s2 + $0xb0] sm:$0xff]
    %v289 = vld [vmem:[%s2 + $0xb8] sm:$0xff]
    %v290 = vld [vmem:[%s2 + $0xc0] sm:$0xff]
    %v291 = vld [vmem:[%s2 + $0xc8] sm:$0xff]
    %v292 = vld [vmem:[%s2 + $0xd0] sm:$0xff]
    %v293 = vld [vmem:[%s2 + $0xd8] sm:$0xff]
    %v294 = vld [vmem:[%s2 + $0xe0] sm:$0xff]
    %v295 = vld [vmem:[%s2 + $0xe8] sm:$0xff]
    %v296 = vld [vmem:[%s2 + $0xf0] sm:$0xff]
    %v297 = vld [vmem:[%s2 + $0xf8] sm:$0xff]
    %v298 = vld [vmem:[%s2 + $0x100] sm:$0xff]
    %v299 = vld [vmem:[%s2 + $0x108] sm:$0xff]
    %v300 = vld [vmem:[%s2 + $0x110] sm:$0xff]
    %v301 = vld [vmem:[%s2 + $0x118] sm:$0xff]
    %v302 = vld [vmem:[%s2 + $0x120] sm:$0xff]
    %v303 = vld [vmem:[%s2 + $0x128] sm:$0xff]
    %v304 = vld [vmem:[%s2 + $0x130] sm:$0xff]
    %v305 = vld [vmem:[%s2 + $0x138] sm:$0xff]
    %v306 = vld [vmem:[%s2 + $0x140] sm:$0xff]
    %v307 = vld [vmem:[%s2 + $0x148] sm:$0xff]
    %v308 = vld [vmem:[%s2 + $0x150] sm:$0xff]
    %v309 = vld [vmem:[%s2 + $0x158] sm:$0xff]
    %v310 = vld [vmem:[%s2 + $0x160] sm:$0xff]
    %v311 = vld [vmem:[%s2 + $0x168] sm:$0xff]
    %v312 = vld [vmem:[%s2 + $0x170] sm:$0xff]
    %v313 = vld [vmem:[%s2 + $0x178] sm:$0xff]
    %v314 = vld [vmem:[%s2 + $0x180] sm:$0xff]
    %v315 = vld [vmem:[%s2 + $0x188] sm:$0xff]
    %v316 = vld [vmem:[%s2 + $0x190] sm:$0xff]
    %v317 = vld [vmem:[%s2 + $0x198] sm:$0xff]
    %v318 = vld [vmem:[%s2 + $0x1a0] sm:$0xff]
    %v319 = vld [vmem:[%s2 + $0x1a8] sm:$0xff]
    %v320 = vld [vmem:[%s2 + $0x1b0] sm:$0xff]
    %v321 = vld [vmem:[%s2 + $0x1b8] sm:$0xff]
    %v322 = vld [vmem:[%s2 + $0x1c0] sm:$0xff]
    %v323 = vld [vmem:[%s2 + $0x1c8] sm:$0xff]
    %v324 = vld [vmem:[%s2 + $0x1d0] sm:$0xff]
    %v325 = vld [vmem:[%s2 + $0x1d8] sm:$0xff]
    %v326 = vld [vmem:[%s2 + $0x1e0] sm:$0xff]
    %v327 = vld [vmem:[%s2 + $0x1e8] sm:$0xff]
    %v328 = vld [vmem:[%s2 + $0x1f0] sm:$0xff]
    %v329 = vld [vmem:[%s2 + $0x1f8] sm:$0xff]
    %v330 = vld [vmem:[%s2 + $0x200] sm:$0xff]
    %v331 = vld [vmem:[%s2 + $0x208] sm:$0xff]
    %v332 = vld [vmem:[%s2 + $0x210] sm:$0xff]
    %v333 = vld [vmem:[%s2 + $0x218] sm:$0xff]
    %v334 = vld [vmem:[%s2 + $0x220] sm:$0xff]
    %v335 = vld [vmem:[%s2 + $0x228] sm:$0xff]
    %v336 = vld [vmem:[%s2 + $0x230] sm:$0xff]
    %v337 = vld [vmem:[%s2 + $0x238] sm:$0xff]
    %v338 = vld [vmem:[%s2 + $0x240] sm:$0xff]
    %v339 = vld [vmem:[%s2 + $0x248] sm:$0xff]
    %v340 = vld [vmem:[%s2 + $0x250] sm:$0xff]
    %v341 = vld [vmem:[%s2 + $0x258] sm:$0xff]
    %v342 = vld [vmem:[%s2 + $0x260] sm:$0xff]
    %v343 = vld [vmem:[%s2 + $0x268] sm:$0xff]
    %v344 = vld [vmem:[%s2 + $0x270] sm:$0xff]
    %v345 = vld [vmem:[%s2 + $0x278] sm:$0xff]
    %v346 = vld [vmem:[%s2 + $0x280] sm:$0xff]
    %v347 = vld [vmem:[%s2 + $0x288] sm:$0xff]
    %v348 = vld [vmem:[%s2 + $0x290] sm:$0xff]
    %v349 = vld [vmem:[%s2 + $0x298] sm:$0xff]
    %v350 = vld [vmem:[%s2 + $0x2a0] sm:$0xff]
    %v351 = vld [vmem:[%s2 + $0x2a8] sm:$0xff]
    %v352 = vld [vmem:[%s2 + $0x2b0] sm:$0xff]
    %v353 = vld [vmem:[%s2 + $0x2b8] sm:$0xff]
    %v354 = vld [vmem:[%s2 + $0x2c0] sm:$0xff]
    %v355 = vld [vmem:[%s2 + $0x2c8] sm:$0xff]
    %v356 = vld [vmem:[%s2 + $0x2d0] sm:$0xff]
    %v357 = vld [vmem:[%s2 + $0x2d8] sm:$0xff]
    %v358 = vld [vmem:[%s2 + $0x2e0] sm:$0xff]
    %v359 = vld [vmem:[%s2 + $0x2e8] sm:$0xff]
    %v360 = vld [vmem:[%s2 + $0x2f0] sm:$0xff]
    %v361 = vld [vmem:[%s2 + $0x2f8] sm:$0xff]
    %v362 = vld [vmem:[%s2 + $0x300] sm:$0xff]
    %v363 = vld [vmem:[%s2 + $0x308] sm:$0xff]
    %v364 = vld [vmem:[%s2 + $0x310] sm:$0xff]
    %v365 = vld [vmem:[%s2 + $0x318] sm:$0xff]
    %v366 = vld [vmem:[%s2 + $0x320] sm:$0xff]
    %v367 = vld [vmem:[%s2 + $0x328] sm:$0xff]
    %v368 = vld [vmem:[%s2 + $0x330] sm:$0xff]
    %v369 = vld [vmem:[%s2 + $0x338] sm:$0xff]
    %v370 = vld [vmem:[%s2 + $0x340] sm:$0xff]
    %v371 = vld [vmem:[%s2 + $0x348] sm:$0xff]
    %v372 = vld [vmem:[%s2 + $0x350] sm:$0xff]
    %v373 = vld [vmem:[%s2 + $0x358] sm:$0xff]
    %v374 = vld [vmem:[%s2 + $0x360] sm:$0xff]
    %v375 = vld [vmem:[%s2 + $0x368] sm:$0xff]
    %v376 = vld [vmem:[%s2 + $0x370] sm:$0xff]
    %v377 = vld [vmem:[%s2 + $0x378] sm:$0xff]
    %v378 = vld [vmem:[%s2 + $0x380] sm:$0xff]
    %v379 = vld [vmem:[%s2 + $0x388] sm:$0xff]
    %v380 = vld [vmem:[%s2 + $0x390] sm:$0xff]
    %v381 = vld [vmem:[%s2 + $0x398] sm:$0xff]
    %v382 = vld [vmem:[%s2 + $0x3a0] sm:$0xff]
    %v383 = vld [vmem:[%s2 + $0x3a8] sm:$0xff]
    %v384 = vld [vmem:[%s2 + $0x3b0] sm:$0xff]
    %v385 = vld [vmem:[%s2 + $0x3b8] sm:$0xff]
    %v386 = vld [vmem:[%s2 + $0x3c0] sm:$0xff]
    %v387 = vld [vmem:[%s2 + $0x3c8] sm:$0xff]
    %v388 = vld [vmem:[%s2 + $0x3d0] sm:$0xff]
    %v389 = vld [vmem:[%s2 + $0x3d8] sm:$0xff]
    %v390 = vld [vmem:[%s2 + $0x3e0] sm:$0xff]
    %v391 = vld [vmem:[%s2 + $0x3e8] sm:$0xff]
    %v392 = vld [vmem:[%s2 + $0x3f0] sm:$0xff]
    %v393 = vld [vmem:[%s2 + $0x3f8] sm:$0xff]
    %v394 = vld [vmem:[%s2 + $0x400] sm:$0xff]
    %v395 = vld [vmem:[%s2 + $0x408] sm:$0xff]
    %v396 = vld [vmem:[%s2 + $0x410] sm:$0xff]
    %v397 = vld [vmem:[%s2 + $0x418] sm:$0xff]
    %v398 = vld [vmem:[%s2 + $0x420] sm:$0xff]
    %v399 = vld [vmem:[%s2 + $0x428] sm:$0xff]
    %v400 = vld [vmem:[%s2 + $0x430] sm:$0xff]
    %v401 = vld [vmem:[%s2 + $0x438] sm:$0xff]
    %v402 = vld [vmem:[%s2 + $0x440] sm:$0xff]
    %v403 = vld [vmem:[%s2 + $0x448] sm:$0xff]
    %v404 = vld [vmem:[%s2 + $0x450] sm:$0xff]
    %v405 = vld [vmem:[%s2 + $0x458] sm:$0xff]
    %v406 = vld [vmem:[%s2 + $0x460] sm:$0xff]
    %v407 = vld [vmem:[%s2 + $0x468] sm:$0xff]
    %v408 = vld [vmem:[%s2 + $0x470] sm:$0xff]
    %v409 = vld [vmem:[%s2 + $0x478] sm:$0xff]
    %410 = vmatprep.subr.mxu0 0.0
    %411 = vmatpush1.msra.mxu0 %v281
    %412 = vmatprep.subr.mxu0 0.0
    %413 = vmatpush1.msra.mxu0 %v280
    %414 = vmatprep.subr.mxu0 0.0
    %415 = vmatpush1.msra.mxu0 %v279
    %416 = vmatprep.subr.mxu0 0.0
    %417 = vmatpush1.msra.mxu0 %v278
    %418 = vmatprep.subr.mxu0 0.0
    %419 = vmatpush1.msra.mxu0 %v277
    %420 = vmatprep.subr.mxu0 0.0
    %421 = vmatpush1.msra.mxu0 %v276
    %422 = vmatprep.subr.mxu0 0.0
    %423 = vmatpush1.msra.mxu0 %v275
    %424 = vmatprep.subr.mxu0 0.0
    %425 = vmatpush1.msra.mxu0 %v274
    %426 = vmatprep.subr.mxu0 0.0
    %427 = vmatpush1.msra.mxu0 %v273
    %428 = vmatprep.subr.mxu0 0.0
    %429 = vmatpush1.msra.mxu0 %v272
    %430 = vmatprep.subr.mxu0 0.0
    %431 = vmatpush1.msra.mxu0 %v271
    %432 = vmatprep.subr.mxu0 0.0
    %433 = vmatpush1.msra.mxu0 %v270
    %434 = vmatprep.subr.mxu0 0.0
    %435 = vmatpush1.msra.mxu0 %v269
    %436 = vmatprep.subr.mxu0 0.0
    %437 = vmatpush1.msra.mxu0 %v268
    %438 = vmatprep.subr.mxu0 0.0
    %439 = vmatpush1.msra.mxu0 %v267
    %440 = vmatprep.subr.mxu0 0.0
    %441 = vmatpush1.msra.mxu0 %v266
    %442 = vmatprep.subr.mxu0 0.0
    %443 = vmatpush2.msra.mxu0 %v297
    %444 = vmatprep.subr.mxu0 0.0
    %445 = vmatpush2.msra.mxu0 %v296
    %446 = vmatprep.subr.mxu0 0.0
    %447 = vmatpush2.msra.mxu0 %v295
    %448 = vmatprep.subr.mxu0 0.0
    %449 = vmatpush2.msra.mxu0 %v294
    %450 = vmatprep.subr.mxu0 0.0
    %451 = vmatpush2.msra.mxu0 %v293
    %452 = vmatprep.subr.mxu0 0.0
    %453 = vmatpush2.msra.mxu0 %v292
    %454 = vmatprep.subr.mxu0 0.0
    %455 = vmatpush2.msra.mxu0 %v291
    %456 = vmatprep.subr.mxu0 0.0
    %457 = vmatpush2.msra.mxu0 %v290
    %458 = vmatprep.subr.mxu0 0.0
    %459 = vmatpush2.msra.mxu0 %v289
    %460 = vmatprep.subr.mxu0 0.0
    %461 = vmatpush2.msra.mxu0 %v288
    %462 = vmatprep.subr.mxu0 0.0
    %463 = vmatpush2.msra.mxu0 %v287
    %464 = vmatprep.subr.mxu0 0.0
    %465 = vmatpush2.msra.mxu0 %v286
    %466 = vmatprep.subr.mxu0 0.0
    %467 = vmatpush2.msra.mxu0 %v285
    %468 = vmatprep.subr.mxu0 0.0
    %469 = vmatpush2.msra.mxu0 %v284
    %470 = vmatprep.subr.mxu0 0.0
    %471 = vmatpush2.msra.mxu0 %v283
    %472 = vmatprep.subr.mxu0 0.0
    %473 = vmatpush2.msra.mxu0 %v282
    %474 = vmatprep.mubr.f32.mxu0 %v97
    %475 = vmatmul.mubr.f32.gmra.mxu0 %v90
    %v476 = vpop.f32.mrf.mxu0
    %v477 = vadd.f32 0.0, %v476
    %v478 = vpop.f32.mrf.mxu0
    %479 = vdwg.mxu0
    %480 = vmatprep.subr.mxu0 0.0
    %481 = vmatpush1.msra.mxu0 %v313
    %482 = vmatprep.subr.mxu0 0.0
    %483 = vmatpush1.msra.mxu0 %v312
    %484 = vmatprep.subr.mxu0 0.0
    %485 = vmatpush1.msra.mxu0 %v311
    %486 = vmatprep.subr.mxu0 0.0
    %487 = vmatpush1.msra.mxu0 %v310
    %488 = vmatprep.subr.mxu0 0.0
    %489 = vmatpush1.msra.mxu0 %v309
    %490 = vmatprep.subr.mxu0 0.0
    %491 = vmatpush1.msra.mxu0 %v308
    %492 = vmatprep.subr.mxu0 0.0
    %493 = vmatpush1.msra.mxu0 %v307
    %494 = vmatprep.subr.mxu0 0.0
    %495 = vmatpush1.msra.mxu0 %v306
    %496 = vmatprep.subr.mxu0 0.0
    %497 = vmatpush1.msra.mxu0 %v305
    %498 = vmatprep.subr.mxu0 0.0
    %499 = vmatpush1.msra.mxu0 %v304
    %500 = vmatprep.subr.mxu0 0.0
    %501 = vmatpush1.msra.mxu0 %v303
    %502 = vmatprep.subr.mxu0 0.0
    %503 = vmatpush1.msra.mxu0 %v302
    %504 = vmatprep.subr.mxu0 0.0
    %505 = vmatpush1.msra.mxu0 %v301
    %506 = vmatprep.subr.mxu0 0.0
    %507 = vmatpush1.msra.mxu0 %v300
    %508 = vmatprep.subr.mxu0 0.0
    %509 = vmatpush1.msra.mxu0 %v299
    %510 = vmatprep.subr.mxu0 0.0
    %511 = vmatpush1.msra.mxu0 %v298
    %512 = vmatprep.subr.mxu0 0.0
    %513 = vmatpush2.msra.mxu0 %v329
    %514 = vmatprep.subr.mxu0 0.0
    %515 = vmatpush2.msra.mxu0 %v328
    %516 = vmatprep.subr.mxu0 0.0
    %517 = vmatpush2.msra.mxu0 %v327
    %518 = vmatprep.subr.mxu0 0.0
    %519 = vmatpush2.msra.mxu0 %v326
    %520 = vmatprep.subr.mxu0 0.0
    %521 = vmatpush2.msra.mxu0 %v325
    %522 = vmatprep.subr.mxu0 0.0
    %523 = vmatpush2.msra.mxu0 %v324
    %524 = vmatprep.subr.mxu0 0.0
    %525 = vmatpush2.msra.mxu0 %v323
    %526 = vmatprep.subr.mxu0 0.0
    %527 = vmatpush2.msra.mxu0 %v322
    %528 = vmatprep.subr.mxu0 0.0
    %529 = vmatpush2.msra.mxu0 %v321
    %530 = vmatprep.subr.mxu0 0.0
    %531 = vmatpush2.msra.mxu0 %v320
    %532 = vmatprep.subr.mxu0 0.0
    %533 = vmatpush2.msra.mxu0 %v319
    %534 = vmatprep.subr.mxu0 0.0
    %535 = vmatpush2.msra.mxu0 %v318
    %536 = vmatprep.subr.mxu0 0.0
    %537 = vmatpush2.msra.mxu0 %v317
    %538 = vmatprep.subr.mxu0 0.0
    %539 = vmatpush2.msra.mxu0 %v316
    %540 = vmatprep.subr.mxu0 0.0
    %541 = vmatpush2.msra.mxu0 %v315
    %542 = vmatprep.subr.mxu0 0.0
    %543 = vmatpush2.msra.mxu0 %v314
    %544 = vmatprep.mubr.f32.mxu0 %v111
    %545 = vmatmul.mubr.f32.gmra.mxu0 %v104
    %v546 = vpop.f32.mrf.mxu0
    %v547 = vadd.f32 %v477, %v546
    %v548 = vpop.f32.mrf.mxu0
    %549 = vdwg.mxu0
    %550 = vmatprep.subr.mxu0 0.0
    %551 = vmatpush1.msra.mxu0 %v345
    %552 = vmatprep.subr.mxu0 0.0
    %553 = vmatpush1.msra.mxu0 %v344
    %554 = vmatprep.subr.mxu0 0.0
    %555 = vmatpush1.msra.mxu0 %v343
    %556 = vmatprep.subr.mxu0 0.0
    %557 = vmatpush1.msra.mxu0 %v342
    %558 = vmatprep.subr.mxu0 0.0
    %559 = vmatpush1.msra.mxu0 %v341
    %560 = vmatprep.subr.mxu0 0.0
    %561 = vmatpush1.msra.mxu0 %v340
    %562 = vmatprep.subr.mxu0 0.0
    %563 = vmatpush1.msra.mxu0 %v339
    %564 = vmatprep.subr.mxu0 0.0
    %565 = vmatpush1.msra.mxu0 %v338
    %566 = vmatprep.subr.mxu0 0.0
    %567 = vmatpush1.msra.mxu0 %v337
    %568 = vmatprep.subr.mxu0 0.0
    %569 = vmatpush1.msra.mxu0 %v336
    %570 = vmatprep.subr.mxu0 0.0
    %571 = vmatpush1.msra.mxu0 %v335
    %572 = vmatprep.subr.mxu0 0.0
    %573 = vmatpush1.msra.mxu0 %v334
    %574 = vmatprep.subr.mxu0 0.0
    %575 = vmatpush1.msra.mxu0 %v333
    %576 = vmatprep.subr.mxu0 0.0
    %577 = vmatpush1.msra.mxu0 %v332
    %578 = vmatprep.subr.mxu0 0.0
    %579 = vmatpush1.msra.mxu0 %v331
    %580 = vmatprep.subr.mxu0 0.0
    %581 = vmatpush1.msra.mxu0 %v330
    %582 = vmatprep.subr.mxu0 0.0
    %583 = vmatpush2.msra.mxu0 %v361
    %584 = vmatprep.subr.mxu0 0.0
    %585 = vmatpush2.msra.mxu0 %v360
    %586 = vmatprep.subr.mxu0 0.0
    %587 = vmatpush2.msra.mxu0 %v359
    %588 = vmatprep.subr.mxu0 0.0
    %589 = vmatpush2.msra.mxu0 %v358
    %590 = vmatprep.subr.mxu0 0.0
    %591 = vmatpush2.msra.mxu0 %v357
    %592 = vmatprep.subr.mxu0 0.0
    %593 = vmatpush2.msra.mxu0 %v356
    %594 = vmatprep.subr.mxu0 0.0
    %595 = vmatpush2.msra.mxu0 %v355
    %596 = vmatprep.subr.mxu0 0.0
    %597 = vmatpush2.msra.mxu0 %v354
    %598 = vmatprep.subr.mxu0 0.0
    %599 = vmatpush2.msra.mxu0 %v353
    %600 = vmatprep.subr.mxu0 0.0
    %601 = vmatpush2.msra.mxu0 %v352
    %602 = vmatprep.subr.mxu0 0.0
    %603 = vmatpush2.msra.mxu0 %v351
    %604 = vmatprep.subr.mxu0 0.0
    %605 = vmatpush2.msra.mxu0 %v350
    %606 = vmatprep.subr.mxu0 0.0
    %607 = vmatpush2.msra.mxu0 %v349
    %608 = vmatprep.subr.mxu0 0.0
    %609 = vmatpush2.msra.mxu0 %v348
    %610 = vmatprep.subr.mxu0 0.0
    %611 = vmatpush2.msra.mxu0 %v347
    %612 = vmatprep.subr.mxu0 0.0
    %613 = vmatpush2.msra.mxu0 %v346
    %614 = vmatprep.mubr.f32.mxu0 %v125
    %615 = vmatmul.mubr.f32.gmra.mxu0 %v118
    %v616 = vpop.f32.mrf.mxu0
    %v617 = vadd.f32 %v547, %v616
    %v618 = vpop.f32.mrf.mxu0
    %619 = vdwg.mxu0
    %620 = vmatprep.subr.mxu0 0.0
    %621 = vmatpush1.msra.mxu0 %v377
    %622 = vmatprep.subr.mxu0 0.0
    %623 = vmatpush1.msra.mxu0 %v376
    %624 = vmatprep.subr.mxu0 0.0
    %625 = vmatpush1.msra.mxu0 %v375
    %626 = vmatprep.subr.mxu0 0.0
    %627 = vmatpush1.msra.mxu0 %v374
    %628 = vmatprep.subr.mxu0 0.0
    %629 = vmatpush1.msra.mxu0 %v373
    %630 = vmatprep.subr.mxu0 0.0
    %631 = vmatpush1.msra.mxu0 %v372
    %632 = vmatprep.subr.mxu0 0.0
    %633 = vmatpush1.msra.mxu0 %v371
    %634 = vmatprep.subr.mxu0 0.0
    %635 = vmatpush1.msra.mxu0 %v370
    %636 = vmatprep.subr.mxu0 0.0
    %637 = vmatpush1.msra.mxu0 %v369
    %638 = vmatprep.subr.mxu0 0.0
    %639 = vmatpush1.msra.mxu0 %v368
    %640 = vmatprep.subr.mxu0 0.0
    %641 = vmatpush1.msra.mxu0 %v367
    %642 = vmatprep.subr.mxu0 0.0
    %643 = vmatpush1.msra.mxu0 %v366
    %644 = vmatprep.subr.mxu0 0.0
    %645 = vmatpush1.msra.mxu0 %v365
    %646 = vmatprep.subr.mxu0 0.0
    %647 = vmatpush1.msra.mxu0 %v364
    %648 = vmatprep.subr.mxu0 0.0
    %649 = vmatpush1.msra.mxu0 %v363
    %650 = vmatprep.subr.mxu0 0.0
    %651 = vmatpush1.msra.mxu0 %v362
    %652 = vmatprep.subr.mxu0 0.0
    %653 = vmatpush2.msra.mxu0 %v393
    %654 = vmatprep.subr.mxu0 0.0
    %655 = vmatpush2.msra.mxu0 %v392
    %656 = vmatprep.subr.mxu0 0.0
    %657 = vmatpush2.msra.mxu0 %v391
    %658 = vmatprep.subr.mxu0 0.0
    %659 = vmatpush2.msra.mxu0 %v390
    %660 = vmatprep.subr.mxu0 0.0
    %661 = vmatpush2.msra.mxu0 %v389
    %662 = vmatprep.subr.mxu0 0.0
    %663 = vmatpush2.msra.mxu0 %v388
    %664 = vmatprep.subr.mxu0 0.0
    %665 = vmatpush2.msra.mxu0 %v387
    %666 = vmatprep.subr.mxu0 0.0
    %667 = vmatpush2.msra.mxu0 %v386
    %668 = vmatprep.subr.mxu0 0.0
    %669 = vmatpush2.msra.mxu0 %v385
    %670 = vmatprep.subr.mxu0 0.0
    %671 = vmatpush2.msra.mxu0 %v384
    %672 = vmatprep.subr.mxu0 0.0
    %673 = vmatpush2.msra.mxu0 %v383
    %674 = vmatprep.subr.mxu0 0.0
    %675 = vmatpush2.msra.mxu0 %v382
    %676 = vmatprep.subr.mxu0 0.0
    %677 = vmatpush2.msra.mxu0 %v381
    %678 = vmatprep.subr.mxu0 0.0
    %679 = vmatpush2.msra.mxu0 %v380
    %680 = vmatprep.subr.mxu0 0.0
    %681 = vmatpush2.msra.mxu0 %v379
    %682 = vmatprep.subr.mxu0 0.0
    %683 = vmatpush2.msra.mxu0 %v378
    %684 = vmatprep.mubr.f32.mxu0 %v139
    %685 = vmatmul.mubr.f32.gmra.mxu0 %v132
    %v686 = vpop.f32.mrf.mxu0
    %v687 = vadd.f32 %v617, %v686
    %v688 = vpop.f32.mrf.mxu0
    %689 = vdwg.mxu0
    %690 = vmatprep.subr.mxu0 0.0
    %691 = vmatpush1.msra.mxu0 %v409
    %692 = vmatprep.subr.mxu0 0.0
    %693 = vmatpush1.msra.mxu0 %v408
    %694 = vmatprep.subr.mxu0 0.0
    %695 = vmatpush1.msra.mxu0 %v407
    %696 = vmatprep.subr.mxu0 0.0
    %697 = vmatpush1.msra.mxu0 %v406
    %698 = vmatprep.subr.mxu0 0.0
    %699 = vmatpush1.msra.mxu0 %v405
    %700 = vmatprep.subr.mxu0 0.0
    %701 = vmatpush1.msra.mxu0 %v404
    %702 = vmatprep.subr.mxu0 0.0
    %703 = vmatpush1.msra.mxu0 %v403
    %704 = vmatprep.subr.mxu0 0.0
    %705 = vmatpush1.msra.mxu0 %v402
    %706 = vmatprep.subr.mxu0 0.0
    %707 = vmatpush1.msra.mxu0 %v401
    %708 = vmatprep.subr.mxu0 0.0
    %709 = vmatpush1.msra.mxu0 %v400
    %710 = vmatprep.subr.mxu0 0.0
    %711 = vmatpush1.msra.mxu0 %v399
    %712 = vmatprep.subr.mxu0 0.0
    %713 = vmatpush1.msra.mxu0 %v398
    %714 = vmatprep.subr.mxu0 0.0
    %715 = vmatpush1.msra.mxu0 %v397
    %716 = vmatprep.subr.mxu0 0.0
    %717 = vmatpush1.msra.mxu0 %v396
    %718 = vmatprep.subr.mxu0 0.0
    %719 = vmatpush1.msra.mxu0 %v395
    %720 = vmatprep.subr.mxu0 0.0
    %721 = vmatpush1.msra.mxu0 %v394
    %722 = vmatprep.subr.mxu0 0.0
    %723 = vmatpush2.msra.mxu0 0.0
    %724 = vmatprep.subr.mxu0 0.0
    %725 = vmatpush2.msra.mxu0 0.0
    %726 = vmatprep.subr.mxu0 0.0
    %727 = vmatpush2.msra.mxu0 0.0
    %728 = vmatprep.subr.mxu0 0.0
    %729 = vmatpush2.msra.mxu0 0.0
    %730 = vmatprep.subr.mxu0 0.0
    %731 = vmatpush2.msra.mxu0 0.0
    %732 = vmatprep.subr.mxu0 0.0
    %733 = vmatpush2.msra.mxu0 0.0
    %734 = vmatprep.subr.mxu0 0.0
    %735 = vmatpush2.msra.mxu0 0.0
    %736 = vmatprep.subr.mxu0 0.0
    %737 = vmatpush2.msra.mxu0 0.0
    %738 = vmatprep.subr.mxu0 0.0
    %739 = vmatpush2.msra.mxu0 0.0
    %740 = vmatprep.subr.mxu0 0.0
    %741 = vmatpush2.msra.mxu0 0.0
    %742 = vmatprep.subr.mxu0 0.0
    %743 = vmatpush2.msra.mxu0 0.0
    %744 = vmatprep.subr.mxu0 0.0
    %745 = vmatpush2.msra.mxu0 0.0
    %746 = vmatprep.subr.mxu0 0.0
    %747 = vmatpush2.msra.mxu0 0.0
    %748 = vmatprep.subr.mxu0 0.0
    %749 = vmatpush2.msra.mxu0 0.0
    %750 = vmatprep.subr.mxu0 0.0
    %751 = vmatpush2.msra.mxu0 0.0
    %752 = vmatprep.subr.mxu0 0.0
    %753 = vmatpush2.msra.mxu0 0.0
    %754 = vmatprep.mubr.f32.mxu0 0.0
    %755 = vmatmul.mubr.f32.gmra.mxu0 %v146
    %v756 = vpop.f32.mrf.mxu0
    %v757 = vadd.f32 %v687, %v756
    %v758 = vpop.f32.mrf.mxu0
    %759 = vdwg.mxu0
    %760 = vmatprep.subr.mxu0 0.0
    %761 = vmatpush1.msra.mxu0 %v281
    %762 = vmatprep.subr.mxu0 0.0
    %763 = vmatpush1.msra.mxu0 %v280
    %764 = vmatprep.subr.mxu0 0.0
    %765 = vmatpush1.msra.mxu0 %v279
    %766 = vmatprep.subr.mxu0 0.0
    %767 = vmatpush1.msra.mxu0 %v278
    %768 = vmatprep.subr.mxu0 0.0
    %769 = vmatpush1.msra.mxu0 %v277
    %770 = vmatprep.subr.mxu0 0.0
    %771 = vmatpush1.msra.mxu0 %v276
    %772 = vmatprep.subr.mxu0 0.0
    %773 = vmatpush1.msra.mxu0 %v275
    %774 = vmatprep.subr.mxu0 0.0
    %775 = vmatpush1.msra.mxu0 %v274
    %776 = vmatprep.subr.mxu0 0.0
    %777 = vmatpush1.msra.mxu0 %v273
    %778 = vmatprep.subr.mxu0 0.0
    %779 = vmatpush1.msra.mxu0 %v272
    %780 = vmatprep.subr.mxu0 0.0
    %781 = vmatpush1.msra.mxu0 %v271
    %782 = vmatprep.subr.mxu0 0.0
    %783 = vmatpush1.msra.mxu0 %v270
    %784 = vmatprep.subr.mxu0 0.0
    %785 = vmatpush1.msra.mxu0 %v269
    %786 = vmatprep.subr.mxu0 0.0
    %787 = vmatpush1.msra.mxu0 %v268
    %788 = vmatprep.subr.mxu0 0.0
    %789 = vmatpush1.msra.mxu0 %v267
    %790 = vmatprep.subr.mxu0 0.0
    %791 = vmatpush1.msra.mxu0 %v266
    %792 = vmatprep.subr.mxu0 0.0
    %793 = vmatpush2.msra.mxu0 %v297
    %794 = vmatprep.subr.mxu0 0.0
    %795 = vmatpush2.msra.mxu0 %v296
    %796 = vmatprep.subr.mxu0 0.0
    %797 = vmatpush2.msra.mxu0 %v295
    %798 = vmatprep.subr.mxu0 0.0
    %799 = vmatpush2.msra.mxu0 %v294
    %800 = vmatprep.subr.mxu0 0.0
    %801 = vmatpush2.msra.mxu0 %v293
    %802 = vmatprep.subr.mxu0 0.0
    %803 = vmatpush2.msra.mxu0 %v292
    %804 = vmatprep.subr.mxu0 0.0
    %805 = vmatpush2.msra.mxu0 %v291
    %806 = vmatprep.subr.mxu0 0.0
    %807 = vmatpush2.msra.mxu0 %v290
    %808 = vmatprep.subr.mxu0 0.0
    %809 = vmatpush2.msra.mxu0 %v289
    %810 = vmatprep.subr.mxu0 0.0
    %811 = vmatpush2.msra.mxu0 %v288
    %812 = vmatprep.subr.mxu0 0.0
    %813 = vmatpush2.msra.mxu0 %v287
    %814 = vmatprep.subr.mxu0 0.0
    %815 = vmatpush2.msra.mxu0 %v286
    %816 = vmatprep.subr.mxu0 0.0
    %817 = vmatpush2.msra.mxu0 %v285
    %818 = vmatprep.subr.mxu0 0.0
    %819 = vmatpush2.msra.mxu0 %v284
    %820 = vmatprep.subr.mxu0 0.0
    %821 = vmatpush2.msra.mxu0 %v283
    %822 = vmatprep.subr.mxu0 0.0
    %823 = vmatpush2.msra.mxu0 %v282
    %824 = vmatprep.mubr.f32.mxu0 %v216
    %825 = vmatmul.mubr.f32.gmra.mxu0 %v209
    %v826 = vpop.f32.mrf.mxu0
    %v827 = vadd.f32 0.0, %v826
    %v828 = vpop.f32.mrf.mxu0
    %829 = vdwg.mxu0
    %830 = vmatprep.subr.mxu0 0.0
    %831 = vmatpush1.msra.mxu0 %v313
    %832 = vmatprep.subr.mxu0 0.0
    %833 = vmatpush1.msra.mxu0 %v312
    %834 = vmatprep.subr.mxu0 0.0
    %835 = vmatpush1.msra.mxu0 %v311
    %836 = vmatprep.subr.mxu0 0.0
    %837 = vmatpush1.msra.mxu0 %v310
    %838 = vmatprep.subr.mxu0 0.0
    %839 = vmatpush1.msra.mxu0 %v309
    %840 = vmatprep.subr.mxu0 0.0
    %841 = vmatpush1.msra.mxu0 %v308
    %842 = vmatprep.subr.mxu0 0.0
    %843 = vmatpush1.msra.mxu0 %v307
    %844 = vmatprep.subr.mxu0 0.0
    %845 = vmatpush1.msra.mxu0 %v306
    %846 = vmatprep.subr.mxu0 0.0
    %847 = vmatpush1.msra.mxu0 %v305
    %848 = vmatprep.subr.mxu0 0.0
    %849 = vmatpush1.msra.mxu0 %v304
    %850 = vmatprep.subr.mxu0 0.0
    %851 = vmatpush1.msra.mxu0 %v303
    %852 = vmatprep.subr.mxu0 0.0
    %853 = vmatpush1.msra.mxu0 %v302
    %854 = vmatprep.subr.mxu0 0.0
    %855 = vmatpush1.msra.mxu0 %v301
    %856 = vmatprep.subr.mxu0 0.0
    %857 = vmatpush1.msra.mxu0 %v300
    %858 = vmatprep.subr.mxu0 0.0
    %859 = vmatpush1.msra.mxu0 %v299
    %860 = vmatprep.subr.mxu0 0.0
    %861 = vmatpush1.msra.mxu0 %v298
    %862 = vmatprep.subr.mxu0 0.0
    %863 = vmatpush2.msra.mxu0 %v329
    %864 = vmatprep.subr.mxu0 0.0
    %865 = vmatpush2.msra.mxu0 %v328
    %866 = vmatprep.subr.mxu0 0.0
    %867 = vmatpush2.msra.mxu0 %v327
    %868 = vmatprep.subr.mxu0 0.0
    %869 = vmatpush2.msra.mxu0 %v326
    %870 = vmatprep.subr.mxu0 0.0
    %871 = vmatpush2.msra.mxu0 %v325
    %872 = vmatprep.subr.mxu0 0.0
    %873 = vmatpush2.msra.mxu0 %v324
    %874 = vmatprep.subr.mxu0 0.0
    %875 = vmatpush2.msra.mxu0 %v323
    %876 = vmatprep.subr.mxu0 0.0
    %877 = vmatpush2.msra.mxu0 %v322
    %878 = vmatprep.subr.mxu0 0.0
    %879 = vmatpush2.msra.mxu0 %v321
    %880 = vmatprep.subr.mxu0 0.0
    %881 = vmatpush2.msra.mxu0 %v320
    %882 = vmatprep.subr.mxu0 0.0
    %883 = vmatpush2.msra.mxu0 %v319
    %884 = vmatprep.subr.mxu0 0.0
    %885 = vmatpush2.msra.mxu0 %v318
    %886 = vmatprep.subr.mxu0 0.0
    %887 = vmatpush2.msra.mxu0 %v317
    %888 = vmatprep.subr.mxu0 0.0
    %889 = vmatpush2.msra.mxu0 %v316
    %890 = vmatprep.subr.mxu0 0.0
    %891 = vmatpush2.msra.mxu0 %v315
    %892 = vmatprep.subr.mxu0 0.0
    %893 = vmatpush2.msra.mxu0 %v314
    %894 = vmatprep.mubr.f32.mxu0 %v230
    %895 = vmatmul.mubr.f32.gmra.mxu0 %v223
    %v896 = vpop.f32.mrf.mxu0
    %v897 = vadd.f32 %v827, %v896
    %v898 = vpop.f32.mrf.mxu0
    %899 = vdwg.mxu0
    %900 = vmatprep.subr.mxu0 0.0
    %901 = vmatpush1.msra.mxu0 %v345
    %902 = vmatprep.subr.mxu0 0.0
    %903 = vmatpush1.msra.mxu0 %v344
    %904 = vmatprep.subr.mxu0 0.0
    %905 = vmatpush1.msra.mxu0 %v343
    %906 = vmatprep.subr.mxu0 0.0
    %907 = vmatpush1.msra.mxu0 %v342
    %908 = vmatprep.subr.mxu0 0.0
    %909 = vmatpush1.msra.mxu0 %v341
    %910 = vmatprep.subr.mxu0 0.0
    %911 = vmatpush1.msra.mxu0 %v340
    %912 = vmatprep.subr.mxu0 0.0
    %913 = vmatpush1.msra.mxu0 %v339
    %914 = vmatprep.subr.mxu0 0.0
    %915 = vmatpush1.msra.mxu0 %v338
    %916 = vmatprep.subr.mxu0 0.0
    %917 = vmatpush1.msra.mxu0 %v337
    %918 = vmatprep.subr.mxu0 0.0
    %919 = vmatpush1.msra.mxu0 %v336
    %920 = vmatprep.subr.mxu0 0.0
    %921 = vmatpush1.msra.mxu0 %v335
    %922 = vmatprep.subr.mxu0 0.0
    %923 = vmatpush1.msra.mxu0 %v334
    %924 = vmatprep.subr.mxu0 0.0
    %925 = vmatpush1.msra.mxu0 %v333
    %926 = vmatprep.subr.mxu0 0.0
    %927 = vmatpush1.msra.mxu0 %v332
    %928 = vmatprep.subr.mxu0 0.0
    %929 = vmatpush1.msra.mxu0 %v331
    %930 = vmatprep.subr.mxu0 0.0
    %931 = vmatpush1.msra.mxu0 %v330
    %932 = vmatprep.subr.mxu0 0.0
    %933 = vmatpush2.msra.mxu0 %v361
    %934 = vmatprep.subr.mxu0 0.0
    %935 = vmatpush2.msra.mxu0 %v360
    %936 = vmatprep.subr.mxu0 0.0
    %937 = vmatpush2.msra.mxu0 %v359
    %938 = vmatprep.subr.mxu0 0.0
    %939 = vmatpush2.msra.mxu0 %v358
    %940 = vmatprep.subr.mxu0 0.0
    %941 = vmatpush2.msra.mxu0 %v357
    %942 = vmatprep.subr.mxu0 0.0
    %943 = vmatpush2.msra.mxu0 %v356
    %944 = vmatprep.subr.mxu0 0.0
    %945 = vmatpush2.msra.mxu0 %v355
    %946 = vmatprep.subr.mxu0 0.0
    %947 = vmatpush2.msra.mxu0 %v354
    %948 = vmatprep.subr.mxu0 0.0
    %949 = vmatpush2.msra.mxu0 %v353
    %950 = vmatprep.subr.mxu0 0.0
    %951 = vmatpush2.msra.mxu0 %v352
    %952 = vmatprep.subr.mxu0 0.0
    %953 = vmatpush2.msra.mxu0 %v351
    %954 = vmatprep.subr.mxu0 0.0
    %955 = vmatpush2.msra.mxu0 %v350
    %956 = vmatprep.subr.mxu0 0.0
    %957 = vmatpush2.msra.mxu0 %v349
    %958 = vmatprep.subr.mxu0 0.0
    %959 = vmatpush2.msra.mxu0 %v348
    %960 = vmatprep.subr.mxu0 0.0
    %961 = vmatpush2.msra.mxu0 %v347
    %962 = vmatprep.subr.mxu0 0.0
    %963 = vmatpush2.msra.mxu0 %v346
    %964 = vmatprep.mubr.f32.mxu0 %v244
    %965 = vmatmul.mubr.f32.gmra.mxu0 %v237
    %v966 = vpop.f32.mrf.mxu0
    %v967 = vadd.f32 %v897, %v966
    %v968 = vpop.f32.mrf.mxu0
    %969 = vdwg.mxu0
    %970 = vmatprep.subr.mxu0 0.0
    %971 = vmatpush1.msra.mxu0 %v377
    %972 = vmatprep.subr.mxu0 0.0
    %973 = vmatpush1.msra.mxu0 %v376
    %974 = vmatprep.subr.mxu0 0.0
    %975 = vmatpush1.msra.mxu0 %v375
    %976 = vmatprep.subr.mxu0 0.0
    %977 = vmatpush1.msra.mxu0 %v374
    %978 = vmatprep.subr.mxu0 0.0
    %979 = vmatpush1.msra.mxu0 %v373
    %980 = vmatprep.subr.mxu0 0.0
    %981 = vmatpush1.msra.mxu0 %v372
    %982 = vmatprep.subr.mxu0 0.0
    %983 = vmatpush1.msra.mxu0 %v371
    %984 = vmatprep.subr.mxu0 0.0
    %985 = vmatpush1.msra.mxu0 %v370
    %986 = vmatprep.subr.mxu0 0.0
    %987 = vmatpush1.msra.mxu0 %v369
    %988 = vmatprep.subr.mxu0 0.0
    %989 = vmatpush1.msra.mxu0 %v368
    %990 = vmatprep.subr.mxu0 0.0
    %991 = vmatpush1.msra.mxu0 %v367
    %992 = vmatprep.subr.mxu0 0.0
    %993 = vmatpush1.msra.mxu0 %v366
    %994 = vmatprep.subr.mxu0 0.0
    %995 = vmatpush1.msra.mxu0 %v365
    %996 = vmatprep.subr.mxu0 0.0
    %997 = vmatpush1.msra.mxu0 %v364
    %998 = vmatprep.subr.mxu0 0.0
    %999 = vmatpush1.msra.mxu0 %v363
    %1000 = vmatprep.subr.mxu0 0.0
    %1001 = vmatpush1.msra.mxu0 %v362
    %1002 = vmatprep.subr.mxu0 0.0
    %1003 = vmatpush2.msra.mxu0 %v393
    %1004 = vmatprep.subr.mxu0 0.0
    %1005 = vmatpush2.msra.mxu0 %v392
    %1006 = vmatprep.subr.mxu0 0.0
    %1007 = vmatpush2.msra.mxu0 %v391
    %1008 = vmatprep.subr.mxu0 0.0
    %1009 = vmatpush2.msra.mxu0 %v390
    %1010 = vmatprep.subr.mxu0 0.0
    %1011 = vmatpush2.msra.mxu0 %v389
    %1012 = vmatprep.subr.mxu0 0.0
    %1013 = vmatpush2.msra.mxu0 %v388
    %1014 = vmatprep.subr.mxu0 0.0
    %1015 = vmatpush2.msra.mxu0 %v387
    %1016 = vmatprep.subr.mxu0 0.0
    %1017 = vmatpush2.msra.mxu0 %v386
    %1018 = vmatprep.subr.mxu0 0.0
    %1019 = vmatpush2.msra.mxu0 %v385
    %1020 = vmatprep.subr.mxu0 0.0
    %1021 = vmatpush2.msra.mxu0 %v384
    %1022 = vmatprep.subr.mxu0 0.0
    %1023 = vmatpush2.msra.mxu0 %v383
    %1024 = vmatprep.subr.mxu0 0.0
    %1025 = vmatpush2.msra.mxu0 %v382
    %1026 = vmatprep.subr.mxu0 0.0
    %1027 = vmatpush2.msra.mxu0 %v381
    %1028 = vmatprep.subr.mxu0 0.0
    %1029 = vmatpush2.msra.mxu0 %v380
    %1030 = vmatprep.subr.mxu0 0.0
    %1031 = vmatpush2.msra.mxu0 %v379
    %1032 = vmatprep.subr.mxu0 0.0
    %1033 = vmatpush2.msra.mxu0 %v378
    %1034 = vmatprep.mubr.f32.mxu0 %v258
    %1035 = vmatmul.mubr.f32.gmra.mxu0 %v251
    %v1036 = vpop.f32.mrf.mxu0
    %v1037 = vadd.f32 %v967, %v1036
    %v1038 = vpop.f32.mrf.mxu0
    %1039 = vdwg.mxu0
    %1040 = vmatprep.subr.mxu0 0.0
    %1041 = vmatpush1.msra.mxu0 %v409
    %1042 = vmatprep.subr.mxu0 0.0
    %1043 = vmatpush1.msra.mxu0 %v408
    %1044 = vmatprep.subr.mxu0 0.0
    %1045 = vmatpush1.msra.mxu0 %v407
    %1046 = vmatprep.subr.mxu0 0.0
    %1047 = vmatpush1.msra.mxu0 %v406
    %1048 = vmatprep.subr.mxu0 0.0
    %1049 = vmatpush1.msra.mxu0 %v405
    %1050 = vmatprep.subr.mxu0 0.0
    %1051 = vmatpush1.msra.mxu0 %v404
    %1052 = vmatprep.subr.mxu0 0.0
    %1053 = vmatpush1.msra.mxu0 %v403
    %1054 = vmatprep.subr.mxu0 0.0
    %1055 = vmatpush1.msra.mxu0 %v402
    %1056 = vmatprep.subr.mxu0 0.0
    %1057 = vmatpush1.msra.mxu0 %v401
    %1058 = vmatprep.subr.mxu0 0.0
    %1059 = vmatpush1.msra.mxu0 %v400
    %1060 = vmatprep.subr.mxu0 0.0
    %1061 = vmatpush1.msra.mxu0 %v399
    %1062 = vmatprep.subr.mxu0 0.0
    %1063 = vmatpush1.msra.mxu0 %v398
    %1064 = vmatprep.subr.mxu0 0.0
    %1065 = vmatpush1.msra.mxu0 %v397
    %1066 = vmatprep.subr.mxu0 0.0
    %1067 = vmatpush1.msra.mxu0 %v396
    %1068 = vmatprep.subr.mxu0 0.0
    %1069 = vmatpush1.msra.mxu0 %v395
    %1070 = vmatprep.subr.mxu0 0.0
    %1071 = vmatpush1.msra.mxu0 %v394
    %1072 = vmatprep.subr.mxu0 0.0
    %1073 = vmatpush2.msra.mxu0 0.0
    %1074 = vmatprep.subr.mxu0 0.0
    %1075 = vmatpush2.msra.mxu0 0.0
    %1076 = vmatprep.subr.mxu0 0.0
    %1077 = vmatpush2.msra.mxu0 0.0
    %1078 = vmatprep.subr.mxu0 0.0
    %1079 = vmatpush2.msra.mxu0 0.0
    %1080 = vmatprep.subr.mxu0 0.0
    %1081 = vmatpush2.msra.mxu0 0.0
    %1082 = vmatprep.subr.mxu0 0.0
    %1083 = vmatpush2.msra.mxu0 0.0
    %1084 = vmatprep.subr.mxu0 0.0
    %1085 = vmatpush2.msra.mxu0 0.0
    %1086 = vmatprep.subr.mxu0 0.0
    %1087 = vmatpush2.msra.mxu0 0.0
    %1088 = vmatprep.subr.mxu0 0.0
    %1089 = vmatpush2.msra.mxu0 0.0
    %1090 = vmatprep.subr.mxu0 0.0
    %1091 = vmatpush2.msra.mxu0 0.0
    %1092 = vmatprep.subr.mxu0 0.0
    %1093 = vmatpush2.msra.mxu0 0.0
    %1094 = vmatprep.subr.mxu0 0.0
    %1095 = vmatpush2.msra.mxu0 0.0
    %1096 = vmatprep.subr.mxu0 0.0
    %1097 = vmatpush2.msra.mxu0 0.0
    %1098 = vmatprep.subr.mxu0 0.0
    %1099 = vmatpush2.msra.mxu0 0.0
    %1100 = vmatprep.subr.mxu0 0.0
    %1101 = vmatpush2.msra.mxu0 0.0
    %1102 = vmatprep.subr.mxu0 0.0
    %1103 = vmatpush2.msra.mxu0 0.0
    %1104 = vmatprep.mubr.f32.mxu0 0.0
    %1105 = vmatmul.mubr.f32.gmra.mxu0 %v265
    %v1106 = vpop.f32.mrf.mxu0
    %v1107 = vadd.f32 %v1037, %v1106
    %v1108 = vpop.f32.mrf.mxu0
    %1109 = vdwg.mxu0
    %v1110 = vmul.f32 %v757, 0.013888889
    %v1111 = vmul.f32 %v1107, 0.013888889
    %v1112 = vmul.f32 %v1110, %v1110
    %v1113 = vsub.f32 %v1111, %v1112
    %v1114 = vadd.f32 %v1113, 1e-05
    %v1115 = vrsqrt.pop %v1114
    %v1116 = vld [vmem:[%s5] sm:$0x1]
    %v1117 = vmul.f32 %v1116, %v1115
    %v1118 = vld [vmem:[%s6] sm:$0x1]
    %v1119 = vmul.f32 %v1110, %v1117
    %v1120 = vsub.f32 %v1118, %v1119
    %v1121 = vld [vmem:[%s1] sm:$0xff]
    %v1122 = vld [vmem:[%s1 + $0x8] sm:$0xff]
    %v1123 = vld [vmem:[%s1 + $0x10] sm:$0xff]
    %v1124 = vld [vmem:[%s1 + $0x18] sm:$0xff]
    %v1125 = vld [vmem:[%s1 + $0x20] sm:$0xff]
    %v1126 = vld [vmem:[%s1 + $0x28] sm:$0xff]
    %v1127 = vld [vmem:[%s1 + $0x30] sm:$0xff]
    %v1128 = vld [vmem:[%s1 + $0x38] sm:$0xff]
    %v1129 = vld [vmem:[%s1 + $0x40] sm:$0xff]
    %v1130 = vld [vmem:[%s1 + $0x48] sm:$0xff]
    %v1131 = vld [vmem:[%s1 + $0x50] sm:$0xff]
    %v1132 = vld [vmem:[%s1 + $0x58] sm:$0xff]
    %v1133 = vld [vmem:[%s1 + $0x60] sm:$0xff]
    %v1134 = vld [vmem:[%s1 + $0x68] sm:$0xff]
    %v1135 = vld [vmem:[%s1 + $0x70] sm:$0xff]
    %v1136 = vld [vmem:[%s1 + $0x78] sm:$0xff]
    %v1137 = vld [vmem:[%s1 + $0x80] sm:$0xff]
    %v1138 = vld [vmem:[%s1 + $0x88] sm:$0xff]
    %v1139 = vld [vmem:[%s1 + $0x90] sm:$0xff]
    %v1140 = vld [vmem:[%s1 + $0x98] sm:$0xff]
    %v1141 = vld [vmem:[%s1 + $0xa0] sm:$0xff]
    %v1142 = vld [vmem:[%s1 + $0xa8] sm:$0xff]
    %v1143 = vld [vmem:[%s1 + $0xb0] sm:$0xff]
    %v1144 = vld [vmem:[%s1 + $0xb8] sm:$0xff]
    %v1145 = vld [vmem:[%s1 + $0xc0] sm:$0xff]
    %v1146 = vld [vmem:[%s1 + $0xc8] sm:$0xff]
    %v1147 = vld [vmem:[%s1 + $0xd0] sm:$0xff]
    %v1148 = vld [vmem:[%s1 + $0xd8] sm:$0xff]
    %v1149 = vld [vmem:[%s1 + $0xe0] sm:$0xff]
    %v1150 = vld [vmem:[%s1 + $0xe8] sm:$0xff]
    %v1151 = vld [vmem:[%s1 + $0xf0] sm:$0xff]
    %v1152 = vld [vmem:[%s1 + $0xf8] sm:$0xff]
    %v1153 = vld [vmem:[%s1 + $0x100] sm:$0xff]
    %v1154 = vld [vmem:[%s1 + $0x108] sm:$0xff]
    %v1155 = vld [vmem:[%s1 + $0x110] sm:$0xff]
    %v1156 = vld [vmem:[%s1 + $0x118] sm:$0xff]
    %vm1157 = vcmask 261120
    %v1159 = vsel %vm1157, %v1117, 0
    %1161 = vmatprep.subr.mxu0 0.0
    %1162 = vmatpush1.msra.mxu0 0.0
    %1163 = vmatprep.subr.mxu0 0.0
    %1164 = vmatpush1.msra.mxu0 0.0
    %1165 = vmatprep.subr.mxu0 0.0
    %1166 = vmatpush1.msra.mxu0 0.0
    %1167 = vmatprep.subr.mxu0 0.0
    %1168 = vmatpush1.msra.mxu0 0.0
    %1169 = vmatprep.subr.mxu0 0.0
    %1170 = vmatpush1.msra.mxu0 0.0
    %1171 = vmatprep.subr.mxu0 0.0
    %1172 = vmatpush1.msra.mxu0 0.0
    %1173 = vmatprep.subr.mxu0 0.0
    %1174 = vmatpush1.msra.mxu0 0.0
    %1175 = vmatprep.subr.mxu0 0.0
    %1176 = vmatpush1.msra.mxu0 0.0
    %1177 = vmatprep.subr.mxu0 0.0
    %1178 = vmatpush1.msra.mxu0 0.0
    %1179 = vmatprep.subr.mxu0 0.0
    %1180 = vmatpush1.msra.mxu0 0.0
    %1181 = vmatprep.subr.mxu0 0.0
    %1182 = vmatpush1.msra.mxu0 0.0
    %1183 = vmatprep.subr.mxu0 0.0
    %1184 = vmatpush1.msra.mxu0 0.0
    %1185 = vmatprep.subr.mxu0 %v1149
    %1186 = vmatpush1.msra.mxu0 %v1148
    %1187 = vmatprep.subr.mxu0 %v1140
    %1188 = vmatpush1.msra.mxu0 %v1139
    %1189 = vmatprep.subr.mxu0 %v1131
    %1190 = vmatpush1.msra.mxu0 %v1130
    %1191 = vmatprep.subr.mxu0 %v1122
    %1192 = vmatpush1.msra.mxu0 %v1121
    %1193 = vmatprep.subr.mxu0 0.0
    %1194 = vmatpush2.msra.mxu0 0.0
    %1195 = vmatprep.subr.mxu0 0.0
    %1196 = vmatpush2.msra.mxu0 0.0
    %1197 = vmatprep.subr.mxu0 0.0
    %1198 = vmatpush2.msra.mxu0 0.0
    %1199 = vmatprep.subr.mxu0 0.0
    %1200 = vmatpush2.msra.mxu0 0.0
    %1201 = vmatprep.subr.mxu0 0.0
    %1202 = vmatpush2.msra.mxu0 0.0
    %1203 = vmatprep.subr.mxu0 0.0
    %1204 = vmatpush2.msra.mxu0 0.0
    %1205 = vmatprep.subr.mxu0 0.0
    %1206 = vmatpush2.msra.mxu0 0.0
    %1207 = vmatprep.subr.mxu0 0.0
    %1208 = vmatpush2.msra.mxu0 0.0
    %1209 = vmatprep.subr.mxu0 0.0
    %1210 = vmatpush2.msra.mxu0 0.0
    %1211 = vmatprep.subr.mxu0 0.0
    %1212 = vmatpush2.msra.mxu0 0.0
    %1213 = vmatprep.subr.mxu0 0.0
    %1214 = vmatpush2.msra.mxu0 0.0
    %1215 = vmatprep.subr.mxu0 0.0
    %1216 = vmatpush2.msra.mxu0 0.0
    %1217 = vmatprep.subr.mxu0 0.0
    %1218 = vmatpush2.msra.mxu0 0.0
    %1219 = vmatprep.subr.mxu0 0.0
    %1220 = vmatpush2.msra.mxu0 0.0
    %1221 = vmatprep.subr.mxu0 0.0
    %1222 = vmatpush2.msra.mxu0 0.0
    %1223 = vmatprep.subr.mxu0 0.0
    %1224 = vmatpush2.msra.mxu0 0.0
    %1225 = vmatprep.mubr.f32.mxu0 0.0
    %1226 = vmatmul.mubr.f32.gmra.mxu0 %v1159
    %v1227 = vpop.f32.mrf.mxu0
    %v1228 = vadd.f32 0.0, %v1227
    %v1229 = vpop.f32.mrf.mxu0
    %v1230 = vadd.f32 0.0, %v1229
    %1231 = vdwg.mxu0
    %1232 = vmatprep.subr.mxu0 0.0
    %1233 = vmatpush1.msra.mxu0 0.0
    %1234 = vmatprep.subr.mxu0 0.0
    %1235 = vmatpush1.msra.mxu0 0.0
    %1236 = vmatprep.subr.mxu0 0.0
    %1237 = vmatpush1.msra.mxu0 0.0
    %1238 = vmatprep.subr.mxu0 0.0
    %1239 = vmatpush1.msra.mxu0 0.0
    %1240 = vmatprep.subr.mxu0 0.0
    %1241 = vmatpush1.msra.mxu0 0.0
    %1242 = vmatprep.subr.mxu0 0.0
    %1243 = vmatpush1.msra.mxu0 0.0
    %1244 = vmatprep.subr.mxu0 0.0
    %1245 = vmatpush1.msra.mxu0 0.0
    %1246 = vmatprep.subr.mxu0 0.0
    %1247 = vmatpush1.msra.mxu0 0.0
    %1248 = vmatprep.subr.mxu0 0.0
    %1249 = vmatpush1.msra.mxu0 0.0
    %1250 = vmatprep.subr.mxu0 0.0
    %1251 = vmatpush1.msra.mxu0 0.0
    %1252 = vmatprep.subr.mxu0 0.0
    %1253 = vmatpush1.msra.mxu0 0.0
    %1254 = vmatprep.subr.mxu0 0.0
    %1255 = vmatpush1.msra.mxu0 0.0
    %1256 = vmatprep.subr.mxu0 %v1151
    %1257 = vmatpush1.msra.mxu0 %v1150
    %1258 = vmatprep.subr.mxu0 %v1142
    %1259 = vmatpush1.msra.mxu0 %v1141
    %1260 = vmatprep.subr.mxu0 %v1133
    %1261 = vmatpush1.msra.mxu0 %v1132
    %1262 = vmatprep.subr.mxu0 %v1124
    %1263 = vmatpush1.msra.mxu0 %v1123
    %1264 = vmatprep.subr.mxu0 0.0
    %1265 = vmatpush2.msra.mxu0 0.0
    %1266 = vmatprep.subr.mxu0 0.0
    %1267 = vmatpush2.msra.mxu0 0.0
    %1268 = vmatprep.subr.mxu0 0.0
    %1269 = vmatpush2.msra.mxu0 0.0
    %1270 = vmatprep.subr.mxu0 0.0
    %1271 = vmatpush2.msra.mxu0 0.0
    %1272 = vmatprep.subr.mxu0 0.0
    %1273 = vmatpush2.msra.mxu0 0.0
    %1274 = vmatprep.subr.mxu0 0.0
    %1275 = vmatpush2.msra.mxu0 0.0
    %1276 = vmatprep.subr.mxu0 0.0
    %1277 = vmatpush2.msra.mxu0 0.0
    %1278 = vmatprep.subr.mxu0 0.0
    %1279 = vmatpush2.msra.mxu0 0.0
    %1280 = vmatprep.subr.mxu0 0.0
    %1281 = vmatpush2.msra.mxu0 0.0
    %1282 = vmatprep.subr.mxu0 0.0
    %1283 = vmatpush2.msra.mxu0 0.0
    %1284 = vmatprep.subr.mxu0 0.0
    %1285 = vmatpush2.msra.mxu0 0.0
    %1286 = vmatprep.subr.mxu0 0.0
    %1287 = vmatpush2.msra.mxu0 0.0
    %1288 = vmatprep.subr.mxu0 0.0
    %1289 = vmatpush2.msra.mxu0 0.0
    %1290 = vmatprep.subr.mxu0 0.0
    %1291 = vmatpush2.msra.mxu0 0.0
    %1292 = vmatprep.subr.mxu0 0.0
    %1293 = vmatpush2.msra.mxu0 0.0
    %1294 = vmatprep.subr.mxu0 0.0
    %1295 = vmatpush2.msra.mxu0 0.0
    %1296 = vmatprep.mubr.f32.mxu0 0.0
    %1297 = vmatmul.mubr.f32.gmra.mxu0 %v1159
    %v1298 = vpop.f32.mrf.mxu0
    %v1299 = vadd.f32 0.0, %v1298
    %v1300 = vpop.f32.mrf.mxu0
    %v1301 = vadd.f32 0.0, %v1300
    %1302 = vdwg.mxu0
    %1303 = vmatprep.subr.mxu0 0.0
    %1304 = vmatpush1.msra.mxu0 0.0
    %1305 = vmatprep.subr.mxu0 0.0
    %1306 = vmatpush1.msra.mxu0 0.0
    %1307 = vmatprep.subr.mxu0 0.0
    %1308 = vmatpush1.msra.mxu0 0.0
    %1309 = vmatprep.subr.mxu0 0.0
    %1310 = vmatpush1.msra.mxu0 0.0
    %1311 = vmatprep.subr.mxu0 0.0
    %1312 = vmatpush1.msra.mxu0 0.0
    %1313 = vmatprep.subr.mxu0 0.0
    %1314 = vmatpush1.msra.mxu0 0.0
    %1315 = vmatprep.subr.mxu0 0.0
    %1316 = vmatpush1.msra.mxu0 0.0
    %1317 = vmatprep.subr.mxu0 0.0
    %1318 = vmatpush1.msra.mxu0 0.0
    %1319 = vmatprep.subr.mxu0 0.0
    %1320 = vmatpush1.msra.mxu0 0.0
    %1321 = vmatprep.subr.mxu0 0.0
    %1322 = vmatpush1.msra.mxu0 0.0
    %1323 = vmatprep.subr.mxu0 0.0
    %1324 = vmatpush1.msra.mxu0 0.0
    %1325 = vmatprep.subr.mxu0 0.0
    %1326 = vmatpush1.msra.mxu0 0.0
    %1327 = vmatprep.subr.mxu0 %v1153
    %1328 = vmatpush1.msra.mxu0 %v1152
    %1329 = vmatprep.subr.mxu0 %v1144
    %1330 = vmatpush1.msra.mxu0 %v1143
    %1331 = vmatprep.subr.mxu0 %v1135
    %1332 = vmatpush1.msra.mxu0 %v1134
    %1333 = vmatprep.subr.mxu0 %v1126
    %1334 = vmatpush1.msra.mxu0 %v1125
    %1335 = vmatprep.subr.mxu0 0.0
    %1336 = vmatpush2.msra.mxu0 0.0
    %1337 = vmatprep.subr.mxu0 0.0
    %1338 = vmatpush2.msra.mxu0 0.0
    %1339 = vmatprep.subr.mxu0 0.0
    %1340 = vmatpush2.msra.mxu0 0.0
    %1341 = vmatprep.subr.mxu0 0.0
    %1342 = vmatpush2.msra.mxu0 0.0
    %1343 = vmatprep.subr.mxu0 0.0
    %1344 = vmatpush2.msra.mxu0 0.0
    %1345 = vmatprep.subr.mxu0 0.0
    %1346 = vmatpush2.msra.mxu0 0.0
    %1347 = vmatprep.subr.mxu0 0.0
    %1348 = vmatpush2.msra.mxu0 0.0
    %1349 = vmatprep.subr.mxu0 0.0
    %1350 = vmatpush2.msra.mxu0 0.0
    %1351 = vmatprep.subr.mxu0 0.0
    %1352 = vmatpush2.msra.mxu0 0.0
    %1353 = vmatprep.subr.mxu0 0.0
    %1354 = vmatpush2.msra.mxu0 0.0
    %1355 = vmatprep.subr.mxu0 0.0
    %1356 = vmatpush2.msra.mxu0 0.0
    %1357 = vmatprep.subr.mxu0 0.0
    %1358 = vmatpush2.msra.mxu0 0.0
    %1359 = vmatprep.subr.mxu0 0.0
    %1360 = vmatpush2.msra.mxu0 0.0
    %1361 = vmatprep.subr.mxu0 0.0
    %1362 = vmatpush2.msra.mxu0 0.0
    %1363 = vmatprep.subr.mxu0 0.0
    %1364 = vmatpush2.msra.mxu0 0.0
    %1365 = vmatprep.subr.mxu0 0.0
    %1366 = vmatpush2.msra.mxu0 0.0
    %1367 = vmatprep.mubr.f32.mxu0 0.0
    %1368 = vmatmul.mubr.f32.gmra.mxu0 %v1159
    %v1369 = vpop.f32.mrf.mxu0
    %v1370 = vadd.f32 0.0, %v1369
    %v1371 = vpop.f32.mrf.mxu0
    %v1372 = vadd.f32 0.0, %v1371
    %1373 = vdwg.mxu0
    %1374 = vmatprep.subr.mxu0 0.0
    %1375 = vmatpush1.msra.mxu0 0.0
    %1376 = vmatprep.subr.mxu0 0.0
    %1377 = vmatpush1.msra.mxu0 0.0
    %1378 = vmatprep.subr.mxu0 0.0
    %1379 = vmatpush1.msra.mxu0 0.0
    %1380 = vmatprep.subr.mxu0 0.0
    %1381 = vmatpush1.msra.mxu0 0.0
    %1382 = vmatprep.subr.mxu0 0.0
    %1383 = vmatpush1.msra.mxu0 0.0
    %1384 = vmatprep.subr.mxu0 0.0
    %1385 = vmatpush1.msra.mxu0 0.0
    %1386 = vmatprep.subr.mxu0 0.0
    %1387 = vmatpush1.msra.mxu0 0.0
    %1388 = vmatprep.subr.mxu0 0.0
    %1389 = vmatpush1.msra.mxu0 0.0
    %1390 = vmatprep.subr.mxu0 0.0
    %1391 = vmatpush1.msra.mxu0 0.0
    %1392 = vmatprep.subr.mxu0 0.0
    %1393 = vmatpush1.msra.mxu0 0.0
    %1394 = vmatprep.subr.mxu0 0.0
    %1395 = vmatpush1.msra.mxu0 0.0
    %1396 = vmatprep.subr.mxu0 0.0
    %1397 = vmatpush1.msra.mxu0 0.0
    %1398 = vmatprep.subr.mxu0 %v1155
    %1399 = vmatpush1.msra.mxu0 %v1154
    %1400 = vmatprep.subr.mxu0 %v1146
    %1401 = vmatpush1.msra.mxu0 %v1145
    %1402 = vmatprep.subr.mxu0 %v1137
    %1403 = vmatpush1.msra.mxu0 %v1136
    %1404 = vmatprep.subr.mxu0 %v1128
    %1405 = vmatpush1.msra.mxu0 %v1127
    %1406 = vmatprep.subr.mxu0 0.0
    %1407 = vmatpush2.msra.mxu0 0.0
    %1408 = vmatprep.subr.mxu0 0.0
    %1409 = vmatpush2.msra.mxu0 0.0
    %1410 = vmatprep.subr.mxu0 0.0
    %1411 = vmatpush2.msra.mxu0 0.0
    %1412 = vmatprep.subr.mxu0 0.0
    %1413 = vmatpush2.msra.mxu0 0.0
    %1414 = vmatprep.subr.mxu0 0.0
    %1415 = vmatpush2.msra.mxu0 0.0
    %1416 = vmatprep.subr.mxu0 0.0
    %1417 = vmatpush2.msra.mxu0 0.0
    %1418 = vmatprep.subr.mxu0 0.0
    %1419 = vmatpush2.msra.mxu0 0.0
    %1420 = vmatprep.subr.mxu0 0.0
    %1421 = vmatpush2.msra.mxu0 0.0
    %1422 = vmatprep.subr.mxu0 0.0
    %1423 = vmatpush2.msra.mxu0 0.0
    %1424 = vmatprep.subr.mxu0 0.0
    %1425 = vmatpush2.msra.mxu0 0.0
    %1426 = vmatprep.subr.mxu0 0.0
    %1427 = vmatpush2.msra.mxu0 0.0
    %1428 = vmatprep.subr.mxu0 0.0
    %1429 = vmatpush2.msra.mxu0 0.0
    %1430 = vmatprep.subr.mxu0 0.0
    %1431 = vmatpush2.msra.mxu0 0.0
    %1432 = vmatprep.subr.mxu0 0.0
    %1433 = vmatpush2.msra.mxu0 0.0
    %1434 = vmatprep.subr.mxu0 0.0
    %1435 = vmatpush2.msra.mxu0 0.0
    %1436 = vmatprep.subr.mxu0 0.0
    %1437 = vmatpush2.msra.mxu0 0.0
    %1438 = vmatprep.mubr.f32.mxu0 0.0
    %1439 = vmatmul.mubr.f32.gmra.mxu0 %v1159
    %v1440 = vpop.f32.mrf.mxu0
    %v1441 = vadd.f32 0.0, %v1440
    %v1442 = vpop.f32.mrf.mxu0
    %v1443 = vadd.f32 0.0, %v1442
    %1444 = vdwg.mxu0
    %1445 = vmatprep.subr.mxu0 0.0
    %1446 = vmatpush1.msra.mxu0 0.0
    %1447 = vmatprep.subr.mxu0 0.0
    %1448 = vmatpush1.msra.mxu0 0.0
    %1449 = vmatprep.subr.mxu0 0.0
    %1450 = vmatpush1.msra.mxu0 0.0
    %1451 = vmatprep.subr.mxu0 0.0
    %1452 = vmatpush1.msra.mxu0 0.0
    %1453 = vmatprep.subr.mxu0 0.0
    %1454 = vmatpush1.msra.mxu0 0.0
    %1455 = vmatprep.subr.mxu0 0.0
    %1456 = vmatpush1.msra.mxu0 0.0
    %1457 = vmatprep.subr.mxu0 0.0
    %1458 = vmatpush1.msra.mxu0 0.0
    %1459 = vmatprep.subr.mxu0 0.0
    %1460 = vmatpush1.msra.mxu0 0.0
    %1461 = vmatprep.subr.mxu0 0.0
    %1462 = vmatpush1.msra.mxu0 0.0
    %1463 = vmatprep.subr.mxu0 0.0
    %1464 = vmatpush1.msra.mxu0 0.0
    %1465 = vmatprep.subr.mxu0 0.0
    %1466 = vmatpush1.msra.mxu0 0.0
    %1467 = vmatprep.subr.mxu0 0.0
    %1468 = vmatpush1.msra.mxu0 0.0
    %1469 = vmatprep.subr.mxu0 0.0
    %1470 = vmatpush1.msra.mxu0 %v1156
    %1471 = vmatprep.subr.mxu0 0.0
    %1472 = vmatpush1.msra.mxu0 %v1147
    %1473 = vmatprep.subr.mxu0 0.0
    %1474 = vmatpush1.msra.mxu0 %v1138
    %1475 = vmatprep.subr.mxu0 0.0
    %1476 = vmatpush1.msra.mxu0 %v1129
    %1477 = vmatprep.subr.mxu0 0.0
    %1478 = vmatpush2.msra.mxu0 0.0
    %1479 = vmatprep.subr.mxu0 0.0
    %1480 = vmatpush2.msra.mxu0 0.0
    %1481 = vmatprep.subr.mxu0 0.0
    %1482 = vmatpush2.msra.mxu0 0.0
    %1483 = vmatprep.subr.mxu0 0.0
    %1484 = vmatpush2.msra.mxu0 0.0
    %1485 = vmatprep.subr.mxu0 0.0
    %1486 = vmatpush2.msra.mxu0 0.0
    %1487 = vmatprep.subr.mxu0 0.0
    %1488 = vmatpush2.msra.mxu0 0.0
    %1489 = vmatprep.subr.mxu0 0.0
    %1490 = vmatpush2.msra.mxu0 0.0
    %1491 = vmatprep.subr.mxu0 0.0
    %1492 = vmatpush2.msra.mxu0 0.0
    %1493 = vmatprep.subr.mxu0 0.0
    %1494 = vmatpush2.msra.mxu0 0.0
    %1495 = vmatprep.subr.mxu0 0.0
    %1496 = vmatpush2.msra.mxu0 0.0
    %1497 = vmatprep.subr.mxu0 0.0
    %1498 = vmatpush2.msra.mxu0 0.0
    %1499 = vmatprep.subr.mxu0 0.0
    %1500 = vmatpush2.msra.mxu0 0.0
    %1501 = vmatprep.subr.mxu0 0.0
    %1502 = vmatpush2.msra.mxu0 0.0
    %1503 = vmatprep.subr.mxu0 0.0
    %1504 = vmatpush2.msra.mxu0 0.0
    %1505 = vmatprep.subr.mxu0 0.0
    %1506 = vmatpush2.msra.mxu0 0.0
    %1507 = vmatprep.subr.mxu0 0.0
    %1508 = vmatpush2.msra.mxu0 0.0
    %1509 = vmatprep.mubr.f32.mxu0 0.0
    %1510 = vmatmul.mubr.f32.gmra.mxu0 %v1159
    %v1511 = vpop.f32.mrf.mxu0
    %v1512 = vadd.f32 0.0, %v1511
    %v1513 = vpop.f32.mrf.mxu0
    %1514 = vdwg.mxu0
    %v1516 = vsel %vm1157, %v1120, 0
    %1518 = vmatprep.subr.mxu0 0.0
    %1519 = vmatpush1.msra.mxu0 0.0
    %1520 = vmatprep.subr.mxu0 0.0
    %1521 = vmatpush1.msra.mxu0 0.0
    %1522 = vmatprep.subr.mxu0 0.0
    %1523 = vmatpush1.msra.mxu0 0.0
    %1524 = vmatprep.subr.mxu0 0.0
    %1525 = vmatpush1.msra.mxu0 0.0
    %1526 = vmatprep.subr.mxu0 0.0
    %1527 = vmatpush1.msra.mxu0 0.0
    %1528 = vmatprep.subr.mxu0 0.0
    %1529 = vmatpush1.msra.mxu0 0.0
    %1530 = vmatprep.subr.mxu0 0.0
    %1531 = vmatpush1.msra.mxu0 0.0
    %1532 = vmatprep.subr.mxu0 0.0
    %1533 = vmatpush1.msra.mxu0 0.0
    %1534 = vmatprep.subr.mxu0 0.0
    %1535 = vmatpush1.msra.mxu0 0.0
    %1536 = vmatprep.subr.mxu0 0.0
    %1537 = vmatpush1.msra.mxu0 0.0
    %1538 = vmatprep.subr.mxu0 0.0
    %1539 = vmatpush1.msra.mxu0 0.0
    %1540 = vmatprep.subr.mxu0 0.0
    %1541 = vmatpush1.msra.mxu0 0.0
    %1542 = vmatprep.subr.mxu0 %v1149
    %1543 = vmatpush1.msra.mxu0 %v1148
    %1544 = vmatprep.subr.mxu0 %v1140
    %1545 = vmatpush1.msra.mxu0 %v1139
    %1546 = vmatprep.subr.mxu0 %v1131
    %1547 = vmatpush1.msra.mxu0 %v1130
    %1548 = vmatprep.subr.mxu0 %v1122
    %1549 = vmatpush1.msra.mxu0 %v1121
    %1550 = vmatprep.subr.mxu0 0.0
    %1551 = vmatpush2.msra.mxu0 0.0
    %1552 = vmatprep.subr.mxu0 0.0
    %1553 = vmatpush2.msra.mxu0 0.0
    %1554 = vmatprep.subr.mxu0 0.0
    %1555 = vmatpush2.msra.mxu0 0.0
    %1556 = vmatprep.subr.mxu0 0.0
    %1557 = vmatpush2.msra.mxu0 0.0
    %1558 = vmatprep.subr.mxu0 0.0
    %1559 = vmatpush2.msra.mxu0 0.0
    %1560 = vmatprep.subr.mxu0 0.0
    %1561 = vmatpush2.msra.mxu0 0.0
    %1562 = vmatprep.subr.mxu0 0.0
    %1563 = vmatpush2.msra.mxu0 0.0
    %1564 = vmatprep.subr.mxu0 0.0
    %1565 = vmatpush2.msra.mxu0 0.0
    %1566 = vmatprep.subr.mxu0 0.0
    %1567 = vmatpush2.msra.mxu0 0.0
    %1568 = vmatprep.subr.mxu0 0.0
    %1569 = vmatpush2.msra.mxu0 0.0
    %1570 = vmatprep.subr.mxu0 0.0
    %1571 = vmatpush2.msra.mxu0 0.0
    %1572 = vmatprep.subr.mxu0 0.0
    %1573 = vmatpush2.msra.mxu0 0.0
    %1574 = vmatprep.subr.mxu0 0.0
    %1575 = vmatpush2.msra.mxu0 0.0
    %1576 = vmatprep.subr.mxu0 0.0
    %1577 = vmatpush2.msra.mxu0 0.0
    %1578 = vmatprep.subr.mxu0 0.0
    %1579 = vmatpush2.msra.mxu0 0.0
    %1580 = vmatprep.subr.mxu0 0.0
    %1581 = vmatpush2.msra.mxu0 0.0
    %1582 = vmatprep.mubr.f32.mxu0 0.0
    %1583 = vmatmul.mubr.f32.gmra.mxu0 %v1516
    %v1584 = vpop.f32.mrf.mxu0
    %v1585 = vadd.f32 0.0, %v1584
    %v1586 = vpop.f32.mrf.mxu0
    %v1587 = vadd.f32 0.0, %v1586
    %1588 = vdwg.mxu0
    %1589 = vmatprep.subr.mxu0 0.0
    %1590 = vmatpush1.msra.mxu0 0.0
    %1591 = vmatprep.subr.mxu0 0.0
    %1592 = vmatpush1.msra.mxu0 0.0
    %1593 = vmatprep.subr.mxu0 0.0
    %1594 = vmatpush1.msra.mxu0 0.0
    %1595 = vmatprep.subr.mxu0 0.0
    %1596 = vmatpush1.msra.mxu0 0.0
    %1597 = vmatprep.subr.mxu0 0.0
    %1598 = vmatpush1.msra.mxu0 0.0
    %1599 = vmatprep.subr.mxu0 0.0
    %1600 = vmatpush1.msra.mxu0 0.0
    %1601 = vmatprep.subr.mxu0 0.0
    %1602 = vmatpush1.msra.mxu0 0.0
    %1603 = vmatprep.subr.mxu0 0.0
    %1604 = vmatpush1.msra.mxu0 0.0
    %1605 = vmatprep.subr.mxu0 0.0
    %1606 = vmatpush1.msra.mxu0 0.0
    %1607 = vmatprep.subr.mxu0 0.0
    %1608 = vmatpush1.msra.mxu0 0.0
    %1609 = vmatprep.subr.mxu0 0.0
    %1610 = vmatpush1.msra.mxu0 0.0
    %1611 = vmatprep.subr.mxu0 0.0
    %1612 = vmatpush1.msra.mxu0 0.0
    %1613 = vmatprep.subr.mxu0 %v1151
    %1614 = vmatpush1.msra.mxu0 %v1150
    %1615 = vmatprep.subr.mxu0 %v1142
    %1616 = vmatpush1.msra.mxu0 %v1141
    %1617 = vmatprep.subr.mxu0 %v1133
    %1618 = vmatpush1.msra.mxu0 %v1132
    %1619 = vmatprep.subr.mxu0 %v1124
    %1620 = vmatpush1.msra.mxu0 %v1123
    %1621 = vmatprep.subr.mxu0 0.0
    %1622 = vmatpush2.msra.mxu0 0.0
    %1623 = vmatprep.subr.mxu0 0.0
    %1624 = vmatpush2.msra.mxu0 0.0
    %1625 = vmatprep.subr.mxu0 0.0
    %1626 = vmatpush2.msra.mxu0 0.0
    %1627 = vmatprep.subr.mxu0 0.0
    %1628 = vmatpush2.msra.mxu0 0.0
    %1629 = vmatprep.subr.mxu0 0.0
    %1630 = vmatpush2.msra.mxu0 0.0
    %1631 = vmatprep.subr.mxu0 0.0
    %1632 = vmatpush2.msra.mxu0 0.0
    %1633 = vmatprep.subr.mxu0 0.0
    %1634 = vmatpush2.msra.mxu0 0.0
    %1635 = vmatprep.subr.mxu0 0.0
    %1636 = vmatpush2.msra.mxu0 0.0
    %1637 = vmatprep.subr.mxu0 0.0
    %1638 = vmatpush2.msra.mxu0 0.0
    %1639 = vmatprep.subr.mxu0 0.0
    %1640 = vmatpush2.msra.mxu0 0.0
    %1641 = vmatprep.subr.mxu0 0.0
    %1642 = vmatpush2.msra.mxu0 0.0
    %1643 = vmatprep.subr.mxu0 0.0
    %1644 = vmatpush2.msra.mxu0 0.0
    %1645 = vmatprep.subr.mxu0 0.0
    %1646 = vmatpush2.msra.mxu0 0.0
    %1647 = vmatprep.subr.mxu0 0.0
    %1648 = vmatpush2.msra.mxu0 0.0
    %1649 = vmatprep.subr.mxu0 0.0
    %1650 = vmatpush2.msra.mxu0 0.0
    %1651 = vmatprep.subr.mxu0 0.0
    %1652 = vmatpush2.msra.mxu0 0.0
    %1653 = vmatprep.mubr.f32.mxu0 0.0
    %1654 = vmatmul.mubr.f32.gmra.mxu0 %v1516
    %v1655 = vpop.f32.mrf.mxu0
    %v1656 = vadd.f32 0.0, %v1655
    %v1657 = vpop.f32.mrf.mxu0
    %v1658 = vadd.f32 0.0, %v1657
    %1659 = vdwg.mxu0
    %1660 = vmatprep.subr.mxu0 0.0
    %1661 = vmatpush1.msra.mxu0 0.0
    %1662 = vmatprep.subr.mxu0 0.0
    %1663 = vmatpush1.msra.mxu0 0.0
    %1664 = vmatprep.subr.mxu0 0.0
    %1665 = vmatpush1.msra.mxu0 0.0
    %1666 = vmatprep.subr.mxu0 0.0
    %1667 = vmatpush1.msra.mxu0 0.0
    %1668 = vmatprep.subr.mxu0 0.0
    %1669 = vmatpush1.msra.mxu0 0.0
    %1670 = vmatprep.subr.mxu0 0.0
    %1671 = vmatpush1.msra.mxu0 0.0
    %1672 = vmatprep.subr.mxu0 0.0
    %1673 = vmatpush1.msra.mxu0 0.0
    %1674 = vmatprep.subr.mxu0 0.0
    %1675 = vmatpush1.msra.mxu0 0.0
    %1676 = vmatprep.subr.mxu0 0.0
    %1677 = vmatpush1.msra.mxu0 0.0
    %1678 = vmatprep.subr.mxu0 0.0
    %1679 = vmatpush1.msra.mxu0 0.0
    %1680 = vmatprep.subr.mxu0 0.0
    %1681 = vmatpush1.msra.mxu0 0.0
    %1682 = vmatprep.subr.mxu0 0.0
    %1683 = vmatpush1.msra.mxu0 0.0
    %1684 = vmatprep.subr.mxu0 %v1153
    %1685 = vmatpush1.msra.mxu0 %v1152
    %1686 = vmatprep.subr.mxu0 %v1144
    %1687 = vmatpush1.msra.mxu0 %v1143
    %1688 = vmatprep.subr.mxu0 %v1135
    %1689 = vmatpush1.msra.mxu0 %v1134
    %1690 = vmatprep.subr.mxu0 %v1126
    %1691 = vmatpush1.msra.mxu0 %v1125
    %1692 = vmatprep.subr.mxu0 0.0
    %1693 = vmatpush2.msra.mxu0 0.0
    %1694 = vmatprep.subr.mxu0 0.0
    %1695 = vmatpush2.msra.mxu0 0.0
    %1696 = vmatprep.subr.mxu0 0.0
    %1697 = vmatpush2.msra.mxu0 0.0
    %1698 = vmatprep.subr.mxu0 0.0
    %1699 = vmatpush2.msra.mxu0 0.0
    %1700 = vmatprep.subr.mxu0 0.0
    %1701 = vmatpush2.msra.mxu0 0.0
    %1702 = vmatprep.subr.mxu0 0.0
    %1703 = vmatpush2.msra.mxu0 0.0
    %1704 = vmatprep.subr.mxu0 0.0
    %1705 = vmatpush2.msra.mxu0 0.0
    %1706 = vmatprep.subr.mxu0 0.0
    %1707 = vmatpush2.msra.mxu0 0.0
    %1708 = vmatprep.subr.mxu0 0.0
    %1709 = vmatpush2.msra.mxu0 0.0
    %1710 = vmatprep.subr.mxu0 0.0
    %1711 = vmatpush2.msra.mxu0 0.0
    %1712 = vmatprep.subr.mxu0 0.0
    %1713 = vmatpush2.msra.mxu0 0.0
    %1714 = vmatprep.subr.mxu0 0.0
    %1715 = vmatpush2.msra.mxu0 0.0
    %1716 = vmatprep.subr.mxu0 0.0
    %1717 = vmatpush2.msra.mxu0 0.0
    %1718 = vmatprep.subr.mxu0 0.0
    %1719 = vmatpush2.msra.mxu0 0.0
    %1720 = vmatprep.subr.mxu0 0.0
    %1721 = vmatpush2.msra.mxu0 0.0
    %1722 = vmatprep.subr.mxu0 0.0
    %1723 = vmatpush2.msra.mxu0 0.0
    %1724 = vmatprep.mubr.f32.mxu0 0.0
    %1725 = vmatmul.mubr.f32.gmra.mxu0 %v1516
    %v1726 = vpop.f32.mrf.mxu0
    %v1727 = vadd.f32 0.0, %v1726
    %v1728 = vpop.f32.mrf.mxu0
    %v1729 = vadd.f32 0.0, %v1728
    %1730 = vdwg.mxu0
    %1731 = vmatprep.subr.mxu0 0.0
    %1732 = vmatpush1.msra.mxu0 0.0
    %1733 = vmatprep.subr.mxu0 0.0
    %1734 = vmatpush1.msra.mxu0 0.0
    %1735 = vmatprep.subr.mxu0 0.0
    %1736 = vmatpush1.msra.mxu0 0.0
    %1737 = vmatprep.subr.mxu0 0.0
    %1738 = vmatpush1.msra.mxu0 0.0
    %1739 = vmatprep.subr.mxu0 0.0
    %1740 = vmatpush1.msra.mxu0 0.0
    %1741 = vmatprep.subr.mxu0 0.0
    %1742 = vmatpush1.msra.mxu0 0.0
    %1743 = vmatprep.subr.mxu0 0.0
    %1744 = vmatpush1.msra.mxu0 0.0
    %1745 = vmatprep.subr.mxu0 0.0
    %1746 = vmatpush1.msra.mxu0 0.0
    %1747 = vmatprep.subr.mxu0 0.0
    %1748 = vmatpush1.msra.mxu0 0.0
    %1749 = vmatprep.subr.mxu0 0.0
    %1750 = vmatpush1.msra.mxu0 0.0
    %1751 = vmatprep.subr.mxu0 0.0
    %1752 = vmatpush1.msra.mxu0 0.0
    %1753 = vmatprep.subr.mxu0 0.0
    %1754 = vmatpush1.msra.mxu0 0.0
    %1755 = vmatprep.subr.mxu0 %v1155
    %1756 = vmatpush1.msra.mxu0 %v1154
    %1757 = vmatprep.subr.mxu0 %v1146
    %1758 = vmatpush1.msra.mxu0 %v1145
    %1759 = vmatprep.subr.mxu0 %v1137
    %1760 = vmatpush1.msra.mxu0 %v1136
    %1761 = vmatprep.subr.mxu0 %v1128
    %1762 = vmatpush1.msra.mxu0 %v1127
    %1763 = vmatprep.subr.mxu0 0.0
    %1764 = vmatpush2.msra.mxu0 0.0
    %1765 = vmatprep.subr.mxu0 0.0
    %1766 = vmatpush2.msra.mxu0 0.0
    %1767 = vmatprep.subr.mxu0 0.0
    %1768 = vmatpush2.msra.mxu0 0.0
    %1769 = vmatprep.subr.mxu0 0.0
    %1770 = vmatpush2.msra.mxu0 0.0
    %1771 = vmatprep.subr.mxu0 0.0
    %1772 = vmatpush2.msra.mxu0 0.0
    %1773 = vmatprep.subr.mxu0 0.0
    %1774 = vmatpush2.msra.mxu0 0.0
    %1775 = vmatprep.subr.mxu0 0.0
    %1776 = vmatpush2.msra.mxu0 0.0
    %1777 = vmatprep.subr.mxu0 0.0
    %1778 = vmatpush2.msra.mxu0 0.0
    %1779 = vmatprep.subr.mxu0 0.0
    %1780 = vmatpush2.msra.mxu0 0.0
    %1781 = vmatprep.subr.mxu0 0.0
    %1782 = vmatpush2.msra.mxu0 0.0
    %1783 = vmatprep.subr.mxu0 0.0
    %1784 = vmatpush2.msra.mxu0 0.0
    %1785 = vmatprep.subr.mxu0 0.0
    %1786 = vmatpush2.msra.mxu0 0.0
    %1787 = vmatprep.subr.mxu0 0.0
    %1788 = vmatpush2.msra.mxu0 0.0
    %1789 = vmatprep.subr.mxu0 0.0
    %1790 = vmatpush2.msra.mxu0 0.0
    %1791 = vmatprep.subr.mxu0 0.0
    %1792 = vmatpush2.msra.mxu0 0.0
    %1793 = vmatprep.subr.mxu0 0.0
    %1794 = vmatpush2.msra.mxu0 0.0
    %1795 = vmatprep.mubr.f32.mxu0 0.0
    %1796 = vmatmul.mubr.f32.gmra.mxu0 %v1516
    %v1797 = vpop.f32.mrf.mxu0
    %v1798 = vadd.f32 0.0, %v1797
    %v1799 = vpop.f32.mrf.mxu0
    %v1800 = vadd.f32 0.0, %v1799
    %1801 = vdwg.mxu0
    %1802 = vmatprep.subr.mxu0 0.0
    %1803 = vmatpush1.msra.mxu0 0.0
    %1804 = vmatprep.subr.mxu0 0.0
    %1805 = vmatpush1.msra.mxu0 0.0
    %1806 = vmatprep.subr.mxu0 0.0
    %1807 = vmatpush1.msra.mxu0 0.0
    %1808 = vmatprep.subr.mxu0 0.0
    %1809 = vmatpush1.msra.mxu0 0.0
    %1810 = vmatprep.subr.mxu0 0.0
    %1811 = vmatpush1.msra.mxu0 0.0
    %1812 = vmatprep.subr.mxu0 0.0
    %1813 = vmatpush1.msra.mxu0 0.0
    %1814 = vmatprep.subr.mxu0 0.0
    %1815 = vmatpush1.msra.mxu0 0.0
    %1816 = vmatprep.subr.mxu0 0.0
    %1817 = vmatpush1.msra.mxu0 0.0
    %1818 = vmatprep.subr.mxu0 0.0
    %1819 = vmatpush1.msra.mxu0 0.0
    %1820 = vmatprep.subr.mxu0 0.0
    %1821 = vmatpush1.msra.mxu0 0.0
    %1822 = vmatprep.subr.mxu0 0.0
    %1823 = vmatpush1.msra.mxu0 0.0
    %1824 = vmatprep.subr.mxu0 0.0
    %1825 = vmatpush1.msra.mxu0 0.0
    %1826 = vmatprep.subr.mxu0 0.0
    %1827 = vmatpush1.msra.mxu0 %v1156
    %1828 = vmatprep.subr.mxu0 0.0
    %1829 = vmatpush1.msra.mxu0 %v1147
    %1830 = vmatprep.subr.mxu0 0.0
    %1831 = vmatpush1.msra.mxu0 %v1138
    %1832 = vmatprep.subr.mxu0 0.0
    %1833 = vmatpush1.msra.mxu0 %v1129
    %1834 = vmatprep.subr.mxu0 0.0
    %1835 = vmatpush2.msra.mxu0 0.0
    %1836 = vmatprep.subr.mxu0 0.0
    %1837 = vmatpush2.msra.mxu0 0.0
    %1838 = vmatprep.subr.mxu0 0.0
    %1839 = vmatpush2.msra.mxu0 0.0
    %1840 = vmatprep.subr.mxu0 0.0
    %1841 = vmatpush2.msra.mxu0 0.0
    %1842 = vmatprep.subr.mxu0 0.0
    %1843 = vmatpush2.msra.mxu0 0.0
    %1844 = vmatprep.subr.mxu0 0.0
    %1845 = vmatpush2.msra.mxu0 0.0
    %1846 = vmatprep.subr.mxu0 0.0
    %1847 = vmatpush2.msra.mxu0 0.0
    %1848 = vmatprep.subr.mxu0 0.0
    %1849 = vmatpush2.msra.mxu0 0.0
    %1850 = vmatprep.subr.mxu0 0.0
    %1851 = vmatpush2.msra.mxu0 0.0
    %1852 = vmatprep.subr.mxu0 0.0
    %1853 = vmatpush2.msra.mxu0 0.0
    %1854 = vmatprep.subr.mxu0 0.0
    %1855 = vmatpush2.msra.mxu0 0.0
    %1856 = vmatprep.subr.mxu0 0.0
    %1857 = vmatpush2.msra.mxu0 0.0
    %1858 = vmatprep.subr.mxu0 0.0
    %1859 = vmatpush2.msra.mxu0 0.0
    %1860 = vmatprep.subr.mxu0 0.0
    %1861 = vmatpush2.msra.mxu0 0.0
    %1862 = vmatprep.subr.mxu0 0.0
    %1863 = vmatpush2.msra.mxu0 0.0
    %1864 = vmatprep.subr.mxu0 0.0
    %1865 = vmatpush2.msra.mxu0 0.0
    %1866 = vmatprep.mubr.f32.mxu0 0.0
    %1867 = vmatmul.mubr.f32.gmra.mxu0 %v1516
    %v1868 = vpop.f32.mrf.mxu0
    %v1869 = vadd.f32 0.0, %v1868
    %v1870 = vpop.f32.mrf.mxu0
    %1871 = vdwg.mxu0
    %v1872 = vlaneseq
    %v1873 = vshrl.u32 %v1872, 7
    %v1874 = vsub.s32 0, %v1873
    %v1875 = vrot.slane %v1228, %v1874
    %v1876 = vlaneseq
    %v1877 = vshrl.u32 %v1876, 7
    %v1878 = vsub.s32 0, %v1877
    %v1879 = vrot.slane %v1230, %v1878
    %v1880 = vlaneseq
    %v1881 = vshrl.u32 %v1880, 7
    %v1882 = vsub.s32 0, %v1881
    %v1883 = vrot.slane %v1299, %v1882
    %v1884 = vlaneseq
    %v1885 = vshrl.u32 %v1884, 7
    %v1886 = vsub.s32 0, %v1885
    %v1887 = vrot.slane %v1301, %v1886
    %v1888 = vlaneseq
    %v1889 = vshrl.u32 %v1888, 7
    %v1890 = vsub.s32 0, %v1889
    %v1891 = vrot.slane %v1370, %v1890
    %v1892 = vlaneseq
    %v1893 = vshrl.u32 %v1892, 7
    %v1894 = vsub.s32 0, %v1893
    %v1895 = vrot.slane %v1372, %v1894
    %v1896 = vlaneseq
    %v1897 = vshrl.u32 %v1896, 7
    %v1898 = vsub.s32 0, %v1897
    %v1899 = vrot.slane %v1441, %v1898
    %v1900 = vlaneseq
    %v1901 = vshrl.u32 %v1900, 7
    %v1902 = vsub.s32 0, %v1901
    %v1903 = vrot.slane %v1443, %v1902
    %v1904 = vlaneseq
    %v1905 = vshrl.u32 %v1904, 7
    %v1906 = vsub.s32 0, %v1905
    %v1907 = vrot.slane %v1512, %v1906
    %v1917 = vcombine.low %v1875, %v1879
    %v1918 = vcombine.low %v1883, %v1887
    %v1920 = vunpack.c.l.s4 1983009808
    %v1921 = vunpack.c.0.s8 %v1920
    %v1922 = vlaneseq
    %v1923 = vshrl.u32 %v1922, 7
    %v1924 = vsub.s32 %v1921, %v1923
    %v1925 = vrot.slane %v1917, %v1924
    %v1927 = vunpack.c.l.s4 1983009808
    %v1928 = vunpack.c.0.s8 %v1927
    %v1929 = vlaneseq
    %v1930 = vshrl.u32 %v1929, 7
    %v1931 = vsub.s32 %v1928, %v1930
    %v1932 = vrot.slane %v1918, %v1931
    %v1933 = vcombine.low %v1925, %v1932
    %v1934 = vcombine.low %v1891, %v1895
    %v1935 = vcombine.low %v1899, %v1903
    %v1937 = vunpack.c.l.s4 1983009808
    %v1938 = vunpack.c.0.s8 %v1937
    %v1939 = vlaneseq
    %v1940 = vshrl.u32 %v1939, 7
    %v1941 = vsub.s32 %v1938, %v1940
    %v1942 = vrot.slane %v1934, %v1941
    %v1944 = vunpack.c.l.s4 1983009808
    %v1945 = vunpack.c.0.s8 %v1944
    %v1946 = vlaneseq
    %v1947 = vshrl.u32 %v1946, 7
    %v1948 = vsub.s32 %v1945, %v1947
    %v1949 = vrot.slane %v1935, %v1948
    %v1950 = vcombine.low %v1942, %v1949
    %v1952 = vunpack.c.l.s4 1983009808
    %v1953 = vunpack.c.0.s8 %v1952
    %v1954 = vlaneseq
    %v1955 = vshrl.u32 %v1954, 7
    %v1956 = vsub.s32 %v1953, %v1955
    %v1957 = vrot.slane %v1907, %v1956
    %v1961 = vmul.f32 %v27, %v1933
    %v1962 = vmul.f32 %v28, %v1950
    %v1963 = vmul.f32 %v29, %v1957
    %v1964 = vlaneseq
    %v1965 = vshrl.u32 %v1964, 7
    %v1966 = vsub.s32 0, %v1965
    %v1967 = vrot.slane %v1585, %v1966
    %v1968 = vlaneseq
    %v1969 = vshrl.u32 %v1968, 7
    %v1970 = vsub.s32 0, %v1969
    %v1971 = vrot.slane %v1587, %v1970
    %v1972 = vlaneseq
    %v1973 = vshrl.u32 %v1972, 7
    %v1974 = vsub.s32 0, %v1973
    %v1975 = vrot.slane %v1656, %v1974
    %v1976 = vlaneseq
    %v1977 = vshrl.u32 %v1976, 7
    %v1978 = vsub.s32 0, %v1977
    %v1979 = vrot.slane %v1658, %v1978
    %v1980 = vlaneseq
    %v1981 = vshrl.u32 %v1980, 7
    %v1982 = vsub.s32 0, %v1981
    %v1983 = vrot.slane %v1727, %v1982
    %v1984 = vlaneseq
    %v1985 = vshrl.u32 %v1984, 7
    %v1986 = vsub.s32 0, %v1985
    %v1987 = vrot.slane %v1729, %v1986
    %v1988 = vlaneseq
    %v1989 = vshrl.u32 %v1988, 7
    %v1990 = vsub.s32 0, %v1989
    %v1991 = vrot.slane %v1798, %v1990
    %v1992 = vlaneseq
    %v1993 = vshrl.u32 %v1992, 7
    %v1994 = vsub.s32 0, %v1993
    %v1995 = vrot.slane %v1800, %v1994
    %v1996 = vlaneseq
    %v1997 = vshrl.u32 %v1996, 7
    %v1998 = vsub.s32 0, %v1997
    %v1999 = vrot.slane %v1869, %v1998
    %v2009 = vcombine.low %v1967, %v1971
    %v2010 = vcombine.low %v1975, %v1979
    %v2012 = vunpack.c.l.s4 1983009808
    %v2013 = vunpack.c.0.s8 %v2012
    %v2014 = vlaneseq
    %v2015 = vshrl.u32 %v2014, 7
    %v2016 = vsub.s32 %v2013, %v2015
    %v2017 = vrot.slane %v2009, %v2016
    %v2019 = vunpack.c.l.s4 1983009808
    %v2020 = vunpack.c.0.s8 %v2019
    %v2021 = vlaneseq
    %v2022 = vshrl.u32 %v2021, 7
    %v2023 = vsub.s32 %v2020, %v2022
    %v2024 = vrot.slane %v2010, %v2023
    %v2025 = vcombine.low %v2017, %v2024
    %v2026 = vcombine.low %v1983, %v1987
    %v2027 = vcombine.low %v1991, %v1995
    %v2029 = vunpack.c.l.s4 1983009808
    %v2030 = vunpack.c.0.s8 %v2029
    %v2031 = vlaneseq
    %v2032 = vshrl.u32 %v2031, 7
    %v2033 = vsub.s32 %v2030, %v2032
    %v2034 = vrot.slane %v2026, %v2033
    %v2036 = vunpack.c.l.s4 1983009808
    %v2037 = vunpack.c.0.s8 %v2036
    %v2038 = vlaneseq
    %v2039 = vshrl.u32 %v2038, 7
    %v2040 = vsub.s32 %v2037, %v2039
    %v2041 = vrot.slane %v2027, %v2040
    %v2042 = vcombine.low %v2034, %v2041
    %v2044 = vunpack.c.l.s4 1983009808
    %v2045 = vunpack.c.0.s8 %v2044
    %v2046 = vlaneseq
    %v2047 = vshrl.u32 %v2046, 7
    %v2048 = vsub.s32 %v2045, %v2047
    %v2049 = vrot.slane %v1999, %v2048
    %v2053 = vadd.f32 %v1961, %v2025
    %v2054 = vadd.f32 %v1962, %v2042
    %v2055 = vadd.f32 %v1963, %v2049
    %v2056 = vld [vmem:[%s3] sm:$0xff]
    %v2057 = vld [vmem:[%s3 + $0x8] sm:$0xff]
    %v2058 = vld [vmem:[%s3 + $0x10] sm:$0xff]
    %v2059 = vld [vmem:[%s3 + $0x18] sm:$0xff]
    %v2060 = vld [vmem:[%s3 + $0x20] sm:$0xff]
    %v2061 = vld [vmem:[%s3 + $0x28] sm:$0xff]
    %v2062 = vld [vmem:[%s3 + $0x30] sm:$0xff]
    %v2063 = vld [vmem:[%s3 + $0x38] sm:$0xff]
    %v2064 = vld [vmem:[%s3 + $0x40] sm:$0xff]
    %v2065 = vld [vmem:[%s3 + $0x48] sm:$0xff]
    %v2066 = vld [vmem:[%s3 + $0x50] sm:$0xff]
    %v2067 = vld [vmem:[%s3 + $0x58] sm:$0xff]
    %v2068 = vld [vmem:[%s3 + $0x60] sm:$0xff]
    %v2069 = vld [vmem:[%s3 + $0x68] sm:$0xff]
    %v2070 = vld [vmem:[%s3 + $0x70] sm:$0xff]
    %v2071 = vld [vmem:[%s3 + $0x78] sm:$0xff]
    %v2072 = vld [vmem:[%s3 + $0x80] sm:$0xff]
    %v2073 = vld [vmem:[%s3 + $0x88] sm:$0xff]
    %v2074 = vld [vmem:[%s3 + $0x90] sm:$0xff]
    %v2075 = vld [vmem:[%s3 + $0x98] sm:$0xff]
    %v2076 = vld [vmem:[%s3 + $0xa0] sm:$0xff]
    %v2077 = vld [vmem:[%s3 + $0xa8] sm:$0xff]
    %v2078 = vld [vmem:[%s3 + $0xb0] sm:$0xff]
    %v2079 = vld [vmem:[%s3 + $0xb8] sm:$0xff]
    %v2080 = vld [vmem:[%s3 + $0xc0] sm:$0xff]
    %v2081 = vld [vmem:[%s3 + $0xc8] sm:$0xff]
    %v2082 = vld [vmem:[%s3 + $0xd0] sm:$0xff]
    %v2083 = vld [vmem:[%s3 + $0xd8] sm:$0xff]
    %v2084 = vld [vmem:[%s3 + $0xe0] sm:$0xff]
    %v2085 = vld [vmem:[%s3 + $0xe8] sm:$0xff]
    %v2086 = vld [vmem:[%s3 + $0xf0] sm:$0xff]
    %v2087 = vld [vmem:[%s3 + $0xf8] sm:$0xff]
    %v2088 = vld [vmem:[%s3 + $0x100] sm:$0xff]
    %v2089 = vld [vmem:[%s3 + $0x108] sm:$0xff]
    %v2090 = vld [vmem:[%s3 + $0x110] sm:$0xff]
    %v2091 = vld [vmem:[%s3 + $0x118] sm:$0xff]
    %v2092 = vld [vmem:[%s3 + $0x120] sm:$0xff]
    %v2093 = vld [vmem:[%s3 + $0x128] sm:$0xff]
    %v2094 = vld [vmem:[%s3 + $0x130] sm:$0xff]
    %v2095 = vld [vmem:[%s3 + $0x138] sm:$0xff]
    %v2096 = vld [vmem:[%s3 + $0x140] sm:$0xff]
    %v2097 = vld [vmem:[%s3 + $0x148] sm:$0xff]
    %v2098 = vld [vmem:[%s3 + $0x150] sm:$0xff]
    %v2099 = vld [vmem:[%s3 + $0x158] sm:$0xff]
    %v2100 = vld [vmem:[%s3 + $0x160] sm:$0xff]
    %v2101 = vld [vmem:[%s3 + $0x168] sm:$0xff]
    %v2102 = vld [vmem:[%s3 + $0x170] sm:$0xff]
    %v2103 = vld [vmem:[%s3 + $0x178] sm:$0xff]
    %v2104 = vld [vmem:[%s3 + $0x180] sm:$0xff]
    %v2105 = vld [vmem:[%s3 + $0x188] sm:$0xff]
    %v2106 = vld [vmem:[%s3 + $0x190] sm:$0xff]
    %v2107 = vld [vmem:[%s3 + $0x198] sm:$0xff]
    %v2108 = vld [vmem:[%s3 + $0x1a0] sm:$0xff]
    %v2109 = vld [vmem:[%s3 + $0x1a8] sm:$0xff]
    %v2110 = vld [vmem:[%s3 + $0x1b0] sm:$0xff]
    %v2111 = vld [vmem:[%s3 + $0x1b8] sm:$0xff]
    %v2112 = vld [vmem:[%s3 + $0x1c0] sm:$0xff]
    %v2113 = vld [vmem:[%s3 + $0x1c8] sm:$0xff]
    %v2114 = vld [vmem:[%s3 + $0x1d0] sm:$0xff]
    %v2115 = vld [vmem:[%s3 + $0x1d8] sm:$0xff]
    %v2116 = vld [vmem:[%s3 + $0x1e0] sm:$0xff]
    %v2117 = vld [vmem:[%s3 + $0x1e8] sm:$0xff]
    %v2118 = vld [vmem:[%s3 + $0x1f0] sm:$0xff]
    %v2119 = vld [vmem:[%s3 + $0x1f8] sm:$0xff]
    %v2120 = vld [vmem:[%s3 + $0x200] sm:$0xff]
    %v2121 = vld [vmem:[%s3 + $0x208] sm:$0xff]
    %v2122 = vld [vmem:[%s3 + $0x210] sm:$0xff]
    %v2123 = vld [vmem:[%s3 + $0x218] sm:$0xff]
    %v2124 = vld [vmem:[%s3 + $0x220] sm:$0xff]
    %v2125 = vld [vmem:[%s3 + $0x228] sm:$0xff]
    %v2126 = vld [vmem:[%s3 + $0x230] sm:$0xff]
    %v2127 = vld [vmem:[%s3 + $0x238] sm:$0xff]
    %v2128 = vld [vmem:[%s3 + $0x240] sm:$0xff]
    %v2129 = vld [vmem:[%s3 + $0x248] sm:$0xff]
    %v2130 = vld [vmem:[%s3 + $0x250] sm:$0xff]
    %v2131 = vld [vmem:[%s3 + $0x258] sm:$0xff]
    %v2132 = vld [vmem:[%s3 + $0x260] sm:$0xff]
    %v2133 = vld [vmem:[%s3 + $0x268] sm:$0xff]
    %v2134 = vld [vmem:[%s3 + $0x270] sm:$0xff]
    %v2135 = vld [vmem:[%s3 + $0x278] sm:$0xff]
    %v2136 = vld [vmem:[%s3 + $0x280] sm:$0xff]
    %v2137 = vld [vmem:[%s3 + $0x288] sm:$0xff]
    %v2138 = vld [vmem:[%s3 + $0x290] sm:$0xff]
    %v2139 = vld [vmem:[%s3 + $0x298] sm:$0xff]
    %v2140 = vld [vmem:[%s3 + $0x2a0] sm:$0xff]
    %v2141 = vld [vmem:[%s3 + $0x2a8] sm:$0xff]
    %v2142 = vld [vmem:[%s3 + $0x2b0] sm:$0xff]
    %v2143 = vld [vmem:[%s3 + $0x2b8] sm:$0xff]
    %v2144 = vld [vmem:[%s3 + $0x2c0] sm:$0xff]
    %v2145 = vld [vmem:[%s3 + $0x2c8] sm:$0xff]
    %v2146 = vld [vmem:[%s3 + $0x2d0] sm:$0xff]
    %v2147 = vld [vmem:[%s3 + $0x2d8] sm:$0xff]
    %v2148 = vld [vmem:[%s3 + $0x2e0] sm:$0xff]
    %v2149 = vld [vmem:[%s3 + $0x2e8] sm:$0xff]
    %v2150 = vld [vmem:[%s3 + $0x2f0] sm:$0xff]
    %v2151 = vld [vmem:[%s3 + $0x2f8] sm:$0xff]
    %v2152 = vld [vmem:[%s3 + $0x300] sm:$0xff]
    %v2153 = vld [vmem:[%s3 + $0x308] sm:$0xff]
    %v2154 = vld [vmem:[%s3 + $0x310] sm:$0xff]
    %v2155 = vld [vmem:[%s3 + $0x318] sm:$0xff]
    %v2156 = vld [vmem:[%s3 + $0x320] sm:$0xff]
    %v2157 = vld [vmem:[%s3 + $0x328] sm:$0xff]
    %v2158 = vld [vmem:[%s3 + $0x330] sm:$0xff]
    %v2159 = vld [vmem:[%s3 + $0x338] sm:$0xff]
    %v2160 = vld [vmem:[%s3 + $0x340] sm:$0xff]
    %v2161 = vld [vmem:[%s3 + $0x348] sm:$0xff]
    %v2162 = vld [vmem:[%s3 + $0x350] sm:$0xff]
    %v2163 = vld [vmem:[%s3 + $0x358] sm:$0xff]
    %v2164 = vld [vmem:[%s3 + $0x360] sm:$0xff]
    %v2165 = vld [vmem:[%s3 + $0x368] sm:$0xff]
    %v2166 = vld [vmem:[%s3 + $0x370] sm:$0xff]
    %v2167 = vld [vmem:[%s3 + $0x378] sm:$0xff]
    %v2168 = vld [vmem:[%s3 + $0x380] sm:$0xff]
    %v2169 = vld [vmem:[%s3 + $0x388] sm:$0xff]
    %v2170 = vld [vmem:[%s3 + $0x390] sm:$0xff]
    %v2171 = vld [vmem:[%s3 + $0x398] sm:$0xff]
    %v2172 = vld [vmem:[%s3 + $0x3a0] sm:$0xff]
    %v2173 = vld [vmem:[%s3 + $0x3a8] sm:$0xff]
    %v2174 = vld [vmem:[%s3 + $0x3b0] sm:$0xff]
    %v2175 = vld [vmem:[%s3 + $0x3b8] sm:$0xff]
    %v2176 = vld [vmem:[%s3 + $0x3c0] sm:$0xff]
    %v2177 = vld [vmem:[%s3 + $0x3c8] sm:$0xff]
    %v2178 = vld [vmem:[%s3 + $0x3d0] sm:$0xff]
    %v2179 = vld [vmem:[%s3 + $0x3d8] sm:$0xff]
    %v2180 = vld [vmem:[%s3 + $0x3e0] sm:$0xff]
    %v2181 = vld [vmem:[%s3 + $0x3e8] sm:$0xff]
    %v2182 = vld [vmem:[%s3 + $0x3f0] sm:$0xff]
    %v2183 = vld [vmem:[%s3 + $0x3f8] sm:$0xff]
    %v2184 = vld [vmem:[%s3 + $0x400] sm:$0xff]
    %v2185 = vld [vmem:[%s3 + $0x408] sm:$0xff]
    %v2186 = vld [vmem:[%s3 + $0x410] sm:$0xff]
    %v2187 = vld [vmem:[%s3 + $0x418] sm:$0xff]
    %v2188 = vld [vmem:[%s3 + $0x420] sm:$0xff]
    %v2189 = vld [vmem:[%s3 + $0x428] sm:$0xff]
    %v2190 = vld [vmem:[%s3 + $0x430] sm:$0xff]
    %v2191 = vld [vmem:[%s3 + $0x438] sm:$0xff]
    %v2192 = vld [vmem:[%s3 + $0x440] sm:$0xff]
    %v2193 = vld [vmem:[%s3 + $0x448] sm:$0xff]
    %v2194 = vld [vmem:[%s3 + $0x450] sm:$0xff]
    %v2195 = vld [vmem:[%s3 + $0x458] sm:$0xff]
    %v2196 = vld [vmem:[%s3 + $0x460] sm:$0xff]
    %v2197 = vld [vmem:[%s3 + $0x468] sm:$0xff]
    %v2198 = vld [vmem:[%s3 + $0x470] sm:$0xff]
    %v2199 = vld [vmem:[%s3 + $0x478] sm:$0xff]
    %v2200 = vld [vmem:[%s4] sm:$0x1]
    %v2202 = vlaneseq
    %v2203 = vshrl.u32 %v2202, 7
    %v2204 = vsub.s32 0, %v2203
    %v2205 = vrot.slane %v2200, %v2204
    %v2210 = vcombine.high %v2053, %v2053
    %v2212 = vunpack.c.l.s4 1983009808
    %v2213 = vunpack.c.0.s8 %v2212
    %v2214 = vlaneseq
    %v2215 = vshrl.u32 %v2214, 7
    %v2216 = vsub.s32 %v2213, %v2215
    %v2217 = vrot.slane %v2053, %v2216
    %v2219 = vunpack.c.l.s4 1983009808
    %v2220 = vunpack.c.0.s8 %v2219
    %v2221 = vlaneseq
    %v2222 = vshrl.u32 %v2221, 7
    %v2223 = vsub.s32 %v2220, %v2222
    %v2224 = vrot.slane %v2210, %v2223
    %v2225 = vcombine.high %v2217, %v2217
    %v2226 = vcombine.high %v2224, %v2224
    %v2227 = vcombine.high %v2054, %v2054
    %v2229 = vunpack.c.l.s4 1983009808
    %v2230 = vunpack.c.0.s8 %v2229
    %v2231 = vlaneseq
    %v2232 = vshrl.u32 %v2231, 7
    %v2233 = vsub.s32 %v2230, %v2232
    %v2234 = vrot.slane %v2054, %v2233
    %v2236 = vunpack.c.l.s4 1983009808
    %v2237 = vunpack.c.0.s8 %v2236
    %v2238 = vlaneseq
    %v2239 = vshrl.u32 %v2238, 7
    %v2240 = vsub.s32 %v2237, %v2239
    %v2241 = vrot.slane %v2227, %v2240
    %v2242 = vcombine.high %v2234, %v2234
    %v2243 = vcombine.high %v2241, %v2241
    %v2245 = vunpack.c.l.s4 1983009808
    %v2246 = vunpack.c.0.s8 %v2245
    %v2247 = vlaneseq
    %v2248 = vshrl.u32 %v2247, 7
    %v2249 = vsub.s32 %v2246, %v2248
    %v2250 = vrot.slane %v2055, %v2249
    %2260 = vmatprep.subr.mxu0 0.0
    %2261 = vmatpush1.msra.mxu0 %v2071
    %2262 = vmatprep.subr.mxu0 0.0
    %2263 = vmatpush1.msra.mxu0 %v2070
    %2264 = vmatprep.subr.mxu0 0.0
    %2265 = vmatpush1.msra.mxu0 %v2069
    %2266 = vmatprep.subr.mxu0 0.0
    %2267 = vmatpush1.msra.mxu0 %v2068
    %2268 = vmatprep.subr.mxu0 0.0
    %2269 = vmatpush1.msra.mxu0 %v2067
    %2270 = vmatprep.subr.mxu0 0.0
    %2271 = vmatpush1.msra.mxu0 %v2066
    %2272 = vmatprep.subr.mxu0 0.0
    %2273 = vmatpush1.msra.mxu0 %v2065
    %2274 = vmatprep.subr.mxu0 0.0
    %2275 = vmatpush1.msra.mxu0 %v2064
    %2276 = vmatprep.subr.mxu0 0.0
    %2277 = vmatpush1.msra.mxu0 %v2063
    %2278 = vmatprep.subr.mxu0 0.0
    %2279 = vmatpush1.msra.mxu0 %v2062
    %2280 = vmatprep.subr.mxu0 0.0
    %2281 = vmatpush1.msra.mxu0 %v2061
    %2282 = vmatprep.subr.mxu0 0.0
    %2283 = vmatpush1.msra.mxu0 %v2060
    %2284 = vmatprep.subr.mxu0 0.0
    %2285 = vmatpush1.msra.mxu0 %v2059
    %2286 = vmatprep.subr.mxu0 0.0
    %2287 = vmatpush1.msra.mxu0 %v2058
    %2288 = vmatprep.subr.mxu0 0.0
    %2289 = vmatpush1.msra.mxu0 %v2057
    %2290 = vmatprep.subr.mxu0 0.0
    %2291 = vmatpush1.msra.mxu0 %v2056
    %2292 = vmatprep.subr.mxu0 0.0
    %2293 = vmatpush2.msra.mxu0 %v2087
    %2294 = vmatprep.subr.mxu0 0.0
    %2295 = vmatpush2.msra.mxu0 %v2086
    %2296 = vmatprep.subr.mxu0 0.0
    %2297 = vmatpush2.msra.mxu0 %v2085
    %2298 = vmatprep.subr.mxu0 0.0
    %2299 = vmatpush2.msra.mxu0 %v2084
    %2300 = vmatprep.subr.mxu0 0.0
    %2301 = vmatpush2.msra.mxu0 %v2083
    %2302 = vmatprep.subr.mxu0 0.0
    %2303 = vmatpush2.msra.mxu0 %v2082
    %2304 = vmatprep.subr.mxu0 0.0
    %2305 = vmatpush2.msra.mxu0 %v2081
    %2306 = vmatprep.subr.mxu0 0.0
    %2307 = vmatpush2.msra.mxu0 %v2080
    %2308 = vmatprep.subr.mxu0 0.0
    %2309 = vmatpush2.msra.mxu0 %v2079
    %2310 = vmatprep.subr.mxu0 0.0
    %2311 = vmatpush2.msra.mxu0 %v2078
    %2312 = vmatprep.subr.mxu0 0.0
    %2313 = vmatpush2.msra.mxu0 %v2077
    %2314 = vmatprep.subr.mxu0 0.0
    %2315 = vmatpush2.msra.mxu0 %v2076
    %2316 = vmatprep.subr.mxu0 0.0
    %2317 = vmatpush2.msra.mxu0 %v2075
    %2318 = vmatprep.subr.mxu0 0.0
    %2319 = vmatpush2.msra.mxu0 %v2074
    %2320 = vmatprep.subr.mxu0 0.0
    %2321 = vmatpush2.msra.mxu0 %v2073
    %2322 = vmatprep.subr.mxu0 0.0
    %2323 = vmatpush2.msra.mxu0 %v2072
    %2324 = vmatprep.mubr.f32.mxu0 %v2225
    %2325 = vmatmul.mubr.f32.gmra.mxu0 %v2217
    %v2326 = vpop.f32.mrf.mxu0
    %v2327 = vadd.f32 %v2205, %v2326
    %v2328 = vpop.f32.mrf.mxu0
    %2329 = vdwg.mxu0
    %2330 = vmatprep.subr.mxu0 0.0
    %2331 = vmatpush1.msra.mxu0 %v2103
    %2332 = vmatprep.subr.mxu0 0.0
    %2333 = vmatpush1.msra.mxu0 %v2102
    %2334 = vmatprep.subr.mxu0 0.0
    %2335 = vmatpush1.msra.mxu0 %v2101
    %2336 = vmatprep.subr.mxu0 0.0
    %2337 = vmatpush1.msra.mxu0 %v2100
    %2338 = vmatprep.subr.mxu0 0.0
    %2339 = vmatpush1.msra.mxu0 %v2099
    %2340 = vmatprep.subr.mxu0 0.0
    %2341 = vmatpush1.msra.mxu0 %v2098
    %2342 = vmatprep.subr.mxu0 0.0
    %2343 = vmatpush1.msra.mxu0 %v2097
    %2344 = vmatprep.subr.mxu0 0.0
    %2345 = vmatpush1.msra.mxu0 %v2096
    %2346 = vmatprep.subr.mxu0 0.0
    %2347 = vmatpush1.msra.mxu0 %v2095
    %2348 = vmatprep.subr.mxu0 0.0
    %2349 = vmatpush1.msra.mxu0 %v2094
    %2350 = vmatprep.subr.mxu0 0.0
    %2351 = vmatpush1.msra.mxu0 %v2093
    %2352 = vmatprep.subr.mxu0 0.0
    %2353 = vmatpush1.msra.mxu0 %v2092
    %2354 = vmatprep.subr.mxu0 0.0
    %2355 = vmatpush1.msra.mxu0 %v2091
    %2356 = vmatprep.subr.mxu0 0.0
    %2357 = vmatpush1.msra.mxu0 %v2090
    %2358 = vmatprep.subr.mxu0 0.0
    %2359 = vmatpush1.msra.mxu0 %v2089
    %2360 = vmatprep.subr.mxu0 0.0
    %2361 = vmatpush1.msra.mxu0 %v2088
    %2362 = vmatprep.subr.mxu0 0.0
    %2363 = vmatpush2.msra.mxu0 %v2119
    %2364 = vmatprep.subr.mxu0 0.0
    %2365 = vmatpush2.msra.mxu0 %v2118
    %2366 = vmatprep.subr.mxu0 0.0
    %2367 = vmatpush2.msra.mxu0 %v2117
    %2368 = vmatprep.subr.mxu0 0.0
    %2369 = vmatpush2.msra.mxu0 %v2116
    %2370 = vmatprep.subr.mxu0 0.0
    %2371 = vmatpush2.msra.mxu0 %v2115
    %2372 = vmatprep.subr.mxu0 0.0
    %2373 = vmatpush2.msra.mxu0 %v2114
    %2374 = vmatprep.subr.mxu0 0.0
    %2375 = vmatpush2.msra.mxu0 %v2113
    %2376 = vmatprep.subr.mxu0 0.0
    %2377 = vmatpush2.msra.mxu0 %v2112
    %2378 = vmatprep.subr.mxu0 0.0
    %2379 = vmatpush2.msra.mxu0 %v2111
    %2380 = vmatprep.subr.mxu0 0.0
    %2381 = vmatpush2.msra.mxu0 %v2110
    %2382 = vmatprep.subr.mxu0 0.0
    %2383 = vmatpush2.msra.mxu0 %v2109
    %2384 = vmatprep.subr.mxu0 0.0
    %2385 = vmatpush2.msra.mxu0 %v2108
    %2386 = vmatprep.subr.mxu0 0.0
    %2387 = vmatpush2.msra.mxu0 %v2107
    %2388 = vmatprep.subr.mxu0 0.0
    %2389 = vmatpush2.msra.mxu0 %v2106
    %2390 = vmatprep.subr.mxu0 0.0
    %2391 = vmatpush2.msra.mxu0 %v2105
    %2392 = vmatprep.subr.mxu0 0.0
    %2393 = vmatpush2.msra.mxu0 %v2104
    %2394 = vmatprep.mubr.f32.mxu0 %v2226
    %2395 = vmatmul.mubr.f32.gmra.mxu0 %v2224
    %v2396 = vpop.f32.mrf.mxu0
    %v2397 = vadd.f32 %v2327, %v2396
    %v2398 = vpop.f32.mrf.mxu0
    %2399 = vdwg.mxu0
    %2400 = vmatprep.subr.mxu0 0.0
    %2401 = vmatpush1.msra.mxu0 %v2135
    %2402 = vmatprep.subr.mxu0 0.0
    %2403 = vmatpush1.msra.mxu0 %v2134
    %2404 = vmatprep.subr.mxu0 0.0
    %2405 = vmatpush1.msra.mxu0 %v2133
    %2406 = vmatprep.subr.mxu0 0.0
    %2407 = vmatpush1.msra.mxu0 %v2132
    %2408 = vmatprep.subr.mxu0 0.0
    %2409 = vmatpush1.msra.mxu0 %v2131
    %2410 = vmatprep.subr.mxu0 0.0
    %2411 = vmatpush1.msra.mxu0 %v2130
    %2412 = vmatprep.subr.mxu0 0.0
    %2413 = vmatpush1.msra.mxu0 %v2129
    %2414 = vmatprep.subr.mxu0 0.0
    %2415 = vmatpush1.msra.mxu0 %v2128
    %2416 = vmatprep.subr.mxu0 0.0
    %2417 = vmatpush1.msra.mxu0 %v2127
    %2418 = vmatprep.subr.mxu0 0.0
    %2419 = vmatpush1.msra.mxu0 %v2126
    %2420 = vmatprep.subr.mxu0 0.0
    %2421 = vmatpush1.msra.mxu0 %v2125
    %2422 = vmatprep.subr.mxu0 0.0
    %2423 = vmatpush1.msra.mxu0 %v2124
    %2424 = vmatprep.subr.mxu0 0.0
    %2425 = vmatpush1.msra.mxu0 %v2123
    %2426 = vmatprep.subr.mxu0 0.0
    %2427 = vmatpush1.msra.mxu0 %v2122
    %2428 = vmatprep.subr.mxu0 0.0
    %2429 = vmatpush1.msra.mxu0 %v2121
    %2430 = vmatprep.subr.mxu0 0.0
    %2431 = vmatpush1.msra.mxu0 %v2120
    %2432 = vmatprep.subr.mxu0 0.0
    %2433 = vmatpush2.msra.mxu0 %v2151
    %2434 = vmatprep.subr.mxu0 0.0
    %2435 = vmatpush2.msra.mxu0 %v2150
    %2436 = vmatprep.subr.mxu0 0.0
    %2437 = vmatpush2.msra.mxu0 %v2149
    %2438 = vmatprep.subr.mxu0 0.0
    %2439 = vmatpush2.msra.mxu0 %v2148
    %2440 = vmatprep.subr.mxu0 0.0
    %2441 = vmatpush2.msra.mxu0 %v2147
    %2442 = vmatprep.subr.mxu0 0.0
    %2443 = vmatpush2.msra.mxu0 %v2146
    %2444 = vmatprep.subr.mxu0 0.0
    %2445 = vmatpush2.msra.mxu0 %v2145
    %2446 = vmatprep.subr.mxu0 0.0
    %2447 = vmatpush2.msra.mxu0 %v2144
    %2448 = vmatprep.subr.mxu0 0.0
    %2449 = vmatpush2.msra.mxu0 %v2143
    %2450 = vmatprep.subr.mxu0 0.0
    %2451 = vmatpush2.msra.mxu0 %v2142
    %2452 = vmatprep.subr.mxu0 0.0
    %2453 = vmatpush2.msra.mxu0 %v2141
    %2454 = vmatprep.subr.mxu0 0.0
    %2455 = vmatpush2.msra.mxu0 %v2140
    %2456 = vmatprep.subr.mxu0 0.0
    %2457 = vmatpush2.msra.mxu0 %v2139
    %2458 = vmatprep.subr.mxu0 0.0
    %2459 = vmatpush2.msra.mxu0 %v2138
    %2460 = vmatprep.subr.mxu0 0.0
    %2461 = vmatpush2.msra.mxu0 %v2137
    %2462 = vmatprep.subr.mxu0 0.0
    %2463 = vmatpush2.msra.mxu0 %v2136
    %2464 = vmatprep.mubr.f32.mxu0 %v2242
    %2465 = vmatmul.mubr.f32.gmra.mxu0 %v2234
    %v2466 = vpop.f32.mrf.mxu0
    %v2467 = vadd.f32 %v2397, %v2466
    %v2468 = vpop.f32.mrf.mxu0
    %2469 = vdwg.mxu0
    %2470 = vmatprep.subr.mxu0 0.0
    %2471 = vmatpush1.msra.mxu0 %v2167
    %2472 = vmatprep.subr.mxu0 0.0
    %2473 = vmatpush1.msra.mxu0 %v2166
    %2474 = vmatprep.subr.mxu0 0.0
    %2475 = vmatpush1.msra.mxu0 %v2165
    %2476 = vmatprep.subr.mxu0 0.0
    %2477 = vmatpush1.msra.mxu0 %v2164
    %2478 = vmatprep.subr.mxu0 0.0
    %2479 = vmatpush1.msra.mxu0 %v2163
    %2480 = vmatprep.subr.mxu0 0.0
    %2481 = vmatpush1.msra.mxu0 %v2162
    %2482 = vmatprep.subr.mxu0 0.0
    %2483 = vmatpush1.msra.mxu0 %v2161
    %2484 = vmatprep.subr.mxu0 0.0
    %2485 = vmatpush1.msra.mxu0 %v2160
    %2486 = vmatprep.subr.mxu0 0.0
    %2487 = vmatpush1.msra.mxu0 %v2159
    %2488 = vmatprep.subr.mxu0 0.0
    %2489 = vmatpush1.msra.mxu0 %v2158
    %2490 = vmatprep.subr.mxu0 0.0
    %2491 = vmatpush1.msra.mxu0 %v2157
    %2492 = vmatprep.subr.mxu0 0.0
    %2493 = vmatpush1.msra.mxu0 %v2156
    %2494 = vmatprep.subr.mxu0 0.0
    %2495 = vmatpush1.msra.mxu0 %v2155
    %2496 = vmatprep.subr.mxu0 0.0
    %2497 = vmatpush1.msra.mxu0 %v2154
    %2498 = vmatprep.subr.mxu0 0.0
    %2499 = vmatpush1.msra.mxu0 %v2153
    %2500 = vmatprep.subr.mxu0 0.0
    %2501 = vmatpush1.msra.mxu0 %v2152
    %2502 = vmatprep.subr.mxu0 0.0
    %2503 = vmatpush2.msra.mxu0 %v2183
    %2504 = vmatprep.subr.mxu0 0.0
    %2505 = vmatpush2.msra.mxu0 %v2182
    %2506 = vmatprep.subr.mxu0 0.0
    %2507 = vmatpush2.msra.mxu0 %v2181
    %2508 = vmatprep.subr.mxu0 0.0
    %2509 = vmatpush2.msra.mxu0 %v2180
    %2510 = vmatprep.subr.mxu0 0.0
    %2511 = vmatpush2.msra.mxu0 %v2179
    %2512 = vmatprep.subr.mxu0 0.0
    %2513 = vmatpush2.msra.mxu0 %v2178
    %2514 = vmatprep.subr.mxu0 0.0
    %2515 = vmatpush2.msra.mxu0 %v2177
    %2516 = vmatprep.subr.mxu0 0.0
    %2517 = vmatpush2.msra.mxu0 %v2176
    %2518 = vmatprep.subr.mxu0 0.0
    %2519 = vmatpush2.msra.mxu0 %v2175
    %2520 = vmatprep.subr.mxu0 0.0
    %2521 = vmatpush2.msra.mxu0 %v2174
    %2522 = vmatprep.subr.mxu0 0.0
    %2523 = vmatpush2.msra.mxu0 %v2173
    %2524 = vmatprep.subr.mxu0 0.0
    %2525 = vmatpush2.msra.mxu0 %v2172
    %2526 = vmatprep.subr.mxu0 0.0
    %2527 = vmatpush2.msra.mxu0 %v2171
    %2528 = vmatprep.subr.mxu0 0.0
    %2529 = vmatpush2.msra.mxu0 %v2170
    %2530 = vmatprep.subr.mxu0 0.0
    %2531 = vmatpush2.msra.mxu0 %v2169
    %2532 = vmatprep.subr.mxu0 0.0
    %2533 = vmatpush2.msra.mxu0 %v2168
    %2534 = vmatprep.mubr.f32.mxu0 %v2243
    %2535 = vmatmul.mubr.f32.gmra.mxu0 %v2241
    %v2536 = vpop.f32.mrf.mxu0
    %v2537 = vadd.f32 %v2467, %v2536
    %v2538 = vpop.f32.mrf.mxu0
    %2539 = vdwg.mxu0
    %2540 = vmatprep.subr.mxu0 0.0
    %2541 = vmatpush1.msra.mxu0 %v2199
    %2542 = vmatprep.subr.mxu0 0.0
    %2543 = vmatpush1.msra.mxu0 %v2198
    %2544 = vmatprep.subr.mxu0 0.0
    %2545 = vmatpush1.msra.mxu0 %v2197
    %2546 = vmatprep.subr.mxu0 0.0
    %2547 = vmatpush1.msra.mxu0 %v2196
    %2548 = vmatprep.subr.mxu0 0.0
    %2549 = vmatpush1.msra.mxu0 %v2195
    %2550 = vmatprep.subr.mxu0 0.0
    %2551 = vmatpush1.msra.mxu0 %v2194
    %2552 = vmatprep.subr.mxu0 0.0
    %2553 = vmatpush1.msra.mxu0 %v2193
    %2554 = vmatprep.subr.mxu0 0.0
    %2555 = vmatpush1.msra.mxu0 %v2192
    %2556 = vmatprep.subr.mxu0 0.0
    %2557 = vmatpush1.msra.mxu0 %v2191
    %2558 = vmatprep.subr.mxu0 0.0
    %2559 = vmatpush1.msra.mxu0 %v2190
    %2560 = vmatprep.subr.mxu0 0.0
    %2561 = vmatpush1.msra.mxu0 %v2189
    %2562 = vmatprep.subr.mxu0 0.0
    %2563 = vmatpush1.msra.mxu0 %v2188
    %2564 = vmatprep.subr.mxu0 0.0
    %2565 = vmatpush1.msra.mxu0 %v2187
    %2566 = vmatprep.subr.mxu0 0.0
    %2567 = vmatpush1.msra.mxu0 %v2186
    %2568 = vmatprep.subr.mxu0 0.0
    %2569 = vmatpush1.msra.mxu0 %v2185
    %2570 = vmatprep.subr.mxu0 0.0
    %2571 = vmatpush1.msra.mxu0 %v2184
    %2572 = vmatprep.subr.mxu0 0.0
    %2573 = vmatpush2.msra.mxu0 0.0
    %2574 = vmatprep.subr.mxu0 0.0
    %2575 = vmatpush2.msra.mxu0 0.0
    %2576 = vmatprep.subr.mxu0 0.0
    %2577 = vmatpush2.msra.mxu0 0.0
    %2578 = vmatprep.subr.mxu0 0.0
    %2579 = vmatpush2.msra.mxu0 0.0
    %2580 = vmatprep.subr.mxu0 0.0
    %2581 = vmatpush2.msra.mxu0 0.0
    %2582 = vmatprep.subr.mxu0 0.0
    %2583 = vmatpush2.msra.mxu0 0.0
    %2584 = vmatprep.subr.mxu0 0.0
    %2585 = vmatpush2.msra.mxu0 0.0
    %2586 = vmatprep.subr.mxu0 0.0
    %2587 = vmatpush2.msra.mxu0 0.0
    %2588 = vmatprep.subr.mxu0 0.0
    %2589 = vmatpush2.msra.mxu0 0.0
    %2590 = vmatprep.subr.mxu0 0.0
    %2591 = vmatpush2.msra.mxu0 0.0
    %2592 = vmatprep.subr.mxu0 0.0
    %2593 = vmatpush2.msra.mxu0 0.0
    %2594 = vmatprep.subr.mxu0 0.0
    %2595 = vmatpush2.msra.mxu0 0.0
    %2596 = vmatprep.subr.mxu0 0.0
    %2597 = vmatpush2.msra.mxu0 0.0
    %2598 = vmatprep.subr.mxu0 0.0
    %2599 = vmatpush2.msra.mxu0 0.0
    %2600 = vmatprep.subr.mxu0 0.0
    %2601 = vmatpush2.msra.mxu0 0.0
    %2602 = vmatprep.subr.mxu0 0.0
    %2603 = vmatpush2.msra.mxu0 0.0
    %2604 = vmatprep.mubr.f32.mxu0 0.0
    %2605 = vmatmul.mubr.f32.gmra.mxu0 %v2250
    %v2606 = vpop.f32.mrf.mxu0
    %v2607 = vadd.f32 %v2537, %v2606
    %v2608 = vpop.f32.mrf.mxu0
    %2609 = vdwg.mxu0
    %v2610 = vlaneseq
    %v2611 = vand.u32 %v2610, 127
    %vm2612 = vcmp.lt.s32.totalorder %v2611, 10
    %v2613 = vsel %vm2612, %v2607, -1e+30
    %v2614 = vsel %vm83, %v2613, -inf
    %2615 = vmax.xlane.f32.xlu0 %v2614
    %v2616 = vpop.xlane.xlu0 %2615
    %v2617 = vsub.f32 %v2613, %v2616
    %v2618 = vmul.f32 %v2617, 1.442695
    %v2619 = vpow.pop %v2618
    %v2620 = vsel %vm83, %v2619, 0.0
    %2621 = vadd.xlane.f32.xlu0 %v2620
    %v2622 = vpop.xlane.xlu0 %2621
    %v2623 = vlog2.pop %v2622
    %v2624 = vmul.f32 %v2623, 0.6931472
    %v2625 = vsub.f32 %v2617, %v2624
    %2626 = vst [vmem:[#allocation2] sm:$0x3] %v2625
    // Predicated region
    $region30: #{mnist_net_forward.3} parent=1 // pred_check
      _
    $region31: #{mnist_net_forward.3} parent=1 // pred_check_branch
      %2628 = sbr.rel (0) target = $region33
    $region32: #{mnist_net_forward.3} parent=1 // pred_region
      %s2630 = ssub.s32 32, 32
      %2631 = vsyncadd [#allocation3], %s2630
      %s2633 = sshll.u32 [#allocation2], 4
      %s2634 = int_to_ptr.vmem [resolvable:$true] %s2633
      %2636 = dma.vmem_to_hbm [thread:$0]  %s2634, 32, %s7, [#allocation3]
    $region33: #{mnist_net_forward.3} parent=1 // pred_fallthru
      _
    // Predicated region
    $region34: #{mnist_net_forward.3} parent=1 // pred_check
      _
    $region35: #{mnist_net_forward.3} parent=1 // pred_check_branch
      %2638 = sbr.rel (0) target = $region37
    $region36: #{mnist_net_forward.3} parent=1 // pred_region
      %2639 = dma.done [#allocation3], 32
    $region37: #{mnist_net_forward.3} parent=1 // pred_fallthru
      _
    %2640 = vsyncpa [#allocation3], 1

// kernel: mnist_net_forward.2
$region0: #{mnist_net_forward.2}
  #allocation0 [shape = 'u32[]', space=smem, size = 0x4, offset = 0x4, fixed_abs, tag = 'smem constant byte address 0x4 - core index']
  #allocation1 [shape = 'u32[144,128]{1,0:T(1,128)}', space=vmem, size = 0x12000, scoped, tag = 'internal scratch']
  %s0 = inlined_call_operand.vmem [shape: f32[2,4,7,28], index: 0, kind: input, shape index: {}]
  %s1 = inlined_call_operand.vmem [shape: f32[3,2,28,416], index: 1, kind: input, shape index: {}]
  %s2 = inlined_call_operand.vmem [shape: f32[1,416], index: 2, kind: input, shape index: {}]
  %s3 = inlined_call_operand.vmem [shape: f32[3,416,192], index: 3, kind: input, shape index: {}]
  %s4 = inlined_call_operand.vmem [shape: f32[1,192], index: 4, kind: input, shape index: {}]
  %s5 = inlined_call_operand.vmem [shape: f32[2,6,192], index: 5, kind: output, shape index: {}]
  %s6 = sld [smem:[#allocation0]]
  $region30: #{mnist_net_forward.2} parent=0
    _
  %s8 = ssub.s32 1, %s6
  %s9 = scalar_select 0, %s8, %s6
  // Predicated region
  $region2: #{mnist_net_forward.2} parent=0 // pred_check
    _
  $region3: #{mnist_net_forward.2} parent=0 // pred_check_branch
    %11 = sbr.rel (0) target = $region5
  $region4: #{mnist_net_forward.2} parent=0 // pred_region
    _
  $region5: #{mnist_net_forward.2} parent=0 // pred_fallthru
    _
  // Predicated region
  $region6: #{mnist_net_forward.2} parent=0 // pred_check
    _
  $region7: #{mnist_net_forward.2} parent=0 // pred_check_branch
    %13 = sbr.rel (0) target = $region9
  $region8: #{mnist_net_forward.2} parent=0 // pred_region
    _
  $region9: #{mnist_net_forward.2} parent=0 // pred_fallthru
    _
  // Predicated region
  $region10: #{mnist_net_forward.2} parent=0 // pred_check
    _
  $region11: #{mnist_net_forward.2} parent=0 // pred_check_branch
    %15 = sbr.rel (0) target = $region13
  $region12: #{mnist_net_forward.2} parent=0 // pred_region
    _
  $region13: #{mnist_net_forward.2} parent=0 // pred_fallthru
    _
  // Predicated region
  $region14: #{mnist_net_forward.2} parent=0 // pred_check
    _
  $region15: #{mnist_net_forward.2} parent=0 // pred_check_branch
    %17 = sbr.rel (0) target = $region17
  $region16: #{mnist_net_forward.2} parent=0 // pred_region
    _
  $region17: #{mnist_net_forward.2} parent=0 // pred_fallthru
    _
  // Predicated region
  $region18: #{mnist_net_forward.2} parent=0 // pred_check
    _
  $region19: #{mnist_net_forward.2} parent=0 // pred_check_branch
    %19 = sbr.rel (0) target = $region21
  $region20: #{mnist_net_forward.2} parent=0 // pred_region
    _
  $region21: #{mnist_net_forward.2} parent=0 // pred_fallthru
    _
  %v20 = vld [vmem:[%s2] sm:$0xf]
  %v21 = vld [vmem:[%s4] sm:$0x3]
  %v22 = vld [vmem:[%s0] sm:$0x7f]
  %s23 = scalar_lea.vmem %s0, 8
  %v24 = vld [vmem:[%s23] sm:$0x7f]
  %s25 = scalar_lea.vmem %s0, 16
  %v26 = vld [vmem:[%s25] sm:$0x7f]
  %s27 = scalar_lea.vmem %s0, 24
  %v28 = vld [vmem:[%s27] sm:$0x7f]
  %v29 = vld [vmem:[%s1] sm:$0xff]
  %v30 = vld [vmem:[%s1 + $0x8] sm:$0xff]
  %v31 = vld [vmem:[%s1 + $0x10] sm:$0xff]
  %v32 = vld [vmem:[%s1 + $0x18] sm:$0xff]
  %v33 = vld [vmem:[%s1 + $0x20] sm:$0xff]
  %v34 = vld [vmem:[%s1 + $0x28] sm:$0xff]
  %v35 = vld [vmem:[%s1 + $0x30] sm:$0xff]
  %v36 = vld [vmem:[%s1 + $0x38] sm:$0xff]
  %v37 = vld [vmem:[%s1 + $0x40] sm:$0xff]
  %v38 = vld [vmem:[%s1 + $0x48] sm:$0xff]
  %v39 = vld [vmem:[%s1 + $0x50] sm:$0xff]
  %v40 = vld [vmem:[%s1 + $0x58] sm:$0xff]
  %v41 = vld [vmem:[%s1 + $0x60] sm:$0xf]
  %v42 = vld [vmem:[%s1 + $0x68] sm:$0xf]
  %v43 = vld [vmem:[%s1 + $0x70] sm:$0xf]
  %v44 = vld [vmem:[%s1 + $0x78] sm:$0xf]
  %s45 = scalar_lea.vmem %s1, 256
  %v46 = vld [vmem:[%s45] sm:$0xff]
  %v47 = vld [vmem:[%s45 + $0x8] sm:$0xff]
  %v48 = vld [vmem:[%s45 + $0x10] sm:$0xff]
  %v49 = vld [vmem:[%s45 + $0x18] sm:$0xff]
  %v50 = vld [vmem:[%s45 + $0x20] sm:$0xff]
  %v51 = vld [vmem:[%s45 + $0x28] sm:$0xff]
  %v52 = vld [vmem:[%s45 + $0x30] sm:$0xff]
  %v53 = vld [vmem:[%s45 + $0x38] sm:$0xff]
  %v54 = vld [vmem:[%s45 + $0x40] sm:$0xff]
  %v55 = vld [vmem:[%s45 + $0x48] sm:$0xff]
  %v56 = vld [vmem:[%s45 + $0x50] sm:$0xff]
  %v57 = vld [vmem:[%s45 + $0x58] sm:$0xff]
  %v58 = vld [vmem:[%s45 + $0x60] sm:$0xf]
  %v59 = vld [vmem:[%s45 + $0x68] sm:$0xf]
  %v60 = vld [vmem:[%s45 + $0x70] sm:$0xf]
  %v61 = vld [vmem:[%s45 + $0x78] sm:$0xf]
  %vm62 = vcmask 228352
  %v64 = vsel %vm62, %v24, 0
  %vm66 = vcmask 1043456
  %v68 = vsel %vm66, %v58, 0
  %v71 = vsel %vm66, %v59, 0
  %v74 = vsel %vm66, %v60, 0
  %v77 = vsel %vm66, %v61, 0
  %79 = vmatprep.subr.mxu0 0.0
  %80 = vmatpush1.msra.mxu0 0.0
  %81 = vmatprep.subr.mxu0 0.0
  %82 = vmatpush1.msra.mxu0 0.0
  %83 = vmatprep.subr.mxu0 0.0
  %84 = vmatpush1.msra.mxu0 0.0
  %85 = vmatprep.subr.mxu0 0.0
  %86 = vmatpush1.msra.mxu0 0.0
  %87 = vmatprep.subr.mxu0 0.0
  %88 = vmatpush1.msra.mxu0 0.0
  %89 = vmatprep.subr.mxu0 0.0
  %90 = vmatpush1.msra.mxu0 0.0
  %91 = vmatprep.subr.mxu0 0.0
  %92 = vmatpush1.msra.mxu0 0.0
  %93 = vmatprep.subr.mxu0 0.0
  %94 = vmatpush1.msra.mxu0 0.0
  %95 = vmatprep.subr.mxu0 0.0
  %96 = vmatpush1.msra.mxu0 0.0
  %97 = vmatprep.subr.mxu0 0.0
  %98 = vmatpush1.msra.mxu0 0.0
  %99 = vmatprep.subr.mxu0 0.0
  %100 = vmatpush1.msra.mxu0 0.0
  %101 = vmatprep.subr.mxu0 0.0
  %102 = vmatpush1.msra.mxu0 0.0
  %103 = vmatprep.subr.mxu0 %v71
  %104 = vmatpush1.msra.mxu0 %v68
  %105 = vmatprep.subr.mxu0 %v55
  %106 = vmatpush1.msra.mxu0 %v54
  %107 = vmatprep.subr.mxu0 %v51
  %108 = vmatpush1.msra.mxu0 %v50
  %109 = vmatprep.subr.mxu0 %v47
  %110 = vmatpush1.msra.mxu0 %v46
  %111 = vmatprep.subr.mxu0 0.0
  %112 = vmatpush2.msra.mxu0 0.0
  %113 = vmatprep.subr.mxu0 0.0
  %114 = vmatpush2.msra.mxu0 0.0
  %115 = vmatprep.subr.mxu0 0.0
  %116 = vmatpush2.msra.mxu0 0.0
  %117 = vmatprep.subr.mxu0 0.0
  %118 = vmatpush2.msra.mxu0 0.0
  %119 = vmatprep.subr.mxu0 0.0
  %120 = vmatpush2.msra.mxu0 0.0
  %121 = vmatprep.subr.mxu0 0.0
  %122 = vmatpush2.msra.mxu0 0.0
  %123 = vmatprep.subr.mxu0 0.0
  %124 = vmatpush2.msra.mxu0 0.0
  %125 = vmatprep.subr.mxu0 0.0
  %126 = vmatpush2.msra.mxu0 0.0
  %127 = vmatprep.subr.mxu0 0.0
  %128 = vmatpush2.msra.mxu0 0.0
  %129 = vmatprep.subr.mxu0 0.0
  %130 = vmatpush2.msra.mxu0 0.0
  %131 = vmatprep.subr.mxu0 0.0
  %132 = vmatpush2.msra.mxu0 0.0
  %133 = vmatprep.subr.mxu0 0.0
  %134 = vmatpush2.msra.mxu0 0.0
  %135 = vmatprep.subr.mxu0 0.0
  %136 = vmatpush2.msra.mxu0 0.0
  %137 = vmatprep.subr.mxu0 0.0
  %138 = vmatpush2.msra.mxu0 0.0
  %139 = vmatprep.subr.mxu0 0.0
  %140 = vmatpush2.msra.mxu0 0.0
  %141 = vmatprep.subr.mxu0 0.0
  %142 = vmatpush2.msra.mxu0 0.0
  %143 = vmatprep.mubr.f32.mxu0 0.0
  %144 = vmatmul.mubr.f32.gmra.mxu0 %v64
  %v145 = vpop.f32.mrf.mxu0
  %v146 = vadd.f32 0.0, %v145
  %v147 = vpop.f32.mrf.mxu0
  %v148 = vadd.f32 0.0, %v147
  %149 = vdwg.mxu0
  %150 = vmatprep.subr.mxu0 0.0
  %151 = vmatpush1.msra.mxu0 0.0
  %152 = vmatprep.subr.mxu0 0.0
  %153 = vmatpush1.msra.mxu0 0.0
  %154 = vmatprep.subr.mxu0 0.0
  %155 = vmatpush1.msra.mxu0 0.0
  %156 = vmatprep.subr.mxu0 0.0
  %157 = vmatpush1.msra.mxu0 0.0
  %158 = vmatprep.subr.mxu0 0.0
  %159 = vmatpush1.msra.mxu0 0.0
  %160 = vmatprep.subr.mxu0 0.0
  %161 = vmatpush1.msra.mxu0 0.0
  %162 = vmatprep.subr.mxu0 0.0
  %163 = vmatpush1.msra.mxu0 0.0
  %164 = vmatprep.subr.mxu0 0.0
  %165 = vmatpush1.msra.mxu0 0.0
  %166 = vmatprep.subr.mxu0 0.0
  %167 = vmatpush1.msra.mxu0 0.0
  %168 = vmatprep.subr.mxu0 0.0
  %169 = vmatpush1.msra.mxu0 0.0
  %170 = vmatprep.subr.mxu0 0.0
  %171 = vmatpush1.msra.mxu0 0.0
  %172 = vmatprep.subr.mxu0 0.0
  %173 = vmatpush1.msra.mxu0 0.0
  %174 = vmatprep.subr.mxu0 %v77
  %175 = vmatpush1.msra.mxu0 %v74
  %176 = vmatprep.subr.mxu0 %v57
  %177 = vmatpush1.msra.mxu0 %v56
  %178 = vmatprep.subr.mxu0 %v53
  %179 = vmatpush1.msra.mxu0 %v52
  %180 = vmatprep.subr.mxu0 %v49
  %181 = vmatpush1.msra.mxu0 %v48
  %182 = vmatprep.subr.mxu0 0.0
  %183 = vmatpush2.msra.mxu0 0.0
  %184 = vmatprep.subr.mxu0 0.0
  %185 = vmatpush2.msra.mxu0 0.0
  %186 = vmatprep.subr.mxu0 0.0
  %187 = vmatpush2.msra.mxu0 0.0
  %188 = vmatprep.subr.mxu0 0.0
  %189 = vmatpush2.msra.mxu0 0.0
  %190 = vmatprep.subr.mxu0 0.0
  %191 = vmatpush2.msra.mxu0 0.0
  %192 = vmatprep.subr.mxu0 0.0
  %193 = vmatpush2.msra.mxu0 0.0
  %194 = vmatprep.subr.mxu0 0.0
  %195 = vmatpush2.msra.mxu0 0.0
  %196 = vmatprep.subr.mxu0 0.0
  %197 = vmatpush2.msra.mxu0 0.0
  %198 = vmatprep.subr.mxu0 0.0
  %199 = vmatpush2.msra.mxu0 0.0
  %200 = vmatprep.subr.mxu0 0.0
  %201 = vmatpush2.msra.mxu0 0.0
  %202 = vmatprep.subr.mxu0 0.0
  %203 = vmatpush2.msra.mxu0 0.0
  %204 = vmatprep.subr.mxu0 0.0
  %205 = vmatpush2.msra.mxu0 0.0
  %206 = vmatprep.subr.mxu0 0.0
  %207 = vmatpush2.msra.mxu0 0.0
  %208 = vmatprep.subr.mxu0 0.0
  %209 = vmatpush2.msra.mxu0 0.0
  %210 = vmatprep.subr.mxu0 0.0
  %211 = vmatpush2.msra.mxu0 0.0
  %212 = vmatprep.subr.mxu0 0.0
  %213 = vmatpush2.msra.mxu0 0.0
  %214 = vmatprep.mubr.f32.mxu0 0.0
  %215 = vmatmul.mubr.f32.gmra.mxu0 %v64
  %v216 = vpop.f32.mrf.mxu0
  %v217 = vadd.f32 0.0, %v216
  %v218 = vpop.f32.mrf.mxu0
  %v219 = vadd.f32 0.0, %v218
  %220 = vdwg.mxu0
  %v222 = vsel %vm62, %v22, 0
  %v225 = vsel %vm66, %v41, 0
  %v228 = vsel %vm66, %v42, 0
  %v231 = vsel %vm66, %v43, 0
  %v234 = vsel %vm66, %v44, 0
  %236 = vmatprep.subr.mxu0 0.0
  %237 = vmatpush1.msra.mxu0 0.0
  %238 = vmatprep.subr.mxu0 0.0
  %239 = vmatpush1.msra.mxu0 0.0
  %240 = vmatprep.subr.mxu0 0.0
  %241 = vmatpush1.msra.mxu0 0.0
  %242 = vmatprep.subr.mxu0 0.0
  %243 = vmatpush1.msra.mxu0 0.0
  %244 = vmatprep.subr.mxu0 0.0
  %245 = vmatpush1.msra.mxu0 0.0
  %246 = vmatprep.subr.mxu0 0.0
  %247 = vmatpush1.msra.mxu0 0.0
  %248 = vmatprep.subr.mxu0 0.0
  %249 = vmatpush1.msra.mxu0 0.0
  %250 = vmatprep.subr.mxu0 0.0
  %251 = vmatpush1.msra.mxu0 0.0
  %252 = vmatprep.subr.mxu0 0.0
  %253 = vmatpush1.msra.mxu0 0.0
  %254 = vmatprep.subr.mxu0 0.0
  %255 = vmatpush1.msra.mxu0 0.0
  %256 = vmatprep.subr.mxu0 0.0
  %257 = vmatpush1.msra.mxu0 0.0
  %258 = vmatprep.subr.mxu0 0.0
  %259 = vmatpush1.msra.mxu0 0.0
  %260 = vmatprep.subr.mxu0 %v228
  %261 = vmatpush1.msra.mxu0 %v225
  %262 = vmatprep.subr.mxu0 %v38
  %263 = vmatpush1.msra.mxu0 %v37
  %264 = vmatprep.subr.mxu0 %v34
  %265 = vmatpush1.msra.mxu0 %v33
  %266 = vmatprep.subr.mxu0 %v30
  %267 = vmatpush1.msra.mxu0 %v29
  %268 = vmatprep.subr.mxu0 0.0
  %269 = vmatpush2.msra.mxu0 0.0
  %270 = vmatprep.subr.mxu0 0.0
  %271 = vmatpush2.msra.mxu0 0.0
  %272 = vmatprep.subr.mxu0 0.0
  %273 = vmatpush2.msra.mxu0 0.0
  %274 = vmatprep.subr.mxu0 0.0
  %275 = vmatpush2.msra.mxu0 0.0
  %276 = vmatprep.subr.mxu0 0.0
  %277 = vmatpush2.msra.mxu0 0.0
  %278 = vmatprep.subr.mxu0 0.0
  %279 = vmatpush2.msra.mxu0 0.0
  %280 = vmatprep.subr.mxu0 0.0
  %281 = vmatpush2.msra.mxu0 0.0
  %282 = vmatprep.subr.mxu0 0.0
  %283 = vmatpush2.msra.mxu0 0.0
  %284 = vmatprep.subr.mxu0 0.0
  %285 = vmatpush2.msra.mxu0 0.0
  %286 = vmatprep.subr.mxu0 0.0
  %287 = vmatpush2.msra.mxu0 0.0
  %288 = vmatprep.subr.mxu0 0.0
  %289 = vmatpush2.msra.mxu0 0.0
  %290 = vmatprep.subr.mxu0 0.0
  %291 = vmatpush2.msra.mxu0 0.0
  %292 = vmatprep.subr.mxu0 0.0
  %293 = vmatpush2.msra.mxu0 0.0
  %294 = vmatprep.subr.mxu0 0.0
  %295 = vmatpush2.msra.mxu0 0.0
  %296 = vmatprep.subr.mxu0 0.0
  %297 = vmatpush2.msra.mxu0 0.0
  %298 = vmatprep.subr.mxu0 0.0
  %299 = vmatpush2.msra.mxu0 0.0
  %300 = vmatprep.mubr.f32.mxu0 0.0
  %301 = vmatmul.mubr.f32.gmra.mxu0 %v222
  %v302 = vpop.f32.mrf.mxu0
  %v303 = vadd.f32 %v146, %v302
  %v304 = vpop.f32.mrf.mxu0
  %v305 = vadd.f32 %v148, %v304
  %306 = vdwg.mxu0
  %307 = vmatprep.subr.mxu0 0.0
  %308 = vmatpush1.msra.mxu0 0.0
  %309 = vmatprep.subr.mxu0 0.0
  %310 = vmatpush1.msra.mxu0 0.0
  %311 = vmatprep.subr.mxu0 0.0
  %312 = vmatpush1.msra.mxu0 0.0
  %313 = vmatprep.subr.mxu0 0.0
  %314 = vmatpush1.msra.mxu0 0.0
  %315 = vmatprep.subr.mxu0 0.0
  %316 = vmatpush1.msra.mxu0 0.0
  %317 = vmatprep.subr.mxu0 0.0
  %318 = vmatpush1.msra.mxu0 0.0
  %319 = vmatprep.subr.mxu0 0.0
  %320 = vmatpush1.msra.mxu0 0.0
  %321 = vmatprep.subr.mxu0 0.0
  %322 = vmatpush1.msra.mxu0 0.0
  %323 = vmatprep.subr.mxu0 0.0
  %324 = vmatpush1.msra.mxu0 0.0
  %325 = vmatprep.subr.mxu0 0.0
  %326 = vmatpush1.msra.mxu0 0.0
  %327 = vmatprep.subr.mxu0 0.0
  %328 = vmatpush1.msra.mxu0 0.0
  %329 = vmatprep.subr.mxu0 0.0
  %330 = vmatpush1.msra.mxu0 0.0
  %331 = vmatprep.subr.mxu0 %v234
  %332 = vmatpush1.msra.mxu0 %v231
  %333 = vmatprep.subr.mxu0 %v40
  %334 = vmatpush1.msra.mxu0 %v39
  %335 = vmatprep.subr.mxu0 %v36
  %336 = vmatpush1.msra.mxu0 %v35
  %337 = vmatprep.subr.mxu0 %v32
  %338 = vmatpush1.msra.mxu0 %v31
  %339 = vmatprep.subr.mxu0 0.0
  %340 = vmatpush2.msra.mxu0 0.0
  %341 = vmatprep.subr.mxu0 0.0
  %342 = vmatpush2.msra.mxu0 0.0
  %343 = vmatprep.subr.mxu0 0.0
  %344 = vmatpush2.msra.mxu0 0.0
  %345 = vmatprep.subr.mxu0 0.0
  %346 = vmatpush2.msra.mxu0 0.0
  %347 = vmatprep.subr.mxu0 0.0
  %348 = vmatpush2.msra.mxu0 0.0
  %349 = vmatprep.subr.mxu0 0.0
  %350 = vmatpush2.msra.mxu0 0.0
  %351 = vmatprep.subr.mxu0 0.0
  %352 = vmatpush2.msra.mxu0 0.0
  %353 = vmatprep.subr.mxu0 0.0
  %354 = vmatpush2.msra.mxu0 0.0
  %355 = vmatprep.subr.mxu0 0.0
  %356 = vmatpush2.msra.mxu0 0.0
  %357 = vmatprep.subr.mxu0 0.0
  %358 = vmatpush2.msra.mxu0 0.0
  %359 = vmatprep.subr.mxu0 0.0
  %360 = vmatpush2.msra.mxu0 0.0
  %361 = vmatprep.subr.mxu0 0.0
  %362 = vmatpush2.msra.mxu0 0.0
  %363 = vmatprep.subr.mxu0 0.0
  %364 = vmatpush2.msra.mxu0 0.0
  %365 = vmatprep.subr.mxu0 0.0
  %366 = vmatpush2.msra.mxu0 0.0
  %367 = vmatprep.subr.mxu0 0.0
  %368 = vmatpush2.msra.mxu0 0.0
  %369 = vmatprep.subr.mxu0 0.0
  %370 = vmatpush2.msra.mxu0 0.0
  %371 = vmatprep.mubr.f32.mxu0 0.0
  %372 = vmatmul.mubr.f32.gmra.mxu0 %v222
  %v373 = vpop.f32.mrf.mxu0
  %v374 = vadd.f32 %v217, %v373
  %v375 = vpop.f32.mrf.mxu0
  %v376 = vadd.f32 %v219, %v375
  %377 = vdwg.mxu0
  %s378 = scalar_lea.vmem %s1, 512
  %v379 = vld [vmem:[%s378] sm:$0xff]
  %v380 = vld [vmem:[%s378 + $0x8] sm:$0xff]
  %v381 = vld [vmem:[%s378 + $0x10] sm:$0xff]
  %v382 = vld [vmem:[%s378 + $0x18] sm:$0xff]
  %v383 = vld [vmem:[%s378 + $0x20] sm:$0xff]
  %v384 = vld [vmem:[%s378 + $0x28] sm:$0xff]
  %v385 = vld [vmem:[%s378 + $0x30] sm:$0xff]
  %v386 = vld [vmem:[%s378 + $0x38] sm:$0xff]
  %v387 = vld [vmem:[%s378 + $0x40] sm:$0xff]
  %v388 = vld [vmem:[%s378 + $0x48] sm:$0xff]
  %v389 = vld [vmem:[%s378 + $0x50] sm:$0xff]
  %v390 = vld [vmem:[%s378 + $0x58] sm:$0xff]
  %v391 = vld [vmem:[%s378 + $0x60] sm:$0xf]
  %v392 = vld [vmem:[%s378 + $0x68] sm:$0xf]
  %v393 = vld [vmem:[%s378 + $0x70] sm:$0xf]
  %v394 = vld [vmem:[%s378 + $0x78] sm:$0xf]
  %v396 = vsel %vm62, %v26, 0
  %v399 = vsel %vm66, %v391, 0
  %v402 = vsel %vm66, %v392, 0
  %v405 = vsel %vm66, %v393, 0
  %v408 = vsel %vm66, %v394, 0
  %410 = vmatprep.subr.mxu0 0.0
  %411 = vmatpush1.msra.mxu0 0.0
  %412 = vmatprep.subr.mxu0 0.0
  %413 = vmatpush1.msra.mxu0 0.0
  %414 = vmatprep.subr.mxu0 0.0
  %415 = vmatpush1.msra.mxu0 0.0
  %416 = vmatprep.subr.mxu0 0.0
  %417 = vmatpush1.msra.mxu0 0.0
  %418 = vmatprep.subr.mxu0 0.0
  %419 = vmatpush1.msra.mxu0 0.0
  %420 = vmatprep.subr.mxu0 0.0
  %421 = vmatpush1.msra.mxu0 0.0
  %422 = vmatprep.subr.mxu0 0.0
  %423 = vmatpush1.msra.mxu0 0.0
  %424 = vmatprep.subr.mxu0 0.0
  %425 = vmatpush1.msra.mxu0 0.0
  %426 = vmatprep.subr.mxu0 0.0
  %427 = vmatpush1.msra.mxu0 0.0
  %428 = vmatprep.subr.mxu0 0.0
  %429 = vmatpush1.msra.mxu0 0.0
  %430 = vmatprep.subr.mxu0 0.0
  %431 = vmatpush1.msra.mxu0 0.0
  %432 = vmatprep.subr.mxu0 0.0
  %433 = vmatpush1.msra.mxu0 0.0
  %434 = vmatprep.subr.mxu0 %v402
  %435 = vmatpush1.msra.mxu0 %v399
  %436 = vmatprep.subr.mxu0 %v388
  %437 = vmatpush1.msra.mxu0 %v387
  %438 = vmatprep.subr.mxu0 %v384
  %439 = vmatpush1.msra.mxu0 %v383
  %440 = vmatprep.subr.mxu0 %v380
  %441 = vmatpush1.msra.mxu0 %v379
  %442 = vmatprep.subr.mxu0 0.0
  %443 = vmatpush2.msra.mxu0 0.0
  %444 = vmatprep.subr.mxu0 0.0
  %445 = vmatpush2.msra.mxu0 0.0
  %446 = vmatprep.subr.mxu0 0.0
  %447 = vmatpush2.msra.mxu0 0.0
  %448 = vmatprep.subr.mxu0 0.0
  %449 = vmatpush2.msra.mxu0 0.0
  %450 = vmatprep.subr.mxu0 0.0
  %451 = vmatpush2.msra.mxu0 0.0
  %452 = vmatprep.subr.mxu0 0.0
  %453 = vmatpush2.msra.mxu0 0.0
  %454 = vmatprep.subr.mxu0 0.0
  %455 = vmatpush2.msra.mxu0 0.0
  %456 = vmatprep.subr.mxu0 0.0
  %457 = vmatpush2.msra.mxu0 0.0
  %458 = vmatprep.subr.mxu0 0.0
  %459 = vmatpush2.msra.mxu0 0.0
  %460 = vmatprep.subr.mxu0 0.0
  %461 = vmatpush2.msra.mxu0 0.0
  %462 = vmatprep.subr.mxu0 0.0
  %463 = vmatpush2.msra.mxu0 0.0
  %464 = vmatprep.subr.mxu0 0.0
  %465 = vmatpush2.msra.mxu0 0.0
  %466 = vmatprep.subr.mxu0 0.0
  %467 = vmatpush2.msra.mxu0 0.0
  %468 = vmatprep.subr.mxu0 0.0
  %469 = vmatpush2.msra.mxu0 0.0
  %470 = vmatprep.subr.mxu0 0.0
  %471 = vmatpush2.msra.mxu0 0.0
  %472 = vmatprep.subr.mxu0 0.0
  %473 = vmatpush2.msra.mxu0 0.0
  %474 = vmatprep.mubr.f32.mxu0 0.0
  %475 = vmatmul.mubr.f32.gmra.mxu0 %v396
  %v476 = vpop.f32.mrf.mxu0
  %v477 = vadd.f32 0.0, %v476
  %v478 = vpop.f32.mrf.mxu0
  %v479 = vadd.f32 0.0, %v478
  %480 = vdwg.mxu0
  %481 = vmatprep.subr.mxu0 0.0
  %482 = vmatpush1.msra.mxu0 0.0
  %483 = vmatprep.subr.mxu0 0.0
  %484 = vmatpush1.msra.mxu0 0.0
  %485 = vmatprep.subr.mxu0 0.0
  %486 = vmatpush1.msra.mxu0 0.0
  %487 = vmatprep.subr.mxu0 0.0
  %488 = vmatpush1.msra.mxu0 0.0
  %489 = vmatprep.subr.mxu0 0.0
  %490 = vmatpush1.msra.mxu0 0.0
  %491 = vmatprep.subr.mxu0 0.0
  %492 = vmatpush1.msra.mxu0 0.0
  %493 = vmatprep.subr.mxu0 0.0
  %494 = vmatpush1.msra.mxu0 0.0
  %495 = vmatprep.subr.mxu0 0.0
  %496 = vmatpush1.msra.mxu0 0.0
  %497 = vmatprep.subr.mxu0 0.0
  %498 = vmatpush1.msra.mxu0 0.0
  %499 = vmatprep.subr.mxu0 0.0
  %500 = vmatpush1.msra.mxu0 0.0
  %501 = vmatprep.subr.mxu0 0.0
  %502 = vmatpush1.msra.mxu0 0.0
  %503 = vmatprep.subr.mxu0 0.0
  %504 = vmatpush1.msra.mxu0 0.0
  %505 = vmatprep.subr.mxu0 %v408
  %506 = vmatpush1.msra.mxu0 %v405
  %507 = vmatprep.subr.mxu0 %v390
  %508 = vmatpush1.msra.mxu0 %v389
  %509 = vmatprep.subr.mxu0 %v386
  %510 = vmatpush1.msra.mxu0 %v385
  %511 = vmatprep.subr.mxu0 %v382
  %512 = vmatpush1.msra.mxu0 %v381
  %513 = vmatprep.subr.mxu0 0.0
  %514 = vmatpush2.msra.mxu0 0.0
  %515 = vmatprep.subr.mxu0 0.0
  %516 = vmatpush2.msra.mxu0 0.0
  %517 = vmatprep.subr.mxu0 0.0
  %518 = vmatpush2.msra.mxu0 0.0
  %519 = vmatprep.subr.mxu0 0.0
  %520 = vmatpush2.msra.mxu0 0.0
  %521 = vmatprep.subr.mxu0 0.0
  %522 = vmatpush2.msra.mxu0 0.0
  %523 = vmatprep.subr.mxu0 0.0
  %524 = vmatpush2.msra.mxu0 0.0
  %525 = vmatprep.subr.mxu0 0.0
  %526 = vmatpush2.msra.mxu0 0.0
  %527 = vmatprep.subr.mxu0 0.0
  %528 = vmatpush2.msra.mxu0 0.0
  %529 = vmatprep.subr.mxu0 0.0
  %530 = vmatpush2.msra.mxu0 0.0
  %531 = vmatprep.subr.mxu0 0.0
  %532 = vmatpush2.msra.mxu0 0.0
  %533 = vmatprep.subr.mxu0 0.0
  %534 = vmatpush2.msra.mxu0 0.0
  %535 = vmatprep.subr.mxu0 0.0
  %536 = vmatpush2.msra.mxu0 0.0
  %537 = vmatprep.subr.mxu0 0.0
  %538 = vmatpush2.msra.mxu0 0.0
  %539 = vmatprep.subr.mxu0 0.0
  %540 = vmatpush2.msra.mxu0 0.0
  %541 = vmatprep.subr.mxu0 0.0
  %542 = vmatpush2.msra.mxu0 0.0
  %543 = vmatprep.subr.mxu0 0.0
  %544 = vmatpush2.msra.mxu0 0.0
  %545 = vmatprep.mubr.f32.mxu0 0.0
  %546 = vmatmul.mubr.f32.gmra.mxu0 %v396
  %v547 = vpop.f32.mrf.mxu0
  %v548 = vadd.f32 0.0, %v547
  %v549 = vpop.f32.mrf.mxu0
  %v550 = vadd.f32 0.0, %v549
  %551 = vdwg.mxu0
  %v552 = vadd.f32 %v303, %v477
  %v553 = vadd.f32 %v305, %v479
  %v554 = vadd.f32 %v374, %v548
  %v555 = vadd.f32 %v376, %v550
  %556 = vmatprep.subr.mxu0 0.0
  %557 = vmatpush1.msra.mxu0 0.0
  %558 = vmatprep.subr.mxu0 0.0
  %559 = vmatpush1.msra.mxu0 0.0
  %560 = vmatprep.subr.mxu0 0.0
  %561 = vmatpush1.msra.mxu0 0.0
  %562 = vmatprep.subr.mxu0 0.0
  %563 = vmatpush1.msra.mxu0 0.0
  %564 = vmatprep.subr.mxu0 0.0
  %565 = vmatpush1.msra.mxu0 0.0
  %566 = vmatprep.subr.mxu0 0.0
  %567 = vmatpush1.msra.mxu0 0.0
  %568 = vmatprep.subr.mxu0 0.0
  %569 = vmatpush1.msra.mxu0 0.0
  %570 = vmatprep.subr.mxu0 0.0
  %571 = vmatpush1.msra.mxu0 0.0
  %572 = vmatprep.subr.mxu0 0.0
  %573 = vmatpush1.msra.mxu0 0.0
  %574 = vmatprep.subr.mxu0 0.0
  %575 = vmatpush1.msra.mxu0 0.0
  %576 = vmatprep.subr.mxu0 0.0
  %577 = vmatpush1.msra.mxu0 0.0
  %578 = vmatprep.subr.mxu0 0.0
  %579 = vmatpush1.msra.mxu0 0.0
  %580 = vmatprep.subr.mxu0 %v71
  %581 = vmatpush1.msra.mxu0 %v68
  %582 = vmatprep.subr.mxu0 %v55
  %583 = vmatpush1.msra.mxu0 %v54
  %584 = vmatprep.subr.mxu0 %v51
  %585 = vmatpush1.msra.mxu0 %v50
  %586 = vmatprep.subr.mxu0 %v47
  %587 = vmatpush1.msra.mxu0 %v46
  %588 = vmatprep.subr.mxu0 0.0
  %589 = vmatpush2.msra.mxu0 0.0
  %590 = vmatprep.subr.mxu0 0.0
  %591 = vmatpush2.msra.mxu0 0.0
  %592 = vmatprep.subr.mxu0 0.0
  %593 = vmatpush2.msra.mxu0 0.0
  %594 = vmatprep.subr.mxu0 0.0
  %595 = vmatpush2.msra.mxu0 0.0
  %596 = vmatprep.subr.mxu0 0.0
  %597 = vmatpush2.msra.mxu0 0.0
  %598 = vmatprep.subr.mxu0 0.0
  %599 = vmatpush2.msra.mxu0 0.0
  %600 = vmatprep.subr.mxu0 0.0
  %601 = vmatpush2.msra.mxu0 0.0
  %602 = vmatprep.subr.mxu0 0.0
  %603 = vmatpush2.msra.mxu0 0.0
  %604 = vmatprep.subr.mxu0 0.0
  %605 = vmatpush2.msra.mxu0 0.0
  %606 = vmatprep.subr.mxu0 0.0
  %607 = vmatpush2.msra.mxu0 0.0
  %608 = vmatprep.subr.mxu0 0.0
  %609 = vmatpush2.msra.mxu0 0.0
  %610 = vmatprep.subr.mxu0 0.0
  %611 = vmatpush2.msra.mxu0 0.0
  %612 = vmatprep.subr.mxu0 0.0
  %613 = vmatpush2.msra.mxu0 0.0
  %614 = vmatprep.subr.mxu0 0.0
  %615 = vmatpush2.msra.mxu0 0.0
  %616 = vmatprep.subr.mxu0 0.0
  %617 = vmatpush2.msra.mxu0 0.0
  %618 = vmatprep.subr.mxu0 0.0
  %619 = vmatpush2.msra.mxu0 0.0
  %620 = vmatprep.mubr.f32.mxu0 0.0
  %621 = vmatmul.mubr.f32.gmra.mxu0 %v396
  %v622 = vpop.f32.mrf.mxu0
  %v623 = vadd.f32 0.0, %v622
  %v624 = vpop.f32.mrf.mxu0
  %v625 = vadd.f32 0.0, %v624
  %626 = vdwg.mxu0
  %627 = vmatprep.subr.mxu0 0.0
  %628 = vmatpush1.msra.mxu0 0.0
  %629 = vmatprep.subr.mxu0 0.0
  %630 = vmatpush1.msra.mxu0 0.0
  %631 = vmatprep.subr.mxu0 0.0
  %632 = vmatpush1.msra.mxu0 0.0
  %633 = vmatprep.subr.mxu0 0.0
  %634 = vmatpush1.msra.mxu0 0.0
  %635 = vmatprep.subr.mxu0 0.0
  %636 = vmatpush1.msra.mxu0 0.0
  %637 = vmatprep.subr.mxu0 0.0
  %638 = vmatpush1.msra.mxu0 0.0
  %639 = vmatprep.subr.mxu0 0.0
  %640 = vmatpush1.msra.mxu0 0.0
  %641 = vmatprep.subr.mxu0 0.0
  %642 = vmatpush1.msra.mxu0 0.0
  %643 = vmatprep.subr.mxu0 0.0
  %644 = vmatpush1.msra.mxu0 0.0
  %645 = vmatprep.subr.mxu0 0.0
  %646 = vmatpush1.msra.mxu0 0.0
  %647 = vmatprep.subr.mxu0 0.0
  %648 = vmatpush1.msra.mxu0 0.0
  %649 = vmatprep.subr.mxu0 0.0
  %650 = vmatpush1.msra.mxu0 0.0
  %651 = vmatprep.subr.mxu0 %v77
  %652 = vmatpush1.msra.mxu0 %v74
  %653 = vmatprep.subr.mxu0 %v57
  %654 = vmatpush1.msra.mxu0 %v56
  %655 = vmatprep.subr.mxu0 %v53
  %656 = vmatpush1.msra.mxu0 %v52
  %657 = vmatprep.subr.mxu0 %v49
  %658 = vmatpush1.msra.mxu0 %v48
  %659 = vmatprep.subr.mxu0 0.0
  %660 = vmatpush2.msra.mxu0 0.0
  %661 = vmatprep.subr.mxu0 0.0
  %662 = vmatpush2.msra.mxu0 0.0
  %663 = vmatprep.subr.mxu0 0.0
  %664 = vmatpush2.msra.mxu0 0.0
  %665 = vmatprep.subr.mxu0 0.0
  %666 = vmatpush2.msra.mxu0 0.0
  %667 = vmatprep.subr.mxu0 0.0
  %668 = vmatpush2.msra.mxu0 0.0
  %669 = vmatprep.subr.mxu0 0.0
  %670 = vmatpush2.msra.mxu0 0.0
  %671 = vmatprep.subr.mxu0 0.0
  %672 = vmatpush2.msra.mxu0 0.0
  %673 = vmatprep.subr.mxu0 0.0
  %674 = vmatpush2.msra.mxu0 0.0
  %675 = vmatprep.subr.mxu0 0.0
  %676 = vmatpush2.msra.mxu0 0.0
  %677 = vmatprep.subr.mxu0 0.0
  %678 = vmatpush2.msra.mxu0 0.0
  %679 = vmatprep.subr.mxu0 0.0
  %680 = vmatpush2.msra.mxu0 0.0
  %681 = vmatprep.subr.mxu0 0.0
  %682 = vmatpush2.msra.mxu0 0.0
  %683 = vmatprep.subr.mxu0 0.0
  %684 = vmatpush2.msra.mxu0 0.0
  %685 = vmatprep.subr.mxu0 0.0
  %686 = vmatpush2.msra.mxu0 0.0
  %687 = vmatprep.subr.mxu0 0.0
  %688 = vmatpush2.msra.mxu0 0.0
  %689 = vmatprep.subr.mxu0 0.0
  %690 = vmatpush2.msra.mxu0 0.0
  %691 = vmatprep.mubr.f32.mxu0 0.0
  %692 = vmatmul.mubr.f32.gmra.mxu0 %v396
  %v693 = vpop.f32.mrf.mxu0
  %v694 = vadd.f32 0.0, %v693
  %v695 = vpop.f32.mrf.mxu0
  %v696 = vadd.f32 0.0, %v695
  %697 = vdwg.mxu0
  %698 = vmatprep.subr.mxu0 0.0
  %699 = vmatpush1.msra.mxu0 0.0
  %700 = vmatprep.subr.mxu0 0.0
  %701 = vmatpush1.msra.mxu0 0.0
  %702 = vmatprep.subr.mxu0 0.0
  %703 = vmatpush1.msra.mxu0 0.0
  %704 = vmatprep.subr.mxu0 0.0
  %705 = vmatpush1.msra.mxu0 0.0
  %706 = vmatprep.subr.mxu0 0.0
  %707 = vmatpush1.msra.mxu0 0.0
  %708 = vmatprep.subr.mxu0 0.0
  %709 = vmatpush1.msra.mxu0 0.0
  %710 = vmatprep.subr.mxu0 0.0
  %711 = vmatpush1.msra.mxu0 0.0
  %712 = vmatprep.subr.mxu0 0.0
  %713 = vmatpush1.msra.mxu0 0.0
  %714 = vmatprep.subr.mxu0 0.0
  %715 = vmatpush1.msra.mxu0 0.0
  %716 = vmatprep.subr.mxu0 0.0
  %717 = vmatpush1.msra.mxu0 0.0
  %718 = vmatprep.subr.mxu0 0.0
  %719 = vmatpush1.msra.mxu0 0.0
  %720 = vmatprep.subr.mxu0 0.0
  %721 = vmatpush1.msra.mxu0 0.0
  %722 = vmatprep.subr.mxu0 %v228
  %723 = vmatpush1.msra.mxu0 %v225
  %724 = vmatprep.subr.mxu0 %v38
  %725 = vmatpush1.msra.mxu0 %v37
  %726 = vmatprep.subr.mxu0 %v34
  %727 = vmatpush1.msra.mxu0 %v33
  %728 = vmatprep.subr.mxu0 %v30
  %729 = vmatpush1.msra.mxu0 %v29
  %730 = vmatprep.subr.mxu0 0.0
  %731 = vmatpush2.msra.mxu0 0.0
  %732 = vmatprep.subr.mxu0 0.0
  %733 = vmatpush2.msra.mxu0 0.0
  %734 = vmatprep.subr.mxu0 0.0
  %735 = vmatpush2.msra.mxu0 0.0
  %736 = vmatprep.subr.mxu0 0.0
  %737 = vmatpush2.msra.mxu0 0.0
  %738 = vmatprep.subr.mxu0 0.0
  %739 = vmatpush2.msra.mxu0 0.0
  %740 = vmatprep.subr.mxu0 0.0
  %741 = vmatpush2.msra.mxu0 0.0
  %742 = vmatprep.subr.mxu0 0.0
  %743 = vmatpush2.msra.mxu0 0.0
  %744 = vmatprep.subr.mxu0 0.0
  %745 = vmatpush2.msra.mxu0 0.0
  %746 = vmatprep.subr.mxu0 0.0
  %747 = vmatpush2.msra.mxu0 0.0
  %748 = vmatprep.subr.mxu0 0.0
  %749 = vmatpush2.msra.mxu0 0.0
  %750 = vmatprep.subr.mxu0 0.0
  %751 = vmatpush2.msra.mxu0 0.0
  %752 = vmatprep.subr.mxu0 0.0
  %753 = vmatpush2.msra.mxu0 0.0
  %754 = vmatprep.subr.mxu0 0.0
  %755 = vmatpush2.msra.mxu0 0.0
  %756 = vmatprep.subr.mxu0 0.0
  %757 = vmatpush2.msra.mxu0 0.0
  %758 = vmatprep.subr.mxu0 0.0
  %759 = vmatpush2.msra.mxu0 0.0
  %760 = vmatprep.subr.mxu0 0.0
  %761 = vmatpush2.msra.mxu0 0.0
  %762 = vmatprep.mubr.f32.mxu0 0.0
  %763 = vmatmul.mubr.f32.gmra.mxu0 %v64
  %v764 = vpop.f32.mrf.mxu0
  %v765 = vadd.f32 %v623, %v764
  %v766 = vpop.f32.mrf.mxu0
  %v767 = vadd.f32 %v625, %v766
  %768 = vdwg.mxu0
  %769 = vmatprep.subr.mxu0 0.0
  %770 = vmatpush1.msra.mxu0 0.0
  %771 = vmatprep.subr.mxu0 0.0
  %772 = vmatpush1.msra.mxu0 0.0
  %773 = vmatprep.subr.mxu0 0.0
  %774 = vmatpush1.msra.mxu0 0.0
  %775 = vmatprep.subr.mxu0 0.0
  %776 = vmatpush1.msra.mxu0 0.0
  %777 = vmatprep.subr.mxu0 0.0
  %778 = vmatpush1.msra.mxu0 0.0
  %779 = vmatprep.subr.mxu0 0.0
  %780 = vmatpush1.msra.mxu0 0.0
  %781 = vmatprep.subr.mxu0 0.0
  %782 = vmatpush1.msra.mxu0 0.0
  %783 = vmatprep.subr.mxu0 0.0
  %784 = vmatpush1.msra.mxu0 0.0
  %785 = vmatprep.subr.mxu0 0.0
  %786 = vmatpush1.msra.mxu0 0.0
  %787 = vmatprep.subr.mxu0 0.0
  %788 = vmatpush1.msra.mxu0 0.0
  %789 = vmatprep.subr.mxu0 0.0
  %790 = vmatpush1.msra.mxu0 0.0
  %791 = vmatprep.subr.mxu0 0.0
  %792 = vmatpush1.msra.mxu0 0.0
  %793 = vmatprep.subr.mxu0 %v234
  %794 = vmatpush1.msra.mxu0 %v231
  %795 = vmatprep.subr.mxu0 %v40
  %796 = vmatpush1.msra.mxu0 %v39
  %797 = vmatprep.subr.mxu0 %v36
  %798 = vmatpush1.msra.mxu0 %v35
  %799 = vmatprep.subr.mxu0 %v32
  %800 = vmatpush1.msra.mxu0 %v31
  %801 = vmatprep.subr.mxu0 0.0
  %802 = vmatpush2.msra.mxu0 0.0
  %803 = vmatprep.subr.mxu0 0.0
  %804 = vmatpush2.msra.mxu0 0.0
  %805 = vmatprep.subr.mxu0 0.0
  %806 = vmatpush2.msra.mxu0 0.0
  %807 = vmatprep.subr.mxu0 0.0
  %808 = vmatpush2.msra.mxu0 0.0
  %809 = vmatprep.subr.mxu0 0.0
  %810 = vmatpush2.msra.mxu0 0.0
  %811 = vmatprep.subr.mxu0 0.0
  %812 = vmatpush2.msra.mxu0 0.0
  %813 = vmatprep.subr.mxu0 0.0
  %814 = vmatpush2.msra.mxu0 0.0
  %815 = vmatprep.subr.mxu0 0.0
  %816 = vmatpush2.msra.mxu0 0.0
  %817 = vmatprep.subr.mxu0 0.0
  %818 = vmatpush2.msra.mxu0 0.0
  %819 = vmatprep.subr.mxu0 0.0
  %820 = vmatpush2.msra.mxu0 0.0
  %821 = vmatprep.subr.mxu0 0.0
  %822 = vmatpush2.msra.mxu0 0.0
  %823 = vmatprep.subr.mxu0 0.0
  %824 = vmatpush2.msra.mxu0 0.0
  %825 = vmatprep.subr.mxu0 0.0
  %826 = vmatpush2.msra.mxu0 0.0
  %827 = vmatprep.subr.mxu0 0.0
  %828 = vmatpush2.msra.mxu0 0.0
  %829 = vmatprep.subr.mxu0 0.0
  %830 = vmatpush2.msra.mxu0 0.0
  %831 = vmatprep.subr.mxu0 0.0
  %832 = vmatpush2.msra.mxu0 0.0
  %833 = vmatprep.mubr.f32.mxu0 0.0
  %834 = vmatmul.mubr.f32.gmra.mxu0 %v64
  %v835 = vpop.f32.mrf.mxu0
  %v836 = vadd.f32 %v694, %v835
  %v837 = vpop.f32.mrf.mxu0
  %v838 = vadd.f32 %v696, %v837
  %839 = vdwg.mxu0
  %v841 = vsel %vm62, %v28, 0
  %843 = vmatprep.subr.mxu0 0.0
  %844 = vmatpush1.msra.mxu0 0.0
  %845 = vmatprep.subr.mxu0 0.0
  %846 = vmatpush1.msra.mxu0 0.0
  %847 = vmatprep.subr.mxu0 0.0
  %848 = vmatpush1.msra.mxu0 0.0
  %849 = vmatprep.subr.mxu0 0.0
  %850 = vmatpush1.msra.mxu0 0.0
  %851 = vmatprep.subr.mxu0 0.0
  %852 = vmatpush1.msra.mxu0 0.0
  %853 = vmatprep.subr.mxu0 0.0
  %854 = vmatpush1.msra.mxu0 0.0
  %855 = vmatprep.subr.mxu0 0.0
  %856 = vmatpush1.msra.mxu0 0.0
  %857 = vmatprep.subr.mxu0 0.0
  %858 = vmatpush1.msra.mxu0 0.0
  %859 = vmatprep.subr.mxu0 0.0
  %860 = vmatpush1.msra.mxu0 0.0
  %861 = vmatprep.subr.mxu0 0.0
  %862 = vmatpush1.msra.mxu0 0.0
  %863 = vmatprep.subr.mxu0 0.0
  %864 = vmatpush1.msra.mxu0 0.0
  %865 = vmatprep.subr.mxu0 0.0
  %866 = vmatpush1.msra.mxu0 0.0
  %867 = vmatprep.subr.mxu0 %v402
  %868 = vmatpush1.msra.mxu0 %v399
  %869 = vmatprep.subr.mxu0 %v388
  %870 = vmatpush1.msra.mxu0 %v387
  %871 = vmatprep.subr.mxu0 %v384
  %872 = vmatpush1.msra.mxu0 %v383
  %873 = vmatprep.subr.mxu0 %v380
  %874 = vmatpush1.msra.mxu0 %v379
  %875 = vmatprep.subr.mxu0 0.0
  %876 = vmatpush2.msra.mxu0 0.0
  %877 = vmatprep.subr.mxu0 0.0
  %878 = vmatpush2.msra.mxu0 0.0
  %879 = vmatprep.subr.mxu0 0.0
  %880 = vmatpush2.msra.mxu0 0.0
  %881 = vmatprep.subr.mxu0 0.0
  %882 = vmatpush2.msra.mxu0 0.0
  %883 = vmatprep.subr.mxu0 0.0
  %884 = vmatpush2.msra.mxu0 0.0
  %885 = vmatprep.subr.mxu0 0.0
  %886 = vmatpush2.msra.mxu0 0.0
  %887 = vmatprep.subr.mxu0 0.0
  %888 = vmatpush2.msra.mxu0 0.0
  %889 = vmatprep.subr.mxu0 0.0
  %890 = vmatpush2.msra.mxu0 0.0
  %891 = vmatprep.subr.mxu0 0.0
  %892 = vmatpush2.msra.mxu0 0.0
  %893 = vmatprep.subr.mxu0 0.0
  %894 = vmatpush2.msra.mxu0 0.0
  %895 = vmatprep.subr.mxu0 0.0
  %896 = vmatpush2.msra.mxu0 0.0
  %897 = vmatprep.subr.mxu0 0.0
  %898 = vmatpush2.msra.mxu0 0.0
  %899 = vmatprep.subr.mxu0 0.0
  %900 = vmatpush2.msra.mxu0 0.0
  %901 = vmatprep.subr.mxu0 0.0
  %902 = vmatpush2.msra.mxu0 0.0
  %903 = vmatprep.subr.mxu0 0.0
  %904 = vmatpush2.msra.mxu0 0.0
  %905 = vmatprep.subr.mxu0 0.0
  %906 = vmatpush2.msra.mxu0 0.0
  %907 = vmatprep.mubr.f32.mxu0 0.0
  %908 = vmatmul.mubr.f32.gmra.mxu0 %v841
  %v909 = vpop.f32.mrf.mxu0
  %v910 = vadd.f32 0.0, %v909
  %v911 = vpop.f32.mrf.mxu0
  %v912 = vadd.f32 0.0, %v911
  %913 = vdwg.mxu0
  %914 = vmatprep.subr.mxu0 0.0
  %915 = vmatpush1.msra.mxu0 0.0
  %916 = vmatprep.subr.mxu0 0.0
  %917 = vmatpush1.msra.mxu0 0.0
  %918 = vmatprep.subr.mxu0 0.0
  %919 = vmatpush1.msra.mxu0 0.0
  %920 = vmatprep.subr.mxu0 0.0
  %921 = vmatpush1.msra.mxu0 0.0
  %922 = vmatprep.subr.mxu0 0.0
  %923 = vmatpush1.msra.mxu0 0.0
  %924 = vmatprep.subr.mxu0 0.0
  %925 = vmatpush1.msra.mxu0 0.0
  %926 = vmatprep.subr.mxu0 0.0
  %927 = vmatpush1.msra.mxu0 0.0
  %928 = vmatprep.subr.mxu0 0.0
  %929 = vmatpush1.msra.mxu0 0.0
  %930 = vmatprep.subr.mxu0 0.0
  %931 = vmatpush1.msra.mxu0 0.0
  %932 = vmatprep.subr.mxu0 0.0
  %933 = vmatpush1.msra.mxu0 0.0
  %934 = vmatprep.subr.mxu0 0.0
  %935 = vmatpush1.msra.mxu0 0.0
  %936 = vmatprep.subr.mxu0 0.0
  %937 = vmatpush1.msra.mxu0 0.0
  %938 = vmatprep.subr.mxu0 %v408
  %939 = vmatpush1.msra.mxu0 %v405
  %940 = vmatprep.subr.mxu0 %v390
  %941 = vmatpush1.msra.mxu0 %v389
  %942 = vmatprep.subr.mxu0 %v386
  %943 = vmatpush1.msra.mxu0 %v385
  %944 = vmatprep.subr.mxu0 %v382
  %945 = vmatpush1.msra.mxu0 %v381
  %946 = vmatprep.subr.mxu0 0.0
  %947 = vmatpush2.msra.mxu0 0.0
  %948 = vmatprep.subr.mxu0 0.0
  %949 = vmatpush2.msra.mxu0 0.0
  %950 = vmatprep.subr.mxu0 0.0
  %951 = vmatpush2.msra.mxu0 0.0
  %952 = vmatprep.subr.mxu0 0.0
  %953 = vmatpush2.msra.mxu0 0.0
  %954 = vmatprep.subr.mxu0 0.0
  %955 = vmatpush2.msra.mxu0 0.0
  %956 = vmatprep.subr.mxu0 0.0
  %957 = vmatpush2.msra.mxu0 0.0
  %958 = vmatprep.subr.mxu0 0.0
  %959 = vmatpush2.msra.mxu0 0.0
  %960 = vmatprep.subr.mxu0 0.0
  %961 = vmatpush2.msra.mxu0 0.0
  %962 = vmatprep.subr.mxu0 0.0
  %963 = vmatpush2.msra.mxu0 0.0
  %964 = vmatprep.subr.mxu0 0.0
  %965 = vmatpush2.msra.mxu0 0.0
  %966 = vmatprep.subr.mxu0 0.0
  %967 = vmatpush2.msra.mxu0 0.0
  %968 = vmatprep.subr.mxu0 0.0
  %969 = vmatpush2.msra.mxu0 0.0
  %970 = vmatprep.subr.mxu0 0.0
  %971 = vmatpush2.msra.mxu0 0.0
  %972 = vmatprep.subr.mxu0 0.0
  %973 = vmatpush2.msra.mxu0 0.0
  %974 = vmatprep.subr.mxu0 0.0
  %975 = vmatpush2.msra.mxu0 0.0
  %976 = vmatprep.subr.mxu0 0.0
  %977 = vmatpush2.msra.mxu0 0.0
  %978 = vmatprep.mubr.f32.mxu0 0.0
  %979 = vmatmul.mubr.f32.gmra.mxu0 %v841
  %v980 = vpop.f32.mrf.mxu0
  %v981 = vadd.f32 0.0, %v980
  %v982 = vpop.f32.mrf.mxu0
  %v983 = vadd.f32 0.0, %v982
  %984 = vdwg.mxu0
  %v985 = vadd.f32 %v765, %v910
  %v986 = vadd.f32 %v767, %v912
  %v987 = vadd.f32 %v836, %v981
  %v988 = vadd.f32 %v838, %v983
  %v989 = vmax.f32 %v552, %v985
  %v990 = vmax.f32 %v553, %v986
  %v991 = vmax.f32 %v554, %v987
  %v992 = vmax.f32 %v555, %v988
  %s993 = scalar_lea.vmem %s1, 128
  %v994 = vld [vmem:[%s993] sm:$0xff]
  %v995 = vld [vmem:[%s993 + $0x8] sm:$0xff]
  %v996 = vld [vmem:[%s993 + $0x10] sm:$0xff]
  %v997 = vld [vmem:[%s993 + $0x18] sm:$0xff]
  %v998 = vld [vmem:[%s993 + $0x20] sm:$0xff]
  %v999 = vld [vmem:[%s993 + $0x28] sm:$0xff]
  %v1000 = vld [vmem:[%s993 + $0x30] sm:$0xff]
  %v1001 = vld [vmem:[%s993 + $0x38] sm:$0xff]
  %v1002 = vld [vmem:[%s993 + $0x40] sm:$0xff]
  %v1003 = vld [vmem:[%s993 + $0x48] sm:$0xff]
  %v1004 = vld [vmem:[%s993 + $0x50] sm:$0xff]
  %v1005 = vld [vmem:[%s993 + $0x58] sm:$0xff]
  %v1006 = vld [vmem:[%s993 + $0x60] sm:$0xf]
  %v1007 = vld [vmem:[%s993 + $0x68] sm:$0xf]
  %v1008 = vld [vmem:[%s993 + $0x70] sm:$0xf]
  %v1009 = vld [vmem:[%s993 + $0x78] sm:$0xf]
  %s1010 = scalar_lea.vmem %s1, 384
  %v1011 = vld [vmem:[%s1010] sm:$0xff]
  %v1012 = vld [vmem:[%s1010 + $0x8] sm:$0xff]
  %v1013 = vld [vmem:[%s1010 + $0x10] sm:$0xff]
  %v1014 = vld [vmem:[%s1010 + $0x18] sm:$0xff]
  %v1015 = vld [vmem:[%s1010 + $0x20] sm:$0xff]
  %v1016 = vld [vmem:[%s1010 + $0x28] sm:$0xff]
  %v1017 = vld [vmem:[%s1010 + $0x30] sm:$0xff]
  %v1018 = vld [vmem:[%s1010 + $0x38] sm:$0xff]
  %v1019 = vld [vmem:[%s1010 + $0x40] sm:$0xff]
  %v1020 = vld [vmem:[%s1010 + $0x48] sm:$0xff]
  %v1021 = vld [vmem:[%s1010 + $0x50] sm:$0xff]
  %v1022 = vld [vmem:[%s1010 + $0x58] sm:$0xff]
  %v1023 = vld [vmem:[%s1010 + $0x60] sm:$0xf]
  %v1024 = vld [vmem:[%s1010 + $0x68] sm:$0xf]
  %v1025 = vld [vmem:[%s1010 + $0x70] sm:$0xf]
  %v1026 = vld [vmem:[%s1010 + $0x78] sm:$0xf]
  %v1028 = vsel %vm66, %v1023, 0
  %v1031 = vsel %vm66, %v1024, 0
  %v1034 = vsel %vm66, %v1025, 0
  %v1037 = vsel %vm66, %v1026, 0
  %1039 = vmatprep.subr.mxu0 0.0
  %1040 = vmatpush1.msra.mxu0 0.0
  %1041 = vmatprep.subr.mxu0 0.0
  %1042 = vmatpush1.msra.mxu0 0.0
  %1043 = vmatprep.subr.mxu0 0.0
  %1044 = vmatpush1.msra.mxu0 0.0
  %1045 = vmatprep.subr.mxu0 0.0
  %1046 = vmatpush1.msra.mxu0 0.0
  %1047 = vmatprep.subr.mxu0 0.0
  %1048 = vmatpush1.msra.mxu0 0.0
  %1049 = vmatprep.subr.mxu0 0.0
  %1050 = vmatpush1.msra.mxu0 0.0
  %1051 = vmatprep.subr.mxu0 0.0
  %1052 = vmatpush1.msra.mxu0 0.0
  %1053 = vmatprep.subr.mxu0 0.0
  %1054 = vmatpush1.msra.mxu0 0.0
  %1055 = vmatprep.subr.mxu0 0.0
  %1056 = vmatpush1.msra.mxu0 0.0
  %1057 = vmatprep.subr.mxu0 0.0
  %1058 = vmatpush1.msra.mxu0 0.0
  %1059 = vmatprep.subr.mxu0 0.0
  %1060 = vmatpush1.msra.mxu0 0.0
  %1061 = vmatprep.subr.mxu0 0.0
  %1062 = vmatpush1.msra.mxu0 0.0
  %1063 = vmatprep.subr.mxu0 %v1031
  %1064 = vmatpush1.msra.mxu0 %v1028
  %1065 = vmatprep.subr.mxu0 %v1020
  %1066 = vmatpush1.msra.mxu0 %v1019
  %1067 = vmatprep.subr.mxu0 %v1016
  %1068 = vmatpush1.msra.mxu0 %v1015
  %1069 = vmatprep.subr.mxu0 %v1012
  %1070 = vmatpush1.msra.mxu0 %v1011
  %1071 = vmatprep.subr.mxu0 0.0
  %1072 = vmatpush2.msra.mxu0 0.0
  %1073 = vmatprep.subr.mxu0 0.0
  %1074 = vmatpush2.msra.mxu0 0.0
  %1075 = vmatprep.subr.mxu0 0.0
  %1076 = vmatpush2.msra.mxu0 0.0
  %1077 = vmatprep.subr.mxu0 0.0
  %1078 = vmatpush2.msra.mxu0 0.0
  %1079 = vmatprep.subr.mxu0 0.0
  %1080 = vmatpush2.msra.mxu0 0.0
  %1081 = vmatprep.subr.mxu0 0.0
  %1082 = vmatpush2.msra.mxu0 0.0
  %1083 = vmatprep.subr.mxu0 0.0
  %1084 = vmatpush2.msra.mxu0 0.0
  %1085 = vmatprep.subr.mxu0 0.0
  %1086 = vmatpush2.msra.mxu0 0.0
  %1087 = vmatprep.subr.mxu0 0.0
  %1088 = vmatpush2.msra.mxu0 0.0
  %1089 = vmatprep.subr.mxu0 0.0
  %1090 = vmatpush2.msra.mxu0 0.0
  %1091 = vmatprep.subr.mxu0 0.0
  %1092 = vmatpush2.msra.mxu0 0.0
  %1093 = vmatprep.subr.mxu0 0.0
  %1094 = vmatpush2.msra.mxu0 0.0
  %1095 = vmatprep.subr.mxu0 0.0
  %1096 = vmatpush2.msra.mxu0 0.0
  %1097 = vmatprep.subr.mxu0 0.0
  %1098 = vmatpush2.msra.mxu0 0.0
  %1099 = vmatprep.subr.mxu0 0.0
  %1100 = vmatpush2.msra.mxu0 0.0
  %1101 = vmatprep.subr.mxu0 0.0
  %1102 = vmatpush2.msra.mxu0 0.0
  %1103 = vmatprep.mubr.f32.mxu0 0.0
  %1104 = vmatmul.mubr.f32.gmra.mxu0 %v64
  %v1105 = vpop.f32.mrf.mxu0
  %v1106 = vadd.f32 0.0, %v1105
  %v1107 = vpop.f32.mrf.mxu0
  %v1108 = vadd.f32 0.0, %v1107
  %1109 = vdwg.mxu0
  %1110 = vmatprep.subr.mxu0 0.0
  %1111 = vmatpush1.msra.mxu0 0.0
  %1112 = vmatprep.subr.mxu0 0.0
  %1113 = vmatpush1.msra.mxu0 0.0
  %1114 = vmatprep.subr.mxu0 0.0
  %1115 = vmatpush1.msra.mxu0 0.0
  %1116 = vmatprep.subr.mxu0 0.0
  %1117 = vmatpush1.msra.mxu0 0.0
  %1118 = vmatprep.subr.mxu0 0.0
  %1119 = vmatpush1.msra.mxu0 0.0
  %1120 = vmatprep.subr.mxu0 0.0
  %1121 = vmatpush1.msra.mxu0 0.0
  %1122 = vmatprep.subr.mxu0 0.0
  %1123 = vmatpush1.msra.mxu0 0.0
  %1124 = vmatprep.subr.mxu0 0.0
  %1125 = vmatpush1.msra.mxu0 0.0
  %1126 = vmatprep.subr.mxu0 0.0
  %1127 = vmatpush1.msra.mxu0 0.0
  %1128 = vmatprep.subr.mxu0 0.0
  %1129 = vmatpush1.msra.mxu0 0.0
  %1130 = vmatprep.subr.mxu0 0.0
  %1131 = vmatpush1.msra.mxu0 0.0
  %1132 = vmatprep.subr.mxu0 0.0
  %1133 = vmatpush1.msra.mxu0 0.0
  %1134 = vmatprep.subr.mxu0 %v1037
  %1135 = vmatpush1.msra.mxu0 %v1034
  %1136 = vmatprep.subr.mxu0 %v1022
  %1137 = vmatpush1.msra.mxu0 %v1021
  %1138 = vmatprep.subr.mxu0 %v1018
  %1139 = vmatpush1.msra.mxu0 %v1017
  %1140 = vmatprep.subr.mxu0 %v1014
  %1141 = vmatpush1.msra.mxu0 %v1013
  %1142 = vmatprep.subr.mxu0 0.0
  %1143 = vmatpush2.msra.mxu0 0.0
  %1144 = vmatprep.subr.mxu0 0.0
  %1145 = vmatpush2.msra.mxu0 0.0
  %1146 = vmatprep.subr.mxu0 0.0
  %1147 = vmatpush2.msra.mxu0 0.0
  %1148 = vmatprep.subr.mxu0 0.0
  %1149 = vmatpush2.msra.mxu0 0.0
  %1150 = vmatprep.subr.mxu0 0.0
  %1151 = vmatpush2.msra.mxu0 0.0
  %1152 = vmatprep.subr.mxu0 0.0
  %1153 = vmatpush2.msra.mxu0 0.0
  %1154 = vmatprep.subr.mxu0 0.0
  %1155 = vmatpush2.msra.mxu0 0.0
  %1156 = vmatprep.subr.mxu0 0.0
  %1157 = vmatpush2.msra.mxu0 0.0
  %1158 = vmatprep.subr.mxu0 0.0
  %1159 = vmatpush2.msra.mxu0 0.0
  %1160 = vmatprep.subr.mxu0 0.0
  %1161 = vmatpush2.msra.mxu0 0.0
  %1162 = vmatprep.subr.mxu0 0.0
  %1163 = vmatpush2.msra.mxu0 0.0
  %1164 = vmatprep.subr.mxu0 0.0
  %1165 = vmatpush2.msra.mxu0 0.0
  %1166 = vmatprep.subr.mxu0 0.0
  %1167 = vmatpush2.msra.mxu0 0.0
  %1168 = vmatprep.subr.mxu0 0.0
  %1169 = vmatpush2.msra.mxu0 0.0
  %1170 = vmatprep.subr.mxu0 0.0
  %1171 = vmatpush2.msra.mxu0 0.0
  %1172 = vmatprep.subr.mxu0 0.0
  %1173 = vmatpush2.msra.mxu0 0.0
  %1174 = vmatprep.mubr.f32.mxu0 0.0
  %1175 = vmatmul.mubr.f32.gmra.mxu0 %v64
  %v1176 = vpop.f32.mrf.mxu0
  %v1177 = vadd.f32 0.0, %v1176
  %v1178 = vpop.f32.mrf.mxu0
  %v1179 = vadd.f32 0.0, %v1178
  %1180 = vdwg.mxu0
  %v1182 = vsel %vm66, %v1006, 0
  %v1185 = vsel %vm66, %v1007, 0
  %v1188 = vsel %vm66, %v1008, 0
  %v1191 = vsel %vm66, %v1009, 0
  %1193 = vmatprep.subr.mxu0 0.0
  %1194 = vmatpush1.msra.mxu0 0.0
  %1195 = vmatprep.subr.mxu0 0.0
  %1196 = vmatpush1.msra.mxu0 0.0
  %1197 = vmatprep.subr.mxu0 0.0
  %1198 = vmatpush1.msra.mxu0 0.0
  %1199 = vmatprep.subr.mxu0 0.0
  %1200 = vmatpush1.msra.mxu0 0.0
  %1201 = vmatprep.subr.mxu0 0.0
  %1202 = vmatpush1.msra.mxu0 0.0
  %1203 = vmatprep.subr.mxu0 0.0
  %1204 = vmatpush1.msra.mxu0 0.0
  %1205 = vmatprep.subr.mxu0 0.0
  %1206 = vmatpush1.msra.mxu0 0.0
  %1207 = vmatprep.subr.mxu0 0.0
  %1208 = vmatpush1.msra.mxu0 0.0
  %1209 = vmatprep.subr.mxu0 0.0
  %1210 = vmatpush1.msra.mxu0 0.0
  %1211 = vmatprep.subr.mxu0 0.0
  %1212 = vmatpush1.msra.mxu0 0.0
  %1213 = vmatprep.subr.mxu0 0.0
  %1214 = vmatpush1.msra.mxu0 0.0
  %1215 = vmatprep.subr.mxu0 0.0
  %1216 = vmatpush1.msra.mxu0 0.0
  %1217 = vmatprep.subr.mxu0 %v1185
  %1218 = vmatpush1.msra.mxu0 %v1182
  %1219 = vmatprep.subr.mxu0 %v1003
  %1220 = vmatpush1.msra.mxu0 %v1002
  %1221 = vmatprep.subr.mxu0 %v999
  %1222 = vmatpush1.msra.mxu0 %v998
  %1223 = vmatprep.subr.mxu0 %v995
  %1224 = vmatpush1.msra.mxu0 %v994
  %1225 = vmatprep.subr.mxu0 0.0
  %1226 = vmatpush2.msra.mxu0 0.0
  %1227 = vmatprep.subr.mxu0 0.0
  %1228 = vmatpush2.msra.mxu0 0.0
  %1229 = vmatprep.subr.mxu0 0.0
  %1230 = vmatpush2.msra.mxu0 0.0
  %1231 = vmatprep.subr.mxu0 0.0
  %1232 = vmatpush2.msra.mxu0 0.0
  %1233 = vmatprep.subr.mxu0 0.0
  %1234 = vmatpush2.msra.mxu0 0.0
  %1235 = vmatprep.subr.mxu0 0.0
  %1236 = vmatpush2.msra.mxu0 0.0
  %1237 = vmatprep.subr.mxu0 0.0
  %1238 = vmatpush2.msra.mxu0 0.0
  %1239 = vmatprep.subr.mxu0 0.0
  %1240 = vmatpush2.msra.mxu0 0.0
  %1241 = vmatprep.subr.mxu0 0.0
  %1242 = vmatpush2.msra.mxu0 0.0
  %1243 = vmatprep.subr.mxu0 0.0
  %1244 = vmatpush2.msra.mxu0 0.0
  %1245 = vmatprep.subr.mxu0 0.0
  %1246 = vmatpush2.msra.mxu0 0.0
  %1247 = vmatprep.subr.mxu0 0.0
  %1248 = vmatpush2.msra.mxu0 0.0
  %1249 = vmatprep.subr.mxu0 0.0
  %1250 = vmatpush2.msra.mxu0 0.0
  %1251 = vmatprep.subr.mxu0 0.0
  %1252 = vmatpush2.msra.mxu0 0.0
  %1253 = vmatprep.subr.mxu0 0.0
  %1254 = vmatpush2.msra.mxu0 0.0
  %1255 = vmatprep.subr.mxu0 0.0
  %1256 = vmatpush2.msra.mxu0 0.0
  %1257 = vmatprep.mubr.f32.mxu0 0.0
  %1258 = vmatmul.mubr.f32.gmra.mxu0 %v222
  %v1259 = vpop.f32.mrf.mxu0
  %v1260 = vadd.f32 %v1106, %v1259
  %v1261 = vpop.f32.mrf.mxu0
  %v1262 = vadd.f32 %v1108, %v1261
  %1263 = vdwg.mxu0
  %1264 = vmatprep.subr.mxu0 0.0
  %1265 = vmatpush1.msra.mxu0 0.0
  %1266 = vmatprep.subr.mxu0 0.0
  %1267 = vmatpush1.msra.mxu0 0.0
  %1268 = vmatprep.subr.mxu0 0.0
  %1269 = vmatpush1.msra.mxu0 0.0
  %1270 = vmatprep.subr.mxu0 0.0
  %1271 = vmatpush1.msra.mxu0 0.0
  %1272 = vmatprep.subr.mxu0 0.0
  %1273 = vmatpush1.msra.mxu0 0.0
  %1274 = vmatprep.subr.mxu0 0.0
  %1275 = vmatpush1.msra.mxu0 0.0
  %1276 = vmatprep.subr.mxu0 0.0
  %1277 = vmatpush1.msra.mxu0 0.0
  %1278 = vmatprep.subr.mxu0 0.0
  %1279 = vmatpush1.msra.mxu0 0.0
  %1280 = vmatprep.subr.mxu0 0.0
  %1281 = vmatpush1.msra.mxu0 0.0
  %1282 = vmatprep.subr.mxu0 0.0
  %1283 = vmatpush1.msra.mxu0 0.0
  %1284 = vmatprep.subr.mxu0 0.0
  %1285 = vmatpush1.msra.mxu0 0.0
  %1286 = vmatprep.subr.mxu0 0.0
  %1287 = vmatpush1.msra.mxu0 0.0
  %1288 = vmatprep.subr.mxu0 %v1191
  %1289 = vmatpush1.msra.mxu0 %v1188
  %1290 = vmatprep.subr.mxu0 %v1005
  %1291 = vmatpush1.msra.mxu0 %v1004
  %1292 = vmatprep.subr.mxu0 %v1001
  %1293 = vmatpush1.msra.mxu0 %v1000
  %1294 = vmatprep.subr.mxu0 %v997
  %1295 = vmatpush1.msra.mxu0 %v996
  %1296 = vmatprep.subr.mxu0 0.0
  %1297 = vmatpush2.msra.mxu0 0.0
  %1298 = vmatprep.subr.mxu0 0.0
  %1299 = vmatpush2.msra.mxu0 0.0
  %1300 = vmatprep.subr.mxu0 0.0
  %1301 = vmatpush2.msra.mxu0 0.0
  %1302 = vmatprep.subr.mxu0 0.0
  %1303 = vmatpush2.msra.mxu0 0.0
  %1304 = vmatprep.subr.mxu0 0.0
  %1305 = vmatpush2.msra.mxu0 0.0
  %1306 = vmatprep.subr.mxu0 0.0
  %1307 = vmatpush2.msra.mxu0 0.0
  %1308 = vmatprep.subr.mxu0 0.0
  %1309 = vmatpush2.msra.mxu0 0.0
  %1310 = vmatprep.subr.mxu0 0.0
  %1311 = vmatpush2.msra.mxu0 0.0
  %1312 = vmatprep.subr.mxu0 0.0
  %1313 = vmatpush2.msra.mxu0 0.0
  %1314 = vmatprep.subr.mxu0 0.0
  %1315 = vmatpush2.msra.mxu0 0.0
  %1316 = vmatprep.subr.mxu0 0.0
  %1317 = vmatpush2.msra.mxu0 0.0
  %1318 = vmatprep.subr.mxu0 0.0
  %1319 = vmatpush2.msra.mxu0 0.0
  %1320 = vmatprep.subr.mxu0 0.0
  %1321 = vmatpush2.msra.mxu0 0.0
  %1322 = vmatprep.subr.mxu0 0.0
  %1323 = vmatpush2.msra.mxu0 0.0
  %1324 = vmatprep.subr.mxu0 0.0
  %1325 = vmatpush2.msra.mxu0 0.0
  %1326 = vmatprep.subr.mxu0 0.0
  %1327 = vmatpush2.msra.mxu0 0.0
  %1328 = vmatprep.mubr.f32.mxu0 0.0
  %1329 = vmatmul.mubr.f32.gmra.mxu0 %v222
  %v1330 = vpop.f32.mrf.mxu0
  %v1331 = vadd.f32 %v1177, %v1330
  %v1332 = vpop.f32.mrf.mxu0
  %v1333 = vadd.f32 %v1179, %v1332
  %1334 = vdwg.mxu0
  %s1335 = scalar_lea.vmem %s1, 640
  %v1336 = vld [vmem:[%s1335] sm:$0xff]
  %v1337 = vld [vmem:[%s1335 + $0x8] sm:$0xff]
  %v1338 = vld [vmem:[%s1335 + $0x10] sm:$0xff]
  %v1339 = vld [vmem:[%s1335 + $0x18] sm:$0xff]
  %v1340 = vld [vmem:[%s1335 + $0x20] sm:$0xff]
  %v1341 = vld [vmem:[%s1335 + $0x28] sm:$0xff]
  %v1342 = vld [vmem:[%s1335 + $0x30] sm:$0xff]
  %v1343 = vld [vmem:[%s1335 + $0x38] sm:$0xff]
  %v1344 = vld [vmem:[%s1335 + $0x40] sm:$0xff]
  %v1345 = vld [vmem:[%s1335 + $0x48] sm:$0xff]
  %v1346 = vld [vmem:[%s1335 + $0x50] sm:$0xff]
  %v1347 = vld [vmem:[%s1335 + $0x58] sm:$0xff]
  %v1348 = vld [vmem:[%s1335 + $0x60] sm:$0xf]
  %v1349 = vld [vmem:[%s1335 + $0x68] sm:$0xf]
  %v1350 = vld [vmem:[%s1335 + $0x70] sm:$0xf]
  %v1351 = vld [vmem:[%s1335 + $0x78] sm:$0xf]
  %v1353 = vsel %vm66, %v1348, 0
  %v1356 = vsel %vm66, %v1349, 0
  %v1359 = vsel %vm66, %v1350, 0
  %v1362 = vsel %vm66, %v1351, 0
  %1364 = vmatprep.subr.mxu0 0.0
  %1365 = vmatpush1.msra.mxu0 0.0
  %1366 = vmatprep.subr.mxu0 0.0
  %1367 = vmatpush1.msra.mxu0 0.0
  %1368 = vmatprep.subr.mxu0 0.0
  %1369 = vmatpush1.msra.mxu0 0.0
  %1370 = vmatprep.subr.mxu0 0.0
  %1371 = vmatpush1.msra.mxu0 0.0
  %1372 = vmatprep.subr.mxu0 0.0
  %1373 = vmatpush1.msra.mxu0 0.0
  %1374 = vmatprep.subr.mxu0 0.0
  %1375 = vmatpush1.msra.mxu0 0.0
  %1376 = vmatprep.subr.mxu0 0.0
  %1377 = vmatpush1.msra.mxu0 0.0
  %1378 = vmatprep.subr.mxu0 0.0
  %1379 = vmatpush1.msra.mxu0 0.0
  %1380 = vmatprep.subr.mxu0 0.0
  %1381 = vmatpush1.msra.mxu0 0.0
  %1382 = vmatprep.subr.mxu0 0.0
  %1383 = vmatpush1.msra.mxu0 0.0
  %1384 = vmatprep.subr.mxu0 0.0
  %1385 = vmatpush1.msra.mxu0 0.0
  %1386 = vmatprep.subr.mxu0 0.0
  %1387 = vmatpush1.msra.mxu0 0.0
  %1388 = vmatprep.subr.mxu0 %v1356
  %1389 = vmatpush1.msra.mxu0 %v1353
  %1390 = vmatprep.subr.mxu0 %v1345
  %1391 = vmatpush1.msra.mxu0 %v1344
  %1392 = vmatprep.subr.mxu0 %v1341
  %1393 = vmatpush1.msra.mxu0 %v1340
  %1394 = vmatprep.subr.mxu0 %v1337
  %1395 = vmatpush1.msra.mxu0 %v1336
  %1396 = vmatprep.subr.mxu0 0.0
  %1397 = vmatpush2.msra.mxu0 0.0
  %1398 = vmatprep.subr.mxu0 0.0
  %1399 = vmatpush2.msra.mxu0 0.0
  %1400 = vmatprep.subr.mxu0 0.0
  %1401 = vmatpush2.msra.mxu0 0.0
  %1402 = vmatprep.subr.mxu0 0.0
  %1403 = vmatpush2.msra.mxu0 0.0
  %1404 = vmatprep.subr.mxu0 0.0
  %1405 = vmatpush2.msra.mxu0 0.0
  %1406 = vmatprep.subr.mxu0 0.0
  %1407 = vmatpush2.msra.mxu0 0.0
  %1408 = vmatprep.subr.mxu0 0.0
  %1409 = vmatpush2.msra.mxu0 0.0
  %1410 = vmatprep.subr.mxu0 0.0
  %1411 = vmatpush2.msra.mxu0 0.0
  %1412 = vmatprep.subr.mxu0 0.0
  %1413 = vmatpush2.msra.mxu0 0.0
  %1414 = vmatprep.subr.mxu0 0.0
  %1415 = vmatpush2.msra.mxu0 0.0
  %1416 = vmatprep.subr.mxu0 0.0
  %1417 = vmatpush2.msra.mxu0 0.0
  %1418 = vmatprep.subr.mxu0 0.0
  %1419 = vmatpush2.msra.mxu0 0.0
  %1420 = vmatprep.subr.mxu0 0.0
  %1421 = vmatpush2.msra.mxu0 0.0
  %1422 = vmatprep.subr.mxu0 0.0
  %1423 = vmatpush2.msra.mxu0 0.0
  %1424 = vmatprep.subr.mxu0 0.0
  %1425 = vmatpush2.msra.mxu0 0.0
  %1426 = vmatprep.subr.mxu0 0.0
  %1427 = vmatpush2.msra.mxu0 0.0
  %1428 = vmatprep.mubr.f32.mxu0 0.0
  %1429 = vmatmul.mubr.f32.gmra.mxu0 %v396
  %v1430 = vpop.f32.mrf.mxu0
  %v1431 = vadd.f32 0.0, %v1430
  %v1432 = vpop.f32.mrf.mxu0
  %v1433 = vadd.f32 0.0, %v1432
  %1434 = vdwg.mxu0
  %1435 = vmatprep.subr.mxu0 0.0
  %1436 = vmatpush1.msra.mxu0 0.0
  %1437 = vmatprep.subr.mxu0 0.0
  %1438 = vmatpush1.msra.mxu0 0.0
  %1439 = vmatprep.subr.mxu0 0.0
  %1440 = vmatpush1.msra.mxu0 0.0
  %1441 = vmatprep.subr.mxu0 0.0
  %1442 = vmatpush1.msra.mxu0 0.0
  %1443 = vmatprep.subr.mxu0 0.0
  %1444 = vmatpush1.msra.mxu0 0.0
  %1445 = vmatprep.subr.mxu0 0.0
  %1446 = vmatpush1.msra.mxu0 0.0
  %1447 = vmatprep.subr.mxu0 0.0
  %1448 = vmatpush1.msra.mxu0 0.0
  %1449 = vmatprep.subr.mxu0 0.0
  %1450 = vmatpush1.msra.mxu0 0.0
  %1451 = vmatprep.subr.mxu0 0.0
  %1452 = vmatpush1.msra.mxu0 0.0
  %1453 = vmatprep.subr.mxu0 0.0
  %1454 = vmatpush1.msra.mxu0 0.0
  %1455 = vmatprep.subr.mxu0 0.0
  %1456 = vmatpush1.msra.mxu0 0.0
  %1457 = vmatprep.subr.mxu0 0.0
  %1458 = vmatpush1.msra.mxu0 0.0
  %1459 = vmatprep.subr.mxu0 %v1362
  %1460 = vmatpush1.msra.mxu0 %v1359
  %1461 = vmatprep.subr.mxu0 %v1347
  %1462 = vmatpush1.msra.mxu0 %v1346
  %1463 = vmatprep.subr.mxu0 %v1343
  %1464 = vmatpush1.msra.mxu0 %v1342
  %1465 = vmatprep.subr.mxu0 %v1339
  %1466 = vmatpush1.msra.mxu0 %v1338
  %1467 = vmatprep.subr.mxu0 0.0
  %1468 = vmatpush2.msra.mxu0 0.0
  %1469 = vmatprep.subr.mxu0 0.0
  %1470 = vmatpush2.msra.mxu0 0.0
  %1471 = vmatprep.subr.mxu0 0.0
  %1472 = vmatpush2.msra.mxu0 0.0
  %1473 = vmatprep.subr.mxu0 0.0
  %1474 = vmatpush2.msra.mxu0 0.0
  %1475 = vmatprep.subr.mxu0 0.0
  %1476 = vmatpush2.msra.mxu0 0.0
  %1477 = vmatprep.subr.mxu0 0.0
  %1478 = vmatpush2.msra.mxu0 0.0
  %1479 = vmatprep.subr.mxu0 0.0
  %1480 = vmatpush2.msra.mxu0 0.0
  %1481 = vmatprep.subr.mxu0 0.0
  %1482 = vmatpush2.msra.mxu0 0.0
  %1483 = vmatprep.subr.mxu0 0.0
  %1484 = vmatpush2.msra.mxu0 0.0
  %1485 = vmatprep.subr.mxu0 0.0
  %1486 = vmatpush2.msra.mxu0 0.0
  %1487 = vmatprep.subr.mxu0 0.0
  %1488 = vmatpush2.msra.mxu0 0.0
  %1489 = vmatprep.subr.mxu0 0.0
  %1490 = vmatpush2.msra.mxu0 0.0
  %1491 = vmatprep.subr.mxu0 0.0
  %1492 = vmatpush2.msra.mxu0 0.0
  %1493 = vmatprep.subr.mxu0 0.0
  %1494 = vmatpush2.msra.mxu0 0.0
  %1495 = vmatprep.subr.mxu0 0.0
  %1496 = vmatpush2.msra.mxu0 0.0
  %1497 = vmatprep.subr.mxu0 0.0
  %1498 = vmatpush2.msra.mxu0 0.0
  %1499 = vmatprep.mubr.f32.mxu0 0.0
  %1500 = vmatmul.mubr.f32.gmra.mxu0 %v396
  %v1501 = vpop.f32.mrf.mxu0
  %v1502 = vadd.f32 0.0, %v1501
  %v1503 = vpop.f32.mrf.mxu0
  %v1504 = vadd.f32 0.0, %v1503
  %1505 = vdwg.mxu0
  %v1506 = vadd.f32 %v1260, %v1431
  %v1507 = vadd.f32 %v1262, %v1433
  %v1508 = vadd.f32 %v1331, %v1502
  %v1509 = vadd.f32 %v1333, %v1504
  %1510 = vmatprep.subr.mxu0 0.0
  %1511 = vmatpush1.msra.mxu0 0.0
  %1512 = vmatprep.subr.mxu0 0.0
  %1513 = vmatpush1.msra.mxu0 0.0
  %1514 = vmatprep.subr.mxu0 0.0
  %1515 = vmatpush1.msra.mxu0 0.0
  %1516 = vmatprep.subr.mxu0 0.0
  %1517 = vmatpush1.msra.mxu0 0.0
  %1518 = vmatprep.subr.mxu0 0.0
  %1519 = vmatpush1.msra.mxu0 0.0
  %1520 = vmatprep.subr.mxu0 0.0
  %1521 = vmatpush1.msra.mxu0 0.0
  %1522 = vmatprep.subr.mxu0 0.0
  %1523 = vmatpush1.msra.mxu0 0.0
  %1524 = vmatprep.subr.mxu0 0.0
  %1525 = vmatpush1.msra.mxu0 0.0
  %1526 = vmatprep.subr.mxu0 0.0
  %1527 = vmatpush1.msra.mxu0 0.0
  %1528 = vmatprep.subr.mxu0 0.0
  %1529 = vmatpush1.msra.mxu0 0.0
  %1530 = vmatprep.subr.mxu0 0.0
  %1531 = vmatpush1.msra.mxu0 0.0
  %1532 = vmatprep.subr.mxu0 0.0
  %1533 = vmatpush1.msra.mxu0 0.0
  %1534 = vmatprep.subr.mxu0 %v1031
  %1535 = vmatpush1.msra.mxu0 %v1028
  %1536 = vmatprep.subr.mxu0 %v1020
  %1537 = vmatpush1.msra.mxu0 %v1019
  %1538 = vmatprep.subr.mxu0 %v1016
  %1539 = vmatpush1.msra.mxu0 %v1015
  %1540 = vmatprep.subr.mxu0 %v1012
  %1541 = vmatpush1.msra.mxu0 %v1011
  %1542 = vmatprep.subr.mxu0 0.0
  %1543 = vmatpush2.msra.mxu0 0.0
  %1544 = vmatprep.subr.mxu0 0.0
  %1545 = vmatpush2.msra.mxu0 0.0
  %1546 = vmatprep.subr.mxu0 0.0
  %1547 = vmatpush2.msra.mxu0 0.0
  %1548 = vmatprep.subr.mxu0 0.0
  %1549 = vmatpush2.msra.mxu0 0.0
  %1550 = vmatprep.subr.mxu0 0.0
  %1551 = vmatpush2.msra.mxu0 0.0
  %1552 = vmatprep.subr.mxu0 0.0
  %1553 = vmatpush2.msra.mxu0 0.0
  %1554 = vmatprep.subr.mxu0 0.0
  %1555 = vmatpush2.msra.mxu0 0.0
  %1556 = vmatprep.subr.mxu0 0.0
  %1557 = vmatpush2.msra.mxu0 0.0
  %1558 = vmatprep.subr.mxu0 0.0
  %1559 = vmatpush2.msra.mxu0 0.0
  %1560 = vmatprep.subr.mxu0 0.0
  %1561 = vmatpush2.msra.mxu0 0.0
  %1562 = vmatprep.subr.mxu0 0.0
  %1563 = vmatpush2.msra.mxu0 0.0
  %1564 = vmatprep.subr.mxu0 0.0
  %1565 = vmatpush2.msra.mxu0 0.0
  %1566 = vmatprep.subr.mxu0 0.0
  %1567 = vmatpush2.msra.mxu0 0.0
  %1568 = vmatprep.subr.mxu0 0.0
  %1569 = vmatpush2.msra.mxu0 0.0
  %1570 = vmatprep.subr.mxu0 0.0
  %1571 = vmatpush2.msra.mxu0 0.0
  %1572 = vmatprep.subr.mxu0 0.0
  %1573 = vmatpush2.msra.mxu0 0.0
  %1574 = vmatprep.mubr.f32.mxu0 0.0
  %1575 = vmatmul.mubr.f32.gmra.mxu0 %v396
  %v1576 = vpop.f32.mrf.mxu0
  %v1577 = vadd.f32 0.0, %v1576
  %v1578 = vpop.f32.mrf.mxu0
  %v1579 = vadd.f32 0.0, %v1578
  %1580 = vdwg.mxu0
  %1581 = vmatprep.subr.mxu0 0.0
  %1582 = vmatpush1.msra.mxu0 0.0
  %1583 = vmatprep.subr.mxu0 0.0
  %1584 = vmatpush1.msra.mxu0 0.0
  %1585 = vmatprep.subr.mxu0 0.0
  %1586 = vmatpush1.msra.mxu0 0.0
  %1587 = vmatprep.subr.mxu0 0.0
  %1588 = vmatpush1.msra.mxu0 0.0
  %1589 = vmatprep.subr.mxu0 0.0
  %1590 = vmatpush1.msra.mxu0 0.0
  %1591 = vmatprep.subr.mxu0 0.0
  %1592 = vmatpush1.msra.mxu0 0.0
  %1593 = vmatprep.subr.mxu0 0.0
  %1594 = vmatpush1.msra.mxu0 0.0
  %1595 = vmatprep.subr.mxu0 0.0
  %1596 = vmatpush1.msra.mxu0 0.0
  %1597 = vmatprep.subr.mxu0 0.0
  %1598 = vmatpush1.msra.mxu0 0.0
  %1599 = vmatprep.subr.mxu0 0.0
  %1600 = vmatpush1.msra.mxu0 0.0
  %1601 = vmatprep.subr.mxu0 0.0
  %1602 = vmatpush1.msra.mxu0 0.0
  %1603 = vmatprep.subr.mxu0 0.0
  %1604 = vmatpush1.msra.mxu0 0.0
  %1605 = vmatprep.subr.mxu0 %v1037
  %1606 = vmatpush1.msra.mxu0 %v1034
  %1607 = vmatprep.subr.mxu0 %v1022
  %1608 = vmatpush1.msra.mxu0 %v1021
  %1609 = vmatprep.subr.mxu0 %v1018
  %1610 = vmatpush1.msra.mxu0 %v1017
  %1611 = vmatprep.subr.mxu0 %v1014
  %1612 = vmatpush1.msra.mxu0 %v1013
  %1613 = vmatprep.subr.mxu0 0.0
  %1614 = vmatpush2.msra.mxu0 0.0
  %1615 = vmatprep.subr.mxu0 0.0
  %1616 = vmatpush2.msra.mxu0 0.0
  %1617 = vmatprep.subr.mxu0 0.0
  %1618 = vmatpush2.msra.mxu0 0.0
  %1619 = vmatprep.subr.mxu0 0.0
  %1620 = vmatpush2.msra.mxu0 0.0
  %1621 = vmatprep.subr.mxu0 0.0
  %1622 = vmatpush2.msra.mxu0 0.0
  %1623 = vmatprep.subr.mxu0 0.0
  %1624 = vmatpush2.msra.mxu0 0.0
  %1625 = vmatprep.subr.mxu0 0.0
  %1626 = vmatpush2.msra.mxu0 0.0
  %1627 = vmatprep.subr.mxu0 0.0
  %1628 = vmatpush2.msra.mxu0 0.0
  %1629 = vmatprep.subr.mxu0 0.0
  %1630 = vmatpush2.msra.mxu0 0.0
  %1631 = vmatprep.subr.mxu0 0.0
  %1632 = vmatpush2.msra.mxu0 0.0
  %1633 = vmatprep.subr.mxu0 0.0
  %1634 = vmatpush2.msra.mxu0 0.0
  %1635 = vmatprep.subr.mxu0 0.0
  %1636 = vmatpush2.msra.mxu0 0.0
  %1637 = vmatprep.subr.mxu0 0.0
  %1638 = vmatpush2.msra.mxu0 0.0
  %1639 = vmatprep.subr.mxu0 0.0
  %1640 = vmatpush2.msra.mxu0 0.0
  %1641 = vmatprep.subr.mxu0 0.0
  %1642 = vmatpush2.msra.mxu0 0.0
  %1643 = vmatprep.subr.mxu0 0.0
  %1644 = vmatpush2.msra.mxu0 0.0
  %1645 = vmatprep.mubr.f32.mxu0 0.0
  %1646 = vmatmul.mubr.f32.gmra.mxu0 %v396
  %v1647 = vpop.f32.mrf.mxu0
  %v1648 = vadd.f32 0.0, %v1647
  %v1649 = vpop.f32.mrf.mxu0
  %v1650 = vadd.f32 0.0, %v1649
  %1651 = vdwg.mxu0
  %1652 = vmatprep.subr.mxu0 0.0
  %1653 = vmatpush1.msra.mxu0 0.0
  %1654 = vmatprep.subr.mxu0 0.0
  %1655 = vmatpush1.msra.mxu0 0.0
  %1656 = vmatprep.subr.mxu0 0.0
  %1657 = vmatpush1.msra.mxu0 0.0
  %1658 = vmatprep.subr.mxu0 0.0
  %1659 = vmatpush1.msra.mxu0 0.0
  %1660 = vmatprep.subr.mxu0 0.0
  %1661 = vmatpush1.msra.mxu0 0.0
  %1662 = vmatprep.subr.mxu0 0.0
  %1663 = vmatpush1.msra.mxu0 0.0
  %1664 = vmatprep.subr.mxu0 0.0
  %1665 = vmatpush1.msra.mxu0 0.0
  %1666 = vmatprep.subr.mxu0 0.0
  %1667 = vmatpush1.msra.mxu0 0.0
  %1668 = vmatprep.subr.mxu0 0.0
  %1669 = vmatpush1.msra.mxu0 0.0
  %1670 = vmatprep.subr.mxu0 0.0
  %1671 = vmatpush1.msra.mxu0 0.0
  %1672 = vmatprep.subr.mxu0 0.0
  %1673 = vmatpush1.msra.mxu0 0.0
  %1674 = vmatprep.subr.mxu0 0.0
  %1675 = vmatpush1.msra.mxu0 0.0
  %1676 = vmatprep.subr.mxu0 %v1185
  %1677 = vmatpush1.msra.mxu0 %v1182
  %1678 = vmatprep.subr.mxu0 %v1003
  %1679 = vmatpush1.msra.mxu0 %v1002
  %1680 = vmatprep.subr.mxu0 %v999
  %1681 = vmatpush1.msra.mxu0 %v998
  %1682 = vmatprep.subr.mxu0 %v995
  %1683 = vmatpush1.msra.mxu0 %v994
  %1684 = vmatprep.subr.mxu0 0.0
  %1685 = vmatpush2.msra.mxu0 0.0
  %1686 = vmatprep.subr.mxu0 0.0
  %1687 = vmatpush2.msra.mxu0 0.0
  %1688 = vmatprep.subr.mxu0 0.0
  %1689 = vmatpush2.msra.mxu0 0.0
  %1690 = vmatprep.subr.mxu0 0.0
  %1691 = vmatpush2.msra.mxu0 0.0
  %1692 = vmatprep.subr.mxu0 0.0
  %1693 = vmatpush2.msra.mxu0 0.0
  %1694 = vmatprep.subr.mxu0 0.0
  %1695 = vmatpush2.msra.mxu0 0.0
  %1696 = vmatprep.subr.mxu0 0.0
  %1697 = vmatpush2.msra.mxu0 0.0
  %1698 = vmatprep.subr.mxu0 0.0
  %1699 = vmatpush2.msra.mxu0 0.0
  %1700 = vmatprep.subr.mxu0 0.0
  %1701 = vmatpush2.msra.mxu0 0.0
  %1702 = vmatprep.subr.mxu0 0.0
  %1703 = vmatpush2.msra.mxu0 0.0
  %1704 = vmatprep.subr.mxu0 0.0
  %1705 = vmatpush2.msra.mxu0 0.0
  %1706 = vmatprep.subr.mxu0 0.0
  %1707 = vmatpush2.msra.mxu0 0.0
  %1708 = vmatprep.subr.mxu0 0.0
  %1709 = vmatpush2.msra.mxu0 0.0
  %1710 = vmatprep.subr.mxu0 0.0
  %1711 = vmatpush2.msra.mxu0 0.0
  %1712 = vmatprep.subr.mxu0 0.0
  %1713 = vmatpush2.msra.mxu0 0.0
  %1714 = vmatprep.subr.mxu0 0.0
  %1715 = vmatpush2.msra.mxu0 0.0
  %1716 = vmatprep.mubr.f32.mxu0 0.0
  %1717 = vmatmul.mubr.f32.gmra.mxu0 %v64
  %v1718 = vpop.f32.mrf.mxu0
  %v1719 = vadd.f32 %v1577, %v1718
  %v1720 = vpop.f32.mrf.mxu0
  %v1721 = vadd.f32 %v1579, %v1720
  %1722 = vdwg.mxu0
  %1723 = vmatprep.subr.mxu0 0.0
  %1724 = vmatpush1.msra.mxu0 0.0
  %1725 = vmatprep.subr.mxu0 0.0
  %1726 = vmatpush1.msra.mxu0 0.0
  %1727 = vmatprep.subr.mxu0 0.0
  %1728 = vmatpush1.msra.mxu0 0.0
  %1729 = vmatprep.subr.mxu0 0.0
  %1730 = vmatpush1.msra.mxu0 0.0
  %1731 = vmatprep.subr.mxu0 0.0
  %1732 = vmatpush1.msra.mxu0 0.0
  %1733 = vmatprep.subr.mxu0 0.0
  %1734 = vmatpush1.msra.mxu0 0.0
  %1735 = vmatprep.subr.mxu0 0.0
  %1736 = vmatpush1.msra.mxu0 0.0
  %1737 = vmatprep.subr.mxu0 0.0
  %1738 = vmatpush1.msra.mxu0 0.0
  %1739 = vmatprep.subr.mxu0 0.0
  %1740 = vmatpush1.msra.mxu0 0.0
  %1741 = vmatprep.subr.mxu0 0.0
  %1742 = vmatpush1.msra.mxu0 0.0
  %1743 = vmatprep.subr.mxu0 0.0
  %1744 = vmatpush1.msra.mxu0 0.0
  %1745 = vmatprep.subr.mxu0 0.0
  %1746 = vmatpush1.msra.mxu0 0.0
  %1747 = vmatprep.subr.mxu0 %v1191
  %1748 = vmatpush1.msra.mxu0 %v1188
  %1749 = vmatprep.subr.mxu0 %v1005
  %1750 = vmatpush1.msra.mxu0 %v1004
  %1751 = vmatprep.subr.mxu0 %v1001
  %1752 = vmatpush1.msra.mxu0 %v1000
  %1753 = vmatprep.subr.mxu0 %v997
  %1754 = vmatpush1.msra.mxu0 %v996
  %1755 = vmatprep.subr.mxu0 0.0
  %1756 = vmatpush2.msra.mxu0 0.0
  %1757 = vmatprep.subr.mxu0 0.0
  %1758 = vmatpush2.msra.mxu0 0.0
  %1759 = vmatprep.subr.mxu0 0.0
  %1760 = vmatpush2.msra.mxu0 0.0
  %1761 = vmatprep.subr.mxu0 0.0
  %1762 = vmatpush2.msra.mxu0 0.0
  %1763 = vmatprep.subr.mxu0 0.0
  %1764 = vmatpush2.msra.mxu0 0.0
  %1765 = vmatprep.subr.mxu0 0.0
  %1766 = vmatpush2.msra.mxu0 0.0
  %1767 = vmatprep.subr.mxu0 0.0
  %1768 = vmatpush2.msra.mxu0 0.0
  %1769 = vmatprep.subr.mxu0 0.0
  %1770 = vmatpush2.msra.mxu0 0.0
  %1771 = vmatprep.subr.mxu0 0.0
  %1772 = vmatpush2.msra.mxu0 0.0
  %1773 = vmatprep.subr.mxu0 0.0
  %1774 = vmatpush2.msra.mxu0 0.0
  %1775 = vmatprep.subr.mxu0 0.0
  %1776 = vmatpush2.msra.mxu0 0.0
  %1777 = vmatprep.subr.mxu0 0.0
  %1778 = vmatpush2.msra.mxu0 0.0
  %1779 = vmatprep.subr.mxu0 0.0
  %1780 = vmatpush2.msra.mxu0 0.0
  %1781 = vmatprep.subr.mxu0 0.0
  %1782 = vmatpush2.msra.mxu0 0.0
  %1783 = vmatprep.subr.mxu0 0.0
  %1784 = vmatpush2.msra.mxu0 0.0
  %1785 = vmatprep.subr.mxu0 0.0
  %1786 = vmatpush2.msra.mxu0 0.0
  %1787 = vmatprep.mubr.f32.mxu0 0.0
  %1788 = vmatmul.mubr.f32.gmra.mxu0 %v64
  %v1789 = vpop.f32.mrf.mxu0
  %v1790 = vadd.f32 %v1648, %v1789
  %v1791 = vpop.f32.mrf.mxu0
  %v1792 = vadd.f32 %v1650, %v1791
  %1793 = vdwg.mxu0
  %1794 = vmatprep.subr.mxu0 0.0
  %1795 = vmatpush1.msra.mxu0 0.0
  %1796 = vmatprep.subr.mxu0 0.0
  %1797 = vmatpush1.msra.mxu0 0.0
  %1798 = vmatprep.subr.mxu0 0.0
  %1799 = vmatpush1.msra.mxu0 0.0
  %1800 = vmatprep.subr.mxu0 0.0
  %1801 = vmatpush1.msra.mxu0 0.0
  %1802 = vmatprep.subr.mxu0 0.0
  %1803 = vmatpush1.msra.mxu0 0.0
  %1804 = vmatprep.subr.mxu0 0.0
  %1805 = vmatpush1.msra.mxu0 0.0
  %1806 = vmatprep.subr.mxu0 0.0
  %1807 = vmatpush1.msra.mxu0 0.0
  %1808 = vmatprep.subr.mxu0 0.0
  %1809 = vmatpush1.msra.mxu0 0.0
  %1810 = vmatprep.subr.mxu0 0.0
  %1811 = vmatpush1.msra.mxu0 0.0
  %1812 = vmatprep.subr.mxu0 0.0
  %1813 = vmatpush1.msra.mxu0 0.0
  %1814 = vmatprep.subr.mxu0 0.0
  %1815 = vmatpush1.msra.mxu0 0.0
  %1816 = vmatprep.subr.mxu0 0.0
  %1817 = vmatpush1.msra.mxu0 0.0
  %1818 = vmatprep.subr.mxu0 %v1356
  %1819 = vmatpush1.msra.mxu0 %v1353
  %1820 = vmatprep.subr.mxu0 %v1345
  %1821 = vmatpush1.msra.mxu0 %v1344
  %1822 = vmatprep.subr.mxu0 %v1341
  %1823 = vmatpush1.msra.mxu0 %v1340
  %1824 = vmatprep.subr.mxu0 %v1337
  %1825 = vmatpush1.msra.mxu0 %v1336
  %1826 = vmatprep.subr.mxu0 0.0
  %1827 = vmatpush2.msra.mxu0 0.0
  %1828 = vmatprep.subr.mxu0 0.0
  %1829 = vmatpush2.msra.mxu0 0.0
  %1830 = vmatprep.subr.mxu0 0.0
  %1831 = vmatpush2.msra.mxu0 0.0
  %1832 = vmatprep.subr.mxu0 0.0
  %1833 = vmatpush2.msra.mxu0 0.0
  %1834 = vmatprep.subr.mxu0 0.0
  %1835 = vmatpush2.msra.mxu0 0.0
  %1836 = vmatprep.subr.mxu0 0.0
  %1837 = vmatpush2.msra.mxu0 0.0
  %1838 = vmatprep.subr.mxu0 0.0
  %1839 = vmatpush2.msra.mxu0 0.0
  %1840 = vmatprep.subr.mxu0 0.0
  %1841 = vmatpush2.msra.mxu0 0.0
  %1842 = vmatprep.subr.mxu0 0.0
  %1843 = vmatpush2.msra.mxu0 0.0
  %1844 = vmatprep.subr.mxu0 0.0
  %1845 = vmatpush2.msra.mxu0 0.0
  %1846 = vmatprep.subr.mxu0 0.0
  %1847 = vmatpush2.msra.mxu0 0.0
  %1848 = vmatprep.subr.mxu0 0.0
  %1849 = vmatpush2.msra.mxu0 0.0
  %1850 = vmatprep.subr.mxu0 0.0
  %1851 = vmatpush2.msra.mxu0 0.0
  %1852 = vmatprep.subr.mxu0 0.0
  %1853 = vmatpush2.msra.mxu0 0.0
  %1854 = vmatprep.subr.mxu0 0.0
  %1855 = vmatpush2.msra.mxu0 0.0
  %1856 = vmatprep.subr.mxu0 0.0
  %1857 = vmatpush2.msra.mxu0 0.0
  %1858 = vmatprep.mubr.f32.mxu0 0.0
  %1859 = vmatmul.mubr.f32.gmra.mxu0 %v841
  %v1860 = vpop.f32.mrf.mxu0
  %v1861 = vadd.f32 0.0, %v1860
  %v1862 = vpop.f32.mrf.mxu0
  %v1863 = vadd.f32 0.0, %v1862
  %1864 = vdwg.mxu0
  %1865 = vmatprep.subr.mxu0 0.0
  %1866 = vmatpush1.msra.mxu0 0.0
  %1867 = vmatprep.subr.mxu0 0.0
  %1868 = vmatpush1.msra.mxu0 0.0
  %1869 = vmatprep.subr.mxu0 0.0
  %1870 = vmatpush1.msra.mxu0 0.0
  %1871 = vmatprep.subr.mxu0 0.0
  %1872 = vmatpush1.msra.mxu0 0.0
  %1873 = vmatprep.subr.mxu0 0.0
  %1874 = vmatpush1.msra.mxu0 0.0
  %1875 = vmatprep.subr.mxu0 0.0
  %1876 = vmatpush1.msra.mxu0 0.0
  %1877 = vmatprep.subr.mxu0 0.0
  %1878 = vmatpush1.msra.mxu0 0.0
  %1879 = vmatprep.subr.mxu0 0.0
  %1880 = vmatpush1.msra.mxu0 0.0
  %1881 = vmatprep.subr.mxu0 0.0
  %1882 = vmatpush1.msra.mxu0 0.0
  %1883 = vmatprep.subr.mxu0 0.0
  %1884 = vmatpush1.msra.mxu0 0.0
  %1885 = vmatprep.subr.mxu0 0.0
  %1886 = vmatpush1.msra.mxu0 0.0
  %1887 = vmatprep.subr.mxu0 0.0
  %1888 = vmatpush1.msra.mxu0 0.0
  %1889 = vmatprep.subr.mxu0 %v1362
  %1890 = vmatpush1.msra.mxu0 %v1359
  %1891 = vmatprep.subr.mxu0 %v1347
  %1892 = vmatpush1.msra.mxu0 %v1346
  %1893 = vmatprep.subr.mxu0 %v1343
  %1894 = vmatpush1.msra.mxu0 %v1342
  %1895 = vmatprep.subr.mxu0 %v1339
  %1896 = vmatpush1.msra.mxu0 %v1338
  %1897 = vmatprep.subr.mxu0 0.0
  %1898 = vmatpush2.msra.mxu0 0.0
  %1899 = vmatprep.subr.mxu0 0.0
  %1900 = vmatpush2.msra.mxu0 0.0
  %1901 = vmatprep.subr.mxu0 0.0
  %1902 = vmatpush2.msra.mxu0 0.0
  %1903 = vmatprep.subr.mxu0 0.0
  %1904 = vmatpush2.msra.mxu0 0.0
  %1905 = vmatprep.subr.mxu0 0.0
  %1906 = vmatpush2.msra.mxu0 0.0
  %1907 = vmatprep.subr.mxu0 0.0
  %1908 = vmatpush2.msra.mxu0 0.0
  %1909 = vmatprep.subr.mxu0 0.0
  %1910 = vmatpush2.msra.mxu0 0.0
  %1911 = vmatprep.subr.mxu0 0.0
  %1912 = vmatpush2.msra.mxu0 0.0
  %1913 = vmatprep.subr.mxu0 0.0
  %1914 = vmatpush2.msra.mxu0 0.0
  %1915 = vmatprep.subr.mxu0 0.0
  %1916 = vmatpush2.msra.mxu0 0.0
  %1917 = vmatprep.subr.mxu0 0.0
  %1918 = vmatpush2.msra.mxu0 0.0
  %1919 = vmatprep.subr.mxu0 0.0
  %1920 = vmatpush2.msra.mxu0 0.0
  %1921 = vmatprep.subr.mxu0 0.0
  %1922 = vmatpush2.msra.mxu0 0.0
  %1923 = vmatprep.subr.mxu0 0.0
  %1924 = vmatpush2.msra.mxu0 0.0
  %1925 = vmatprep.subr.mxu0 0.0
  %1926 = vmatpush2.msra.mxu0 0.0
  %1927 = vmatprep.subr.mxu0 0.0
  %1928 = vmatpush2.msra.mxu0 0.0
  %1929 = vmatprep.mubr.f32.mxu0 0.0
  %1930 = vmatmul.mubr.f32.gmra.mxu0 %v841
  %v1931 = vpop.f32.mrf.mxu0
  %v1932 = vadd.f32 0.0, %v1931
  %v1933 = vpop.f32.mrf.mxu0
  %v1934 = vadd.f32 0.0, %v1933
  %1935 = vdwg.mxu0
  %v1936 = vadd.f32 %v1719, %v1861
  %v1937 = vadd.f32 %v1721, %v1863
  %v1938 = vadd.f32 %v1790, %v1932
  %v1939 = vadd.f32 %v1792, %v1934
  %v1940 = vmax.f32 %v1506, %v1936
  %v1941 = vmax.f32 %v1507, %v1937
  %v1942 = vmax.f32 %v1508, %v1938
  %v1943 = vmax.f32 %v1509, %v1939
  %v1944 = vmax.f32 %v989, %v1940
  %v1945 = vmax.f32 %v990, %v1941
  %v1946 = vmax.f32 %v991, %v1942
  %v1947 = vmax.f32 %v992, %v1943
  %v1949 = vlaneseq
  %v1950 = vshrl.u32 %v1949, 7
  %v1951 = vsub.s32 0, %v1950
  %v1952 = vrot.slane %v20, %v1951
  %v1953 = vlaneseq
  %v1954 = vshrl.u32 %v1953, 7
  %v1955 = vsub.s32 1, %v1954
  %v1956 = vrot.slane %v20, %v1955
  %v1957 = vlaneseq
  %v1958 = vshrl.u32 %v1957, 7
  %v1959 = vsub.s32 2, %v1958
  %v1960 = vrot.slane %v20, %v1959
  %v1961 = vlaneseq
  %v1962 = vshrl.u32 %v1961, 7
  %v1963 = vsub.s32 3, %v1962
  %v1964 = vrot.slane %v20, %v1963
  %v1969 = vadd.f32 %v1944, %v1952
  %v1970 = vadd.f32 %v1945, %v1956
  %v1971 = vadd.f32 %v1946, %v1960
  %v1972 = vadd.f32 %v1947, %v1964
  %v1973 = vmax.f32 %v1969, 0.0
  %v1974 = vmax.f32 %v1970, 0.0
  %v1975 = vmax.f32 %v1971, 0.0
  %v1976 = vmax.f32 %v1972, 0.0
  %1977 = vmatprep.subr.mxu0 0.0
  %1978 = vmatpush1.msra.mxu0 0.0
  %1979 = vmatprep.subr.mxu0 0.0
  %1980 = vmatpush1.msra.mxu0 0.0
  %1981 = vmatprep.subr.mxu0 0.0
  %1982 = vmatpush1.msra.mxu0 0.0
  %1983 = vmatprep.subr.mxu0 0.0
  %1984 = vmatpush1.msra.mxu0 0.0
  %1985 = vmatprep.subr.mxu0 0.0
  %1986 = vmatpush1.msra.mxu0 0.0
  %1987 = vmatprep.subr.mxu0 0.0
  %1988 = vmatpush1.msra.mxu0 0.0
  %1989 = vmatprep.subr.mxu0 0.0
  %1990 = vmatpush1.msra.mxu0 0.0
  %1991 = vmatprep.subr.mxu0 0.0
  %1992 = vmatpush1.msra.mxu0 0.0
  %1993 = vmatprep.subr.mxu0 0.0
  %1994 = vmatpush1.msra.mxu0 0.0
  %1995 = vmatprep.subr.mxu0 0.0
  %1996 = vmatpush1.msra.mxu0 0.0
  %1997 = vmatprep.subr.mxu0 0.0
  %1998 = vmatpush1.msra.mxu0 0.0
  %1999 = vmatprep.subr.mxu0 0.0
  %2000 = vmatpush1.msra.mxu0 0.0
  %2001 = vmatprep.subr.mxu0 %v71
  %2002 = vmatpush1.msra.mxu0 %v68
  %2003 = vmatprep.subr.mxu0 %v55
  %2004 = vmatpush1.msra.mxu0 %v54
  %2005 = vmatprep.subr.mxu0 %v51
  %2006 = vmatpush1.msra.mxu0 %v50
  %2007 = vmatprep.subr.mxu0 %v47
  %2008 = vmatpush1.msra.mxu0 %v46
  %2009 = vmatprep.subr.mxu0 0.0
  %2010 = vmatpush2.msra.mxu0 0.0
  %2011 = vmatprep.subr.mxu0 0.0
  %2012 = vmatpush2.msra.mxu0 0.0
  %2013 = vmatprep.subr.mxu0 0.0
  %2014 = vmatpush2.msra.mxu0 0.0
  %2015 = vmatprep.subr.mxu0 0.0
  %2016 = vmatpush2.msra.mxu0 0.0
  %2017 = vmatprep.subr.mxu0 0.0
  %2018 = vmatpush2.msra.mxu0 0.0
  %2019 = vmatprep.subr.mxu0 0.0
  %2020 = vmatpush2.msra.mxu0 0.0
  %2021 = vmatprep.subr.mxu0 0.0
  %2022 = vmatpush2.msra.mxu0 0.0
  %2023 = vmatprep.subr.mxu0 0.0
  %2024 = vmatpush2.msra.mxu0 0.0
  %2025 = vmatprep.subr.mxu0 0.0
  %2026 = vmatpush2.msra.mxu0 0.0
  %2027 = vmatprep.subr.mxu0 0.0
  %2028 = vmatpush2.msra.mxu0 0.0
  %2029 = vmatprep.subr.mxu0 0.0
  %2030 = vmatpush2.msra.mxu0 0.0
  %2031 = vmatprep.subr.mxu0 0.0
  %2032 = vmatpush2.msra.mxu0 0.0
  %2033 = vmatprep.subr.mxu0 0.0
  %2034 = vmatpush2.msra.mxu0 0.0
  %2035 = vmatprep.subr.mxu0 0.0
  %2036 = vmatpush2.msra.mxu0 0.0
  %2037 = vmatprep.subr.mxu0 0.0
  %2038 = vmatpush2.msra.mxu0 0.0
  %2039 = vmatprep.subr.mxu0 0.0
  %2040 = vmatpush2.msra.mxu0 0.0
  %2041 = vmatprep.mubr.f32.mxu0 0.0
  %2042 = vmatmul.mubr.f32.gmra.mxu0 %v841
  %v2043 = vpop.f32.mrf.mxu0
  %v2044 = vadd.f32 0.0, %v2043
  %v2045 = vpop.f32.mrf.mxu0
  %v2046 = vadd.f32 0.0, %v2045
  %2047 = vdwg.mxu0
  %2048 = vmatprep.subr.mxu0 0.0
  %2049 = vmatpush1.msra.mxu0 0.0
  %2050 = vmatprep.subr.mxu0 0.0
  %2051 = vmatpush1.msra.mxu0 0.0
  %2052 = vmatprep.subr.mxu0 0.0
  %2053 = vmatpush1.msra.mxu0 0.0
  %2054 = vmatprep.subr.mxu0 0.0
  %2055 = vmatpush1.msra.mxu0 0.0
  %2056 = vmatprep.subr.mxu0 0.0
  %2057 = vmatpush1.msra.mxu0 0.0
  %2058 = vmatprep.subr.mxu0 0.0
  %2059 = vmatpush1.msra.mxu0 0.0
  %2060 = vmatprep.subr.mxu0 0.0
  %2061 = vmatpush1.msra.mxu0 0.0
  %2062 = vmatprep.subr.mxu0 0.0
  %2063 = vmatpush1.msra.mxu0 0.0
  %2064 = vmatprep.subr.mxu0 0.0
  %2065 = vmatpush1.msra.mxu0 0.0
  %2066 = vmatprep.subr.mxu0 0.0
  %2067 = vmatpush1.msra.mxu0 0.0
  %2068 = vmatprep.subr.mxu0 0.0
  %2069 = vmatpush1.msra.mxu0 0.0
  %2070 = vmatprep.subr.mxu0 0.0
  %2071 = vmatpush1.msra.mxu0 0.0
  %2072 = vmatprep.subr.mxu0 %v77
  %2073 = vmatpush1.msra.mxu0 %v74
  %2074 = vmatprep.subr.mxu0 %v57
  %2075 = vmatpush1.msra.mxu0 %v56
  %2076 = vmatprep.subr.mxu0 %v53
  %2077 = vmatpush1.msra.mxu0 %v52
  %2078 = vmatprep.subr.mxu0 %v49
  %2079 = vmatpush1.msra.mxu0 %v48
  %2080 = vmatprep.subr.mxu0 0.0
  %2081 = vmatpush2.msra.mxu0 0.0
  %2082 = vmatprep.subr.mxu0 0.0
  %2083 = vmatpush2.msra.mxu0 0.0
  %2084 = vmatprep.subr.mxu0 0.0
  %2085 = vmatpush2.msra.mxu0 0.0
  %2086 = vmatprep.subr.mxu0 0.0
  %2087 = vmatpush2.msra.mxu0 0.0
  %2088 = vmatprep.subr.mxu0 0.0
  %2089 = vmatpush2.msra.mxu0 0.0
  %2090 = vmatprep.subr.mxu0 0.0
  %2091 = vmatpush2.msra.mxu0 0.0
  %2092 = vmatprep.subr.mxu0 0.0
  %2093 = vmatpush2.msra.mxu0 0.0
  %2094 = vmatprep.subr.mxu0 0.0
  %2095 = vmatpush2.msra.mxu0 0.0
  %2096 = vmatprep.subr.mxu0 0.0
  %2097 = vmatpush2.msra.mxu0 0.0
  %2098 = vmatprep.subr.mxu0 0.0
  %2099 = vmatpush2.msra.mxu0 0.0
  %2100 = vmatprep.subr.mxu0 0.0
  %2101 = vmatpush2.msra.mxu0 0.0
  %2102 = vmatprep.subr.mxu0 0.0
  %2103 = vmatpush2.msra.mxu0 0.0
  %2104 = vmatprep.subr.mxu0 0.0
  %2105 = vmatpush2.msra.mxu0 0.0
  %2106 = vmatprep.subr.mxu0 0.0
  %2107 = vmatpush2.msra.mxu0 0.0
  %2108 = vmatprep.subr.mxu0 0.0
  %2109 = vmatpush2.msra.mxu0 0.0
  %2110 = vmatprep.subr.mxu0 0.0
  %2111 = vmatpush2.msra.mxu0 0.0
  %2112 = vmatprep.mubr.f32.mxu0 0.0
  %2113 = vmatmul.mubr.f32.gmra.mxu0 %v841
  %v2114 = vpop.f32.mrf.mxu0
  %v2115 = vadd.f32 0.0, %v2114
  %v2116 = vpop.f32.mrf.mxu0
  %v2117 = vadd.f32 0.0, %v2116
  %2118 = vdwg.mxu0
  %2119 = vmatprep.subr.mxu0 0.0
  %2120 = vmatpush1.msra.mxu0 0.0
  %2121 = vmatprep.subr.mxu0 0.0
  %2122 = vmatpush1.msra.mxu0 0.0
  %2123 = vmatprep.subr.mxu0 0.0
  %2124 = vmatpush1.msra.mxu0 0.0
  %2125 = vmatprep.subr.mxu0 0.0
  %2126 = vmatpush1.msra.mxu0 0.0
  %2127 = vmatprep.subr.mxu0 0.0
  %2128 = vmatpush1.msra.mxu0 0.0
  %2129 = vmatprep.subr.mxu0 0.0
  %2130 = vmatpush1.msra.mxu0 0.0
  %2131 = vmatprep.subr.mxu0 0.0
  %2132 = vmatpush1.msra.mxu0 0.0
  %2133 = vmatprep.subr.mxu0 0.0
  %2134 = vmatpush1.msra.mxu0 0.0
  %2135 = vmatprep.subr.mxu0 0.0
  %2136 = vmatpush1.msra.mxu0 0.0
  %2137 = vmatprep.subr.mxu0 0.0
  %2138 = vmatpush1.msra.mxu0 0.0
  %2139 = vmatprep.subr.mxu0 0.0
  %2140 = vmatpush1.msra.mxu0 0.0
  %2141 = vmatprep.subr.mxu0 0.0
  %2142 = vmatpush1.msra.mxu0 0.0
  %2143 = vmatprep.subr.mxu0 %v228
  %2144 = vmatpush1.msra.mxu0 %v225
  %2145 = vmatprep.subr.mxu0 %v38
  %2146 = vmatpush1.msra.mxu0 %v37
  %2147 = vmatprep.subr.mxu0 %v34
  %2148 = vmatpush1.msra.mxu0 %v33
  %2149 = vmatprep.subr.mxu0 %v30
  %2150 = vmatpush1.msra.mxu0 %v29
  %2151 = vmatprep.subr.mxu0 0.0
  %2152 = vmatpush2.msra.mxu0 0.0
  %2153 = vmatprep.subr.mxu0 0.0
  %2154 = vmatpush2.msra.mxu0 0.0
  %2155 = vmatprep.subr.mxu0 0.0
  %2156 = vmatpush2.msra.mxu0 0.0
  %2157 = vmatprep.subr.mxu0 0.0
  %2158 = vmatpush2.msra.mxu0 0.0
  %2159 = vmatprep.subr.mxu0 0.0
  %2160 = vmatpush2.msra.mxu0 0.0
  %2161 = vmatprep.subr.mxu0 0.0
  %2162 = vmatpush2.msra.mxu0 0.0
  %2163 = vmatprep.subr.mxu0 0.0
  %2164 = vmatpush2.msra.mxu0 0.0
  %2165 = vmatprep.subr.mxu0 0.0
  %2166 = vmatpush2.msra.mxu0 0.0
  %2167 = vmatprep.subr.mxu0 0.0
  %2168 = vmatpush2.msra.mxu0 0.0
  %2169 = vmatprep.subr.mxu0 0.0
  %2170 = vmatpush2.msra.mxu0 0.0
  %2171 = vmatprep.subr.mxu0 0.0
  %2172 = vmatpush2.msra.mxu0 0.0
  %2173 = vmatprep.subr.mxu0 0.0
  %2174 = vmatpush2.msra.mxu0 0.0
  %2175 = vmatprep.subr.mxu0 0.0
  %2176 = vmatpush2.msra.mxu0 0.0
  %2177 = vmatprep.subr.mxu0 0.0
  %2178 = vmatpush2.msra.mxu0 0.0
  %2179 = vmatprep.subr.mxu0 0.0
  %2180 = vmatpush2.msra.mxu0 0.0
  %2181 = vmatprep.subr.mxu0 0.0
  %2182 = vmatpush2.msra.mxu0 0.0
  %2183 = vmatprep.mubr.f32.mxu0 0.0
  %2184 = vmatmul.mubr.f32.gmra.mxu0 %v396
  %v2185 = vpop.f32.mrf.mxu0
  %v2186 = vadd.f32 %v2044, %v2185
  %v2187 = vpop.f32.mrf.mxu0
  %v2188 = vadd.f32 %v2046, %v2187
  %2189 = vdwg.mxu0
  %2190 = vmatprep.subr.mxu0 0.0
  %2191 = vmatpush1.msra.mxu0 0.0
  %2192 = vmatprep.subr.mxu0 0.0
  %2193 = vmatpush1.msra.mxu0 0.0
  %2194 = vmatprep.subr.mxu0 0.0
  %2195 = vmatpush1.msra.mxu0 0.0
  %2196 = vmatprep.subr.mxu0 0.0
  %2197 = vmatpush1.msra.mxu0 0.0
  %2198 = vmatprep.subr.mxu0 0.0
  %2199 = vmatpush1.msra.mxu0 0.0
  %2200 = vmatprep.subr.mxu0 0.0
  %2201 = vmatpush1.msra.mxu0 0.0
  %2202 = vmatprep.subr.mxu0 0.0
  %2203 = vmatpush1.msra.mxu0 0.0
  %2204 = vmatprep.subr.mxu0 0.0
  %2205 = vmatpush1.msra.mxu0 0.0
  %2206 = vmatprep.subr.mxu0 0.0
  %2207 = vmatpush1.msra.mxu0 0.0
  %2208 = vmatprep.subr.mxu0 0.0
  %2209 = vmatpush1.msra.mxu0 0.0
  %2210 = vmatprep.subr.mxu0 0.0
  %2211 = vmatpush1.msra.mxu0 0.0
  %2212 = vmatprep.subr.mxu0 0.0
  %2213 = vmatpush1.msra.mxu0 0.0
  %2214 = vmatprep.subr.mxu0 %v234
  %2215 = vmatpush1.msra.mxu0 %v231
  %2216 = vmatprep.subr.mxu0 %v40
  %2217 = vmatpush1.msra.mxu0 %v39
  %2218 = vmatprep.subr.mxu0 %v36
  %2219 = vmatpush1.msra.mxu0 %v35
  %2220 = vmatprep.subr.mxu0 %v32
  %2221 = vmatpush1.msra.mxu0 %v31
  %2222 = vmatprep.subr.mxu0 0.0
  %2223 = vmatpush2.msra.mxu0 0.0
  %2224 = vmatprep.subr.mxu0 0.0
  %2225 = vmatpush2.msra.mxu0 0.0
  %2226 = vmatprep.subr.mxu0 0.0
  %2227 = vmatpush2.msra.mxu0 0.0
  %2228 = vmatprep.subr.mxu0 0.0
  %2229 = vmatpush2.msra.mxu0 0.0
  %2230 = vmatprep.subr.mxu0 0.0
  %2231 = vmatpush2.msra.mxu0 0.0
  %2232 = vmatprep.subr.mxu0 0.0
  %2233 = vmatpush2.msra.mxu0 0.0
  %2234 = vmatprep.subr.mxu0 0.0
  %2235 = vmatpush2.msra.mxu0 0.0
  %2236 = vmatprep.subr.mxu0 0.0
  %2237 = vmatpush2.msra.mxu0 0.0
  %2238 = vmatprep.subr.mxu0 0.0
  %2239 = vmatpush2.msra.mxu0 0.0
  %2240 = vmatprep.subr.mxu0 0.0
  %2241 = vmatpush2.msra.mxu0 0.0
  %2242 = vmatprep.subr.mxu0 0.0
  %2243 = vmatpush2.msra.mxu0 0.0
  %2244 = vmatprep.subr.mxu0 0.0
  %2245 = vmatpush2.msra.mxu0 0.0
  %2246 = vmatprep.subr.mxu0 0.0
  %2247 = vmatpush2.msra.mxu0 0.0
  %2248 = vmatprep.subr.mxu0 0.0
  %2249 = vmatpush2.msra.mxu0 0.0
  %2250 = vmatprep.subr.mxu0 0.0
  %2251 = vmatpush2.msra.mxu0 0.0
  %2252 = vmatprep.subr.mxu0 0.0
  %2253 = vmatpush2.msra.mxu0 0.0
  %2254 = vmatprep.mubr.f32.mxu0 0.0
  %2255 = vmatmul.mubr.f32.gmra.mxu0 %v396
  %v2256 = vpop.f32.mrf.mxu0
  %v2257 = vadd.f32 %v2115, %v2256
  %v2258 = vpop.f32.mrf.mxu0
  %v2259 = vadd.f32 %v2117, %v2258
  %2260 = vdwg.mxu0
  %v2261 = vrot.slane %v22, 1
  %v2262 = vsel %vm62, %v2261, 0
  %2264 = vmatprep.subr.mxu0 0.0
  %2265 = vmatpush1.msra.mxu0 0.0
  %2266 = vmatprep.subr.mxu0 0.0
  %2267 = vmatpush1.msra.mxu0 0.0
  %2268 = vmatprep.subr.mxu0 0.0
  %2269 = vmatpush1.msra.mxu0 0.0
  %2270 = vmatprep.subr.mxu0 0.0
  %2271 = vmatpush1.msra.mxu0 0.0
  %2272 = vmatprep.subr.mxu0 0.0
  %2273 = vmatpush1.msra.mxu0 0.0
  %2274 = vmatprep.subr.mxu0 0.0
  %2275 = vmatpush1.msra.mxu0 0.0
  %2276 = vmatprep.subr.mxu0 0.0
  %2277 = vmatpush1.msra.mxu0 0.0
  %2278 = vmatprep.subr.mxu0 0.0
  %2279 = vmatpush1.msra.mxu0 0.0
  %2280 = vmatprep.subr.mxu0 0.0
  %2281 = vmatpush1.msra.mxu0 0.0
  %2282 = vmatprep.subr.mxu0 0.0
  %2283 = vmatpush1.msra.mxu0 0.0
  %2284 = vmatprep.subr.mxu0 0.0
  %2285 = vmatpush1.msra.mxu0 0.0
  %2286 = vmatprep.subr.mxu0 0.0
  %2287 = vmatpush1.msra.mxu0 0.0
  %2288 = vmatprep.subr.mxu0 %v402
  %2289 = vmatpush1.msra.mxu0 %v399
  %2290 = vmatprep.subr.mxu0 %v388
  %2291 = vmatpush1.msra.mxu0 %v387
  %2292 = vmatprep.subr.mxu0 %v384
  %2293 = vmatpush1.msra.mxu0 %v383
  %2294 = vmatprep.subr.mxu0 %v380
  %2295 = vmatpush1.msra.mxu0 %v379
  %2296 = vmatprep.subr.mxu0 0.0
  %2297 = vmatpush2.msra.mxu0 0.0
  %2298 = vmatprep.subr.mxu0 0.0
  %2299 = vmatpush2.msra.mxu0 0.0
  %2300 = vmatprep.subr.mxu0 0.0
  %2301 = vmatpush2.msra.mxu0 0.0
  %2302 = vmatprep.subr.mxu0 0.0
  %2303 = vmatpush2.msra.mxu0 0.0
  %2304 = vmatprep.subr.mxu0 0.0
  %2305 = vmatpush2.msra.mxu0 0.0
  %2306 = vmatprep.subr.mxu0 0.0
  %2307 = vmatpush2.msra.mxu0 0.0
  %2308 = vmatprep.subr.mxu0 0.0
  %2309 = vmatpush2.msra.mxu0 0.0
  %2310 = vmatprep.subr.mxu0 0.0
  %2311 = vmatpush2.msra.mxu0 0.0
  %2312 = vmatprep.subr.mxu0 0.0
  %2313 = vmatpush2.msra.mxu0 0.0
  %2314 = vmatprep.subr.mxu0 0.0
  %2315 = vmatpush2.msra.mxu0 0.0
  %2316 = vmatprep.subr.mxu0 0.0
  %2317 = vmatpush2.msra.mxu0 0.0
  %2318 = vmatprep.subr.mxu0 0.0
  %2319 = vmatpush2.msra.mxu0 0.0
  %2320 = vmatprep.subr.mxu0 0.0
  %2321 = vmatpush2.msra.mxu0 0.0
  %2322 = vmatprep.subr.mxu0 0.0
  %2323 = vmatpush2.msra.mxu0 0.0
  %2324 = vmatprep.subr.mxu0 0.0
  %2325 = vmatpush2.msra.mxu0 0.0
  %2326 = vmatprep.subr.mxu0 0.0
  %2327 = vmatpush2.msra.mxu0 0.0
  %2328 = vmatprep.mubr.f32.mxu0 0.0
  %2329 = vmatmul.mubr.f32.gmra.mxu0 %v2262
  %v2330 = vpop.f32.mrf.mxu0
  %v2331 = vadd.f32 0.0, %v2330
  %v2332 = vpop.f32.mrf.mxu0
  %v2333 = vadd.f32 0.0, %v2332
  %2334 = vdwg.mxu0
  %2335 = vmatprep.subr.mxu0 0.0
  %2336 = vmatpush1.msra.mxu0 0.0
  %2337 = vmatprep.subr.mxu0 0.0
  %2338 = vmatpush1.msra.mxu0 0.0
  %2339 = vmatprep.subr.mxu0 0.0
  %2340 = vmatpush1.msra.mxu0 0.0
  %2341 = vmatprep.subr.mxu0 0.0
  %2342 = vmatpush1.msra.mxu0 0.0
  %2343 = vmatprep.subr.mxu0 0.0
  %2344 = vmatpush1.msra.mxu0 0.0
  %2345 = vmatprep.subr.mxu0 0.0
  %2346 = vmatpush1.msra.mxu0 0.0
  %2347 = vmatprep.subr.mxu0 0.0
  %2348 = vmatpush1.msra.mxu0 0.0
  %2349 = vmatprep.subr.mxu0 0.0
  %2350 = vmatpush1.msra.mxu0 0.0
  %2351 = vmatprep.subr.mxu0 0.0
  %2352 = vmatpush1.msra.mxu0 0.0
  %2353 = vmatprep.subr.mxu0 0.0
  %2354 = vmatpush1.msra.mxu0 0.0
  %2355 = vmatprep.subr.mxu0 0.0
  %2356 = vmatpush1.msra.mxu0 0.0
  %2357 = vmatprep.subr.mxu0 0.0
  %2358 = vmatpush1.msra.mxu0 0.0
  %2359 = vmatprep.subr.mxu0 %v408
  %2360 = vmatpush1.msra.mxu0 %v405
  %2361 = vmatprep.subr.mxu0 %v390
  %2362 = vmatpush1.msra.mxu0 %v389
  %2363 = vmatprep.subr.mxu0 %v386
  %2364 = vmatpush1.msra.mxu0 %v385
  %2365 = vmatprep.subr.mxu0 %v382
  %2366 = vmatpush1.msra.mxu0 %v381
  %2367 = vmatprep.subr.mxu0 0.0
  %2368 = vmatpush2.msra.mxu0 0.0
  %2369 = vmatprep.subr.mxu0 0.0
  %2370 = vmatpush2.msra.mxu0 0.0
  %2371 = vmatprep.subr.mxu0 0.0
  %2372 = vmatpush2.msra.mxu0 0.0
  %2373 = vmatprep.subr.mxu0 0.0
  %2374 = vmatpush2.msra.mxu0 0.0
  %2375 = vmatprep.subr.mxu0 0.0
  %2376 = vmatpush2.msra.mxu0 0.0
  %2377 = vmatprep.subr.mxu0 0.0
  %2378 = vmatpush2.msra.mxu0 0.0
  %2379 = vmatprep.subr.mxu0 0.0
  %2380 = vmatpush2.msra.mxu0 0.0
  %2381 = vmatprep.subr.mxu0 0.0
  %2382 = vmatpush2.msra.mxu0 0.0
  %2383 = vmatprep.subr.mxu0 0.0
  %2384 = vmatpush2.msra.mxu0 0.0
  %2385 = vmatprep.subr.mxu0 0.0
  %2386 = vmatpush2.msra.mxu0 0.0
  %2387 = vmatprep.subr.mxu0 0.0
  %2388 = vmatpush2.msra.mxu0 0.0
  %2389 = vmatprep.subr.mxu0 0.0
  %2390 = vmatpush2.msra.mxu0 0.0
  %2391 = vmatprep.subr.mxu0 0.0
  %2392 = vmatpush2.msra.mxu0 0.0
  %2393 = vmatprep.subr.mxu0 0.0
  %2394 = vmatpush2.msra.mxu0 0.0
  %2395 = vmatprep.subr.mxu0 0.0
  %2396 = vmatpush2.msra.mxu0 0.0
  %2397 = vmatprep.subr.mxu0 0.0
  %2398 = vmatpush2.msra.mxu0 0.0
  %2399 = vmatprep.mubr.f32.mxu0 0.0
  %2400 = vmatmul.mubr.f32.gmra.mxu0 %v2262
  %v2401 = vpop.f32.mrf.mxu0
  %v2402 = vadd.f32 0.0, %v2401
  %v2403 = vpop.f32.mrf.mxu0
  %v2404 = vadd.f32 0.0, %v2403
  %2405 = vdwg.mxu0
  %v2406 = vadd.f32 %v2186, %v2331
  %v2407 = vadd.f32 %v2188, %v2333
  %v2408 = vadd.f32 %v2257, %v2402
  %v2409 = vadd.f32 %v2259, %v2404
  %2410 = vmatprep.subr.mxu0 0.0
  %2411 = vmatpush1.msra.mxu0 0.0
  %2412 = vmatprep.subr.mxu0 0.0
  %2413 = vmatpush1.msra.mxu0 0.0
  %2414 = vmatprep.subr.mxu0 0.0
  %2415 = vmatpush1.msra.mxu0 0.0
  %2416 = vmatprep.subr.mxu0 0.0
  %2417 = vmatpush1.msra.mxu0 0.0
  %2418 = vmatprep.subr.mxu0 0.0
  %2419 = vmatpush1.msra.mxu0 0.0
  %2420 = vmatprep.subr.mxu0 0.0
  %2421 = vmatpush1.msra.mxu0 0.0
  %2422 = vmatprep.subr.mxu0 0.0
  %2423 = vmatpush1.msra.mxu0 0.0
  %2424 = vmatprep.subr.mxu0 0.0
  %2425 = vmatpush1.msra.mxu0 0.0
  %2426 = vmatprep.subr.mxu0 0.0
  %2427 = vmatpush1.msra.mxu0 0.0
  %2428 = vmatprep.subr.mxu0 0.0
  %2429 = vmatpush1.msra.mxu0 0.0
  %2430 = vmatprep.subr.mxu0 0.0
  %2431 = vmatpush1.msra.mxu0 0.0
  %2432 = vmatprep.subr.mxu0 0.0
  %2433 = vmatpush1.msra.mxu0 0.0
  %2434 = vmatprep.subr.mxu0 %v71
  %2435 = vmatpush1.msra.mxu0 %v68
  %2436 = vmatprep.subr.mxu0 %v55
  %2437 = vmatpush1.msra.mxu0 %v54
  %2438 = vmatprep.subr.mxu0 %v51
  %2439 = vmatpush1.msra.mxu0 %v50
  %2440 = vmatprep.subr.mxu0 %v47
  %2441 = vmatpush1.msra.mxu0 %v46
  %2442 = vmatprep.subr.mxu0 0.0
  %2443 = vmatpush2.msra.mxu0 0.0
  %2444 = vmatprep.subr.mxu0 0.0
  %2445 = vmatpush2.msra.mxu0 0.0
  %2446 = vmatprep.subr.mxu0 0.0
  %2447 = vmatpush2.msra.mxu0 0.0
  %2448 = vmatprep.subr.mxu0 0.0
  %2449 = vmatpush2.msra.mxu0 0.0
  %2450 = vmatprep.subr.mxu0 0.0
  %2451 = vmatpush2.msra.mxu0 0.0
  %2452 = vmatprep.subr.mxu0 0.0
  %2453 = vmatpush2.msra.mxu0 0.0
  %2454 = vmatprep.subr.mxu0 0.0
  %2455 = vmatpush2.msra.mxu0 0.0
  %2456 = vmatprep.subr.mxu0 0.0
  %2457 = vmatpush2.msra.mxu0 0.0
  %2458 = vmatprep.subr.mxu0 0.0
  %2459 = vmatpush2.msra.mxu0 0.0
  %2460 = vmatprep.subr.mxu0 0.0
  %2461 = vmatpush2.msra.mxu0 0.0
  %2462 = vmatprep.subr.mxu0 0.0
  %2463 = vmatpush2.msra.mxu0 0.0
  %2464 = vmatprep.subr.mxu0 0.0
  %2465 = vmatpush2.msra.mxu0 0.0
  %2466 = vmatprep.subr.mxu0 0.0
  %2467 = vmatpush2.msra.mxu0 0.0
  %2468 = vmatprep.subr.mxu0 0.0
  %2469 = vmatpush2.msra.mxu0 0.0
  %2470 = vmatprep.subr.mxu0 0.0
  %2471 = vmatpush2.msra.mxu0 0.0
  %2472 = vmatprep.subr.mxu0 0.0
  %2473 = vmatpush2.msra.mxu0 0.0
  %2474 = vmatprep.mubr.f32.mxu0 0.0
  %2475 = vmatmul.mubr.f32.gmra.mxu0 %v2262
  %v2476 = vpop.f32.mrf.mxu0
  %v2477 = vadd.f32 0.0, %v2476
  %v2478 = vpop.f32.mrf.mxu0
  %v2479 = vadd.f32 0.0, %v2478
  %2480 = vdwg.mxu0
  %2481 = vmatprep.subr.mxu0 0.0
  %2482 = vmatpush1.msra.mxu0 0.0
  %2483 = vmatprep.subr.mxu0 0.0
  %2484 = vmatpush1.msra.mxu0 0.0
  %2485 = vmatprep.subr.mxu0 0.0
  %2486 = vmatpush1.msra.mxu0 0.0
  %2487 = vmatprep.subr.mxu0 0.0
  %2488 = vmatpush1.msra.mxu0 0.0
  %2489 = vmatprep.subr.mxu0 0.0
  %2490 = vmatpush1.msra.mxu0 0.0
  %2491 = vmatprep.subr.mxu0 0.0
  %2492 = vmatpush1.msra.mxu0 0.0
  %2493 = vmatprep.subr.mxu0 0.0
  %2494 = vmatpush1.msra.mxu0 0.0
  %2495 = vmatprep.subr.mxu0 0.0
  %2496 = vmatpush1.msra.mxu0 0.0
  %2497 = vmatprep.subr.mxu0 0.0
  %2498 = vmatpush1.msra.mxu0 0.0
  %2499 = vmatprep.subr.mxu0 0.0
  %2500 = vmatpush1.msra.mxu0 0.0
  %2501 = vmatprep.subr.mxu0 0.0
  %2502 = vmatpush1.msra.mxu0 0.0
  %2503 = vmatprep.subr.mxu0 0.0
  %2504 = vmatpush1.msra.mxu0 0.0
  %2505 = vmatprep.subr.mxu0 %v77
  %2506 = vmatpush1.msra.mxu0 %v74
  %2507 = vmatprep.subr.mxu0 %v57
  %2508 = vmatpush1.msra.mxu0 %v56
  %2509 = vmatprep.subr.mxu0 %v53
  %2510 = vmatpush1.msra.mxu0 %v52
  %2511 = vmatprep.subr.mxu0 %v49
  %2512 = vmatpush1.msra.mxu0 %v48
  %2513 = vmatprep.subr.mxu0 0.0
  %2514 = vmatpush2.msra.mxu0 0.0
  %2515 = vmatprep.subr.mxu0 0.0
  %2516 = vmatpush2.msra.mxu0 0.0
  %2517 = vmatprep.subr.mxu0 0.0
  %2518 = vmatpush2.msra.mxu0 0.0
  %2519 = vmatprep.subr.mxu0 0.0
  %2520 = vmatpush2.msra.mxu0 0.0
  %2521 = vmatprep.subr.mxu0 0.0
  %2522 = vmatpush2.msra.mxu0 0.0
  %2523 = vmatprep.subr.mxu0 0.0
  %2524 = vmatpush2.msra.mxu0 0.0
  %2525 = vmatprep.subr.mxu0 0.0
  %2526 = vmatpush2.msra.mxu0 0.0
  %2527 = vmatprep.subr.mxu0 0.0
  %2528 = vmatpush2.msra.mxu0 0.0
  %2529 = vmatprep.subr.mxu0 0.0
  %2530 = vmatpush2.msra.mxu0 0.0
  %2531 = vmatprep.subr.mxu0 0.0
  %2532 = vmatpush2.msra.mxu0 0.0
  %2533 = vmatprep.subr.mxu0 0.0
  %2534 = vmatpush2.msra.mxu0 0.0
  %2535 = vmatprep.subr.mxu0 0.0
  %2536 = vmatpush2.msra.mxu0 0.0
  %2537 = vmatprep.subr.mxu0 0.0
  %2538 = vmatpush2.msra.mxu0 0.0
  %2539 = vmatprep.subr.mxu0 0.0
  %2540 = vmatpush2.msra.mxu0 0.0
  %2541 = vmatprep.subr.mxu0 0.0
  %2542 = vmatpush2.msra.mxu0 0.0
  %2543 = vmatprep.subr.mxu0 0.0
  %2544 = vmatpush2.msra.mxu0 0.0
  %2545 = vmatprep.mubr.f32.mxu0 0.0
  %2546 = vmatmul.mubr.f32.gmra.mxu0 %v2262
  %v2547 = vpop.f32.mrf.mxu0
  %v2548 = vadd.f32 0.0, %v2547
  %v2549 = vpop.f32.mrf.mxu0
  %v2550 = vadd.f32 0.0, %v2549
  %2551 = vdwg.mxu0
  %2552 = vmatprep.subr.mxu0 0.0
  %2553 = vmatpush1.msra.mxu0 0.0
  %2554 = vmatprep.subr.mxu0 0.0
  %2555 = vmatpush1.msra.mxu0 0.0
  %2556 = vmatprep.subr.mxu0 0.0
  %2557 = vmatpush1.msra.mxu0 0.0
  %2558 = vmatprep.subr.mxu0 0.0
  %2559 = vmatpush1.msra.mxu0 0.0
  %2560 = vmatprep.subr.mxu0 0.0
  %2561 = vmatpush1.msra.mxu0 0.0
  %2562 = vmatprep.subr.mxu0 0.0
  %2563 = vmatpush1.msra.mxu0 0.0
  %2564 = vmatprep.subr.mxu0 0.0
  %2565 = vmatpush1.msra.mxu0 0.0
  %2566 = vmatprep.subr.mxu0 0.0
  %2567 = vmatpush1.msra.mxu0 0.0
  %2568 = vmatprep.subr.mxu0 0.0
  %2569 = vmatpush1.msra.mxu0 0.0
  %2570 = vmatprep.subr.mxu0 0.0
  %2571 = vmatpush1.msra.mxu0 0.0
  %2572 = vmatprep.subr.mxu0 0.0
  %2573 = vmatpush1.msra.mxu0 0.0
  %2574 = vmatprep.subr.mxu0 0.0
  %2575 = vmatpush1.msra.mxu0 0.0
  %2576 = vmatprep.subr.mxu0 %v228
  %2577 = vmatpush1.msra.mxu0 %v225
  %2578 = vmatprep.subr.mxu0 %v38
  %2579 = vmatpush1.msra.mxu0 %v37
  %2580 = vmatprep.subr.mxu0 %v34
  %2581 = vmatpush1.msra.mxu0 %v33
  %2582 = vmatprep.subr.mxu0 %v30
  %2583 = vmatpush1.msra.mxu0 %v29
  %2584 = vmatprep.subr.mxu0 0.0
  %2585 = vmatpush2.msra.mxu0 0.0
  %2586 = vmatprep.subr.mxu0 0.0
  %2587 = vmatpush2.msra.mxu0 0.0
  %2588 = vmatprep.subr.mxu0 0.0
  %2589 = vmatpush2.msra.mxu0 0.0
  %2590 = vmatprep.subr.mxu0 0.0
  %2591 = vmatpush2.msra.mxu0 0.0
  %2592 = vmatprep.subr.mxu0 0.0
  %2593 = vmatpush2.msra.mxu0 0.0
  %2594 = vmatprep.subr.mxu0 0.0
  %2595 = vmatpush2.msra.mxu0 0.0
  %2596 = vmatprep.subr.mxu0 0.0
  %2597 = vmatpush2.msra.mxu0 0.0
  %2598 = vmatprep.subr.mxu0 0.0
  %2599 = vmatpush2.msra.mxu0 0.0
  %2600 = vmatprep.subr.mxu0 0.0
  %2601 = vmatpush2.msra.mxu0 0.0
  %2602 = vmatprep.subr.mxu0 0.0
  %2603 = vmatpush2.msra.mxu0 0.0
  %2604 = vmatprep.subr.mxu0 0.0
  %2605 = vmatpush2.msra.mxu0 0.0
  %2606 = vmatprep.subr.mxu0 0.0
  %2607 = vmatpush2.msra.mxu0 0.0
  %2608 = vmatprep.subr.mxu0 0.0
  %2609 = vmatpush2.msra.mxu0 0.0
  %2610 = vmatprep.subr.mxu0 0.0
  %2611 = vmatpush2.msra.mxu0 0.0
  %2612 = vmatprep.subr.mxu0 0.0
  %2613 = vmatpush2.msra.mxu0 0.0
  %2614 = vmatprep.subr.mxu0 0.0
  %2615 = vmatpush2.msra.mxu0 0.0
  %2616 = vmatprep.mubr.f32.mxu0 0.0
  %2617 = vmatmul.mubr.f32.gmra.mxu0 %v841
  %v2618 = vpop.f32.mrf.mxu0
  %v2619 = vadd.f32 %v2477, %v2618
  %v2620 = vpop.f32.mrf.mxu0
  %v2621 = vadd.f32 %v2479, %v2620
  %2622 = vdwg.mxu0
  %2623 = vmatprep.subr.mxu0 0.0
  %2624 = vmatpush1.msra.mxu0 0.0
  %2625 = vmatprep.subr.mxu0 0.0
  %2626 = vmatpush1.msra.mxu0 0.0
  %2627 = vmatprep.subr.mxu0 0.0
  %2628 = vmatpush1.msra.mxu0 0.0
  %2629 = vmatprep.subr.mxu0 0.0
  %2630 = vmatpush1.msra.mxu0 0.0
  %2631 = vmatprep.subr.mxu0 0.0
  %2632 = vmatpush1.msra.mxu0 0.0
  %2633 = vmatprep.subr.mxu0 0.0
  %2634 = vmatpush1.msra.mxu0 0.0
  %2635 = vmatprep.subr.mxu0 0.0
  %2636 = vmatpush1.msra.mxu0 0.0
  %2637 = vmatprep.subr.mxu0 0.0
  %2638 = vmatpush1.msra.mxu0 0.0
  %2639 = vmatprep.subr.mxu0 0.0
  %2640 = vmatpush1.msra.mxu0 0.0
  %2641 = vmatprep.subr.mxu0 0.0
  %2642 = vmatpush1.msra.mxu0 0.0
  %2643 = vmatprep.subr.mxu0 0.0
  %2644 = vmatpush1.msra.mxu0 0.0
  %2645 = vmatprep.subr.mxu0 0.0
  %2646 = vmatpush1.msra.mxu0 0.0
  %2647 = vmatprep.subr.mxu0 %v234
  %2648 = vmatpush1.msra.mxu0 %v231
  %2649 = vmatprep.subr.mxu0 %v40
  %2650 = vmatpush1.msra.mxu0 %v39
  %2651 = vmatprep.subr.mxu0 %v36
  %2652 = vmatpush1.msra.mxu0 %v35
  %2653 = vmatprep.subr.mxu0 %v32
  %2654 = vmatpush1.msra.mxu0 %v31
  %2655 = vmatprep.subr.mxu0 0.0
  %2656 = vmatpush2.msra.mxu0 0.0
  %2657 = vmatprep.subr.mxu0 0.0
  %2658 = vmatpush2.msra.mxu0 0.0
  %2659 = vmatprep.subr.mxu0 0.0
  %2660 = vmatpush2.msra.mxu0 0.0
  %2661 = vmatprep.subr.mxu0 0.0
  %2662 = vmatpush2.msra.mxu0 0.0
  %2663 = vmatprep.subr.mxu0 0.0
  %2664 = vmatpush2.msra.mxu0 0.0
  %2665 = vmatprep.subr.mxu0 0.0
  %2666 = vmatpush2.msra.mxu0 0.0
  %2667 = vmatprep.subr.mxu0 0.0
  %2668 = vmatpush2.msra.mxu0 0.0
  %2669 = vmatprep.subr.mxu0 0.0
  %2670 = vmatpush2.msra.mxu0 0.0
  %2671 = vmatprep.subr.mxu0 0.0
  %2672 = vmatpush2.msra.mxu0 0.0
  %2673 = vmatprep.subr.mxu0 0.0
  %2674 = vmatpush2.msra.mxu0 0.0
  %2675 = vmatprep.subr.mxu0 0.0
  %2676 = vmatpush2.msra.mxu0 0.0
  %2677 = vmatprep.subr.mxu0 0.0
  %2678 = vmatpush2.msra.mxu0 0.0
  %2679 = vmatprep.subr.mxu0 0.0
  %2680 = vmatpush2.msra.mxu0 0.0
  %2681 = vmatprep.subr.mxu0 0.0
  %2682 = vmatpush2.msra.mxu0 0.0
  %2683 = vmatprep.subr.mxu0 0.0
  %2684 = vmatpush2.msra.mxu0 0.0
  %2685 = vmatprep.subr.mxu0 0.0
  %2686 = vmatpush2.msra.mxu0 0.0
  %2687 = vmatprep.mubr.f32.mxu0 0.0
  %2688 = vmatmul.mubr.f32.gmra.mxu0 %v841
  %v2689 = vpop.f32.mrf.mxu0
  %v2690 = vadd.f32 %v2548, %v2689
  %v2691 = vpop.f32.mrf.mxu0
  %v2692 = vadd.f32 %v2550, %v2691
  %2693 = vdwg.mxu0
  %v2694 = vrot.slane %v24, 1
  %v2695 = vsel %vm62, %v2694, 0
  %2697 = vmatprep.subr.mxu0 0.0
  %2698 = vmatpush1.msra.mxu0 0.0
  %2699 = vmatprep.subr.mxu0 0.0
  %2700 = vmatpush1.msra.mxu0 0.0
  %2701 = vmatprep.subr.mxu0 0.0
  %2702 = vmatpush1.msra.mxu0 0.0
  %2703 = vmatprep.subr.mxu0 0.0
  %2704 = vmatpush1.msra.mxu0 0.0
  %2705 = vmatprep.subr.mxu0 0.0
  %2706 = vmatpush1.msra.mxu0 0.0
  %2707 = vmatprep.subr.mxu0 0.0
  %2708 = vmatpush1.msra.mxu0 0.0
  %2709 = vmatprep.subr.mxu0 0.0
  %2710 = vmatpush1.msra.mxu0 0.0
  %2711 = vmatprep.subr.mxu0 0.0
  %2712 = vmatpush1.msra.mxu0 0.0
  %2713 = vmatprep.subr.mxu0 0.0
  %2714 = vmatpush1.msra.mxu0 0.0
  %2715 = vmatprep.subr.mxu0 0.0
  %2716 = vmatpush1.msra.mxu0 0.0
  %2717 = vmatprep.subr.mxu0 0.0
  %2718 = vmatpush1.msra.mxu0 0.0
  %2719 = vmatprep.subr.mxu0 0.0
  %2720 = vmatpush1.msra.mxu0 0.0
  %2721 = vmatprep.subr.mxu0 %v402
  %2722 = vmatpush1.msra.mxu0 %v399
  %2723 = vmatprep.subr.mxu0 %v388
  %2724 = vmatpush1.msra.mxu0 %v387
  %2725 = vmatprep.subr.mxu0 %v384
  %2726 = vmatpush1.msra.mxu0 %v383
  %2727 = vmatprep.subr.mxu0 %v380
  %2728 = vmatpush1.msra.mxu0 %v379
  %2729 = vmatprep.subr.mxu0 0.0
  %2730 = vmatpush2.msra.mxu0 0.0
  %2731 = vmatprep.subr.mxu0 0.0
  %2732 = vmatpush2.msra.mxu0 0.0
  %2733 = vmatprep.subr.mxu0 0.0
  %2734 = vmatpush2.msra.mxu0 0.0
  %2735 = vmatprep.subr.mxu0 0.0
  %2736 = vmatpush2.msra.mxu0 0.0
  %2737 = vmatprep.subr.mxu0 0.0
  %2738 = vmatpush2.msra.mxu0 0.0
  %2739 = vmatprep.subr.mxu0 0.0
  %2740 = vmatpush2.msra.mxu0 0.0
  %2741 = vmatprep.subr.mxu0 0.0
  %2742 = vmatpush2.msra.mxu0 0.0
  %2743 = vmatprep.subr.mxu0 0.0
  %2744 = vmatpush2.msra.mxu0 0.0
  %2745 = vmatprep.subr.mxu0 0.0
  %2746 = vmatpush2.msra.mxu0 0.0
  %2747 = vmatprep.subr.mxu0 0.0
  %2748 = vmatpush2.msra.mxu0 0.0
  %2749 = vmatprep.subr.mxu0 0.0
  %2750 = vmatpush2.msra.mxu0 0.0
  %2751 = vmatprep.subr.mxu0 0.0
  %2752 = vmatpush2.msra.mxu0 0.0
  %2753 = vmatprep.subr.mxu0 0.0
  %2754 = vmatpush2.msra.mxu0 0.0
  %2755 = vmatprep.subr.mxu0 0.0
  %2756 = vmatpush2.msra.mxu0 0.0
  %2757 = vmatprep.subr.mxu0 0.0
  %2758 = vmatpush2.msra.mxu0 0.0
  %2759 = vmatprep.subr.mxu0 0.0
  %2760 = vmatpush2.msra.mxu0 0.0
  %2761 = vmatprep.mubr.f32.mxu0 0.0
  %2762 = vmatmul.mubr.f32.gmra.mxu0 %v2695
  %v2763 = vpop.f32.mrf.mxu0
  %v2764 = vadd.f32 0.0, %v2763
  %v2765 = vpop.f32.mrf.mxu0
  %v2766 = vadd.f32 0.0, %v2765
  %2767 = vdwg.mxu0
  %2768 = vmatprep.subr.mxu0 0.0
  %2769 = vmatpush1.msra.mxu0 0.0
  %2770 = vmatprep.subr.mxu0 0.0
  %2771 = vmatpush1.msra.mxu0 0.0
  %2772 = vmatprep.subr.mxu0 0.0
  %2773 = vmatpush1.msra.mxu0 0.0
  %2774 = vmatprep.subr.mxu0 0.0
  %2775 = vmatpush1.msra.mxu0 0.0
  %2776 = vmatprep.subr.mxu0 0.0
  %2777 = vmatpush1.msra.mxu0 0.0
  %2778 = vmatprep.subr.mxu0 0.0
  %2779 = vmatpush1.msra.mxu0 0.0
  %2780 = vmatprep.subr.mxu0 0.0
  %2781 = vmatpush1.msra.mxu0 0.0
  %2782 = vmatprep.subr.mxu0 0.0
  %2783 = vmatpush1.msra.mxu0 0.0
  %2784 = vmatprep.subr.mxu0 0.0
  %2785 = vmatpush1.msra.mxu0 0.0
  %2786 = vmatprep.subr.mxu0 0.0
  %2787 = vmatpush1.msra.mxu0 0.0
  %2788 = vmatprep.subr.mxu0 0.0
  %2789 = vmatpush1.msra.mxu0 0.0
  %2790 = vmatprep.subr.mxu0 0.0
  %2791 = vmatpush1.msra.mxu0 0.0
  %2792 = vmatprep.subr.mxu0 %v408
  %2793 = vmatpush1.msra.mxu0 %v405
  %2794 = vmatprep.subr.mxu0 %v390
  %2795 = vmatpush1.msra.mxu0 %v389
  %2796 = vmatprep.subr.mxu0 %v386
  %2797 = vmatpush1.msra.mxu0 %v385
  %2798 = vmatprep.subr.mxu0 %v382
  %2799 = vmatpush1.msra.mxu0 %v381
  %2800 = vmatprep.subr.mxu0 0.0
  %2801 = vmatpush2.msra.mxu0 0.0
  %2802 = vmatprep.subr.mxu0 0.0
  %2803 = vmatpush2.msra.mxu0 0.0
  %2804 = vmatprep.subr.mxu0 0.0
  %2805 = vmatpush2.msra.mxu0 0.0
  %2806 = vmatprep.subr.mxu0 0.0
  %2807 = vmatpush2.msra.mxu0 0.0
  %2808 = vmatprep.subr.mxu0 0.0
  %2809 = vmatpush2.msra.mxu0 0.0
  %2810 = vmatprep.subr.mxu0 0.0
  %2811 = vmatpush2.msra.mxu0 0.0
  %2812 = vmatprep.subr.mxu0 0.0
  %2813 = vmatpush2.msra.mxu0 0.0
  %2814 = vmatprep.subr.mxu0 0.0
  %2815 = vmatpush2.msra.mxu0 0.0
  %2816 = vmatprep.subr.mxu0 0.0
  %2817 = vmatpush2.msra.mxu0 0.0
  %2818 = vmatprep.subr.mxu0 0.0
  %2819 = vmatpush2.msra.mxu0 0.0
  %2820 = vmatprep.subr.mxu0 0.0
  %2821 = vmatpush2.msra.mxu0 0.0
  %2822 = vmatprep.subr.mxu0 0.0
  %2823 = vmatpush2.msra.mxu0 0.0
  %2824 = vmatprep.subr.mxu0 0.0
  %2825 = vmatpush2.msra.mxu0 0.0
  %2826 = vmatprep.subr.mxu0 0.0
  %2827 = vmatpush2.msra.mxu0 0.0
  %2828 = vmatprep.subr.mxu0 0.0
  %2829 = vmatpush2.msra.mxu0 0.0
  %2830 = vmatprep.subr.mxu0 0.0
  %2831 = vmatpush2.msra.mxu0 0.0
  %2832 = vmatprep.mubr.f32.mxu0 0.0
  %2833 = vmatmul.mubr.f32.gmra.mxu0 %v2695
  %v2834 = vpop.f32.mrf.mxu0
  %v2835 = vadd.f32 0.0, %v2834
  %v2836 = vpop.f32.mrf.mxu0
  %v2837 = vadd.f32 0.0, %v2836
  %2838 = vdwg.mxu0
  %v2839 = vadd.f32 %v2619, %v2764
  %v2840 = vadd.f32 %v2621, %v2766
  %v2841 = vadd.f32 %v2690, %v2835
  %v2842 = vadd.f32 %v2692, %v2837
  %v2843 = vmax.f32 %v2406, %v2839
  %v2844 = vmax.f32 %v2407, %v2840
  %v2845 = vmax.f32 %v2408, %v2841
  %v2846 = vmax.f32 %v2409, %v2842
  %2847 = vmatprep.subr.mxu0 0.0
  %2848 = vmatpush1.msra.mxu0 0.0
  %2849 = vmatprep.subr.mxu0 0.0
  %2850 = vmatpush1.msra.mxu0 0.0
  %2851 = vmatprep.subr.mxu0 0.0
  %2852 = vmatpush1.msra.mxu0 0.0
  %2853 = vmatprep.subr.mxu0 0.0
  %2854 = vmatpush1.msra.mxu0 0.0
  %2855 = vmatprep.subr.mxu0 0.0
  %2856 = vmatpush1.msra.mxu0 0.0
  %2857 = vmatprep.subr.mxu0 0.0
  %2858 = vmatpush1.msra.mxu0 0.0
  %2859 = vmatprep.subr.mxu0 0.0
  %2860 = vmatpush1.msra.mxu0 0.0
  %2861 = vmatprep.subr.mxu0 0.0
  %2862 = vmatpush1.msra.mxu0 0.0
  %2863 = vmatprep.subr.mxu0 0.0
  %2864 = vmatpush1.msra.mxu0 0.0
  %2865 = vmatprep.subr.mxu0 0.0
  %2866 = vmatpush1.msra.mxu0 0.0
  %2867 = vmatprep.subr.mxu0 0.0
  %2868 = vmatpush1.msra.mxu0 0.0
  %2869 = vmatprep.subr.mxu0 0.0
  %2870 = vmatpush1.msra.mxu0 0.0
  %2871 = vmatprep.subr.mxu0 %v1031
  %2872 = vmatpush1.msra.mxu0 %v1028
  %2873 = vmatprep.subr.mxu0 %v1020
  %2874 = vmatpush1.msra.mxu0 %v1019
  %2875 = vmatprep.subr.mxu0 %v1016
  %2876 = vmatpush1.msra.mxu0 %v1015
  %2877 = vmatprep.subr.mxu0 %v1012
  %2878 = vmatpush1.msra.mxu0 %v1011
  %2879 = vmatprep.subr.mxu0 0.0
  %2880 = vmatpush2.msra.mxu0 0.0
  %2881 = vmatprep.subr.mxu0 0.0
  %2882 = vmatpush2.msra.mxu0 0.0
  %2883 = vmatprep.subr.mxu0 0.0
  %2884 = vmatpush2.msra.mxu0 0.0
  %2885 = vmatprep.subr.mxu0 0.0
  %2886 = vmatpush2.msra.mxu0 0.0
  %2887 = vmatprep.subr.mxu0 0.0
  %2888 = vmatpush2.msra.mxu0 0.0
  %2889 = vmatprep.subr.mxu0 0.0
  %2890 = vmatpush2.msra.mxu0 0.0
  %2891 = vmatprep.subr.mxu0 0.0
  %2892 = vmatpush2.msra.mxu0 0.0
  %2893 = vmatprep.subr.mxu0 0.0
  %2894 = vmatpush2.msra.mxu0 0.0
  %2895 = vmatprep.subr.mxu0 0.0
  %2896 = vmatpush2.msra.mxu0 0.0
  %2897 = vmatprep.subr.mxu0 0.0
  %2898 = vmatpush2.msra.mxu0 0.0
  %2899 = vmatprep.subr.mxu0 0.0
  %2900 = vmatpush2.msra.mxu0 0.0
  %2901 = vmatprep.subr.mxu0 0.0
  %2902 = vmatpush2.msra.mxu0 0.0
  %2903 = vmatprep.subr.mxu0 0.0
  %2904 = vmatpush2.msra.mxu0 0.0
  %2905 = vmatprep.subr.mxu0 0.0
  %2906 = vmatpush2.msra.mxu0 0.0
  %2907 = vmatprep.subr.mxu0 0.0
  %2908 = vmatpush2.msra.mxu0 0.0
  %2909 = vmatprep.subr.mxu0 0.0
  %2910 = vmatpush2.msra.mxu0 0.0
  %2911 = vmatprep.mubr.f32.mxu0 0.0
  %2912 = vmatmul.mubr.f32.gmra.mxu0 %v841
  %v2913 = vpop.f32.mrf.mxu0
  %v2914 = vadd.f32 0.0, %v2913
  %v2915 = vpop.f32.mrf.mxu0
  %v2916 = vadd.f32 0.0, %v2915
  %2917 = vdwg.mxu0
  %2918 = vmatprep.subr.mxu0 0.0
  %2919 = vmatpush1.msra.mxu0 0.0
  %2920 = vmatprep.subr.mxu0 0.0
  %2921 = vmatpush1.msra.mxu0 0.0
  %2922 = vmatprep.subr.mxu0 0.0
  %2923 = vmatpush1.msra.mxu0 0.0
  %2924 = vmatprep.subr.mxu0 0.0
  %2925 = vmatpush1.msra.mxu0 0.0
  %2926 = vmatprep.subr.mxu0 0.0
  %2927 = vmatpush1.msra.mxu0 0.0
  %2928 = vmatprep.subr.mxu0 0.0
  %2929 = vmatpush1.msra.mxu0 0.0
  %2930 = vmatprep.subr.mxu0 0.0
  %2931 = vmatpush1.msra.mxu0 0.0
  %2932 = vmatprep.subr.mxu0 0.0
  %2933 = vmatpush1.msra.mxu0 0.0
  %2934 = vmatprep.subr.mxu0 0.0
  %2935 = vmatpush1.msra.mxu0 0.0
  %2936 = vmatprep.subr.mxu0 0.0
  %2937 = vmatpush1.msra.mxu0 0.0
  %2938 = vmatprep.subr.mxu0 0.0
  %2939 = vmatpush1.msra.mxu0 0.0
  %2940 = vmatprep.subr.mxu0 0.0
  %2941 = vmatpush1.msra.mxu0 0.0
  %2942 = vmatprep.subr.mxu0 %v1037
  %2943 = vmatpush1.msra.mxu0 %v1034
  %2944 = vmatprep.subr.mxu0 %v1022
  %2945 = vmatpush1.msra.mxu0 %v1021
  %2946 = vmatprep.subr.mxu0 %v1018
  %2947 = vmatpush1.msra.mxu0 %v1017
  %2948 = vmatprep.subr.mxu0 %v1014
  %2949 = vmatpush1.msra.mxu0 %v1013
  %2950 = vmatprep.subr.mxu0 0.0
  %2951 = vmatpush2.msra.mxu0 0.0
  %2952 = vmatprep.subr.mxu0 0.0
  %2953 = vmatpush2.msra.mxu0 0.0
  %2954 = vmatprep.subr.mxu0 0.0
  %2955 = vmatpush2.msra.mxu0 0.0
  %2956 = vmatprep.subr.mxu0 0.0
  %2957 = vmatpush2.msra.mxu0 0.0
  %2958 = vmatprep.subr.mxu0 0.0
  %2959 = vmatpush2.msra.mxu0 0.0
  %2960 = vmatprep.subr.mxu0 0.0
  %2961 = vmatpush2.msra.mxu0 0.0
  %2962 = vmatprep.subr.mxu0 0.0
  %2963 = vmatpush2.msra.mxu0 0.0
  %2964 = vmatprep.subr.mxu0 0.0
  %2965 = vmatpush2.msra.mxu0 0.0
  %2966 = vmatprep.subr.mxu0 0.0
  %2967 = vmatpush2.msra.mxu0 0.0
  %2968 = vmatprep.subr.mxu0 0.0
  %2969 = vmatpush2.msra.mxu0 0.0
  %2970 = vmatprep.subr.mxu0 0.0
  %2971 = vmatpush2.msra.mxu0 0.0
  %2972 = vmatprep.subr.mxu0 0.0
  %2973 = vmatpush2.msra.mxu0 0.0
  %2974 = vmatprep.subr.mxu0 0.0
  %2975 = vmatpush2.msra.mxu0 0.0
  %2976 = vmatprep.subr.mxu0 0.0
  %2977 = vmatpush2.msra.mxu0 0.0
  %2978 = vmatprep.subr.mxu0 0.0
  %2979 = vmatpush2.msra.mxu0 0.0
  %2980 = vmatprep.subr.mxu0 0.0
  %2981 = vmatpush2.msra.mxu0 0.0
  %2982 = vmatprep.mubr.f32.mxu0 0.0
  %2983 = vmatmul.mubr.f32.gmra.mxu0 %v841
  %v2984 = vpop.f32.mrf.mxu0
  %v2985 = vadd.f32 0.0, %v2984
  %v2986 = vpop.f32.mrf.mxu0
  %v2987 = vadd.f32 0.0, %v2986
  %2988 = vdwg.mxu0
  %2989 = vmatprep.subr.mxu0 0.0
  %2990 = vmatpush1.msra.mxu0 0.0
  %2991 = vmatprep.subr.mxu0 0.0
  %2992 = vmatpush1.msra.mxu0 0.0
  %2993 = vmatprep.subr.mxu0 0.0
  %2994 = vmatpush1.msra.mxu0 0.0
  %2995 = vmatprep.subr.mxu0 0.0
  %2996 = vmatpush1.msra.mxu0 0.0
  %2997 = vmatprep.subr.mxu0 0.0
  %2998 = vmatpush1.msra.mxu0 0.0
  %2999 = vmatprep.subr.mxu0 0.0
  %3000 = vmatpush1.msra.mxu0 0.0
  %3001 = vmatprep.subr.mxu0 0.0
  %3002 = vmatpush1.msra.mxu0 0.0
  %3003 = vmatprep.subr.mxu0 0.0
  %3004 = vmatpush1.msra.mxu0 0.0
  %3005 = vmatprep.subr.mxu0 0.0
  %3006 = vmatpush1.msra.mxu0 0.0
  %3007 = vmatprep.subr.mxu0 0.0
  %3008 = vmatpush1.msra.mxu0 0.0
  %3009 = vmatprep.subr.mxu0 0.0
  %3010 = vmatpush1.msra.mxu0 0.0
  %3011 = vmatprep.subr.mxu0 0.0
  %3012 = vmatpush1.msra.mxu0 0.0
  %3013 = vmatprep.subr.mxu0 %v1185
  %3014 = vmatpush1.msra.mxu0 %v1182
  %3015 = vmatprep.subr.mxu0 %v1003
  %3016 = vmatpush1.msra.mxu0 %v1002
  %3017 = vmatprep.subr.mxu0 %v999
  %3018 = vmatpush1.msra.mxu0 %v998
  %3019 = vmatprep.subr.mxu0 %v995
  %3020 = vmatpush1.msra.mxu0 %v994
  %3021 = vmatprep.subr.mxu0 0.0
  %3022 = vmatpush2.msra.mxu0 0.0
  %3023 = vmatprep.subr.mxu0 0.0
  %3024 = vmatpush2.msra.mxu0 0.0
  %3025 = vmatprep.subr.mxu0 0.0
  %3026 = vmatpush2.msra.mxu0 0.0
  %3027 = vmatprep.subr.mxu0 0.0
  %3028 = vmatpush2.msra.mxu0 0.0
  %3029 = vmatprep.subr.mxu0 0.0
  %3030 = vmatpush2.msra.mxu0 0.0
  %3031 = vmatprep.subr.mxu0 0.0
  %3032 = vmatpush2.msra.mxu0 0.0
  %3033 = vmatprep.subr.mxu0 0.0
  %3034 = vmatpush2.msra.mxu0 0.0
  %3035 = vmatprep.subr.mxu0 0.0
  %3036 = vmatpush2.msra.mxu0 0.0
  %3037 = vmatprep.subr.mxu0 0.0
  %3038 = vmatpush2.msra.mxu0 0.0
  %3039 = vmatprep.subr.mxu0 0.0
  %3040 = vmatpush2.msra.mxu0 0.0
  %3041 = vmatprep.subr.mxu0 0.0
  %3042 = vmatpush2.msra.mxu0 0.0
  %3043 = vmatprep.subr.mxu0 0.0
  %3044 = vmatpush2.msra.mxu0 0.0
  %3045 = vmatprep.subr.mxu0 0.0
  %3046 = vmatpush2.msra.mxu0 0.0
  %3047 = vmatprep.subr.mxu0 0.0
  %3048 = vmatpush2.msra.mxu0 0.0
  %3049 = vmatprep.subr.mxu0 0.0
  %3050 = vmatpush2.msra.mxu0 0.0
  %3051 = vmatprep.subr.mxu0 0.0
  %3052 = vmatpush2.msra.mxu0 0.0
  %3053 = vmatprep.mubr.f32.mxu0 0.0
  %3054 = vmatmul.mubr.f32.gmra.mxu0 %v396
  %v3055 = vpop.f32.mrf.mxu0
  %v3056 = vadd.f32 %v2914, %v3055
  %v3057 = vpop.f32.mrf.mxu0
  %v3058 = vadd.f32 %v2916, %v3057
  %3059 = vdwg.mxu0
  %3060 = vmatprep.subr.mxu0 0.0
  %3061 = vmatpush1.msra.mxu0 0.0
  %3062 = vmatprep.subr.mxu0 0.0
  %3063 = vmatpush1.msra.mxu0 0.0
  %3064 = vmatprep.subr.mxu0 0.0
  %3065 = vmatpush1.msra.mxu0 0.0
  %3066 = vmatprep.subr.mxu0 0.0
  %3067 = vmatpush1.msra.mxu0 0.0
  %3068 = vmatprep.subr.mxu0 0.0
  %3069 = vmatpush1.msra.mxu0 0.0
  %3070 = vmatprep.subr.mxu0 0.0
  %3071 = vmatpush1.msra.mxu0 0.0
  %3072 = vmatprep.subr.mxu0 0.0
  %3073 = vmatpush1.msra.mxu0 0.0
  %3074 = vmatprep.subr.mxu0 0.0
  %3075 = vmatpush1.msra.mxu0 0.0
  %3076 = vmatprep.subr.mxu0 0.0
  %3077 = vmatpush1.msra.mxu0 0.0
  %3078 = vmatprep.subr.mxu0 0.0
  %3079 = vmatpush1.msra.mxu0 0.0
  %3080 = vmatprep.subr.mxu0 0.0
  %3081 = vmatpush1.msra.mxu0 0.0
  %3082 = vmatprep.subr.mxu0 0.0
  %3083 = vmatpush1.msra.mxu0 0.0
  %3084 = vmatprep.subr.mxu0 %v1191
  %3085 = vmatpush1.msra.mxu0 %v1188
  %3086 = vmatprep.subr.mxu0 %v1005
  %3087 = vmatpush1.msra.mxu0 %v1004
  %3088 = vmatprep.subr.mxu0 %v1001
  %3089 = vmatpush1.msra.mxu0 %v1000
  %3090 = vmatprep.subr.mxu0 %v997
  %3091 = vmatpush1.msra.mxu0 %v996
  %3092 = vmatprep.subr.mxu0 0.0
  %3093 = vmatpush2.msra.mxu0 0.0
  %3094 = vmatprep.subr.mxu0 0.0
  %3095 = vmatpush2.msra.mxu0 0.0
  %3096 = vmatprep.subr.mxu0 0.0
  %3097 = vmatpush2.msra.mxu0 0.0
  %3098 = vmatprep.subr.mxu0 0.0
  %3099 = vmatpush2.msra.mxu0 0.0
  %3100 = vmatprep.subr.mxu0 0.0
  %3101 = vmatpush2.msra.mxu0 0.0
  %3102 = vmatprep.subr.mxu0 0.0
  %3103 = vmatpush2.msra.mxu0 0.0
  %3104 = vmatprep.subr.mxu0 0.0
  %3105 = vmatpush2.msra.mxu0 0.0
  %3106 = vmatprep.subr.mxu0 0.0
  %3107 = vmatpush2.msra.mxu0 0.0
  %3108 = vmatprep.subr.mxu0 0.0
  %3109 = vmatpush2.msra.mxu0 0.0
  %3110 = vmatprep.subr.mxu0 0.0
  %3111 = vmatpush2.msra.mxu0 0.0
  %3112 = vmatprep.subr.mxu0 0.0
  %3113 = vmatpush2.msra.mxu0 0.0
  %3114 = vmatprep.subr.mxu0 0.0
  %3115 = vmatpush2.msra.mxu0 0.0
  %3116 = vmatprep.subr.mxu0 0.0
  %3117 = vmatpush2.msra.mxu0 0.0
  %3118 = vmatprep.subr.mxu0 0.0
  %3119 = vmatpush2.msra.mxu0 0.0
  %3120 = vmatprep.subr.mxu0 0.0
  %3121 = vmatpush2.msra.mxu0 0.0
  %3122 = vmatprep.subr.mxu0 0.0
  %3123 = vmatpush2.msra.mxu0 0.0
  %3124 = vmatprep.mubr.f32.mxu0 0.0
  %3125 = vmatmul.mubr.f32.gmra.mxu0 %v396
  %v3126 = vpop.f32.mrf.mxu0
  %v3127 = vadd.f32 %v2985, %v3126
  %v3128 = vpop.f32.mrf.mxu0
  %v3129 = vadd.f32 %v2987, %v3128
  %3130 = vdwg.mxu0
  %3131 = vmatprep.subr.mxu0 0.0
  %3132 = vmatpush1.msra.mxu0 0.0
  %3133 = vmatprep.subr.mxu0 0.0
  %3134 = vmatpush1.msra.mxu0 0.0
  %3135 = vmatprep.subr.mxu0 0.0
  %3136 = vmatpush1.msra.mxu0 0.0
  %3137 = vmatprep.subr.mxu0 0.0
  %3138 = vmatpush1.msra.mxu0 0.0
  %3139 = vmatprep.subr.mxu0 0.0
  %3140 = vmatpush1.msra.mxu0 0.0
  %3141 = vmatprep.subr.mxu0 0.0
  %3142 = vmatpush1.msra.mxu0 0.0
  %3143 = vmatprep.subr.mxu0 0.0
  %3144 = vmatpush1.msra.mxu0 0.0
  %3145 = vmatprep.subr.mxu0 0.0
  %3146 = vmatpush1.msra.mxu0 0.0
  %3147 = vmatprep.subr.mxu0 0.0
  %3148 = vmatpush1.msra.mxu0 0.0
  %3149 = vmatprep.subr.mxu0 0.0
  %3150 = vmatpush1.msra.mxu0 0.0
  %3151 = vmatprep.subr.mxu0 0.0
  %3152 = vmatpush1.msra.mxu0 0.0
  %3153 = vmatprep.subr.mxu0 0.0
  %3154 = vmatpush1.msra.mxu0 0.0
  %3155 = vmatprep.subr.mxu0 %v1356
  %3156 = vmatpush1.msra.mxu0 %v1353
  %3157 = vmatprep.subr.mxu0 %v1345
  %3158 = vmatpush1.msra.mxu0 %v1344
  %3159 = vmatprep.subr.mxu0 %v1341
  %3160 = vmatpush1.msra.mxu0 %v1340
  %3161 = vmatprep.subr.mxu0 %v1337
  %3162 = vmatpush1.msra.mxu0 %v1336
  %3163 = vmatprep.subr.mxu0 0.0
  %3164 = vmatpush2.msra.mxu0 0.0
  %3165 = vmatprep.subr.mxu0 0.0
  %3166 = vmatpush2.msra.mxu0 0.0
  %3167 = vmatprep.subr.mxu0 0.0
  %3168 = vmatpush2.msra.mxu0 0.0
  %3169 = vmatprep.subr.mxu0 0.0
  %3170 = vmatpush2.msra.mxu0 0.0
  %3171 = vmatprep.subr.mxu0 0.0
  %3172 = vmatpush2.msra.mxu0 0.0
  %3173 = vmatprep.subr.mxu0 0.0
  %3174 = vmatpush2.msra.mxu0 0.0
  %3175 = vmatprep.subr.mxu0 0.0
  %3176 = vmatpush2.msra.mxu0 0.0
  %3177 = vmatprep.subr.mxu0 0.0
  %3178 = vmatpush2.msra.mxu0 0.0
  %3179 = vmatprep.subr.mxu0 0.0
  %3180 = vmatpush2.msra.mxu0 0.0
  %3181 = vmatprep.subr.mxu0 0.0
  %3182 = vmatpush2.msra.mxu0 0.0
  %3183 = vmatprep.subr.mxu0 0.0
  %3184 = vmatpush2.msra.mxu0 0.0
  %3185 = vmatprep.subr.mxu0 0.0
  %3186 = vmatpush2.msra.mxu0 0.0
  %3187 = vmatprep.subr.mxu0 0.0
  %3188 = vmatpush2.msra.mxu0 0.0
  %3189 = vmatprep.subr.mxu0 0.0
  %3190 = vmatpush2.msra.mxu0 0.0
  %3191 = vmatprep.subr.mxu0 0.0
  %3192 = vmatpush2.msra.mxu0 0.0
  %3193 = vmatprep.subr.mxu0 0.0
  %3194 = vmatpush2.msra.mxu0 0.0
  %3195 = vmatprep.mubr.f32.mxu0 0.0
  %3196 = vmatmul.mubr.f32.gmra.mxu0 %v2262
  %v3197 = vpop.f32.mrf.mxu0
  %v3198 = vadd.f32 0.0, %v3197
  %v3199 = vpop.f32.mrf.mxu0
  %v3200 = vadd.f32 0.0, %v3199
  %3201 = vdwg.mxu0
  %3202 = vmatprep.subr.mxu0 0.0
  %3203 = vmatpush1.msra.mxu0 0.0
  %3204 = vmatprep.subr.mxu0 0.0
  %3205 = vmatpush1.msra.mxu0 0.0
  %3206 = vmatprep.subr.mxu0 0.0
  %3207 = vmatpush1.msra.mxu0 0.0
  %3208 = vmatprep.subr.mxu0 0.0
  %3209 = vmatpush1.msra.mxu0 0.0
  %3210 = vmatprep.subr.mxu0 0.0
  %3211 = vmatpush1.msra.mxu0 0.0
  %3212 = vmatprep.subr.mxu0 0.0
  %3213 = vmatpush1.msra.mxu0 0.0
  %3214 = vmatprep.subr.mxu0 0.0
  %3215 = vmatpush1.msra.mxu0 0.0
  %3216 = vmatprep.subr.mxu0 0.0
  %3217 = vmatpush1.msra.mxu0 0.0
  %3218 = vmatprep.subr.mxu0 0.0
  %3219 = vmatpush1.msra.mxu0 0.0
  %3220 = vmatprep.subr.mxu0 0.0
  %3221 = vmatpush1.msra.mxu0 0.0
  %3222 = vmatprep.subr.mxu0 0.0
  %3223 = vmatpush1.msra.mxu0 0.0
  %3224 = vmatprep.subr.mxu0 0.0
  %3225 = vmatpush1.msra.mxu0 0.0
  %3226 = vmatprep.subr.mxu0 %v1362
  %3227 = vmatpush1.msra.mxu0 %v1359
  %3228 = vmatprep.subr.mxu0 %v1347
  %3229 = vmatpush1.msra.mxu0 %v1346
  %3230 = vmatprep.subr.mxu0 %v1343
  %3231 = vmatpush1.msra.mxu0 %v1342
  %3232 = vmatprep.subr.mxu0 %v1339
  %3233 = vmatpush1.msra.mxu0 %v1338
  %3234 = vmatprep.subr.mxu0 0.0
  %3235 = vmatpush2.msra.mxu0 0.0
  %3236 = vmatprep.subr.mxu0 0.0
  %3237 = vmatpush2.msra.mxu0 0.0
  %3238 = vmatprep.subr.mxu0 0.0
  %3239 = vmatpush2.msra.mxu0 0.0
  %3240 = vmatprep.subr.mxu0 0.0
  %3241 = vmatpush2.msra.mxu0 0.0
  %3242 = vmatprep.subr.mxu0 0.0
  %3243 = vmatpush2.msra.mxu0 0.0
  %3244 = vmatprep.subr.mxu0 0.0
  %3245 = vmatpush2.msra.mxu0 0.0
  %3246 = vmatprep.subr.mxu0 0.0
  %3247 = vmatpush2.msra.mxu0 0.0
  %3248 = vmatprep.subr.mxu0 0.0
  %3249 = vmatpush2.msra.mxu0 0.0
  %3250 = vmatprep.subr.mxu0 0.0
  %3251 = vmatpush2.msra.mxu0 0.0
  %3252 = vmatprep.subr.mxu0 0.0
  %3253 = vmatpush2.msra.mxu0 0.0
  %3254 = vmatprep.subr.mxu0 0.0
  %3255 = vmatpush2.msra.mxu0 0.0
  %3256 = vmatprep.subr.mxu0 0.0
  %3257 = vmatpush2.msra.mxu0 0.0
  %3258 = vmatprep.subr.mxu0 0.0
  %3259 = vmatpush2.msra.mxu0 0.0
  %3260 = vmatprep.subr.mxu0 0.0
  %3261 = vmatpush2.msra.mxu0 0.0
  %3262 = vmatprep.subr.mxu0 0.0
  %3263 = vmatpush2.msra.mxu0 0.0
  %3264 = vmatprep.subr.mxu0 0.0
  %3265 = vmatpush2.msra.mxu0 0.0
  %3266 = vmatprep.mubr.f32.mxu0 0.0
  %3267 = vmatmul.mubr.f32.gmra.mxu0 %v2262
  %v3268 = vpop.f32.mrf.mxu0
  %v3269 = vadd.f32 0.0, %v3268
  %v3270 = vpop.f32.mrf.mxu0
  %v3271 = vadd.f32 0.0, %v3270
  %3272 = vdwg.mxu0
  %v3273 = vadd.f32 %v3056, %v3198
  %v3274 = vadd.f32 %v3058, %v3200
  %v3275 = vadd.f32 %v3127, %v3269
  %v3276 = vadd.f32 %v3129, %v3271
  %3277 = vmatprep.subr.mxu0 0.0
  %3278 = vmatpush1.msra.mxu0 0.0
  %3279 = vmatprep.subr.mxu0 0.0
  %3280 = vmatpush1.msra.mxu0 0.0
  %3281 = vmatprep.subr.mxu0 0.0
  %3282 = vmatpush1.msra.mxu0 0.0
  %3283 = vmatprep.subr.mxu0 0.0
  %3284 = vmatpush1.msra.mxu0 0.0
  %3285 = vmatprep.subr.mxu0 0.0
  %3286 = vmatpush1.msra.mxu0 0.0
  %3287 = vmatprep.subr.mxu0 0.0
  %3288 = vmatpush1.msra.mxu0 0.0
  %3289 = vmatprep.subr.mxu0 0.0
  %3290 = vmatpush1.msra.mxu0 0.0
  %3291 = vmatprep.subr.mxu0 0.0
  %3292 = vmatpush1.msra.mxu0 0.0
  %3293 = vmatprep.subr.mxu0 0.0
  %3294 = vmatpush1.msra.mxu0 0.0
  %3295 = vmatprep.subr.mxu0 0.0
  %3296 = vmatpush1.msra.mxu0 0.0
  %3297 = vmatprep.subr.mxu0 0.0
  %3298 = vmatpush1.msra.mxu0 0.0
  %3299 = vmatprep.subr.mxu0 0.0
  %3300 = vmatpush1.msra.mxu0 0.0
  %3301 = vmatprep.subr.mxu0 %v1031
  %3302 = vmatpush1.msra.mxu0 %v1028
  %3303 = vmatprep.subr.mxu0 %v1020
  %3304 = vmatpush1.msra.mxu0 %v1019
  %3305 = vmatprep.subr.mxu0 %v1016
  %3306 = vmatpush1.msra.mxu0 %v1015
  %3307 = vmatprep.subr.mxu0 %v1012
  %3308 = vmatpush1.msra.mxu0 %v1011
  %3309 = vmatprep.subr.mxu0 0.0
  %3310 = vmatpush2.msra.mxu0 0.0
  %3311 = vmatprep.subr.mxu0 0.0
  %3312 = vmatpush2.msra.mxu0 0.0
  %3313 = vmatprep.subr.mxu0 0.0
  %3314 = vmatpush2.msra.mxu0 0.0
  %3315 = vmatprep.subr.mxu0 0.0
  %3316 = vmatpush2.msra.mxu0 0.0
  %3317 = vmatprep.subr.mxu0 0.0
  %3318 = vmatpush2.msra.mxu0 0.0
  %3319 = vmatprep.subr.mxu0 0.0
  %3320 = vmatpush2.msra.mxu0 0.0
  %3321 = vmatprep.subr.mxu0 0.0
  %3322 = vmatpush2.msra.mxu0 0.0
  %3323 = vmatprep.subr.mxu0 0.0
  %3324 = vmatpush2.msra.mxu0 0.0
  %3325 = vmatprep.subr.mxu0 0.0
  %3326 = vmatpush2.msra.mxu0 0.0
  %3327 = vmatprep.subr.mxu0 0.0
  %3328 = vmatpush2.msra.mxu0 0.0
  %3329 = vmatprep.subr.mxu0 0.0
  %3330 = vmatpush2.msra.mxu0 0.0
  %3331 = vmatprep.subr.mxu0 0.0
  %3332 = vmatpush2.msra.mxu0 0.0
  %3333 = vmatprep.subr.mxu0 0.0
  %3334 = vmatpush2.msra.mxu0 0.0
  %3335 = vmatprep.subr.mxu0 0.0
  %3336 = vmatpush2.msra.mxu0 0.0
  %3337 = vmatprep.subr.mxu0 0.0
  %3338 = vmatpush2.msra.mxu0 0.0
  %3339 = vmatprep.subr.mxu0 0.0
  %3340 = vmatpush2.msra.mxu0 0.0
  %3341 = vmatprep.mubr.f32.mxu0 0.0
  %3342 = vmatmul.mubr.f32.gmra.mxu0 %v2262
  %v3343 = vpop.f32.mrf.mxu0
  %v3344 = vadd.f32 0.0, %v3343
  %v3345 = vpop.f32.mrf.mxu0
  %v3346 = vadd.f32 0.0, %v3345
  %3347 = vdwg.mxu0
  %3348 = vmatprep.subr.mxu0 0.0
  %3349 = vmatpush1.msra.mxu0 0.0
  %3350 = vmatprep.subr.mxu0 0.0
  %3351 = vmatpush1.msra.mxu0 0.0
  %3352 = vmatprep.subr.mxu0 0.0
  %3353 = vmatpush1.msra.mxu0 0.0
  %3354 = vmatprep.subr.mxu0 0.0
  %3355 = vmatpush1.msra.mxu0 0.0
  %3356 = vmatprep.subr.mxu0 0.0
  %3357 = vmatpush1.msra.mxu0 0.0
  %3358 = vmatprep.subr.mxu0 0.0
  %3359 = vmatpush1.msra.mxu0 0.0
  %3360 = vmatprep.subr.mxu0 0.0
  %3361 = vmatpush1.msra.mxu0 0.0
  %3362 = vmatprep.subr.mxu0 0.0
  %3363 = vmatpush1.msra.mxu0 0.0
  %3364 = vmatprep.subr.mxu0 0.0
  %3365 = vmatpush1.msra.mxu0 0.0
  %3366 = vmatprep.subr.mxu0 0.0
  %3367 = vmatpush1.msra.mxu0 0.0
  %3368 = vmatprep.subr.mxu0 0.0
  %3369 = vmatpush1.msra.mxu0 0.0
  %3370 = vmatprep.subr.mxu0 0.0
  %3371 = vmatpush1.msra.mxu0 0.0
  %3372 = vmatprep.subr.mxu0 %v1037
  %3373 = vmatpush1.msra.mxu0 %v1034
  %3374 = vmatprep.subr.mxu0 %v1022
  %3375 = vmatpush1.msra.mxu0 %v1021
  %3376 = vmatprep.subr.mxu0 %v1018
  %3377 = vmatpush1.msra.mxu0 %v1017
  %3378 = vmatprep.subr.mxu0 %v1014
  %3379 = vmatpush1.msra.mxu0 %v1013
  %3380 = vmatprep.subr.mxu0 0.0
  %3381 = vmatpush2.msra.mxu0 0.0
  %3382 = vmatprep.subr.mxu0 0.0
  %3383 = vmatpush2.msra.mxu0 0.0
  %3384 = vmatprep.subr.mxu0 0.0
  %3385 = vmatpush2.msra.mxu0 0.0
  %3386 = vmatprep.subr.mxu0 0.0
  %3387 = vmatpush2.msra.mxu0 0.0
  %3388 = vmatprep.subr.mxu0 0.0
  %3389 = vmatpush2.msra.mxu0 0.0
  %3390 = vmatprep.subr.mxu0 0.0
  %3391 = vmatpush2.msra.mxu0 0.0
  %3392 = vmatprep.subr.mxu0 0.0
  %3393 = vmatpush2.msra.mxu0 0.0
  %3394 = vmatprep.subr.mxu0 0.0
  %3395 = vmatpush2.msra.mxu0 0.0
  %3396 = vmatprep.subr.mxu0 0.0
  %3397 = vmatpush2.msra.mxu0 0.0
  %3398 = vmatprep.subr.mxu0 0.0
  %3399 = vmatpush2.msra.mxu0 0.0
  %3400 = vmatprep.subr.mxu0 0.0
  %3401 = vmatpush2.msra.mxu0 0.0
  %3402 = vmatprep.subr.mxu0 0.0
  %3403 = vmatpush2.msra.mxu0 0.0
  %3404 = vmatprep.subr.mxu0 0.0
  %3405 = vmatpush2.msra.mxu0 0.0
  %3406 = vmatprep.subr.mxu0 0.0
  %3407 = vmatpush2.msra.mxu0 0.0
  %3408 = vmatprep.subr.mxu0 0.0
  %3409 = vmatpush2.msra.mxu0 0.0
  %3410 = vmatprep.subr.mxu0 0.0
  %3411 = vmatpush2.msra.mxu0 0.0
  %3412 = vmatprep.mubr.f32.mxu0 0.0
  %3413 = vmatmul.mubr.f32.gmra.mxu0 %v2262
  %v3414 = vpop.f32.mrf.mxu0
  %v3415 = vadd.f32 0.0, %v3414
  %v3416 = vpop.f32.mrf.mxu0
  %v3417 = vadd.f32 0.0, %v3416
  %3418 = vdwg.mxu0
  %3419 = vmatprep.subr.mxu0 0.0
  %3420 = vmatpush1.msra.mxu0 0.0
  %3421 = vmatprep.subr.mxu0 0.0
  %3422 = vmatpush1.msra.mxu0 0.0
  %3423 = vmatprep.subr.mxu0 0.0
  %3424 = vmatpush1.msra.mxu0 0.0
  %3425 = vmatprep.subr.mxu0 0.0
  %3426 = vmatpush1.msra.mxu0 0.0
  %3427 = vmatprep.subr.mxu0 0.0
  %3428 = vmatpush1.msra.mxu0 0.0
  %3429 = vmatprep.subr.mxu0 0.0
  %3430 = vmatpush1.msra.mxu0 0.0
  %3431 = vmatprep.subr.mxu0 0.0
  %3432 = vmatpush1.msra.mxu0 0.0
  %3433 = vmatprep.subr.mxu0 0.0
  %3434 = vmatpush1.msra.mxu0 0.0
  %3435 = vmatprep.subr.mxu0 0.0
  %3436 = vmatpush1.msra.mxu0 0.0
  %3437 = vmatprep.subr.mxu0 0.0
  %3438 = vmatpush1.msra.mxu0 0.0
  %3439 = vmatprep.subr.mxu0 0.0
  %3440 = vmatpush1.msra.mxu0 0.0
  %3441 = vmatprep.subr.mxu0 0.0
  %3442 = vmatpush1.msra.mxu0 0.0
  %3443 = vmatprep.subr.mxu0 %v1185
  %3444 = vmatpush1.msra.mxu0 %v1182
  %3445 = vmatprep.subr.mxu0 %v1003
  %3446 = vmatpush1.msra.mxu0 %v1002
  %3447 = vmatprep.subr.mxu0 %v999
  %3448 = vmatpush1.msra.mxu0 %v998
  %3449 = vmatprep.subr.mxu0 %v995
  %3450 = vmatpush1.msra.mxu0 %v994
  %3451 = vmatprep.subr.mxu0 0.0
  %3452 = vmatpush2.msra.mxu0 0.0
  %3453 = vmatprep.subr.mxu0 0.0
  %3454 = vmatpush2.msra.mxu0 0.0
  %3455 = vmatprep.subr.mxu0 0.0
  %3456 = vmatpush2.msra.mxu0 0.0
  %3457 = vmatprep.subr.mxu0 0.0
  %3458 = vmatpush2.msra.mxu0 0.0
  %3459 = vmatprep.subr.mxu0 0.0
  %3460 = vmatpush2.msra.mxu0 0.0
  %3461 = vmatprep.subr.mxu0 0.0
  %3462 = vmatpush2.msra.mxu0 0.0
  %3463 = vmatprep.subr.mxu0 0.0
  %3464 = vmatpush2.msra.mxu0 0.0
  %3465 = vmatprep.subr.mxu0 0.0
  %3466 = vmatpush2.msra.mxu0 0.0
  %3467 = vmatprep.subr.mxu0 0.0
  %3468 = vmatpush2.msra.mxu0 0.0
  %3469 = vmatprep.subr.mxu0 0.0
  %3470 = vmatpush2.msra.mxu0 0.0
  %3471 = vmatprep.subr.mxu0 0.0
  %3472 = vmatpush2.msra.mxu0 0.0
  %3473 = vmatprep.subr.mxu0 0.0
  %3474 = vmatpush2.msra.mxu0 0.0
  %3475 = vmatprep.subr.mxu0 0.0
  %3476 = vmatpush2.msra.mxu0 0.0
  %3477 = vmatprep.subr.mxu0 0.0
  %3478 = vmatpush2.msra.mxu0 0.0
  %3479 = vmatprep.subr.mxu0 0.0
  %3480 = vmatpush2.msra.mxu0 0.0
  %3481 = vmatprep.subr.mxu0 0.0
  %3482 = vmatpush2.msra.mxu0 0.0
  %3483 = vmatprep.mubr.f32.mxu0 0.0
  %3484 = vmatmul.mubr.f32.gmra.mxu0 %v841
  %v3485 = vpop.f32.mrf.mxu0
  %v3486 = vadd.f32 %v3344, %v3485
  %v3487 = vpop.f32.mrf.mxu0
  %v3488 = vadd.f32 %v3346, %v3487
  %3489 = vdwg.mxu0
  %3490 = vmatprep.subr.mxu0 0.0
  %3491 = vmatpush1.msra.mxu0 0.0
  %3492 = vmatprep.subr.mxu0 0.0
  %3493 = vmatpush1.msra.mxu0 0.0
  %3494 = vmatprep.subr.mxu0 0.0
  %3495 = vmatpush1.msra.mxu0 0.0
  %3496 = vmatprep.subr.mxu0 0.0
  %3497 = vmatpush1.msra.mxu0 0.0
  %3498 = vmatprep.subr.mxu0 0.0
  %3499 = vmatpush1.msra.mxu0 0.0
  %3500 = vmatprep.subr.mxu0 0.0
  %3501 = vmatpush1.msra.mxu0 0.0
  %3502 = vmatprep.subr.mxu0 0.0
  %3503 = vmatpush1.msra.mxu0 0.0
  %3504 = vmatprep.subr.mxu0 0.0
  %3505 = vmatpush1.msra.mxu0 0.0
  %3506 = vmatprep.subr.mxu0 0.0
  %3507 = vmatpush1.msra.mxu0 0.0
  %3508 = vmatprep.subr.mxu0 0.0
  %3509 = vmatpush1.msra.mxu0 0.0
  %3510 = vmatprep.subr.mxu0 0.0
  %3511 = vmatpush1.msra.mxu0 0.0
  %3512 = vmatprep.subr.mxu0 0.0
  %3513 = vmatpush1.msra.mxu0 0.0
  %3514 = vmatprep.subr.mxu0 %v1191
  %3515 = vmatpush1.msra.mxu0 %v1188
  %3516 = vmatprep.subr.mxu0 %v1005
  %3517 = vmatpush1.msra.mxu0 %v1004
  %3518 = vmatprep.subr.mxu0 %v1001
  %3519 = vmatpush1.msra.mxu0 %v1000
  %3520 = vmatprep.subr.mxu0 %v997
  %3521 = vmatpush1.msra.mxu0 %v996
  %3522 = vmatprep.subr.mxu0 0.0
  %3523 = vmatpush2.msra.mxu0 0.0
  %3524 = vmatprep.subr.mxu0 0.0
  %3525 = vmatpush2.msra.mxu0 0.0
  %3526 = vmatprep.subr.mxu0 0.0
  %3527 = vmatpush2.msra.mxu0 0.0
  %3528 = vmatprep.subr.mxu0 0.0
  %3529 = vmatpush2.msra.mxu0 0.0
  %3530 = vmatprep.subr.mxu0 0.0
  %3531 = vmatpush2.msra.mxu0 0.0
  %3532 = vmatprep.subr.mxu0 0.0
  %3533 = vmatpush2.msra.mxu0 0.0
  %3534 = vmatprep.subr.mxu0 0.0
  %3535 = vmatpush2.msra.mxu0 0.0
  %3536 = vmatprep.subr.mxu0 0.0
  %3537 = vmatpush2.msra.mxu0 0.0
  %3538 = vmatprep.subr.mxu0 0.0
  %3539 = vmatpush2.msra.mxu0 0.0
  %3540 = vmatprep.subr.mxu0 0.0
  %3541 = vmatpush2.msra.mxu0 0.0
  %3542 = vmatprep.subr.mxu0 0.0
  %3543 = vmatpush2.msra.mxu0 0.0
  %3544 = vmatprep.subr.mxu0 0.0
  %3545 = vmatpush2.msra.mxu0 0.0
  %3546 = vmatprep.subr.mxu0 0.0
  %3547 = vmatpush2.msra.mxu0 0.0
  %3548 = vmatprep.subr.mxu0 0.0
  %3549 = vmatpush2.msra.mxu0 0.0
  %3550 = vmatprep.subr.mxu0 0.0
  %3551 = vmatpush2.msra.mxu0 0.0
  %3552 = vmatprep.subr.mxu0 0.0
  %3553 = vmatpush2.msra.mxu0 0.0
  %3554 = vmatprep.mubr.f32.mxu0 0.0
  %3555 = vmatmul.mubr.f32.gmra.mxu0 %v841
  %v3556 = vpop.f32.mrf.mxu0
  %v3557 = vadd.f32 %v3415, %v3556
  %v3558 = vpop.f32.mrf.mxu0
  %v3559 = vadd.f32 %v3417, %v3558
  %3560 = vdwg.mxu0
  %3561 = vmatprep.subr.mxu0 0.0
  %3562 = vmatpush1.msra.mxu0 0.0
  %3563 = vmatprep.subr.mxu0 0.0
  %3564 = vmatpush1.msra.mxu0 0.0
  %3565 = vmatprep.subr.mxu0 0.0
  %3566 = vmatpush1.msra.mxu0 0.0
  %3567 = vmatprep.subr.mxu0 0.0
  %3568 = vmatpush1.msra.mxu0 0.0
  %3569 = vmatprep.subr.mxu0 0.0
  %3570 = vmatpush1.msra.mxu0 0.0
  %3571 = vmatprep.subr.mxu0 0.0
  %3572 = vmatpush1.msra.mxu0 0.0
  %3573 = vmatprep.subr.mxu0 0.0
  %3574 = vmatpush1.msra.mxu0 0.0
  %3575 = vmatprep.subr.mxu0 0.0
  %3576 = vmatpush1.msra.mxu0 0.0
  %3577 = vmatprep.subr.mxu0 0.0
  %3578 = vmatpush1.msra.mxu0 0.0
  %3579 = vmatprep.subr.mxu0 0.0
  %3580 = vmatpush1.msra.mxu0 0.0
  %3581 = vmatprep.subr.mxu0 0.0
  %3582 = vmatpush1.msra.mxu0 0.0
  %3583 = vmatprep.subr.mxu0 0.0
  %3584 = vmatpush1.msra.mxu0 0.0
  %3585 = vmatprep.subr.mxu0 %v1356
  %3586 = vmatpush1.msra.mxu0 %v1353
  %3587 = vmatprep.subr.mxu0 %v1345
  %3588 = vmatpush1.msra.mxu0 %v1344
  %3589 = vmatprep.subr.mxu0 %v1341
  %3590 = vmatpush1.msra.mxu0 %v1340
  %3591 = vmatprep.subr.mxu0 %v1337
  %3592 = vmatpush1.msra.mxu0 %v1336
  %3593 = vmatprep.subr.mxu0 0.0
  %3594 = vmatpush2.msra.mxu0 0.0
  %3595 = vmatprep.subr.mxu0 0.0
  %3596 = vmatpush2.msra.mxu0 0.0
  %3597 = vmatprep.subr.mxu0 0.0
  %3598 = vmatpush2.msra.mxu0 0.0
  %3599 = vmatprep.subr.mxu0 0.0
  %3600 = vmatpush2.msra.mxu0 0.0
  %3601 = vmatprep.subr.mxu0 0.0
  %3602 = vmatpush2.msra.mxu0 0.0
  %3603 = vmatprep.subr.mxu0 0.0
  %3604 = vmatpush2.msra.mxu0 0.0
  %3605 = vmatprep.subr.mxu0 0.0
  %3606 = vmatpush2.msra.mxu0 0.0
  %3607 = vmatprep.subr.mxu0 0.0
  %3608 = vmatpush2.msra.mxu0 0.0
  %3609 = vmatprep.subr.mxu0 0.0
  %3610 = vmatpush2.msra.mxu0 0.0
  %3611 = vmatprep.subr.mxu0 0.0
  %3612 = vmatpush2.msra.mxu0 0.0
  %3613 = vmatprep.subr.mxu0 0.0
  %3614 = vmatpush2.msra.mxu0 0.0
  %3615 = vmatprep.subr.mxu0 0.0
  %3616 = vmatpush2.msra.mxu0 0.0
  %3617 = vmatprep.subr.mxu0 0.0
  %3618 = vmatpush2.msra.mxu0 0.0
  %3619 = vmatprep.subr.mxu0 0.0
  %3620 = vmatpush2.msra.mxu0 0.0
  %3621 = vmatprep.subr.mxu0 0.0
  %3622 = vmatpush2.msra.mxu0 0.0
  %3623 = vmatprep.subr.mxu0 0.0
  %3624 = vmatpush2.msra.mxu0 0.0
  %3625 = vmatprep.mubr.f32.mxu0 0.0
  %3626 = vmatmul.mubr.f32.gmra.mxu0 %v2695
  %v3627 = vpop.f32.mrf.mxu0
  %v3628 = vadd.f32 0.0, %v3627
  %v3629 = vpop.f32.mrf.mxu0
  %v3630 = vadd.f32 0.0, %v3629
  %3631 = vdwg.mxu0
  %3632 = vmatprep.subr.mxu0 0.0
  %3633 = vmatpush1.msra.mxu0 0.0
  %3634 = vmatprep.subr.mxu0 0.0
  %3635 = vmatpush1.msra.mxu0 0.0
  %3636 = vmatprep.subr.mxu0 0.0
  %3637 = vmatpush1.msra.mxu0 0.0
  %3638 = vmatprep.subr.mxu0 0.0
  %3639 = vmatpush1.msra.mxu0 0.0
  %3640 = vmatprep.subr.mxu0 0.0
  %3641 = vmatpush1.msra.mxu0 0.0
  %3642 = vmatprep.subr.mxu0 0.0
  %3643 = vmatpush1.msra.mxu0 0.0
  %3644 = vmatprep.subr.mxu0 0.0
  %3645 = vmatpush1.msra.mxu0 0.0
  %3646 = vmatprep.subr.mxu0 0.0
  %3647 = vmatpush1.msra.mxu0 0.0
  %3648 = vmatprep.subr.mxu0 0.0
  %3649 = vmatpush1.msra.mxu0 0.0
  %3650 = vmatprep.subr.mxu0 0.0
  %3651 = vmatpush1.msra.mxu0 0.0
  %3652 = vmatprep.subr.mxu0 0.0
  %3653 = vmatpush1.msra.mxu0 0.0
  %3654 = vmatprep.subr.mxu0 0.0
  %3655 = vmatpush1.msra.mxu0 0.0
  %3656 = vmatprep.subr.mxu0 %v1362
  %3657 = vmatpush1.msra.mxu0 %v1359
  %3658 = vmatprep.subr.mxu0 %v1347
  %3659 = vmatpush1.msra.mxu0 %v1346
  %3660 = vmatprep.subr.mxu0 %v1343
  %3661 = vmatpush1.msra.mxu0 %v1342
  %3662 = vmatprep.subr.mxu0 %v1339
  %3663 = vmatpush1.msra.mxu0 %v1338
  %3664 = vmatprep.subr.mxu0 0.0
  %3665 = vmatpush2.msra.mxu0 0.0
  %3666 = vmatprep.subr.mxu0 0.0
  %3667 = vmatpush2.msra.mxu0 0.0
  %3668 = vmatprep.subr.mxu0 0.0
  %3669 = vmatpush2.msra.mxu0 0.0
  %3670 = vmatprep.subr.mxu0 0.0
  %3671 = vmatpush2.msra.mxu0 0.0
  %3672 = vmatprep.subr.mxu0 0.0
  %3673 = vmatpush2.msra.mxu0 0.0
  %3674 = vmatprep.subr.mxu0 0.0
  %3675 = vmatpush2.msra.mxu0 0.0
  %3676 = vmatprep.subr.mxu0 0.0
  %3677 = vmatpush2.msra.mxu0 0.0
  %3678 = vmatprep.subr.mxu0 0.0
  %3679 = vmatpush2.msra.mxu0 0.0
  %3680 = vmatprep.subr.mxu0 0.0
  %3681 = vmatpush2.msra.mxu0 0.0
  %3682 = vmatprep.subr.mxu0 0.0
  %3683 = vmatpush2.msra.mxu0 0.0
  %3684 = vmatprep.subr.mxu0 0.0
  %3685 = vmatpush2.msra.mxu0 0.0
  %3686 = vmatprep.subr.mxu0 0.0
  %3687 = vmatpush2.msra.mxu0 0.0
  %3688 = vmatprep.subr.mxu0 0.0
  %3689 = vmatpush2.msra.mxu0 0.0
  %3690 = vmatprep.subr.mxu0 0.0
  %3691 = vmatpush2.msra.mxu0 0.0
  %3692 = vmatprep.subr.mxu0 0.0
  %3693 = vmatpush2.msra.mxu0 0.0
  %3694 = vmatprep.subr.mxu0 0.0
  %3695 = vmatpush2.msra.mxu0 0.0
  %3696 = vmatprep.mubr.f32.mxu0 0.0
  %3697 = vmatmul.mubr.f32.gmra.mxu0 %v2695
  %v3698 = vpop.f32.mrf.mxu0
  %v3699 = vadd.f32 0.0, %v3698
  %v3700 = vpop.f32.mrf.mxu0
  %v3701 = vadd.f32 0.0, %v3700
  %3702 = vdwg.mxu0
  %v3703 = vadd.f32 %v3486, %v3628
  %v3704 = vadd.f32 %v3488, %v3630
  %v3705 = vadd.f32 %v3557, %v3699
  %v3706 = vadd.f32 %v3559, %v3701
  %v3707 = vmax.f32 %v3273, %v3703
  %v3708 = vmax.f32 %v3274, %v3704
  %v3709 = vmax.f32 %v3275, %v3705
  %v3710 = vmax.f32 %v3276, %v3706
  %v3711 = vmax.f32 %v2843, %v3707
  %v3712 = vmax.f32 %v2844, %v3708
  %v3713 = vmax.f32 %v2845, %v3709
  %v3714 = vmax.f32 %v2846, %v3710
  %v3715 = vadd.f32 %v3711, %v1952
  %v3716 = vadd.f32 %v3712, %v1956
  %v3717 = vadd.f32 %v3713, %v1960
  %v3718 = vadd.f32 %v3714, %v1964
  %v3719 = vmax.f32 %v3715, 0.0
  %v3720 = vmax.f32 %v3716, 0.0
  %v3721 = vmax.f32 %v3717, 0.0
  %v3722 = vmax.f32 %v3718, 0.0
  %v3723 = vld [vmem:[%s3] sm:$0xff]
  %v3724 = vld [vmem:[%s3 + $0x8] sm:$0xff]
  %v3725 = vld [vmem:[%s3 + $0x10] sm:$0xff]
  %v3726 = vld [vmem:[%s3 + $0x18] sm:$0xff]
  %v3727 = vld [vmem:[%s3 + $0x20] sm:$0xff]
  %v3728 = vld [vmem:[%s3 + $0x28] sm:$0xff]
  %v3729 = vld [vmem:[%s3 + $0x30] sm:$0xff]
  %v3730 = vld [vmem:[%s3 + $0x38] sm:$0xff]
  %v3731 = vld [vmem:[%s3 + $0x40] sm:$0xff]
  %v3732 = vld [vmem:[%s3 + $0x48] sm:$0xff]
  %v3733 = vld [vmem:[%s3 + $0x50] sm:$0xff]
  %v3734 = vld [vmem:[%s3 + $0x58] sm:$0xff]
  %v3735 = vld [vmem:[%s3 + $0x60] sm:$0xff]
  %v3736 = vld [vmem:[%s3 + $0x68] sm:$0xff]
  %v3737 = vld [vmem:[%s3 + $0x70] sm:$0xff]
  %v3738 = vld [vmem:[%s3 + $0x78] sm:$0xff]
  %v3739 = vld [vmem:[%s3 + $0x80] sm:$0xff]
  %v3740 = vld [vmem:[%s3 + $0x88] sm:$0xff]
  %v3741 = vld [vmem:[%s3 + $0x90] sm:$0xff]
  %v3742 = vld [vmem:[%s3 + $0x98] sm:$0xff]
  %v3743 = vld [vmem:[%s3 + $0xa0] sm:$0xff]
  %v3744 = vld [vmem:[%s3 + $0xa8] sm:$0xff]
  %v3745 = vld [vmem:[%s3 + $0xb0] sm:$0xff]
  %v3746 = vld [vmem:[%s3 + $0xb8] sm:$0xff]
  %v3747 = vld [vmem:[%s3 + $0xc0] sm:$0xff]
  %v3748 = vld [vmem:[%s3 + $0xc8] sm:$0xff]
  %v3749 = vld [vmem:[%s3 + $0xd0] sm:$0xff]
  %v3750 = vld [vmem:[%s3 + $0xd8] sm:$0xff]
  %v3751 = vld [vmem:[%s3 + $0xe0] sm:$0xff]
  %v3752 = vld [vmem:[%s3 + $0xe8] sm:$0xff]
  %v3753 = vld [vmem:[%s3 + $0xf0] sm:$0xff]
  %v3754 = vld [vmem:[%s3 + $0xf8] sm:$0xff]
  %v3755 = vld [vmem:[%s3 + $0x100] sm:$0xff]
  %v3756 = vld [vmem:[%s3 + $0x108] sm:$0xff]
  %v3757 = vld [vmem:[%s3 + $0x110] sm:$0xff]
  %v3758 = vld [vmem:[%s3 + $0x118] sm:$0xff]
  %v3759 = vld [vmem:[%s3 + $0x120] sm:$0xff]
  %v3760 = vld [vmem:[%s3 + $0x128] sm:$0xff]
  %v3761 = vld [vmem:[%s3 + $0x130] sm:$0xff]
  %v3762 = vld [vmem:[%s3 + $0x138] sm:$0xff]
  %v3763 = vld [vmem:[%s3 + $0x140] sm:$0xff]
  %v3764 = vld [vmem:[%s3 + $0x148] sm:$0xff]
  %v3765 = vld [vmem:[%s3 + $0x150] sm:$0xff]
  %v3766 = vld [vmem:[%s3 + $0x158] sm:$0xff]
  %v3767 = vld [vmem:[%s3 + $0x160] sm:$0xff]
  %v3768 = vld [vmem:[%s3 + $0x168] sm:$0xff]
  %v3769 = vld [vmem:[%s3 + $0x170] sm:$0xff]
  %v3770 = vld [vmem:[%s3 + $0x178] sm:$0xff]
  %v3771 = vld [vmem:[%s3 + $0x180] sm:$0xff]
  %v3772 = vld [vmem:[%s3 + $0x188] sm:$0xff]
  %v3773 = vld [vmem:[%s3 + $0x190] sm:$0xff]
  %v3774 = vld [vmem:[%s3 + $0x198] sm:$0xff]
  %v3775 = vld [vmem:[%s3 + $0x1a0] sm:$0xff]
  %v3776 = vld [vmem:[%s3 + $0x1a8] sm:$0xff]
  %v3777 = vld [vmem:[%s3 + $0x1b0] sm:$0xff]
  %v3778 = vld [vmem:[%s3 + $0x1b8] sm:$0xff]
  %v3779 = vld [vmem:[%s3 + $0x1c0] sm:$0xff]
  %v3780 = vld [vmem:[%s3 + $0x1c8] sm:$0xff]
  %v3781 = vld [vmem:[%s3 + $0x1d0] sm:$0xff]
  %v3782 = vld [vmem:[%s3 + $0x1d8] sm:$0xff]
  %v3783 = vld [vmem:[%s3 + $0x1e0] sm:$0xff]
  %v3784 = vld [vmem:[%s3 + $0x1e8] sm:$0xff]
  %v3785 = vld [vmem:[%s3 + $0x1f0] sm:$0xff]
  %v3786 = vld [vmem:[%s3 + $0x1f8] sm:$0xff]
  %v3787 = vld [vmem:[%s3 + $0x200] sm:$0xff]
  %v3788 = vld [vmem:[%s3 + $0x208] sm:$0xff]
  %v3789 = vld [vmem:[%s3 + $0x210] sm:$0xff]
  %v3790 = vld [vmem:[%s3 + $0x218] sm:$0xff]
  %v3791 = vld [vmem:[%s3 + $0x220] sm:$0xff]
  %v3792 = vld [vmem:[%s3 + $0x228] sm:$0xff]
  %v3793 = vld [vmem:[%s3 + $0x230] sm:$0xff]
  %v3794 = vld [vmem:[%s3 + $0x238] sm:$0xff]
  %v3795 = vld [vmem:[%s3 + $0x240] sm:$0xff]
  %v3796 = vld [vmem:[%s3 + $0x248] sm:$0xff]
  %v3797 = vld [vmem:[%s3 + $0x250] sm:$0xff]
  %v3798 = vld [vmem:[%s3 + $0x258] sm:$0xff]
  %v3799 = vld [vmem:[%s3 + $0x260] sm:$0xff]
  %v3800 = vld [vmem:[%s3 + $0x268] sm:$0xff]
  %v3801 = vld [vmem:[%s3 + $0x270] sm:$0xff]
  %v3802 = vld [vmem:[%s3 + $0x278] sm:$0xff]
  %v3803 = vld [vmem:[%s3 + $0x280] sm:$0xff]
  %v3804 = vld [vmem:[%s3 + $0x288] sm:$0xff]
  %v3805 = vld [vmem:[%s3 + $0x290] sm:$0xff]
  %v3806 = vld [vmem:[%s3 + $0x298] sm:$0xff]
  %v3807 = vld [vmem:[%s3 + $0x2a0] sm:$0xff]
  %v3808 = vld [vmem:[%s3 + $0x2a8] sm:$0xff]
  %v3809 = vld [vmem:[%s3 + $0x2b0] sm:$0xff]
  %v3810 = vld [vmem:[%s3 + $0x2b8] sm:$0xff]
  %v3811 = vld [vmem:[%s3 + $0x2c0] sm:$0xff]
  %v3812 = vld [vmem:[%s3 + $0x2c8] sm:$0xff]
  %v3813 = vld [vmem:[%s3 + $0x2d0] sm:$0xff]
  %v3814 = vld [vmem:[%s3 + $0x2d8] sm:$0xff]
  %v3815 = vld [vmem:[%s3 + $0x2e0] sm:$0xff]
  %v3816 = vld [vmem:[%s3 + $0x2e8] sm:$0xff]
  %v3817 = vld [vmem:[%s3 + $0x2f0] sm:$0xff]
  %v3818 = vld [vmem:[%s3 + $0x2f8] sm:$0xff]
  %v3819 = vld [vmem:[%s3 + $0x300] sm:$0xff]
  %v3820 = vld [vmem:[%s3 + $0x308] sm:$0xff]
  %v3821 = vld [vmem:[%s3 + $0x310] sm:$0xff]
  %v3822 = vld [vmem:[%s3 + $0x318] sm:$0xff]
  %v3823 = vld [vmem:[%s3 + $0x320] sm:$0xff]
  %v3824 = vld [vmem:[%s3 + $0x328] sm:$0xff]
  %v3825 = vld [vmem:[%s3 + $0x330] sm:$0xff]
  %v3826 = vld [vmem:[%s3 + $0x338] sm:$0xff]
  %s3827 = scalar_lea.vmem %s3, 832
  %v3828 = vld [vmem:[%s3827] sm:$0xff]
  %v3829 = vld [vmem:[%s3827 + $0x8] sm:$0xff]
  %v3830 = vld [vmem:[%s3827 + $0x10] sm:$0xff]
  %v3831 = vld [vmem:[%s3827 + $0x18] sm:$0xff]
  %v3832 = vld [vmem:[%s3827 + $0x20] sm:$0xff]
  %v3833 = vld [vmem:[%s3827 + $0x28] sm:$0xff]
  %v3834 = vld [vmem:[%s3827 + $0x30] sm:$0xff]
  %v3835 = vld [vmem:[%s3827 + $0x38] sm:$0xff]
  %v3836 = vld [vmem:[%s3827 + $0x40] sm:$0xff]
  %v3837 = vld [vmem:[%s3827 + $0x48] sm:$0xff]
  %v3838 = vld [vmem:[%s3827 + $0x50] sm:$0xff]
  %v3839 = vld [vmem:[%s3827 + $0x58] sm:$0xff]
  %v3840 = vld [vmem:[%s3827 + $0x60] sm:$0xff]
  %v3841 = vld [vmem:[%s3827 + $0x68] sm:$0xff]
  %v3842 = vld [vmem:[%s3827 + $0x70] sm:$0xff]
  %v3843 = vld [vmem:[%s3827 + $0x78] sm:$0xff]
  %v3844 = vld [vmem:[%s3827 + $0x80] sm:$0xff]
  %v3845 = vld [vmem:[%s3827 + $0x88] sm:$0xff]
  %v3846 = vld [vmem:[%s3827 + $0x90] sm:$0xff]
  %v3847 = vld [vmem:[%s3827 + $0x98] sm:$0xff]
  %v3848 = vld [vmem:[%s3827 + $0xa0] sm:$0xff]
  %v3849 = vld [vmem:[%s3827 + $0xa8] sm:$0xff]
  %v3850 = vld [vmem:[%s3827 + $0xb0] sm:$0xff]
  %v3851 = vld [vmem:[%s3827 + $0xb8] sm:$0xff]
  %v3852 = vld [vmem:[%s3827 + $0xc0] sm:$0xff]
  %v3853 = vld [vmem:[%s3827 + $0xc8] sm:$0xff]
  %v3854 = vld [vmem:[%s3827 + $0xd0] sm:$0xff]
  %v3855 = vld [vmem:[%s3827 + $0xd8] sm:$0xff]
  %v3856 = vld [vmem:[%s3827 + $0xe0] sm:$0xff]
  %v3857 = vld [vmem:[%s3827 + $0xe8] sm:$0xff]
  %v3858 = vld [vmem:[%s3827 + $0xf0] sm:$0xff]
  %v3859 = vld [vmem:[%s3827 + $0xf8] sm:$0xff]
  %v3860 = vld [vmem:[%s3827 + $0x100] sm:$0xff]
  %v3861 = vld [vmem:[%s3827 + $0x108] sm:$0xff]
  %v3862 = vld [vmem:[%s3827 + $0x110] sm:$0xff]
  %v3863 = vld [vmem:[%s3827 + $0x118] sm:$0xff]
  %v3864 = vld [vmem:[%s3827 + $0x120] sm:$0xff]
  %v3865 = vld [vmem:[%s3827 + $0x128] sm:$0xff]
  %v3866 = vld [vmem:[%s3827 + $0x130] sm:$0xff]
  %v3867 = vld [vmem:[%s3827 + $0x138] sm:$0xff]
  %v3868 = vld [vmem:[%s3827 + $0x140] sm:$0xff]
  %v3869 = vld [vmem:[%s3827 + $0x148] sm:$0xff]
  %v3870 = vld [vmem:[%s3827 + $0x150] sm:$0xff]
  %v3871 = vld [vmem:[%s3827 + $0x158] sm:$0xff]
  %v3872 = vld [vmem:[%s3827 + $0x160] sm:$0xff]
  %v3873 = vld [vmem:[%s3827 + $0x168] sm:$0xff]
  %v3874 = vld [vmem:[%s3827 + $0x170] sm:$0xff]
  %v3875 = vld [vmem:[%s3827 + $0x178] sm:$0xff]
  %v3876 = vld [vmem:[%s3827 + $0x180] sm:$0xff]
  %v3877 = vld [vmem:[%s3827 + $0x188] sm:$0xff]
  %v3878 = vld [vmem:[%s3827 + $0x190] sm:$0xff]
  %v3879 = vld [vmem:[%s3827 + $0x198] sm:$0xff]
  %v3880 = vld [vmem:[%s3827 + $0x1a0] sm:$0xff]
  %v3881 = vld [vmem:[%s3827 + $0x1a8] sm:$0xff]
  %v3882 = vld [vmem:[%s3827 + $0x1b0] sm:$0xff]
  %v3883 = vld [vmem:[%s3827 + $0x1b8] sm:$0xff]
  %v3884 = vld [vmem:[%s3827 + $0x1c0] sm:$0xff]
  %v3885 = vld [vmem:[%s3827 + $0x1c8] sm:$0xff]
  %v3886 = vld [vmem:[%s3827 + $0x1d0] sm:$0xff]
  %v3887 = vld [vmem:[%s3827 + $0x1d8] sm:$0xff]
  %v3888 = vld [vmem:[%s3827 + $0x1e0] sm:$0xff]
  %v3889 = vld [vmem:[%s3827 + $0x1e8] sm:$0xff]
  %v3890 = vld [vmem:[%s3827 + $0x1f0] sm:$0xff]
  %v3891 = vld [vmem:[%s3827 + $0x1f8] sm:$0xff]
  %v3892 = vld [vmem:[%s3827 + $0x200] sm:$0xff]
  %v3893 = vld [vmem:[%s3827 + $0x208] sm:$0xff]
  %v3894 = vld [vmem:[%s3827 + $0x210] sm:$0xff]
  %v3895 = vld [vmem:[%s3827 + $0x218] sm:$0xff]
  %v3896 = vld [vmem:[%s3827 + $0x220] sm:$0xff]
  %v3897 = vld [vmem:[%s3827 + $0x228] sm:$0xff]
  %v3898 = vld [vmem:[%s3827 + $0x230] sm:$0xff]
  %v3899 = vld [vmem:[%s3827 + $0x238] sm:$0xff]
  %v3900 = vld [vmem:[%s3827 + $0x240] sm:$0xff]
  %v3901 = vld [vmem:[%s3827 + $0x248] sm:$0xff]
  %v3902 = vld [vmem:[%s3827 + $0x250] sm:$0xff]
  %v3903 = vld [vmem:[%s3827 + $0x258] sm:$0xff]
  %v3904 = vld [vmem:[%s3827 + $0x260] sm:$0xff]
  %v3905 = vld [vmem:[%s3827 + $0x268] sm:$0xff]
  %v3906 = vld [vmem:[%s3827 + $0x270] sm:$0xff]
  %v3907 = vld [vmem:[%s3827 + $0x278] sm:$0xff]
  %v3908 = vld [vmem:[%s3827 + $0x280] sm:$0xff]
  %v3909 = vld [vmem:[%s3827 + $0x288] sm:$0xff]
  %v3910 = vld [vmem:[%s3827 + $0x290] sm:$0xff]
  %v3911 = vld [vmem:[%s3827 + $0x298] sm:$0xff]
  %v3912 = vld [vmem:[%s3827 + $0x2a0] sm:$0xff]
  %v3913 = vld [vmem:[%s3827 + $0x2a8] sm:$0xff]
  %v3914 = vld [vmem:[%s3827 + $0x2b0] sm:$0xff]
  %v3915 = vld [vmem:[%s3827 + $0x2b8] sm:$0xff]
  %v3916 = vld [vmem:[%s3827 + $0x2c0] sm:$0xff]
  %v3917 = vld [vmem:[%s3827 + $0x2c8] sm:$0xff]
  %v3918 = vld [vmem:[%s3827 + $0x2d0] sm:$0xff]
  %v3919 = vld [vmem:[%s3827 + $0x2d8] sm:$0xff]
  %v3920 = vld [vmem:[%s3827 + $0x2e0] sm:$0xff]
  %v3921 = vld [vmem:[%s3827 + $0x2e8] sm:$0xff]
  %v3922 = vld [vmem:[%s3827 + $0x2f0] sm:$0xff]
  %v3923 = vld [vmem:[%s3827 + $0x2f8] sm:$0xff]
  %v3924 = vld [vmem:[%s3827 + $0x300] sm:$0xff]
  %v3925 = vld [vmem:[%s3827 + $0x308] sm:$0xff]
  %v3926 = vld [vmem:[%s3827 + $0x310] sm:$0xff]
  %v3927 = vld [vmem:[%s3827 + $0x318] sm:$0xff]
  %v3928 = vld [vmem:[%s3827 + $0x320] sm:$0xff]
  %v3929 = vld [vmem:[%s3827 + $0x328] sm:$0xff]
  %v3930 = vld [vmem:[%s3827 + $0x330] sm:$0xff]
  %v3931 = vld [vmem:[%s3827 + $0x338] sm:$0xff]
  %vm3932 = vcmask 261120
  %v3934 = vsel %vm3932, %v3722, 0
  %3936 = vmatprep.subr.mxu0 %v3859
  %3937 = vmatpush1.msra.mxu0 %v3858
  %3938 = vmatprep.subr.mxu0 %v3857
  %3939 = vmatpush1.msra.mxu0 %v3856
  %3940 = vmatprep.subr.mxu0 %v3855
  %3941 = vmatpush1.msra.mxu0 %v3854
  %3942 = vmatprep.subr.mxu0 %v3853
  %3943 = vmatpush1.msra.mxu0 %v3852
  %3944 = vmatprep.subr.mxu0 %v3851
  %3945 = vmatpush1.msra.mxu0 %v3850
  %3946 = vmatprep.subr.mxu0 %v3849
  %3947 = vmatpush1.msra.mxu0 %v3848
  %3948 = vmatprep.subr.mxu0 %v3847
  %3949 = vmatpush1.msra.mxu0 %v3846
  %3950 = vmatprep.subr.mxu0 %v3845
  %3951 = vmatpush1.msra.mxu0 %v3844
  %3952 = vmatprep.subr.mxu0 %v3843
  %3953 = vmatpush1.msra.mxu0 %v3842
  %3954 = vmatprep.subr.mxu0 %v3841
  %3955 = vmatpush1.msra.mxu0 %v3840
  %3956 = vmatprep.subr.mxu0 %v3839
  %3957 = vmatpush1.msra.mxu0 %v3838
  %3958 = vmatprep.subr.mxu0 %v3837
  %3959 = vmatpush1.msra.mxu0 %v3836
  %3960 = vmatprep.subr.mxu0 %v3835
  %3961 = vmatpush1.msra.mxu0 %v3834
  %3962 = vmatprep.subr.mxu0 %v3833
  %3963 = vmatpush1.msra.mxu0 %v3832
  %3964 = vmatprep.subr.mxu0 %v3831
  %3965 = vmatpush1.msra.mxu0 %v3830
  %3966 = vmatprep.subr.mxu0 %v3829
  %3967 = vmatpush1.msra.mxu0 %v3828
  %3968 = vmatprep.subr.mxu0 %v3891
  %3969 = vmatpush2.msra.mxu0 %v3890
  %3970 = vmatprep.subr.mxu0 %v3889
  %3971 = vmatpush2.msra.mxu0 %v3888
  %3972 = vmatprep.subr.mxu0 %v3887
  %3973 = vmatpush2.msra.mxu0 %v3886
  %3974 = vmatprep.subr.mxu0 %v3885
  %3975 = vmatpush2.msra.mxu0 %v3884
  %3976 = vmatprep.subr.mxu0 %v3883
  %3977 = vmatpush2.msra.mxu0 %v3882
  %3978 = vmatprep.subr.mxu0 %v3881
  %3979 = vmatpush2.msra.mxu0 %v3880
  %3980 = vmatprep.subr.mxu0 %v3879
  %3981 = vmatpush2.msra.mxu0 %v3878
  %3982 = vmatprep.subr.mxu0 %v3877
  %3983 = vmatpush2.msra.mxu0 %v3876
  %3984 = vmatprep.subr.mxu0 %v3875
  %3985 = vmatpush2.msra.mxu0 %v3874
  %3986 = vmatprep.subr.mxu0 %v3873
  %3987 = vmatpush2.msra.mxu0 %v3872
  %3988 = vmatprep.subr.mxu0 %v3871
  %3989 = vmatpush2.msra.mxu0 %v3870
  %3990 = vmatprep.subr.mxu0 %v3869
  %3991 = vmatpush2.msra.mxu0 %v3868
  %3992 = vmatprep.subr.mxu0 %v3867
  %3993 = vmatpush2.msra.mxu0 %v3866
  %3994 = vmatprep.subr.mxu0 %v3865
  %3995 = vmatpush2.msra.mxu0 %v3864
  %3996 = vmatprep.subr.mxu0 %v3863
  %3997 = vmatpush2.msra.mxu0 %v3862
  %3998 = vmatprep.subr.mxu0 %v3861
  %3999 = vmatpush2.msra.mxu0 %v3860
  %4000 = vmatprep.mubr.f32.mxu0 %v3720
  %4001 = vmatmul.mubr.f32.gmra.mxu0 %v3719
  %v4002 = vpop.f32.mrf.mxu0
  %v4003 = vadd.f32 0.0, %v4002
  %v4004 = vpop.f32.mrf.mxu0
  %v4005 = vadd.f32 0.0, %v4004
  %4006 = vdwg.mxu0
  %4007 = vmatprep.subr.mxu0 %v3923
  %4008 = vmatpush1.msra.mxu0 %v3922
  %4009 = vmatprep.subr.mxu0 %v3921
  %4010 = vmatpush1.msra.mxu0 %v3920
  %4011 = vmatprep.subr.mxu0 %v3919
  %4012 = vmatpush1.msra.mxu0 %v3918
  %4013 = vmatprep.subr.mxu0 %v3917
  %4014 = vmatpush1.msra.mxu0 %v3916
  %4015 = vmatprep.subr.mxu0 %v3915
  %4016 = vmatpush1.msra.mxu0 %v3914
  %4017 = vmatprep.subr.mxu0 %v3913
  %4018 = vmatpush1.msra.mxu0 %v3912
  %4019 = vmatprep.subr.mxu0 %v3911
  %4020 = vmatpush1.msra.mxu0 %v3910
  %4021 = vmatprep.subr.mxu0 %v3909
  %4022 = vmatpush1.msra.mxu0 %v3908
  %4023 = vmatprep.subr.mxu0 %v3907
  %4024 = vmatpush1.msra.mxu0 %v3906
  %4025 = vmatprep.subr.mxu0 %v3905
  %4026 = vmatpush1.msra.mxu0 %v3904
  %4027 = vmatprep.subr.mxu0 %v3903
  %4028 = vmatpush1.msra.mxu0 %v3902
  %4029 = vmatprep.subr.mxu0 %v3901
  %4030 = vmatpush1.msra.mxu0 %v3900
  %4031 = vmatprep.subr.mxu0 %v3899
  %4032 = vmatpush1.msra.mxu0 %v3898
  %4033 = vmatprep.subr.mxu0 %v3897
  %4034 = vmatpush1.msra.mxu0 %v3896
  %4035 = vmatprep.subr.mxu0 %v3895
  %4036 = vmatpush1.msra.mxu0 %v3894
  %4037 = vmatprep.subr.mxu0 %v3893
  %4038 = vmatpush1.msra.mxu0 %v3892
  %4039 = vmatprep.subr.mxu0 0.0
  %4040 = vmatpush2.msra.mxu0 0.0
  %4041 = vmatprep.subr.mxu0 0.0
  %4042 = vmatpush2.msra.mxu0 0.0
  %4043 = vmatprep.subr.mxu0 0.0
  %4044 = vmatpush2.msra.mxu0 0.0
  %4045 = vmatprep.subr.mxu0 0.0
  %4046 = vmatpush2.msra.mxu0 0.0
  %4047 = vmatprep.subr.mxu0 0.0
  %4048 = vmatpush2.msra.mxu0 0.0
  %4049 = vmatprep.subr.mxu0 0.0
  %4050 = vmatpush2.msra.mxu0 0.0
  %4051 = vmatprep.subr.mxu0 0.0
  %4052 = vmatpush2.msra.mxu0 0.0
  %4053 = vmatprep.subr.mxu0 0.0
  %4054 = vmatpush2.msra.mxu0 0.0
  %4055 = vmatprep.subr.mxu0 0.0
  %4056 = vmatpush2.msra.mxu0 0.0
  %4057 = vmatprep.subr.mxu0 0.0
  %4058 = vmatpush2.msra.mxu0 0.0
  %4059 = vmatprep.subr.mxu0 0.0
  %4060 = vmatpush2.msra.mxu0 0.0
  %4061 = vmatprep.subr.mxu0 0.0
  %4062 = vmatpush2.msra.mxu0 0.0
  %4063 = vmatprep.subr.mxu0 %v3931
  %4064 = vmatpush2.msra.mxu0 %v3930
  %4065 = vmatprep.subr.mxu0 %v3929
  %4066 = vmatpush2.msra.mxu0 %v3928
  %4067 = vmatprep.subr.mxu0 %v3927
  %4068 = vmatpush2.msra.mxu0 %v3926
  %4069 = vmatprep.subr.mxu0 %v3925
  %4070 = vmatpush2.msra.mxu0 %v3924
  %4071 = vmatprep.mubr.f32.mxu0 %v3934
  %4072 = vmatmul.mubr.f32.gmra.mxu0 %v3721
  %v4073 = vpop.f32.mrf.mxu0
  %v4074 = vadd.f32 %v4003, %v4073
  %v4075 = vpop.f32.mrf.mxu0
  %v4076 = vadd.f32 %v4005, %v4075
  %4077 = vdwg.mxu0
  %v4079 = vsel %vm3932, %v1976, 0
  %4081 = vmatprep.subr.mxu0 %v3754
  %4082 = vmatpush1.msra.mxu0 %v3753
  %4083 = vmatprep.subr.mxu0 %v3752
  %4084 = vmatpush1.msra.mxu0 %v3751
  %4085 = vmatprep.subr.mxu0 %v3750
  %4086 = vmatpush1.msra.mxu0 %v3749
  %4087 = vmatprep.subr.mxu0 %v3748
  %4088 = vmatpush1.msra.mxu0 %v3747
  %4089 = vmatprep.subr.mxu0 %v3746
  %4090 = vmatpush1.msra.mxu0 %v3745
  %4091 = vmatprep.subr.mxu0 %v3744
  %4092 = vmatpush1.msra.mxu0 %v3743
  %4093 = vmatprep.subr.mxu0 %v3742
  %4094 = vmatpush1.msra.mxu0 %v3741
  %4095 = vmatprep.subr.mxu0 %v3740
  %4096 = vmatpush1.msra.mxu0 %v3739
  %4097 = vmatprep.subr.mxu0 %v3738
  %4098 = vmatpush1.msra.mxu0 %v3737
  %4099 = vmatprep.subr.mxu0 %v3736
  %4100 = vmatpush1.msra.mxu0 %v3735
  %4101 = vmatprep.subr.mxu0 %v3734
  %4102 = vmatpush1.msra.mxu0 %v3733
  %4103 = vmatprep.subr.mxu0 %v3732
  %4104 = vmatpush1.msra.mxu0 %v3731
  %4105 = vmatprep.subr.mxu0 %v3730
  %4106 = vmatpush1.msra.mxu0 %v3729
  %4107 = vmatprep.subr.mxu0 %v3728
  %4108 = vmatpush1.msra.mxu0 %v3727
  %4109 = vmatprep.subr.mxu0 %v3726
  %4110 = vmatpush1.msra.mxu0 %v3725
  %4111 = vmatprep.subr.mxu0 %v3724
  %4112 = vmatpush1.msra.mxu0 %v3723
  %4113 = vmatprep.subr.mxu0 %v3786
  %4114 = vmatpush2.msra.mxu0 %v3785
  %4115 = vmatprep.subr.mxu0 %v3784
  %4116 = vmatpush2.msra.mxu0 %v3783
  %4117 = vmatprep.subr.mxu0 %v3782
  %4118 = vmatpush2.msra.mxu0 %v3781
  %4119 = vmatprep.subr.mxu0 %v3780
  %4120 = vmatpush2.msra.mxu0 %v3779
  %4121 = vmatprep.subr.mxu0 %v3778
  %4122 = vmatpush2.msra.mxu0 %v3777
  %4123 = vmatprep.subr.mxu0 %v3776
  %4124 = vmatpush2.msra.mxu0 %v3775
  %4125 = vmatprep.subr.mxu0 %v3774
  %4126 = vmatpush2.msra.mxu0 %v3773
  %4127 = vmatprep.subr.mxu0 %v3772
  %4128 = vmatpush2.msra.mxu0 %v3771
  %4129 = vmatprep.subr.mxu0 %v3770
  %4130 = vmatpush2.msra.mxu0 %v3769
  %4131 = vmatprep.subr.mxu0 %v3768
  %4132 = vmatpush2.msra.mxu0 %v3767
  %4133 = vmatprep.subr.mxu0 %v3766
  %4134 = vmatpush2.msra.mxu0 %v3765
  %4135 = vmatprep.subr.mxu0 %v3764
  %4136 = vmatpush2.msra.mxu0 %v3763
  %4137 = vmatprep.subr.mxu0 %v3762
  %4138 = vmatpush2.msra.mxu0 %v3761
  %4139 = vmatprep.subr.mxu0 %v3760
  %4140 = vmatpush2.msra.mxu0 %v3759
  %4141 = vmatprep.subr.mxu0 %v3758
  %4142 = vmatpush2.msra.mxu0 %v3757
  %4143 = vmatprep.subr.mxu0 %v3756
  %4144 = vmatpush2.msra.mxu0 %v3755
  %4145 = vmatprep.mubr.f32.mxu0 %v1974
  %4146 = vmatmul.mubr.f32.gmra.mxu0 %v1973
  %v4147 = vpop.f32.mrf.mxu0
  %v4148 = vadd.f32 %v4074, %v4147
  %v4149 = vpop.f32.mrf.mxu0
  %v4150 = vadd.f32 %v4076, %v4149
  %4151 = vdwg.mxu0
  %4152 = vmatprep.subr.mxu0 %v3818
  %4153 = vmatpush1.msra.mxu0 %v3817
  %4154 = vmatprep.subr.mxu0 %v3816
  %4155 = vmatpush1.msra.mxu0 %v3815
  %4156 = vmatprep.subr.mxu0 %v3814
  %4157 = vmatpush1.msra.mxu0 %v3813
  %4158 = vmatprep.subr.mxu0 %v3812
  %4159 = vmatpush1.msra.mxu0 %v3811
  %4160 = vmatprep.subr.mxu0 %v3810
  %4161 = vmatpush1.msra.mxu0 %v3809
  %4162 = vmatprep.subr.mxu0 %v3808
  %4163 = vmatpush1.msra.mxu0 %v3807
  %4164 = vmatprep.subr.mxu0 %v3806
  %4165 = vmatpush1.msra.mxu0 %v3805
  %4166 = vmatprep.subr.mxu0 %v3804
  %4167 = vmatpush1.msra.mxu0 %v3803
  %4168 = vmatprep.subr.mxu0 %v3802
  %4169 = vmatpush1.msra.mxu0 %v3801
  %4170 = vmatprep.subr.mxu0 %v3800
  %4171 = vmatpush1.msra.mxu0 %v3799
  %4172 = vmatprep.subr.mxu0 %v3798
  %4173 = vmatpush1.msra.mxu0 %v3797
  %4174 = vmatprep.subr.mxu0 %v3796
  %4175 = vmatpush1.msra.mxu0 %v3795
  %4176 = vmatprep.subr.mxu0 %v3794
  %4177 = vmatpush1.msra.mxu0 %v3793
  %4178 = vmatprep.subr.mxu0 %v3792
  %4179 = vmatpush1.msra.mxu0 %v3791
  %4180 = vmatprep.subr.mxu0 %v3790
  %4181 = vmatpush1.msra.mxu0 %v3789
  %4182 = vmatprep.subr.mxu0 %v3788
  %4183 = vmatpush1.msra.mxu0 %v3787
  %4184 = vmatprep.subr.mxu0 0.0
  %4185 = vmatpush2.msra.mxu0 0.0
  %4186 = vmatprep.subr.mxu0 0.0
  %4187 = vmatpush2.msra.mxu0 0.0
  %4188 = vmatprep.subr.mxu0 0.0
  %4189 = vmatpush2.msra.mxu0 0.0
  %4190 = vmatprep.subr.mxu0 0.0
  %4191 = vmatpush2.msra.mxu0 0.0
  %4192 = vmatprep.subr.mxu0 0.0
  %4193 = vmatpush2.msra.mxu0 0.0
  %4194 = vmatprep.subr.mxu0 0.0
  %4195 = vmatpush2.msra.mxu0 0.0
  %4196 = vmatprep.subr.mxu0 0.0
  %4197 = vmatpush2.msra.mxu0 0.0
  %4198 = vmatprep.subr.mxu0 0.0
  %4199 = vmatpush2.msra.mxu0 0.0
  %4200 = vmatprep.subr.mxu0 0.0
  %4201 = vmatpush2.msra.mxu0 0.0
  %4202 = vmatprep.subr.mxu0 0.0
  %4203 = vmatpush2.msra.mxu0 0.0
  %4204 = vmatprep.subr.mxu0 0.0
  %4205 = vmatpush2.msra.mxu0 0.0
  %4206 = vmatprep.subr.mxu0 0.0
  %4207 = vmatpush2.msra.mxu0 0.0
  %4208 = vmatprep.subr.mxu0 %v3826
  %4209 = vmatpush2.msra.mxu0 %v3825
  %4210 = vmatprep.subr.mxu0 %v3824
  %4211 = vmatpush2.msra.mxu0 %v3823
  %4212 = vmatprep.subr.mxu0 %v3822
  %4213 = vmatpush2.msra.mxu0 %v3821
  %4214 = vmatprep.subr.mxu0 %v3820
  %4215 = vmatpush2.msra.mxu0 %v3819
  %4216 = vmatprep.mubr.f32.mxu0 %v4079
  %4217 = vmatmul.mubr.f32.gmra.mxu0 %v1975
  %v4218 = vpop.f32.mrf.mxu0
  %v4219 = vadd.f32 %v4148, %v4218
  %v4220 = vpop.f32.mrf.mxu0
  %v4221 = vadd.f32 %v4150, %v4220
  %4222 = vdwg.mxu0
  %s4223 = scalar_lea.vmem %s3, 1664
  %v4224 = vld [vmem:[%s4223] sm:$0xff]
  %v4225 = vld [vmem:[%s4223 + $0x8] sm:$0xff]
  %v4226 = vld [vmem:[%s4223 + $0x10] sm:$0xff]
  %v4227 = vld [vmem:[%s4223 + $0x18] sm:$0xff]
  %v4228 = vld [vmem:[%s4223 + $0x20] sm:$0xff]
  %v4229 = vld [vmem:[%s4223 + $0x28] sm:$0xff]
  %v4230 = vld [vmem:[%s4223 + $0x30] sm:$0xff]
  %v4231 = vld [vmem:[%s4223 + $0x38] sm:$0xff]
  %v4232 = vld [vmem:[%s4223 + $0x40] sm:$0xff]
  %v4233 = vld [vmem:[%s4223 + $0x48] sm:$0xff]
  %v4234 = vld [vmem:[%s4223 + $0x50] sm:$0xff]
  %v4235 = vld [vmem:[%s4223 + $0x58] sm:$0xff]
  %v4236 = vld [vmem:[%s4223 + $0x60] sm:$0xff]
  %v4237 = vld [vmem:[%s4223 + $0x68] sm:$0xff]
  %v4238 = vld [vmem:[%s4223 + $0x70] sm:$0xff]
  %v4239 = vld [vmem:[%s4223 + $0x78] sm:$0xff]
  %v4240 = vld [vmem:[%s4223 + $0x80] sm:$0xff]
  %v4241 = vld [vmem:[%s4223 + $0x88] sm:$0xff]
  %v4242 = vld [vmem:[%s4223 + $0x90] sm:$0xff]
  %v4243 = vld [vmem:[%s4223 + $0x98] sm:$0xff]
  %v4244 = vld [vmem:[%s4223 + $0xa0] sm:$0xff]
  %v4245 = vld [vmem:[%s4223 + $0xa8] sm:$0xff]
  %v4246 = vld [vmem:[%s4223 + $0xb0] sm:$0xff]
  %v4247 = vld [vmem:[%s4223 + $0xb8] sm:$0xff]
  %v4248 = vld [vmem:[%s4223 + $0xc0] sm:$0xff]
  %v4249 = vld [vmem:[%s4223 + $0xc8] sm:$0xff]
  %v4250 = vld [vmem:[%s4223 + $0xd0] sm:$0xff]
  %v4251 = vld [vmem:[%s4223 + $0xd8] sm:$0xff]
  %v4252 = vld [vmem:[%s4223 + $0xe0] sm:$0xff]
  %v4253 = vld [vmem:[%s4223 + $0xe8] sm:$0xff]
  %v4254 = vld [vmem:[%s4223 + $0xf0] sm:$0xff]
  %v4255 = vld [vmem:[%s4223 + $0xf8] sm:$0xff]
  %v4256 = vld [vmem:[%s4223 + $0x100] sm:$0xff]
  %v4257 = vld [vmem:[%s4223 + $0x108] sm:$0xff]
  %v4258 = vld [vmem:[%s4223 + $0x110] sm:$0xff]
  %v4259 = vld [vmem:[%s4223 + $0x118] sm:$0xff]
  %v4260 = vld [vmem:[%s4223 + $0x120] sm:$0xff]
  %v4261 = vld [vmem:[%s4223 + $0x128] sm:$0xff]
  %v4262 = vld [vmem:[%s4223 + $0x130] sm:$0xff]
  %v4263 = vld [vmem:[%s4223 + $0x138] sm:$0xff]
  %v4264 = vld [vmem:[%s4223 + $0x140] sm:$0xff]
  %v4265 = vld [vmem:[%s4223 + $0x148] sm:$0xff]
  %v4266 = vld [vmem:[%s4223 + $0x150] sm:$0xff]
  %v4267 = vld [vmem:[%s4223 + $0x158] sm:$0xff]
  %v4268 = vld [vmem:[%s4223 + $0x160] sm:$0xff]
  %v4269 = vld [vmem:[%s4223 + $0x168] sm:$0xff]
  %v4270 = vld [vmem:[%s4223 + $0x170] sm:$0xff]
  %v4271 = vld [vmem:[%s4223 + $0x178] sm:$0xff]
  %v4272 = vld [vmem:[%s4223 + $0x180] sm:$0xff]
  %v4273 = vld [vmem:[%s4223 + $0x188] sm:$0xff]
  %v4274 = vld [vmem:[%s4223 + $0x190] sm:$0xff]
  %v4275 = vld [vmem:[%s4223 + $0x198] sm:$0xff]
  %v4276 = vld [vmem:[%s4223 + $0x1a0] sm:$0xff]
  %v4277 = vld [vmem:[%s4223 + $0x1a8] sm:$0xff]
  %v4278 = vld [vmem:[%s4223 + $0x1b0] sm:$0xff]
  %v4279 = vld [vmem:[%s4223 + $0x1b8] sm:$0xff]
  %v4280 = vld [vmem:[%s4223 + $0x1c0] sm:$0xff]
  %v4281 = vld [vmem:[%s4223 + $0x1c8] sm:$0xff]
  %v4282 = vld [vmem:[%s4223 + $0x1d0] sm:$0xff]
  %v4283 = vld [vmem:[%s4223 + $0x1d8] sm:$0xff]
  %v4284 = vld [vmem:[%s4223 + $0x1e0] sm:$0xff]
  %v4285 = vld [vmem:[%s4223 + $0x1e8] sm:$0xff]
  %v4286 = vld [vmem:[%s4223 + $0x1f0] sm:$0xff]
  %v4287 = vld [vmem:[%s4223 + $0x1f8] sm:$0xff]
  %v4288 = vld [vmem:[%s4223 + $0x200] sm:$0xff]
  %v4289 = vld [vmem:[%s4223 + $0x208] sm:$0xff]
  %v4290 = vld [vmem:[%s4223 + $0x210] sm:$0xff]
  %v4291 = vld [vmem:[%s4223 + $0x218] sm:$0xff]
  %v4292 = vld [vmem:[%s4223 + $0x220] sm:$0xff]
  %v4293 = vld [vmem:[%s4223 + $0x228] sm:$0xff]
  %v4294 = vld [vmem:[%s4223 + $0x230] sm:$0xff]
  %v4295 = vld [vmem:[%s4223 + $0x238] sm:$0xff]
  %v4296 = vld [vmem:[%s4223 + $0x240] sm:$0xff]
  %v4297 = vld [vmem:[%s4223 + $0x248] sm:$0xff]
  %v4298 = vld [vmem:[%s4223 + $0x250] sm:$0xff]
  %v4299 = vld [vmem:[%s4223 + $0x258] sm:$0xff]
  %v4300 = vld [vmem:[%s4223 + $0x260] sm:$0xff]
  %v4301 = vld [vmem:[%s4223 + $0x268] sm:$0xff]
  %v4302 = vld [vmem:[%s4223 + $0x270] sm:$0xff]
  %v4303 = vld [vmem:[%s4223 + $0x278] sm:$0xff]
  %v4304 = vld [vmem:[%s4223 + $0x280] sm:$0xff]
  %v4305 = vld [vmem:[%s4223 + $0x288] sm:$0xff]
  %v4306 = vld [vmem:[%s4223 + $0x290] sm:$0xff]
  %v4307 = vld [vmem:[%s4223 + $0x298] sm:$0xff]
  %v4308 = vld [vmem:[%s4223 + $0x2a0] sm:$0xff]
  %v4309 = vld [vmem:[%s4223 + $0x2a8] sm:$0xff]
  %v4310 = vld [vmem:[%s4223 + $0x2b0] sm:$0xff]
  %v4311 = vld [vmem:[%s4223 + $0x2b8] sm:$0xff]
  %v4312 = vld [vmem:[%s4223 + $0x2c0] sm:$0xff]
  %v4313 = vld [vmem:[%s4223 + $0x2c8] sm:$0xff]
  %v4314 = vld [vmem:[%s4223 + $0x2d0] sm:$0xff]
  %v4315 = vld [vmem:[%s4223 + $0x2d8] sm:$0xff]
  %v4316 = vld [vmem:[%s4223 + $0x2e0] sm:$0xff]
  %v4317 = vld [vmem:[%s4223 + $0x2e8] sm:$0xff]
  %v4318 = vld [vmem:[%s4223 + $0x2f0] sm:$0xff]
  %v4319 = vld [vmem:[%s4223 + $0x2f8] sm:$0xff]
  %v4320 = vld [vmem:[%s4223 + $0x300] sm:$0xff]
  %v4321 = vld [vmem:[%s4223 + $0x308] sm:$0xff]
  %v4322 = vld [vmem:[%s4223 + $0x310] sm:$0xff]
  %v4323 = vld [vmem:[%s4223 + $0x318] sm:$0xff]
  %v4324 = vld [vmem:[%s4223 + $0x320] sm:$0xff]
  %v4325 = vld [vmem:[%s4223 + $0x328] sm:$0xff]
  %v4326 = vld [vmem:[%s4223 + $0x330] sm:$0xff]
  %v4327 = vld [vmem:[%s4223 + $0x338] sm:$0xff]
  %v4331 = vrot.slane %v1973, 1
  %v4332 = vrot.slane %v1974, 1
  %v4333 = vrot.slane %v1975, 1
  %v4334 = vrot.slane %v1976, 1
  %v4338 = vsel %vm3932, %v4334, 0
  %4340 = vmatprep.subr.mxu0 %v4255
  %4341 = vmatpush1.msra.mxu0 %v4254
  %4342 = vmatprep.subr.mxu0 %v4253
  %4343 = vmatpush1.msra.mxu0 %v4252
  %4344 = vmatprep.subr.mxu0 %v4251
  %4345 = vmatpush1.msra.mxu0 %v4250
  %4346 = vmatprep.subr.mxu0 %v4249
  %4347 = vmatpush1.msra.mxu0 %v4248
  %4348 = vmatprep.subr.mxu0 %v4247
  %4349 = vmatpush1.msra.mxu0 %v4246
  %4350 = vmatprep.subr.mxu0 %v4245
  %4351 = vmatpush1.msra.mxu0 %v4244
  %4352 = vmatprep.subr.mxu0 %v4243
  %4353 = vmatpush1.msra.mxu0 %v4242
  %4354 = vmatprep.subr.mxu0 %v4241
  %4355 = vmatpush1.msra.mxu0 %v4240
  %4356 = vmatprep.subr.mxu0 %v4239
  %4357 = vmatpush1.msra.mxu0 %v4238
  %4358 = vmatprep.subr.mxu0 %v4237
  %4359 = vmatpush1.msra.mxu0 %v4236
  %4360 = vmatprep.subr.mxu0 %v4235
  %4361 = vmatpush1.msra.mxu0 %v4234
  %4362 = vmatprep.subr.mxu0 %v4233
  %4363 = vmatpush1.msra.mxu0 %v4232
  %4364 = vmatprep.subr.mxu0 %v4231
  %4365 = vmatpush1.msra.mxu0 %v4230
  %4366 = vmatprep.subr.mxu0 %v4229
  %4367 = vmatpush1.msra.mxu0 %v4228
  %4368 = vmatprep.subr.mxu0 %v4227
  %4369 = vmatpush1.msra.mxu0 %v4226
  %4370 = vmatprep.subr.mxu0 %v4225
  %4371 = vmatpush1.msra.mxu0 %v4224
  %4372 = vmatprep.subr.mxu0 %v4287
  %4373 = vmatpush2.msra.mxu0 %v4286
  %4374 = vmatprep.subr.mxu0 %v4285
  %4375 = vmatpush2.msra.mxu0 %v4284
  %4376 = vmatprep.subr.mxu0 %v4283
  %4377 = vmatpush2.msra.mxu0 %v4282
  %4378 = vmatprep.subr.mxu0 %v4281
  %4379 = vmatpush2.msra.mxu0 %v4280
  %4380 = vmatprep.subr.mxu0 %v4279
  %4381 = vmatpush2.msra.mxu0 %v4278
  %4382 = vmatprep.subr.mxu0 %v4277
  %4383 = vmatpush2.msra.mxu0 %v4276
  %4384 = vmatprep.subr.mxu0 %v4275
  %4385 = vmatpush2.msra.mxu0 %v4274
  %4386 = vmatprep.subr.mxu0 %v4273
  %4387 = vmatpush2.msra.mxu0 %v4272
  %4388 = vmatprep.subr.mxu0 %v4271
  %4389 = vmatpush2.msra.mxu0 %v4270
  %4390 = vmatprep.subr.mxu0 %v4269
  %4391 = vmatpush2.msra.mxu0 %v4268
  %4392 = vmatprep.subr.mxu0 %v4267
  %4393 = vmatpush2.msra.mxu0 %v4266
  %4394 = vmatprep.subr.mxu0 %v4265
  %4395 = vmatpush2.msra.mxu0 %v4264
  %4396 = vmatprep.subr.mxu0 %v4263
  %4397 = vmatpush2.msra.mxu0 %v4262
  %4398 = vmatprep.subr.mxu0 %v4261
  %4399 = vmatpush2.msra.mxu0 %v4260
  %4400 = vmatprep.subr.mxu0 %v4259
  %4401 = vmatpush2.msra.mxu0 %v4258
  %4402 = vmatprep.subr.mxu0 %v4257
  %4403 = vmatpush2.msra.mxu0 %v4256
  %4404 = vmatprep.mubr.f32.mxu0 %v4332
  %4405 = vmatmul.mubr.f32.gmra.mxu0 %v4331
  %v4406 = vpop.f32.mrf.mxu0
  %v4407 = vadd.f32 0.0, %v4406
  %v4408 = vpop.f32.mrf.mxu0
  %v4409 = vadd.f32 0.0, %v4408
  %4410 = vdwg.mxu0
  %4411 = vmatprep.subr.mxu0 %v4319
  %4412 = vmatpush1.msra.mxu0 %v4318
  %4413 = vmatprep.subr.mxu0 %v4317
  %4414 = vmatpush1.msra.mxu0 %v4316
  %4415 = vmatprep.subr.mxu0 %v4315
  %4416 = vmatpush1.msra.mxu0 %v4314
  %4417 = vmatprep.subr.mxu0 %v4313
  %4418 = vmatpush1.msra.mxu0 %v4312
  %4419 = vmatprep.subr.mxu0 %v4311
  %4420 = vmatpush1.msra.mxu0 %v4310
  %4421 = vmatprep.subr.mxu0 %v4309
  %4422 = vmatpush1.msra.mxu0 %v4308
  %4423 = vmatprep.subr.mxu0 %v4307
  %4424 = vmatpush1.msra.mxu0 %v4306
  %4425 = vmatprep.subr.mxu0 %v4305
  %4426 = vmatpush1.msra.mxu0 %v4304
  %4427 = vmatprep.subr.mxu0 %v4303
  %4428 = vmatpush1.msra.mxu0 %v4302
  %4429 = vmatprep.subr.mxu0 %v4301
  %4430 = vmatpush1.msra.mxu0 %v4300
  %4431 = vmatprep.subr.mxu0 %v4299
  %4432 = vmatpush1.msra.mxu0 %v4298
  %4433 = vmatprep.subr.mxu0 %v4297
  %4434 = vmatpush1.msra.mxu0 %v4296
  %4435 = vmatprep.subr.mxu0 %v4295
  %4436 = vmatpush1.msra.mxu0 %v4294
  %4437 = vmatprep.subr.mxu0 %v4293
  %4438 = vmatpush1.msra.mxu0 %v4292
  %4439 = vmatprep.subr.mxu0 %v4291
  %4440 = vmatpush1.msra.mxu0 %v4290
  %4441 = vmatprep.subr.mxu0 %v4289
  %4442 = vmatpush1.msra.mxu0 %v4288
  %4443 = vmatprep.subr.mxu0 0.0
  %4444 = vmatpush2.msra.mxu0 0.0
  %4445 = vmatprep.subr.mxu0 0.0
  %4446 = vmatpush2.msra.mxu0 0.0
  %4447 = vmatprep.subr.mxu0 0.0
  %4448 = vmatpush2.msra.mxu0 0.0
  %4449 = vmatprep.subr.mxu0 0.0
  %4450 = vmatpush2.msra.mxu0 0.0
  %4451 = vmatprep.subr.mxu0 0.0
  %4452 = vmatpush2.msra.mxu0 0.0
  %4453 = vmatprep.subr.mxu0 0.0
  %4454 = vmatpush2.msra.mxu0 0.0
  %4455 = vmatprep.subr.mxu0 0.0
  %4456 = vmatpush2.msra.mxu0 0.0
  %4457 = vmatprep.subr.mxu0 0.0
  %4458 = vmatpush2.msra.mxu0 0.0
  %4459 = vmatprep.subr.mxu0 0.0
  %4460 = vmatpush2.msra.mxu0 0.0
  %4461 = vmatprep.subr.mxu0 0.0
  %4462 = vmatpush2.msra.mxu0 0.0
  %4463 = vmatprep.subr.mxu0 0.0
  %4464 = vmatpush2.msra.mxu0 0.0
  %4465 = vmatprep.subr.mxu0 0.0
  %4466 = vmatpush2.msra.mxu0 0.0
  %4467 = vmatprep.subr.mxu0 %v4327
  %4468 = vmatpush2.msra.mxu0 %v4326
  %4469 = vmatprep.subr.mxu0 %v4325
  %4470 = vmatpush2.msra.mxu0 %v4324
  %4471 = vmatprep.subr.mxu0 %v4323
  %4472 = vmatpush2.msra.mxu0 %v4322
  %4473 = vmatprep.subr.mxu0 %v4321
  %4474 = vmatpush2.msra.mxu0 %v4320
  %4475 = vmatprep.mubr.f32.mxu0 %v4338
  %4476 = vmatmul.mubr.f32.gmra.mxu0 %v4333
  %v4477 = vpop.f32.mrf.mxu0
  %v4478 = vadd.f32 %v4407, %v4477
  %v4479 = vpop.f32.mrf.mxu0
  %v4480 = vadd.f32 %v4409, %v4479
  %4481 = vdwg.mxu0
  %v4482 = vadd.f32 %v4219, %v4478
  %v4483 = vadd.f32 %v4221, %v4480
  %v4485 = vlaneseq
  %v4486 = vshrl.u32 %v4485, 7
  %v4487 = vsub.s32 0, %v4486
  %v4488 = vrot.slane %v21, %v4487
  %v4489 = vlaneseq
  %v4490 = vshrl.u32 %v4489, 7
  %v4491 = vsub.s32 1, %v4490
  %v4492 = vrot.slane %v21, %v4491
  %v4495 = vadd.f32 %v4482, %v4488
  %v4496 = vadd.f32 %v4483, %v4492
  %4497 = vst [vmem:[%s5] sm:$0x3f] %v4495
  %vm4498 = vcmask 521216
  %4499 = vst.msk [vmem:[%s5 + $0x8] sm:$0x3f] %vm4498, %v4496
  %s4500 = scalar_lea.vmem %s0, 32
  %v4501 = vld [vmem:[%s4500] sm:$0x7f]
  %s4502 = scalar_lea.vmem %s0, 40
  %v4503 = vld [vmem:[%s4502] sm:$0x7f]
  %s4504 = scalar_lea.vmem %s0, 48
  %v4505 = vld [vmem:[%s4504] sm:$0x7f]
  %s4506 = scalar_lea.vmem %s0, 56
  %v4507 = vld [vmem:[%s4506] sm:$0x7f]
  %v4508 = vld [vmem:[%s1] sm:$0xff]
  %v4509 = vld [vmem:[%s1 + $0x8] sm:$0xff]
  %v4510 = vld [vmem:[%s1 + $0x10] sm:$0xff]
  %v4511 = vld [vmem:[%s1 + $0x18] sm:$0xff]
  %v4512 = vld [vmem:[%s1 + $0x20] sm:$0xff]
  %v4513 = vld [vmem:[%s1 + $0x28] sm:$0xff]
  %v4514 = vld [vmem:[%s1 + $0x30] sm:$0xff]
  %v4515 = vld [vmem:[%s1 + $0x38] sm:$0xff]
  %v4516 = vld [vmem:[%s1 + $0x40] sm:$0xff]
  %v4517 = vld [vmem:[%s1 + $0x48] sm:$0xff]
  %v4518 = vld [vmem:[%s1 + $0x50] sm:$0xff]
  %v4519 = vld [vmem:[%s1 + $0x58] sm:$0xff]
  %v4520 = vld [vmem:[%s1 + $0x60] sm:$0xf]
  %v4521 = vld [vmem:[%s1 + $0x68] sm:$0xf]
  %v4522 = vld [vmem:[%s1 + $0x70] sm:$0xf]
  %v4523 = vld [vmem:[%s1 + $0x78] sm:$0xf]
  %v4524 = vld [vmem:[%s45] sm:$0xff]
  %v4525 = vld [vmem:[%s45 + $0x8] sm:$0xff]
  %v4526 = vld [vmem:[%s45 + $0x10] sm:$0xff]
  %v4527 = vld [vmem:[%s45 + $0x18] sm:$0xff]
  %v4528 = vld [vmem:[%s45 + $0x20] sm:$0xff]
  %v4529 = vld [vmem:[%s45 + $0x28] sm:$0xff]
  %v4530 = vld [vmem:[%s45 + $0x30] sm:$0xff]
  %v4531 = vld [vmem:[%s45 + $0x38] sm:$0xff]
  %v4532 = vld [vmem:[%s45 + $0x40] sm:$0xff]
  %v4533 = vld [vmem:[%s45 + $0x48] sm:$0xff]
  %v4534 = vld [vmem:[%s45 + $0x50] sm:$0xff]
  %v4535 = vld [vmem:[%s45 + $0x58] sm:$0xff]
  %v4536 = vld [vmem:[%s45 + $0x60] sm:$0xf]
  %v4537 = vld [vmem:[%s45 + $0x68] sm:$0xf]
  %v4538 = vld [vmem:[%s45 + $0x70] sm:$0xf]
  %v4539 = vld [vmem:[%s45 + $0x78] sm:$0xf]
  %v4541 = vsel %vm62, %v4503, 0
  %v4544 = vsel %vm66, %v4536, 0
  %v4547 = vsel %vm66, %v4537, 0
  %v4550 = vsel %vm66, %v4538, 0
  %v4553 = vsel %vm66, %v4539, 0
  %4555 = vmatprep.subr.mxu0 0.0
  %4556 = vmatpush1.msra.mxu0 0.0
  %4557 = vmatprep.subr.mxu0 0.0
  %4558 = vmatpush1.msra.mxu0 0.0
  %4559 = vmatprep.subr.mxu0 0.0
  %4560 = vmatpush1.msra.mxu0 0.0
  %4561 = vmatprep.subr.mxu0 0.0
  %4562 = vmatpush1.msra.mxu0 0.0
  %4563 = vmatprep.subr.mxu0 0.0
  %4564 = vmatpush1.msra.mxu0 0.0
  %4565 = vmatprep.subr.mxu0 0.0
  %4566 = vmatpush1.msra.mxu0 0.0
  %4567 = vmatprep.subr.mxu0 0.0
  %4568 = vmatpush1.msra.mxu0 0.0
  %4569 = vmatprep.subr.mxu0 0.0
  %4570 = vmatpush1.msra.mxu0 0.0
  %4571 = vmatprep.subr.mxu0 0.0
  %4572 = vmatpush1.msra.mxu0 0.0
  %4573 = vmatprep.subr.mxu0 0.0
  %4574 = vmatpush1.msra.mxu0 0.0
  %4575 = vmatprep.subr.mxu0 0.0
  %4576 = vmatpush1.msra.mxu0 0.0
  %4577 = vmatprep.subr.mxu0 0.0
  %4578 = vmatpush1.msra.mxu0 0.0
  %4579 = vmatprep.subr.mxu0 %v4547
  %4580 = vmatpush1.msra.mxu0 %v4544
  %4581 = vmatprep.subr.mxu0 %v4533
  %4582 = vmatpush1.msra.mxu0 %v4532
  %4583 = vmatprep.subr.mxu0 %v4529
  %4584 = vmatpush1.msra.mxu0 %v4528
  %4585 = vmatprep.subr.mxu0 %v4525
  %4586 = vmatpush1.msra.mxu0 %v4524
  %4587 = vmatprep.subr.mxu0 0.0
  %4588 = vmatpush2.msra.mxu0 0.0
  %4589 = vmatprep.subr.mxu0 0.0
  %4590 = vmatpush2.msra.mxu0 0.0
  %4591 = vmatprep.subr.mxu0 0.0
  %4592 = vmatpush2.msra.mxu0 0.0
  %4593 = vmatprep.subr.mxu0 0.0
  %4594 = vmatpush2.msra.mxu0 0.0
  %4595 = vmatprep.subr.mxu0 0.0
  %4596 = vmatpush2.msra.mxu0 0.0
  %4597 = vmatprep.subr.mxu0 0.0
  %4598 = vmatpush2.msra.mxu0 0.0
  %4599 = vmatprep.subr.mxu0 0.0
  %4600 = vmatpush2.msra.mxu0 0.0
  %4601 = vmatprep.subr.mxu0 0.0
  %4602 = vmatpush2.msra.mxu0 0.0
  %4603 = vmatprep.subr.mxu0 0.0
  %4604 = vmatpush2.msra.mxu0 0.0
  %4605 = vmatprep.subr.mxu0 0.0
  %4606 = vmatpush2.msra.mxu0 0.0
  %4607 = vmatprep.subr.mxu0 0.0
  %4608 = vmatpush2.msra.mxu0 0.0
  %4609 = vmatprep.subr.mxu0 0.0
  %4610 = vmatpush2.msra.mxu0 0.0
  %4611 = vmatprep.subr.mxu0 0.0
  %4612 = vmatpush2.msra.mxu0 0.0
  %4613 = vmatprep.subr.mxu0 0.0
  %4614 = vmatpush2.msra.mxu0 0.0
  %4615 = vmatprep.subr.mxu0 0.0
  %4616 = vmatpush2.msra.mxu0 0.0
  %4617 = vmatprep.subr.mxu0 0.0
  %4618 = vmatpush2.msra.mxu0 0.0
  %4619 = vmatprep.mubr.f32.mxu0 0.0
  %4620 = vmatmul.mubr.f32.gmra.mxu0 %v4541
  %v4621 = vpop.f32.mrf.mxu0
  %v4622 = vadd.f32 0.0, %v4621
  %v4623 = vpop.f32.mrf.mxu0
  %v4624 = vadd.f32 0.0, %v4623
  %4625 = vdwg.mxu0
  %4626 = vmatprep.subr.mxu0 0.0
  %4627 = vmatpush1.msra.mxu0 0.0
  %4628 = vmatprep.subr.mxu0 0.0
  %4629 = vmatpush1.msra.mxu0 0.0
  %4630 = vmatprep.subr.mxu0 0.0
  %4631 = vmatpush1.msra.mxu0 0.0
  %4632 = vmatprep.subr.mxu0 0.0
  %4633 = vmatpush1.msra.mxu0 0.0
  %4634 = vmatprep.subr.mxu0 0.0
  %4635 = vmatpush1.msra.mxu0 0.0
  %4636 = vmatprep.subr.mxu0 0.0
  %4637 = vmatpush1.msra.mxu0 0.0
  %4638 = vmatprep.subr.mxu0 0.0
  %4639 = vmatpush1.msra.mxu0 0.0
  %4640 = vmatprep.subr.mxu0 0.0
  %4641 = vmatpush1.msra.mxu0 0.0
  %4642 = vmatprep.subr.mxu0 0.0
  %4643 = vmatpush1.msra.mxu0 0.0
  %4644 = vmatprep.subr.mxu0 0.0
  %4645 = vmatpush1.msra.mxu0 0.0
  %4646 = vmatprep.subr.mxu0 0.0
  %4647 = vmatpush1.msra.mxu0 0.0
  %4648 = vmatprep.subr.mxu0 0.0
  %4649 = vmatpush1.msra.mxu0 0.0
  %4650 = vmatprep.subr.mxu0 %v4553
  %4651 = vmatpush1.msra.mxu0 %v4550
  %4652 = vmatprep.subr.mxu0 %v4535
  %4653 = vmatpush1.msra.mxu0 %v4534
  %4654 = vmatprep.subr.mxu0 %v4531
  %4655 = vmatpush1.msra.mxu0 %v4530
  %4656 = vmatprep.subr.mxu0 %v4527
  %4657 = vmatpush1.msra.mxu0 %v4526
  %4658 = vmatprep.subr.mxu0 0.0
  %4659 = vmatpush2.msra.mxu0 0.0
  %4660 = vmatprep.subr.mxu0 0.0
  %4661 = vmatpush2.msra.mxu0 0.0
  %4662 = vmatprep.subr.mxu0 0.0
  %4663 = vmatpush2.msra.mxu0 0.0
  %4664 = vmatprep.subr.mxu0 0.0
  %4665 = vmatpush2.msra.mxu0 0.0
  %4666 = vmatprep.subr.mxu0 0.0
  %4667 = vmatpush2.msra.mxu0 0.0
  %4668 = vmatprep.subr.mxu0 0.0
  %4669 = vmatpush2.msra.mxu0 0.0
  %4670 = vmatprep.subr.mxu0 0.0
  %4671 = vmatpush2.msra.mxu0 0.0
  %4672 = vmatprep.subr.mxu0 0.0
  %4673 = vmatpush2.msra.mxu0 0.0
  %4674 = vmatprep.subr.mxu0 0.0
  %4675 = vmatpush2.msra.mxu0 0.0
  %4676 = vmatprep.subr.mxu0 0.0
  %4677 = vmatpush2.msra.mxu0 0.0
  %4678 = vmatprep.subr.mxu0 0.0
  %4679 = vmatpush2.msra.mxu0 0.0
  %4680 = vmatprep.subr.mxu0 0.0
  %4681 = vmatpush2.msra.mxu0 0.0
  %4682 = vmatprep.subr.mxu0 0.0
  %4683 = vmatpush2.msra.mxu0 0.0
  %4684 = vmatprep.subr.mxu0 0.0
  %4685 = vmatpush2.msra.mxu0 0.0
  %4686 = vmatprep.subr.mxu0 0.0
  %4687 = vmatpush2.msra.mxu0 0.0
  %4688 = vmatprep.subr.mxu0 0.0
  %4689 = vmatpush2.msra.mxu0 0.0
  %4690 = vmatprep.mubr.f32.mxu0 0.0
  %4691 = vmatmul.mubr.f32.gmra.mxu0 %v4541
  %v4692 = vpop.f32.mrf.mxu0
  %v4693 = vadd.f32 0.0, %v4692
  %v4694 = vpop.f32.mrf.mxu0
  %v4695 = vadd.f32 0.0, %v4694
  %4696 = vdwg.mxu0
  %v4698 = vsel %vm62, %v4501, 0
  %v4701 = vsel %vm66, %v4520, 0
  %v4704 = vsel %vm66, %v4521, 0
  %v4707 = vsel %vm66, %v4522, 0
  %v4710 = vsel %vm66, %v4523, 0
  %4712 = vmatprep.subr.mxu0 0.0
  %4713 = vmatpush1.msra.mxu0 0.0
  %4714 = vmatprep.subr.mxu0 0.0
  %4715 = vmatpush1.msra.mxu0 0.0
  %4716 = vmatprep.subr.mxu0 0.0
  %4717 = vmatpush1.msra.mxu0 0.0
  %4718 = vmatprep.subr.mxu0 0.0
  %4719 = vmatpush1.msra.mxu0 0.0
  %4720 = vmatprep.subr.mxu0 0.0
  %4721 = vmatpush1.msra.mxu0 0.0
  %4722 = vmatprep.subr.mxu0 0.0
  %4723 = vmatpush1.msra.mxu0 0.0
  %4724 = vmatprep.subr.mxu0 0.0
  %4725 = vmatpush1.msra.mxu0 0.0
  %4726 = vmatprep.subr.mxu0 0.0
  %4727 = vmatpush1.msra.mxu0 0.0
  %4728 = vmatprep.subr.mxu0 0.0
  %4729 = vmatpush1.msra.mxu0 0.0
  %4730 = vmatprep.subr.mxu0 0.0
  %4731 = vmatpush1.msra.mxu0 0.0
  %4732 = vmatprep.subr.mxu0 0.0
  %4733 = vmatpush1.msra.mxu0 0.0
  %4734 = vmatprep.subr.mxu0 0.0
  %4735 = vmatpush1.msra.mxu0 0.0
  %4736 = vmatprep.subr.mxu0 %v4704
  %4737 = vmatpush1.msra.mxu0 %v4701
  %4738 = vmatprep.subr.mxu0 %v4517
  %4739 = vmatpush1.msra.mxu0 %v4516
  %4740 = vmatprep.subr.mxu0 %v4513
  %4741 = vmatpush1.msra.mxu0 %v4512
  %4742 = vmatprep.subr.mxu0 %v4509
  %4743 = vmatpush1.msra.mxu0 %v4508
  %4744 = vmatprep.subr.mxu0 0.0
  %4745 = vmatpush2.msra.mxu0 0.0
  %4746 = vmatprep.subr.mxu0 0.0
  %4747 = vmatpush2.msra.mxu0 0.0
  %4748 = vmatprep.subr.mxu0 0.0
  %4749 = vmatpush2.msra.mxu0 0.0
  %4750 = vmatprep.subr.mxu0 0.0
  %4751 = vmatpush2.msra.mxu0 0.0
  %4752 = vmatprep.subr.mxu0 0.0
  %4753 = vmatpush2.msra.mxu0 0.0
  %4754 = vmatprep.subr.mxu0 0.0
  %4755 = vmatpush2.msra.mxu0 0.0
  %4756 = vmatprep.subr.mxu0 0.0
  %4757 = vmatpush2.msra.mxu0 0.0
  %4758 = vmatprep.subr.mxu0 0.0
  %4759 = vmatpush2.msra.mxu0 0.0
  %4760 = vmatprep.subr.mxu0 0.0
  %4761 = vmatpush2.msra.mxu0 0.0
  %4762 = vmatprep.subr.mxu0 0.0
  %4763 = vmatpush2.msra.mxu0 0.0
  %4764 = vmatprep.subr.mxu0 0.0
  %4765 = vmatpush2.msra.mxu0 0.0
  %4766 = vmatprep.subr.mxu0 0.0
  %4767 = vmatpush2.msra.mxu0 0.0
  %4768 = vmatprep.subr.mxu0 0.0
  %4769 = vmatpush2.msra.mxu0 0.0
  %4770 = vmatprep.subr.mxu0 0.0
  %4771 = vmatpush2.msra.mxu0 0.0
  %4772 = vmatprep.subr.mxu0 0.0
  %4773 = vmatpush2.msra.mxu0 0.0
  %4774 = vmatprep.subr.mxu0 0.0
  %4775 = vmatpush2.msra.mxu0 0.0
  %4776 = vmatprep.mubr.f32.mxu0 0.0
  %4777 = vmatmul.mubr.f32.gmra.mxu0 %v4698
  %v4778 = vpop.f32.mrf.mxu0
  %v4779 = vadd.f32 %v4622, %v4778
  %v4780 = vpop.f32.mrf.mxu0
  %v4781 = vadd.f32 %v4624, %v4780
  %4782 = vdwg.mxu0
  %4783 = vmatprep.subr.mxu0 0.0
  %4784 = vmatpush1.msra.mxu0 0.0
  %4785 = vmatprep.subr.mxu0 0.0
  %4786 = vmatpush1.msra.mxu0 0.0
  %4787 = vmatprep.subr.mxu0 0.0
  %4788 = vmatpush1.msra.mxu0 0.0
  %4789 = vmatprep.subr.mxu0 0.0
  %4790 = vmatpush1.msra.mxu0 0.0
  %4791 = vmatprep.subr.mxu0 0.0
  %4792 = vmatpush1.msra.mxu0 0.0
  %4793 = vmatprep.subr.mxu0 0.0
  %4794 = vmatpush1.msra.mxu0 0.0
  %4795 = vmatprep.subr.mxu0 0.0
  %4796 = vmatpush1.msra.mxu0 0.0
  %4797 = vmatprep.subr.mxu0 0.0
  %4798 = vmatpush1.msra.mxu0 0.0
  %4799 = vmatprep.subr.mxu0 0.0
  %4800 = vmatpush1.msra.mxu0 0.0
  %4801 = vmatprep.subr.mxu0 0.0
  %4802 = vmatpush1.msra.mxu0 0.0
  %4803 = vmatprep.subr.mxu0 0.0
  %4804 = vmatpush1.msra.mxu0 0.0
  %4805 = vmatprep.subr.mxu0 0.0
  %4806 = vmatpush1.msra.mxu0 0.0
  %4807 = vmatprep.subr.mxu0 %v4710
  %4808 = vmatpush1.msra.mxu0 %v4707
  %4809 = vmatprep.subr.mxu0 %v4519
  %4810 = vmatpush1.msra.mxu0 %v4518
  %4811 = vmatprep.subr.mxu0 %v4515
  %4812 = vmatpush1.msra.mxu0 %v4514
  %4813 = vmatprep.subr.mxu0 %v4511
  %4814 = vmatpush1.msra.mxu0 %v4510
  %4815 = vmatprep.subr.mxu0 0.0
  %4816 = vmatpush2.msra.mxu0 0.0
  %4817 = vmatprep.subr.mxu0 0.0
  %4818 = vmatpush2.msra.mxu0 0.0
  %4819 = vmatprep.subr.mxu0 0.0
  %4820 = vmatpush2.msra.mxu0 0.0
  %4821 = vmatprep.subr.mxu0 0.0
  %4822 = vmatpush2.msra.mxu0 0.0
  %4823 = vmatprep.subr.mxu0 0.0
  %4824 = vmatpush2.msra.mxu0 0.0
  %4825 = vmatprep.subr.mxu0 0.0
  %4826 = vmatpush2.msra.mxu0 0.0
  %4827 = vmatprep.subr.mxu0 0.0
  %4828 = vmatpush2.msra.mxu0 0.0
  %4829 = vmatprep.subr.mxu0 0.0
  %4830 = vmatpush2.msra.mxu0 0.0
  %4831 = vmatprep.subr.mxu0 0.0
  %4832 = vmatpush2.msra.mxu0 0.0
  %4833 = vmatprep.subr.mxu0 0.0
  %4834 = vmatpush2.msra.mxu0 0.0
  %4835 = vmatprep.subr.mxu0 0.0
  %4836 = vmatpush2.msra.mxu0 0.0
  %4837 = vmatprep.subr.mxu0 0.0
  %4838 = vmatpush2.msra.mxu0 0.0
  %4839 = vmatprep.subr.mxu0 0.0
  %4840 = vmatpush2.msra.mxu0 0.0
  %4841 = vmatprep.subr.mxu0 0.0
  %4842 = vmatpush2.msra.mxu0 0.0
  %4843 = vmatprep.subr.mxu0 0.0
  %4844 = vmatpush2.msra.mxu0 0.0
  %4845 = vmatprep.subr.mxu0 0.0
  %4846 = vmatpush2.msra.mxu0 0.0
  %4847 = vmatprep.mubr.f32.mxu0 0.0
  %4848 = vmatmul.mubr.f32.gmra.mxu0 %v4698
  %v4849 = vpop.f32.mrf.mxu0
  %v4850 = vadd.f32 %v4693, %v4849
  %v4851 = vpop.f32.mrf.mxu0
  %v4852 = vadd.f32 %v4695, %v4851
  %4853 = vdwg.mxu0
  %v4854 = vld [vmem:[%s378] sm:$0xff]
  %v4855 = vld [vmem:[%s378 + $0x8] sm:$0xff]
  %v4856 = vld [vmem:[%s378 + $0x10] sm:$0xff]
  %v4857 = vld [vmem:[%s378 + $0x18] sm:$0xff]
  %v4858 = vld [vmem:[%s378 + $0x20] sm:$0xff]
  %v4859 = vld [vmem:[%s378 + $0x28] sm:$0xff]
  %v4860 = vld [vmem:[%s378 + $0x30] sm:$0xff]
  %v4861 = vld [vmem:[%s378 + $0x38] sm:$0xff]
  %v4862 = vld [vmem:[%s378 + $0x40] sm:$0xff]
  %v4863 = vld [vmem:[%s378 + $0x48] sm:$0xff]
  %v4864 = vld [vmem:[%s378 + $0x50] sm:$0xff]
  %v4865 = vld [vmem:[%s378 + $0x58] sm:$0xff]
  %v4866 = vld [vmem:[%s378 + $0x60] sm:$0xf]
  %v4867 = vld [vmem:[%s378 + $0x68] sm:$0xf]
  %v4868 = vld [vmem:[%s378 + $0x70] sm:$0xf]
  %v4869 = vld [vmem:[%s378 + $0x78] sm:$0xf]
  %v4871 = vsel %vm62, %v4505, 0
  %v4874 = vsel %vm66, %v4866, 0
  %v4877 = vsel %vm66, %v4867, 0
  %v4880 = vsel %vm66, %v4868, 0
  %v4883 = vsel %vm66, %v4869, 0
  %4885 = vmatprep.subr.mxu0 0.0
  %4886 = vmatpush1.msra.mxu0 0.0
  %4887 = vmatprep.subr.mxu0 0.0
  %4888 = vmatpush1.msra.mxu0 0.0
  %4889 = vmatprep.subr.mxu0 0.0
  %4890 = vmatpush1.msra.mxu0 0.0
  %4891 = vmatprep.subr.mxu0 0.0
  %4892 = vmatpush1.msra.mxu0 0.0
  %4893 = vmatprep.subr.mxu0 0.0
  %4894 = vmatpush1.msra.mxu0 0.0
  %4895 = vmatprep.subr.mxu0 0.0
  %4896 = vmatpush1.msra.mxu0 0.0
  %4897 = vmatprep.subr.mxu0 0.0
  %4898 = vmatpush1.msra.mxu0 0.0
  %4899 = vmatprep.subr.mxu0 0.0
  %4900 = vmatpush1.msra.mxu0 0.0
  %4901 = vmatprep.subr.mxu0 0.0
  %4902 = vmatpush1.msra.mxu0 0.0
  %4903 = vmatprep.subr.mxu0 0.0
  %4904 = vmatpush1.msra.mxu0 0.0
  %4905 = vmatprep.subr.mxu0 0.0
  %4906 = vmatpush1.msra.mxu0 0.0
  %4907 = vmatprep.subr.mxu0 0.0
  %4908 = vmatpush1.msra.mxu0 0.0
  %4909 = vmatprep.subr.mxu0 %v4877
  %4910 = vmatpush1.msra.mxu0 %v4874
  %4911 = vmatprep.subr.mxu0 %v4863
  %4912 = vmatpush1.msra.mxu0 %v4862
  %4913 = vmatprep.subr.mxu0 %v4859
  %4914 = vmatpush1.msra.mxu0 %v4858
  %4915 = vmatprep.subr.mxu0 %v4855
  %4916 = vmatpush1.msra.mxu0 %v4854
  %4917 = vmatprep.subr.mxu0 0.0
  %4918 = vmatpush2.msra.mxu0 0.0
  %4919 = vmatprep.subr.mxu0 0.0
  %4920 = vmatpush2.msra.mxu0 0.0
  %4921 = vmatprep.subr.mxu0 0.0
  %4922 = vmatpush2.msra.mxu0 0.0
  %4923 = vmatprep.subr.mxu0 0.0
  %4924 = vmatpush2.msra.mxu0 0.0
  %4925 = vmatprep.subr.mxu0 0.0
  %4926 = vmatpush2.msra.mxu0 0.0
  %4927 = vmatprep.subr.mxu0 0.0
  %4928 = vmatpush2.msra.mxu0 0.0
  %4929 = vmatprep.subr.mxu0 0.0
  %4930 = vmatpush2.msra.mxu0 0.0
  %4931 = vmatprep.subr.mxu0 0.0
  %4932 = vmatpush2.msra.mxu0 0.0
  %4933 = vmatprep.subr.mxu0 0.0
  %4934 = vmatpush2.msra.mxu0 0.0
  %4935 = vmatprep.subr.mxu0 0.0
  %4936 = vmatpush2.msra.mxu0 0.0
  %4937 = vmatprep.subr.mxu0 0.0
  %4938 = vmatpush2.msra.mxu0 0.0
  %4939 = vmatprep.subr.mxu0 0.0
  %4940 = vmatpush2.msra.mxu0 0.0
  %4941 = vmatprep.subr.mxu0 0.0
  %4942 = vmatpush2.msra.mxu0 0.0
  %4943 = vmatprep.subr.mxu0 0.0
  %4944 = vmatpush2.msra.mxu0 0.0
  %4945 = vmatprep.subr.mxu0 0.0
  %4946 = vmatpush2.msra.mxu0 0.0
  %4947 = vmatprep.subr.mxu0 0.0
  %4948 = vmatpush2.msra.mxu0 0.0
  %4949 = vmatprep.mubr.f32.mxu0 0.0
  %4950 = vmatmul.mubr.f32.gmra.mxu0 %v4871
  %v4951 = vpop.f32.mrf.mxu0
  %v4952 = vadd.f32 0.0, %v4951
  %v4953 = vpop.f32.mrf.mxu0
  %v4954 = vadd.f32 0.0, %v4953
  %4955 = vdwg.mxu0
  %4956 = vmatprep.subr.mxu0 0.0
  %4957 = vmatpush1.msra.mxu0 0.0
  %4958 = vmatprep.subr.mxu0 0.0
  %4959 = vmatpush1.msra.mxu0 0.0
  %4960 = vmatprep.subr.mxu0 0.0
  %4961 = vmatpush1.msra.mxu0 0.0
  %4962 = vmatprep.subr.mxu0 0.0
  %4963 = vmatpush1.msra.mxu0 0.0
  %4964 = vmatprep.subr.mxu0 0.0
  %4965 = vmatpush1.msra.mxu0 0.0
  %4966 = vmatprep.subr.mxu0 0.0
  %4967 = vmatpush1.msra.mxu0 0.0
  %4968 = vmatprep.subr.mxu0 0.0
  %4969 = vmatpush1.msra.mxu0 0.0
  %4970 = vmatprep.subr.mxu0 0.0
  %4971 = vmatpush1.msra.mxu0 0.0
  %4972 = vmatprep.subr.mxu0 0.0
  %4973 = vmatpush1.msra.mxu0 0.0
  %4974 = vmatprep.subr.mxu0 0.0
  %4975 = vmatpush1.msra.mxu0 0.0
  %4976 = vmatprep.subr.mxu0 0.0
  %4977 = vmatpush1.msra.mxu0 0.0
  %4978 = vmatprep.subr.mxu0 0.0
  %4979 = vmatpush1.msra.mxu0 0.0
  %4980 = vmatprep.subr.mxu0 %v4883
  %4981 = vmatpush1.msra.mxu0 %v4880
  %4982 = vmatprep.subr.mxu0 %v4865
  %4983 = vmatpush1.msra.mxu0 %v4864
  %4984 = vmatprep.subr.mxu0 %v4861
  %4985 = vmatpush1.msra.mxu0 %v4860
  %4986 = vmatprep.subr.mxu0 %v4857
  %4987 = vmatpush1.msra.mxu0 %v4856
  %4988 = vmatprep.subr.mxu0 0.0
  %4989 = vmatpush2.msra.mxu0 0.0
  %4990 = vmatprep.subr.mxu0 0.0
  %4991 = vmatpush2.msra.mxu0 0.0
  %4992 = vmatprep.subr.mxu0 0.0
  %4993 = vmatpush2.msra.mxu0 0.0
  %4994 = vmatprep.subr.mxu0 0.0
  %4995 = vmatpush2.msra.mxu0 0.0
  %4996 = vmatprep.subr.mxu0 0.0
  %4997 = vmatpush2.msra.mxu0 0.0
  %4998 = vmatprep.subr.mxu0 0.0
  %4999 = vmatpush2.msra.mxu0 0.0
  %5000 = vmatprep.subr.mxu0 0.0
  %5001 = vmatpush2.msra.mxu0 0.0
  %5002 = vmatprep.subr.mxu0 0.0
  %5003 = vmatpush2.msra.mxu0 0.0
  %5004 = vmatprep.subr.mxu0 0.0
  %5005 = vmatpush2.msra.mxu0 0.0
  %5006 = vmatprep.subr.mxu0 0.0
  %5007 = vmatpush2.msra.mxu0 0.0
  %5008 = vmatprep.subr.mxu0 0.0
  %5009 = vmatpush2.msra.mxu0 0.0
  %5010 = vmatprep.subr.mxu0 0.0
  %5011 = vmatpush2.msra.mxu0 0.0
  %5012 = vmatprep.subr.mxu0 0.0
  %5013 = vmatpush2.msra.mxu0 0.0
  %5014 = vmatprep.subr.mxu0 0.0
  %5015 = vmatpush2.msra.mxu0 0.0
  %5016 = vmatprep.subr.mxu0 0.0
  %5017 = vmatpush2.msra.mxu0 0.0
  %5018 = vmatprep.subr.mxu0 0.0
  %5019 = vmatpush2.msra.mxu0 0.0
  %5020 = vmatprep.mubr.f32.mxu0 0.0
  %5021 = vmatmul.mubr.f32.gmra.mxu0 %v4871
  %v5022 = vpop.f32.mrf.mxu0
  %v5023 = vadd.f32 0.0, %v5022
  %v5024 = vpop.f32.mrf.mxu0
  %v5025 = vadd.f32 0.0, %v5024
  %5026 = vdwg.mxu0
  %v5027 = vadd.f32 %v4779, %v4952
  %v5028 = vadd.f32 %v4781, %v4954
  %v5029 = vadd.f32 %v4850, %v5023
  %v5030 = vadd.f32 %v4852, %v5025
  %5031 = vmatprep.subr.mxu0 0.0
  %5032 = vmatpush1.msra.mxu0 0.0
  %5033 = vmatprep.subr.mxu0 0.0
  %5034 = vmatpush1.msra.mxu0 0.0
  %5035 = vmatprep.subr.mxu0 0.0
  %5036 = vmatpush1.msra.mxu0 0.0
  %5037 = vmatprep.subr.mxu0 0.0
  %5038 = vmatpush1.msra.mxu0 0.0
  %5039 = vmatprep.subr.mxu0 0.0
  %5040 = vmatpush1.msra.mxu0 0.0
  %5041 = vmatprep.subr.mxu0 0.0
  %5042 = vmatpush1.msra.mxu0 0.0
  %5043 = vmatprep.subr.mxu0 0.0
  %5044 = vmatpush1.msra.mxu0 0.0
  %5045 = vmatprep.subr.mxu0 0.0
  %5046 = vmatpush1.msra.mxu0 0.0
  %5047 = vmatprep.subr.mxu0 0.0
  %5048 = vmatpush1.msra.mxu0 0.0
  %5049 = vmatprep.subr.mxu0 0.0
  %5050 = vmatpush1.msra.mxu0 0.0
  %5051 = vmatprep.subr.mxu0 0.0
  %5052 = vmatpush1.msra.mxu0 0.0
  %5053 = vmatprep.subr.mxu0 0.0
  %5054 = vmatpush1.msra.mxu0 0.0
  %5055 = vmatprep.subr.mxu0 %v4547
  %5056 = vmatpush1.msra.mxu0 %v4544
  %5057 = vmatprep.subr.mxu0 %v4533
  %5058 = vmatpush1.msra.mxu0 %v4532
  %5059 = vmatprep.subr.mxu0 %v4529
  %5060 = vmatpush1.msra.mxu0 %v4528
  %5061 = vmatprep.subr.mxu0 %v4525
  %5062 = vmatpush1.msra.mxu0 %v4524
  %5063 = vmatprep.subr.mxu0 0.0
  %5064 = vmatpush2.msra.mxu0 0.0
  %5065 = vmatprep.subr.mxu0 0.0
  %5066 = vmatpush2.msra.mxu0 0.0
  %5067 = vmatprep.subr.mxu0 0.0
  %5068 = vmatpush2.msra.mxu0 0.0
  %5069 = vmatprep.subr.mxu0 0.0
  %5070 = vmatpush2.msra.mxu0 0.0
  %5071 = vmatprep.subr.mxu0 0.0
  %5072 = vmatpush2.msra.mxu0 0.0
  %5073 = vmatprep.subr.mxu0 0.0
  %5074 = vmatpush2.msra.mxu0 0.0
  %5075 = vmatprep.subr.mxu0 0.0
  %5076 = vmatpush2.msra.mxu0 0.0
  %5077 = vmatprep.subr.mxu0 0.0
  %5078 = vmatpush2.msra.mxu0 0.0
  %5079 = vmatprep.subr.mxu0 0.0
  %5080 = vmatpush2.msra.mxu0 0.0
  %5081 = vmatprep.subr.mxu0 0.0
  %5082 = vmatpush2.msra.mxu0 0.0
  %5083 = vmatprep.subr.mxu0 0.0
  %5084 = vmatpush2.msra.mxu0 0.0
  %5085 = vmatprep.subr.mxu0 0.0
  %5086 = vmatpush2.msra.mxu0 0.0
  %5087 = vmatprep.subr.mxu0 0.0
  %5088 = vmatpush2.msra.mxu0 0.0
  %5089 = vmatprep.subr.mxu0 0.0
  %5090 = vmatpush2.msra.mxu0 0.0
  %5091 = vmatprep.subr.mxu0 0.0
  %5092 = vmatpush2.msra.mxu0 0.0
  %5093 = vmatprep.subr.mxu0 0.0
  %5094 = vmatpush2.msra.mxu0 0.0
  %5095 = vmatprep.mubr.f32.mxu0 0.0
  %5096 = vmatmul.mubr.f32.gmra.mxu0 %v4871
  %v5097 = vpop.f32.mrf.mxu0
  %v5098 = vadd.f32 0.0, %v5097
  %v5099 = vpop.f32.mrf.mxu0
  %v5100 = vadd.f32 0.0, %v5099
  %5101 = vdwg.mxu0
  %5102 = vmatprep.subr.mxu0 0.0
  %5103 = vmatpush1.msra.mxu0 0.0
  %5104 = vmatprep.subr.mxu0 0.0
  %5105 = vmatpush1.msra.mxu0 0.0
  %5106 = vmatprep.subr.mxu0 0.0
  %5107 = vmatpush1.msra.mxu0 0.0
  %5108 = vmatprep.subr.mxu0 0.0
  %5109 = vmatpush1.msra.mxu0 0.0
  %5110 = vmatprep.subr.mxu0 0.0
  %5111 = vmatpush1.msra.mxu0 0.0
  %5112 = vmatprep.subr.mxu0 0.0
  %5113 = vmatpush1.msra.mxu0 0.0
  %5114 = vmatprep.subr.mxu0 0.0
  %5115 = vmatpush1.msra.mxu0 0.0
  %5116 = vmatprep.subr.mxu0 0.0
  %5117 = vmatpush1.msra.mxu0 0.0
  %5118 = vmatprep.subr.mxu0 0.0
  %5119 = vmatpush1.msra.mxu0 0.0
  %5120 = vmatprep.subr.mxu0 0.0
  %5121 = vmatpush1.msra.mxu0 0.0
  %5122 = vmatprep.subr.mxu0 0.0
  %5123 = vmatpush1.msra.mxu0 0.0
  %5124 = vmatprep.subr.mxu0 0.0
  %5125 = vmatpush1.msra.mxu0 0.0
  %5126 = vmatprep.subr.mxu0 %v4553
  %5127 = vmatpush1.msra.mxu0 %v4550
  %5128 = vmatprep.subr.mxu0 %v4535
  %5129 = vmatpush1.msra.mxu0 %v4534
  %5130 = vmatprep.subr.mxu0 %v4531
  %5131 = vmatpush1.msra.mxu0 %v4530
  %5132 = vmatprep.subr.mxu0 %v4527
  %5133 = vmatpush1.msra.mxu0 %v4526
  %5134 = vmatprep.subr.mxu0 0.0
  %5135 = vmatpush2.msra.mxu0 0.0
  %5136 = vmatprep.subr.mxu0 0.0
  %5137 = vmatpush2.msra.mxu0 0.0
  %5138 = vmatprep.subr.mxu0 0.0
  %5139 = vmatpush2.msra.mxu0 0.0
  %5140 = vmatprep.subr.mxu0 0.0
  %5141 = vmatpush2.msra.mxu0 0.0
  %5142 = vmatprep.subr.mxu0 0.0
  %5143 = vmatpush2.msra.mxu0 0.0
  %5144 = vmatprep.subr.mxu0 0.0
  %5145 = vmatpush2.msra.mxu0 0.0
  %5146 = vmatprep.subr.mxu0 0.0
  %5147 = vmatpush2.msra.mxu0 0.0
  %5148 = vmatprep.subr.mxu0 0.0
  %5149 = vmatpush2.msra.mxu0 0.0
  %5150 = vmatprep.subr.mxu0 0.0
  %5151 = vmatpush2.msra.mxu0 0.0
  %5152 = vmatprep.subr.mxu0 0.0
  %5153 = vmatpush2.msra.mxu0 0.0
  %5154 = vmatprep.subr.mxu0 0.0
  %5155 = vmatpush2.msra.mxu0 0.0
  %5156 = vmatprep.subr.mxu0 0.0
  %5157 = vmatpush2.msra.mxu0 0.0
  %5158 = vmatprep.subr.mxu0 0.0
  %5159 = vmatpush2.msra.mxu0 0.0
  %5160 = vmatprep.subr.mxu0 0.0
  %5161 = vmatpush2.msra.mxu0 0.0
  %5162 = vmatprep.subr.mxu0 0.0
  %5163 = vmatpush2.msra.mxu0 0.0
  %5164 = vmatprep.subr.mxu0 0.0
  %5165 = vmatpush2.msra.mxu0 0.0
  %5166 = vmatprep.mubr.f32.mxu0 0.0
  %5167 = vmatmul.mubr.f32.gmra.mxu0 %v4871
  %v5168 = vpop.f32.mrf.mxu0
  %v5169 = vadd.f32 0.0, %v5168
  %v5170 = vpop.f32.mrf.mxu0
  %v5171 = vadd.f32 0.0, %v5170
  %5172 = vdwg.mxu0
  %5173 = vmatprep.subr.mxu0 0.0
  %5174 = vmatpush1.msra.mxu0 0.0
  %5175 = vmatprep.subr.mxu0 0.0
  %5176 = vmatpush1.msra.mxu0 0.0
  %5177 = vmatprep.subr.mxu0 0.0
  %5178 = vmatpush1.msra.mxu0 0.0
  %5179 = vmatprep.subr.mxu0 0.0
  %5180 = vmatpush1.msra.mxu0 0.0
  %5181 = vmatprep.subr.mxu0 0.0
  %5182 = vmatpush1.msra.mxu0 0.0
  %5183 = vmatprep.subr.mxu0 0.0
  %5184 = vmatpush1.msra.mxu0 0.0
  %5185 = vmatprep.subr.mxu0 0.0
  %5186 = vmatpush1.msra.mxu0 0.0
  %5187 = vmatprep.subr.mxu0 0.0
  %5188 = vmatpush1.msra.mxu0 0.0
  %5189 = vmatprep.subr.mxu0 0.0
  %5190 = vmatpush1.msra.mxu0 0.0
  %5191 = vmatprep.subr.mxu0 0.0
  %5192 = vmatpush1.msra.mxu0 0.0
  %5193 = vmatprep.subr.mxu0 0.0
  %5194 = vmatpush1.msra.mxu0 0.0
  %5195 = vmatprep.subr.mxu0 0.0
  %5196 = vmatpush1.msra.mxu0 0.0
  %5197 = vmatprep.subr.mxu0 %v4704
  %5198 = vmatpush1.msra.mxu0 %v4701
  %5199 = vmatprep.subr.mxu0 %v4517
  %5200 = vmatpush1.msra.mxu0 %v4516
  %5201 = vmatprep.subr.mxu0 %v4513
  %5202 = vmatpush1.msra.mxu0 %v4512
  %5203 = vmatprep.subr.mxu0 %v4509
  %5204 = vmatpush1.msra.mxu0 %v4508
  %5205 = vmatprep.subr.mxu0 0.0
  %5206 = vmatpush2.msra.mxu0 0.0
  %5207 = vmatprep.subr.mxu0 0.0
  %5208 = vmatpush2.msra.mxu0 0.0
  %5209 = vmatprep.subr.mxu0 0.0
  %5210 = vmatpush2.msra.mxu0 0.0
  %5211 = vmatprep.subr.mxu0 0.0
  %5212 = vmatpush2.msra.mxu0 0.0
  %5213 = vmatprep.subr.mxu0 0.0
  %5214 = vmatpush2.msra.mxu0 0.0
  %5215 = vmatprep.subr.mxu0 0.0
  %5216 = vmatpush2.msra.mxu0 0.0
  %5217 = vmatprep.subr.mxu0 0.0
  %5218 = vmatpush2.msra.mxu0 0.0
  %5219 = vmatprep.subr.mxu0 0.0
  %5220 = vmatpush2.msra.mxu0 0.0
  %5221 = vmatprep.subr.mxu0 0.0
  %5222 = vmatpush2.msra.mxu0 0.0
  %5223 = vmatprep.subr.mxu0 0.0
  %5224 = vmatpush2.msra.mxu0 0.0
  %5225 = vmatprep.subr.mxu0 0.0
  %5226 = vmatpush2.msra.mxu0 0.0
  %5227 = vmatprep.subr.mxu0 0.0
  %5228 = vmatpush2.msra.mxu0 0.0
  %5229 = vmatprep.subr.mxu0 0.0
  %5230 = vmatpush2.msra.mxu0 0.0
  %5231 = vmatprep.subr.mxu0 0.0
  %5232 = vmatpush2.msra.mxu0 0.0
  %5233 = vmatprep.subr.mxu0 0.0
  %5234 = vmatpush2.msra.mxu0 0.0
  %5235 = vmatprep.subr.mxu0 0.0
  %5236 = vmatpush2.msra.mxu0 0.0
  %5237 = vmatprep.mubr.f32.mxu0 0.0
  %5238 = vmatmul.mubr.f32.gmra.mxu0 %v4541
  %v5239 = vpop.f32.mrf.mxu0
  %v5240 = vadd.f32 %v5098, %v5239
  %v5241 = vpop.f32.mrf.mxu0
  %v5242 = vadd.f32 %v5100, %v5241
  %5243 = vdwg.mxu0
  %5244 = vmatprep.subr.mxu0 0.0
  %5245 = vmatpush1.msra.mxu0 0.0
  %5246 = vmatprep.subr.mxu0 0.0
  %5247 = vmatpush1.msra.mxu0 0.0
  %5248 = vmatprep.subr.mxu0 0.0
  %5249 = vmatpush1.msra.mxu0 0.0
  %5250 = vmatprep.subr.mxu0 0.0
  %5251 = vmatpush1.msra.mxu0 0.0
  %5252 = vmatprep.subr.mxu0 0.0
  %5253 = vmatpush1.msra.mxu0 0.0
  %5254 = vmatprep.subr.mxu0 0.0
  %5255 = vmatpush1.msra.mxu0 0.0
  %5256 = vmatprep.subr.mxu0 0.0
  %5257 = vmatpush1.msra.mxu0 0.0
  %5258 = vmatprep.subr.mxu0 0.0
  %5259 = vmatpush1.msra.mxu0 0.0
  %5260 = vmatprep.subr.mxu0 0.0
  %5261 = vmatpush1.msra.mxu0 0.0
  %5262 = vmatprep.subr.mxu0 0.0
  %5263 = vmatpush1.msra.mxu0 0.0
  %5264 = vmatprep.subr.mxu0 0.0
  %5265 = vmatpush1.msra.mxu0 0.0
  %5266 = vmatprep.subr.mxu0 0.0
  %5267 = vmatpush1.msra.mxu0 0.0
  %5268 = vmatprep.subr.mxu0 %v4710
  %5269 = vmatpush1.msra.mxu0 %v4707
  %5270 = vmatprep.subr.mxu0 %v4519
  %5271 = vmatpush1.msra.mxu0 %v4518
  %5272 = vmatprep.subr.mxu0 %v4515
  %5273 = vmatpush1.msra.mxu0 %v4514
  %5274 = vmatprep.subr.mxu0 %v4511
  %5275 = vmatpush1.msra.mxu0 %v4510
  %5276 = vmatprep.subr.mxu0 0.0
  %5277 = vmatpush2.msra.mxu0 0.0
  %5278 = vmatprep.subr.mxu0 0.0
  %5279 = vmatpush2.msra.mxu0 0.0
  %5280 = vmatprep.subr.mxu0 0.0
  %5281 = vmatpush2.msra.mxu0 0.0
  %5282 = vmatprep.subr.mxu0 0.0
  %5283 = vmatpush2.msra.mxu0 0.0
  %5284 = vmatprep.subr.mxu0 0.0
  %5285 = vmatpush2.msra.mxu0 0.0
  %5286 = vmatprep.subr.mxu0 0.0
  %5287 = vmatpush2.msra.mxu0 0.0
  %5288 = vmatprep.subr.mxu0 0.0
  %5289 = vmatpush2.msra.mxu0 0.0
  %5290 = vmatprep.subr.mxu0 0.0
  %5291 = vmatpush2.msra.mxu0 0.0
  %5292 = vmatprep.subr.mxu0 0.0
  %5293 = vmatpush2.msra.mxu0 0.0
  %5294 = vmatprep.subr.mxu0 0.0
  %5295 = vmatpush2.msra.mxu0 0.0
  %5296 = vmatprep.subr.mxu0 0.0
  %5297 = vmatpush2.msra.mxu0 0.0
  %5298 = vmatprep.subr.mxu0 0.0
  %5299 = vmatpush2.msra.mxu0 0.0
  %5300 = vmatprep.subr.mxu0 0.0
  %5301 = vmatpush2.msra.mxu0 0.0
  %5302 = vmatprep.subr.mxu0 0.0
  %5303 = vmatpush2.msra.mxu0 0.0
  %5304 = vmatprep.subr.mxu0 0.0
  %5305 = vmatpush2.msra.mxu0 0.0
  %5306 = vmatprep.subr.mxu0 0.0
  %5307 = vmatpush2.msra.mxu0 0.0
  %5308 = vmatprep.mubr.f32.mxu0 0.0
  %5309 = vmatmul.mubr.f32.gmra.mxu0 %v4541
  %v5310 = vpop.f32.mrf.mxu0
  %v5311 = vadd.f32 %v5169, %v5310
  %v5312 = vpop.f32.mrf.mxu0
  %v5313 = vadd.f32 %v5171, %v5312
  %5314 = vdwg.mxu0
  %v5316 = vsel %vm62, %v4507, 0
  %5318 = vmatprep.subr.mxu0 0.0
  %5319 = vmatpush1.msra.mxu0 0.0
  %5320 = vmatprep.subr.mxu0 0.0
  %5321 = vmatpush1.msra.mxu0 0.0
  %5322 = vmatprep.subr.mxu0 0.0
  %5323 = vmatpush1.msra.mxu0 0.0
  %5324 = vmatprep.subr.mxu0 0.0
  %5325 = vmatpush1.msra.mxu0 0.0
  %5326 = vmatprep.subr.mxu0 0.0
  %5327 = vmatpush1.msra.mxu0 0.0
  %5328 = vmatprep.subr.mxu0 0.0
  %5329 = vmatpush1.msra.mxu0 0.0
  %5330 = vmatprep.subr.mxu0 0.0
  %5331 = vmatpush1.msra.mxu0 0.0
  %5332 = vmatprep.subr.mxu0 0.0
  %5333 = vmatpush1.msra.mxu0 0.0
  %5334 = vmatprep.subr.mxu0 0.0
  %5335 = vmatpush1.msra.mxu0 0.0
  %5336 = vmatprep.subr.mxu0 0.0
  %5337 = vmatpush1.msra.mxu0 0.0
  %5338 = vmatprep.subr.mxu0 0.0
  %5339 = vmatpush1.msra.mxu0 0.0
  %5340 = vmatprep.subr.mxu0 0.0
  %5341 = vmatpush1.msra.mxu0 0.0
  %5342 = vmatprep.subr.mxu0 %v4877
  %5343 = vmatpush1.msra.mxu0 %v4874
  %5344 = vmatprep.subr.mxu0 %v4863
  %5345 = vmatpush1.msra.mxu0 %v4862
  %5346 = vmatprep.subr.mxu0 %v4859
  %5347 = vmatpush1.msra.mxu0 %v4858
  %5348 = vmatprep.subr.mxu0 %v4855
  %5349 = vmatpush1.msra.mxu0 %v4854
  %5350 = vmatprep.subr.mxu0 0.0
  %5351 = vmatpush2.msra.mxu0 0.0
  %5352 = vmatprep.subr.mxu0 0.0
  %5353 = vmatpush2.msra.mxu0 0.0
  %5354 = vmatprep.subr.mxu0 0.0
  %5355 = vmatpush2.msra.mxu0 0.0
  %5356 = vmatprep.subr.mxu0 0.0
  %5357 = vmatpush2.msra.mxu0 0.0
  %5358 = vmatprep.subr.mxu0 0.0
  %5359 = vmatpush2.msra.mxu0 0.0
  %5360 = vmatprep.subr.mxu0 0.0
  %5361 = vmatpush2.msra.mxu0 0.0
  %5362 = vmatprep.subr.mxu0 0.0
  %5363 = vmatpush2.msra.mxu0 0.0
  %5364 = vmatprep.subr.mxu0 0.0
  %5365 = vmatpush2.msra.mxu0 0.0
  %5366 = vmatprep.subr.mxu0 0.0
  %5367 = vmatpush2.msra.mxu0 0.0
  %5368 = vmatprep.subr.mxu0 0.0
  %5369 = vmatpush2.msra.mxu0 0.0
  %5370 = vmatprep.subr.mxu0 0.0
  %5371 = vmatpush2.msra.mxu0 0.0
  %5372 = vmatprep.subr.mxu0 0.0
  %5373 = vmatpush2.msra.mxu0 0.0
  %5374 = vmatprep.subr.mxu0 0.0
  %5375 = vmatpush2.msra.mxu0 0.0
  %5376 = vmatprep.subr.mxu0 0.0
  %5377 = vmatpush2.msra.mxu0 0.0
  %5378 = vmatprep.subr.mxu0 0.0
  %5379 = vmatpush2.msra.mxu0 0.0
  %5380 = vmatprep.subr.mxu0 0.0
  %5381 = vmatpush2.msra.mxu0 0.0
  %5382 = vmatprep.mubr.f32.mxu0 0.0
  %5383 = vmatmul.mubr.f32.gmra.mxu0 %v5316
  %v5384 = vpop.f32.mrf.mxu0
  %v5385 = vadd.f32 0.0, %v5384
  %v5386 = vpop.f32.mrf.mxu0
  %v5387 = vadd.f32 0.0, %v5386
  %5388 = vdwg.mxu0
  %5389 = vmatprep.subr.mxu0 0.0
  %5390 = vmatpush1.msra.mxu0 0.0
  %5391 = vmatprep.subr.mxu0 0.0
  %5392 = vmatpush1.msra.mxu0 0.0
  %5393 = vmatprep.subr.mxu0 0.0
  %5394 = vmatpush1.msra.mxu0 0.0
  %5395 = vmatprep.subr.mxu0 0.0
  %5396 = vmatpush1.msra.mxu0 0.0
  %5397 = vmatprep.subr.mxu0 0.0
  %5398 = vmatpush1.msra.mxu0 0.0
  %5399 = vmatprep.subr.mxu0 0.0
  %5400 = vmatpush1.msra.mxu0 0.0
  %5401 = vmatprep.subr.mxu0 0.0
  %5402 = vmatpush1.msra.mxu0 0.0
  %5403 = vmatprep.subr.mxu0 0.0
  %5404 = vmatpush1.msra.mxu0 0.0
  %5405 = vmatprep.subr.mxu0 0.0
  %5406 = vmatpush1.msra.mxu0 0.0
  %5407 = vmatprep.subr.mxu0 0.0
  %5408 = vmatpush1.msra.mxu0 0.0
  %5409 = vmatprep.subr.mxu0 0.0
  %5410 = vmatpush1.msra.mxu0 0.0
  %5411 = vmatprep.subr.mxu0 0.0
  %5412 = vmatpush1.msra.mxu0 0.0
  %5413 = vmatprep.subr.mxu0 %v4883
  %5414 = vmatpush1.msra.mxu0 %v4880
  %5415 = vmatprep.subr.mxu0 %v4865
  %5416 = vmatpush1.msra.mxu0 %v4864
  %5417 = vmatprep.subr.mxu0 %v4861
  %5418 = vmatpush1.msra.mxu0 %v4860
  %5419 = vmatprep.subr.mxu0 %v4857
  %5420 = vmatpush1.msra.mxu0 %v4856
  %5421 = vmatprep.subr.mxu0 0.0
  %5422 = vmatpush2.msra.mxu0 0.0
  %5423 = vmatprep.subr.mxu0 0.0
  %5424 = vmatpush2.msra.mxu0 0.0
  %5425 = vmatprep.subr.mxu0 0.0
  %5426 = vmatpush2.msra.mxu0 0.0
  %5427 = vmatprep.subr.mxu0 0.0
  %5428 = vmatpush2.msra.mxu0 0.0
  %5429 = vmatprep.subr.mxu0 0.0
  %5430 = vmatpush2.msra.mxu0 0.0
  %5431 = vmatprep.subr.mxu0 0.0
  %5432 = vmatpush2.msra.mxu0 0.0
  %5433 = vmatprep.subr.mxu0 0.0
  %5434 = vmatpush2.msra.mxu0 0.0
  %5435 = vmatprep.subr.mxu0 0.0
  %5436 = vmatpush2.msra.mxu0 0.0
  %5437 = vmatprep.subr.mxu0 0.0
  %5438 = vmatpush2.msra.mxu0 0.0
  %5439 = vmatprep.subr.mxu0 0.0
  %5440 = vmatpush2.msra.mxu0 0.0
  %5441 = vmatprep.subr.mxu0 0.0
  %5442 = vmatpush2.msra.mxu0 0.0
  %5443 = vmatprep.subr.mxu0 0.0
  %5444 = vmatpush2.msra.mxu0 0.0
  %5445 = vmatprep.subr.mxu0 0.0
  %5446 = vmatpush2.msra.mxu0 0.0
  %5447 = vmatprep.subr.mxu0 0.0
  %5448 = vmatpush2.msra.mxu0 0.0
  %5449 = vmatprep.subr.mxu0 0.0
  %5450 = vmatpush2.msra.mxu0 0.0
  %5451 = vmatprep.subr.mxu0 0.0
  %5452 = vmatpush2.msra.mxu0 0.0
  %5453 = vmatprep.mubr.f32.mxu0 0.0
  %5454 = vmatmul.mubr.f32.gmra.mxu0 %v5316
  %v5455 = vpop.f32.mrf.mxu0
  %v5456 = vadd.f32 0.0, %v5455
  %v5457 = vpop.f32.mrf.mxu0
  %v5458 = vadd.f32 0.0, %v5457
  %5459 = vdwg.mxu0
  %v5460 = vadd.f32 %v5240, %v5385
  %v5461 = vadd.f32 %v5242, %v5387
  %v5462 = vadd.f32 %v5311, %v5456
  %v5463 = vadd.f32 %v5313, %v5458
  %v5464 = vmax.f32 %v5027, %v5460
  %v5465 = vmax.f32 %v5028, %v5461
  %v5466 = vmax.f32 %v5029, %v5462
  %v5467 = vmax.f32 %v5030, %v5463
  %v5468 = vld [vmem:[%s993] sm:$0xff]
  %v5469 = vld [vmem:[%s993 + $0x8] sm:$0xff]
  %v5470 = vld [vmem:[%s993 + $0x10] sm:$0xff]
  %v5471 = vld [vmem:[%s993 + $0x18] sm:$0xff]
  %v5472 = vld [vmem:[%s993 + $0x20] sm:$0xff]
  %v5473 = vld [vmem:[%s993 + $0x28] sm:$0xff]
  %v5474 = vld [vmem:[%s993 + $0x30] sm:$0xff]
  %v5475 = vld [vmem:[%s993 + $0x38] sm:$0xff]
  %v5476 = vld [vmem:[%s993 + $0x40] sm:$0xff]
  %v5477 = vld [vmem:[%s993 + $0x48] sm:$0xff]
  %v5478 = vld [vmem:[%s993 + $0x50] sm:$0xff]
  %v5479 = vld [vmem:[%s993 + $0x58] sm:$0xff]
  %v5480 = vld [vmem:[%s993 + $0x60] sm:$0xf]
  %v5481 = vld [vmem:[%s993 + $0x68] sm:$0xf]
  %v5482 = vld [vmem:[%s993 + $0x70] sm:$0xf]
  %v5483 = vld [vmem:[%s993 + $0x78] sm:$0xf]
  %v5484 = vld [vmem:[%s1010] sm:$0xff]
  %v5485 = vld [vmem:[%s1010 + $0x8] sm:$0xff]
  %v5486 = vld [vmem:[%s1010 + $0x10] sm:$0xff]
  %v5487 = vld [vmem:[%s1010 + $0x18] sm:$0xff]
  %v5488 = vld [vmem:[%s1010 + $0x20] sm:$0xff]
  %v5489 = vld [vmem:[%s1010 + $0x28] sm:$0xff]
  %v5490 = vld [vmem:[%s1010 + $0x30] sm:$0xff]
  %v5491 = vld [vmem:[%s1010 + $0x38] sm:$0xff]
  %v5492 = vld [vmem:[%s1010 + $0x40] sm:$0xff]
  %v5493 = vld [vmem:[%s1010 + $0x48] sm:$0xff]
  %v5494 = vld [vmem:[%s1010 + $0x50] sm:$0xff]
  %v5495 = vld [vmem:[%s1010 + $0x58] sm:$0xff]
  %v5496 = vld [vmem:[%s1010 + $0x60] sm:$0xf]
  %v5497 = vld [vmem:[%s1010 + $0x68] sm:$0xf]
  %v5498 = vld [vmem:[%s1010 + $0x70] sm:$0xf]
  %v5499 = vld [vmem:[%s1010 + $0x78] sm:$0xf]
  %v5501 = vsel %vm66, %v5496, 0
  %v5504 = vsel %vm66, %v5497, 0
  %v5507 = vsel %vm66, %v5498, 0
  %v5510 = vsel %vm66, %v5499, 0
  %5512 = vmatprep.subr.mxu0 0.0
  %5513 = vmatpush1.msra.mxu0 0.0
  %5514 = vmatprep.subr.mxu0 0.0
  %5515 = vmatpush1.msra.mxu0 0.0
  %5516 = vmatprep.subr.mxu0 0.0
  %5517 = vmatpush1.msra.mxu0 0.0
  %5518 = vmatprep.subr.mxu0 0.0
  %5519 = vmatpush1.msra.mxu0 0.0
  %5520 = vmatprep.subr.mxu0 0.0
  %5521 = vmatpush1.msra.mxu0 0.0
  %5522 = vmatprep.subr.mxu0 0.0
  %5523 = vmatpush1.msra.mxu0 0.0
  %5524 = vmatprep.subr.mxu0 0.0
  %5525 = vmatpush1.msra.mxu0 0.0
  %5526 = vmatprep.subr.mxu0 0.0
  %5527 = vmatpush1.msra.mxu0 0.0
  %5528 = vmatprep.subr.mxu0 0.0
  %5529 = vmatpush1.msra.mxu0 0.0
  %5530 = vmatprep.subr.mxu0 0.0
  %5531 = vmatpush1.msra.mxu0 0.0
  %5532 = vmatprep.subr.mxu0 0.0
  %5533 = vmatpush1.msra.mxu0 0.0
  %5534 = vmatprep.subr.mxu0 0.0
  %5535 = vmatpush1.msra.mxu0 0.0
  %5536 = vmatprep.subr.mxu0 %v5504
  %5537 = vmatpush1.msra.mxu0 %v5501
  %5538 = vmatprep.subr.mxu0 %v5493
  %5539 = vmatpush1.msra.mxu0 %v5492
  %5540 = vmatprep.subr.mxu0 %v5489
  %5541 = vmatpush1.msra.mxu0 %v5488
  %5542 = vmatprep.subr.mxu0 %v5485
  %5543 = vmatpush1.msra.mxu0 %v5484
  %5544 = vmatprep.subr.mxu0 0.0
  %5545 = vmatpush2.msra.mxu0 0.0
  %5546 = vmatprep.subr.mxu0 0.0
  %5547 = vmatpush2.msra.mxu0 0.0
  %5548 = vmatprep.subr.mxu0 0.0
  %5549 = vmatpush2.msra.mxu0 0.0
  %5550 = vmatprep.subr.mxu0 0.0
  %5551 = vmatpush2.msra.mxu0 0.0
  %5552 = vmatprep.subr.mxu0 0.0
  %5553 = vmatpush2.msra.mxu0 0.0
  %5554 = vmatprep.subr.mxu0 0.0
  %5555 = vmatpush2.msra.mxu0 0.0
  %5556 = vmatprep.subr.mxu0 0.0
  %5557 = vmatpush2.msra.mxu0 0.0
  %5558 = vmatprep.subr.mxu0 0.0
  %5559 = vmatpush2.msra.mxu0 0.0
  %5560 = vmatprep.subr.mxu0 0.0
  %5561 = vmatpush2.msra.mxu0 0.0
  %5562 = vmatprep.subr.mxu0 0.0
  %5563 = vmatpush2.msra.mxu0 0.0
  %5564 = vmatprep.subr.mxu0 0.0
  %5565 = vmatpush2.msra.mxu0 0.0
  %5566 = vmatprep.subr.mxu0 0.0
  %5567 = vmatpush2.msra.mxu0 0.0
  %5568 = vmatprep.subr.mxu0 0.0
  %5569 = vmatpush2.msra.mxu0 0.0
  %5570 = vmatprep.subr.mxu0 0.0
  %5571 = vmatpush2.msra.mxu0 0.0
  %5572 = vmatprep.subr.mxu0 0.0
  %5573 = vmatpush2.msra.mxu0 0.0
  %5574 = vmatprep.subr.mxu0 0.0
  %5575 = vmatpush2.msra.mxu0 0.0
  %5576 = vmatprep.mubr.f32.mxu0 0.0
  %5577 = vmatmul.mubr.f32.gmra.mxu0 %v4541
  %v5578 = vpop.f32.mrf.mxu0
  %v5579 = vadd.f32 0.0, %v5578
  %v5580 = vpop.f32.mrf.mxu0
  %v5581 = vadd.f32 0.0, %v5580
  %5582 = vdwg.mxu0
  %5583 = vmatprep.subr.mxu0 0.0
  %5584 = vmatpush1.msra.mxu0 0.0
  %5585 = vmatprep.subr.mxu0 0.0
  %5586 = vmatpush1.msra.mxu0 0.0
  %5587 = vmatprep.subr.mxu0 0.0
  %5588 = vmatpush1.msra.mxu0 0.0
  %5589 = vmatprep.subr.mxu0 0.0
  %5590 = vmatpush1.msra.mxu0 0.0
  %5591 = vmatprep.subr.mxu0 0.0
  %5592 = vmatpush1.msra.mxu0 0.0
  %5593 = vmatprep.subr.mxu0 0.0
  %5594 = vmatpush1.msra.mxu0 0.0
  %5595 = vmatprep.subr.mxu0 0.0
  %5596 = vmatpush1.msra.mxu0 0.0
  %5597 = vmatprep.subr.mxu0 0.0
  %5598 = vmatpush1.msra.mxu0 0.0
  %5599 = vmatprep.subr.mxu0 0.0
  %5600 = vmatpush1.msra.mxu0 0.0
  %5601 = vmatprep.subr.mxu0 0.0
  %5602 = vmatpush1.msra.mxu0 0.0
  %5603 = vmatprep.subr.mxu0 0.0
  %5604 = vmatpush1.msra.mxu0 0.0
  %5605 = vmatprep.subr.mxu0 0.0
  %5606 = vmatpush1.msra.mxu0 0.0
  %5607 = vmatprep.subr.mxu0 %v5510
  %5608 = vmatpush1.msra.mxu0 %v5507
  %5609 = vmatprep.subr.mxu0 %v5495
  %5610 = vmatpush1.msra.mxu0 %v5494
  %5611 = vmatprep.subr.mxu0 %v5491
  %5612 = vmatpush1.msra.mxu0 %v5490
  %5613 = vmatprep.subr.mxu0 %v5487
  %5614 = vmatpush1.msra.mxu0 %v5486
  %5615 = vmatprep.subr.mxu0 0.0
  %5616 = vmatpush2.msra.mxu0 0.0
  %5617 = vmatprep.subr.mxu0 0.0
  %5618 = vmatpush2.msra.mxu0 0.0
  %5619 = vmatprep.subr.mxu0 0.0
  %5620 = vmatpush2.msra.mxu0 0.0
  %5621 = vmatprep.subr.mxu0 0.0
  %5622 = vmatpush2.msra.mxu0 0.0
  %5623 = vmatprep.subr.mxu0 0.0
  %5624 = vmatpush2.msra.mxu0 0.0
  %5625 = vmatprep.subr.mxu0 0.0
  %5626 = vmatpush2.msra.mxu0 0.0
  %5627 = vmatprep.subr.mxu0 0.0
  %5628 = vmatpush2.msra.mxu0 0.0
  %5629 = vmatprep.subr.mxu0 0.0
  %5630 = vmatpush2.msra.mxu0 0.0
  %5631 = vmatprep.subr.mxu0 0.0
  %5632 = vmatpush2.msra.mxu0 0.0
  %5633 = vmatprep.subr.mxu0 0.0
  %5634 = vmatpush2.msra.mxu0 0.0
  %5635 = vmatprep.subr.mxu0 0.0
  %5636 = vmatpush2.msra.mxu0 0.0
  %5637 = vmatprep.subr.mxu0 0.0
  %5638 = vmatpush2.msra.mxu0 0.0
  %5639 = vmatprep.subr.mxu0 0.0
  %5640 = vmatpush2.msra.mxu0 0.0
  %5641 = vmatprep.subr.mxu0 0.0
  %5642 = vmatpush2.msra.mxu0 0.0
  %5643 = vmatprep.subr.mxu0 0.0
  %5644 = vmatpush2.msra.mxu0 0.0
  %5645 = vmatprep.subr.mxu0 0.0
  %5646 = vmatpush2.msra.mxu0 0.0
  %5647 = vmatprep.mubr.f32.mxu0 0.0
  %5648 = vmatmul.mubr.f32.gmra.mxu0 %v4541
  %v5649 = vpop.f32.mrf.mxu0
  %v5650 = vadd.f32 0.0, %v5649
  %v5651 = vpop.f32.mrf.mxu0
  %v5652 = vadd.f32 0.0, %v5651
  %5653 = vdwg.mxu0
  %v5655 = vsel %vm66, %v5480, 0
  %v5658 = vsel %vm66, %v5481, 0
  %v5661 = vsel %vm66, %v5482, 0
  %v5664 = vsel %vm66, %v5483, 0
  %5666 = vmatprep.subr.mxu0 0.0
  %5667 = vmatpush1.msra.mxu0 0.0
  %5668 = vmatprep.subr.mxu0 0.0
  %5669 = vmatpush1.msra.mxu0 0.0
  %5670 = vmatprep.subr.mxu0 0.0
  %5671 = vmatpush1.msra.mxu0 0.0
  %5672 = vmatprep.subr.mxu0 0.0
  %5673 = vmatpush1.msra.mxu0 0.0
  %5674 = vmatprep.subr.mxu0 0.0
  %5675 = vmatpush1.msra.mxu0 0.0
  %5676 = vmatprep.subr.mxu0 0.0
  %5677 = vmatpush1.msra.mxu0 0.0
  %5678 = vmatprep.subr.mxu0 0.0
  %5679 = vmatpush1.msra.mxu0 0.0
  %5680 = vmatprep.subr.mxu0 0.0
  %5681 = vmatpush1.msra.mxu0 0.0
  %5682 = vmatprep.subr.mxu0 0.0
  %5683 = vmatpush1.msra.mxu0 0.0
  %5684 = vmatprep.subr.mxu0 0.0
  %5685 = vmatpush1.msra.mxu0 0.0
  %5686 = vmatprep.subr.mxu0 0.0
  %5687 = vmatpush1.msra.mxu0 0.0
  %5688 = vmatprep.subr.mxu0 0.0
  %5689 = vmatpush1.msra.mxu0 0.0
  %5690 = vmatprep.subr.mxu0 %v5658
  %5691 = vmatpush1.msra.mxu0 %v5655
  %5692 = vmatprep.subr.mxu0 %v5477
  %5693 = vmatpush1.msra.mxu0 %v5476
  %5694 = vmatprep.subr.mxu0 %v5473
  %5695 = vmatpush1.msra.mxu0 %v5472
  %5696 = vmatprep.subr.mxu0 %v5469
  %5697 = vmatpush1.msra.mxu0 %v5468
  %5698 = vmatprep.subr.mxu0 0.0
  %5699 = vmatpush2.msra.mxu0 0.0
  %5700 = vmatprep.subr.mxu0 0.0
  %5701 = vmatpush2.msra.mxu0 0.0
  %5702 = vmatprep.subr.mxu0 0.0
  %5703 = vmatpush2.msra.mxu0 0.0
  %5704 = vmatprep.subr.mxu0 0.0
  %5705 = vmatpush2.msra.mxu0 0.0
  %5706 = vmatprep.subr.mxu0 0.0
  %5707 = vmatpush2.msra.mxu0 0.0
  %5708 = vmatprep.subr.mxu0 0.0
  %5709 = vmatpush2.msra.mxu0 0.0
  %5710 = vmatprep.subr.mxu0 0.0
  %5711 = vmatpush2.msra.mxu0 0.0
  %5712 = vmatprep.subr.mxu0 0.0
  %5713 = vmatpush2.msra.mxu0 0.0
  %5714 = vmatprep.subr.mxu0 0.0
  %5715 = vmatpush2.msra.mxu0 0.0
  %5716 = vmatprep.subr.mxu0 0.0
  %5717 = vmatpush2.msra.mxu0 0.0
  %5718 = vmatprep.subr.mxu0 0.0
  %5719 = vmatpush2.msra.mxu0 0.0
  %5720 = vmatprep.subr.mxu0 0.0
  %5721 = vmatpush2.msra.mxu0 0.0
  %5722 = vmatprep.subr.mxu0 0.0
  %5723 = vmatpush2.msra.mxu0 0.0
  %5724 = vmatprep.subr.mxu0 0.0
  %5725 = vmatpush2.msra.mxu0 0.0
  %5726 = vmatprep.subr.mxu0 0.0
  %5727 = vmatpush2.msra.mxu0 0.0
  %5728 = vmatprep.subr.mxu0 0.0
  %5729 = vmatpush2.msra.mxu0 0.0
  %5730 = vmatprep.mubr.f32.mxu0 0.0
  %5731 = vmatmul.mubr.f32.gmra.mxu0 %v4698
  %v5732 = vpop.f32.mrf.mxu0
  %v5733 = vadd.f32 %v5579, %v5732
  %v5734 = vpop.f32.mrf.mxu0
  %v5735 = vadd.f32 %v5581, %v5734
  %5736 = vdwg.mxu0
  %5737 = vmatprep.subr.mxu0 0.0
  %5738 = vmatpush1.msra.mxu0 0.0
  %5739 = vmatprep.subr.mxu0 0.0
  %5740 = vmatpush1.msra.mxu0 0.0
  %5741 = vmatprep.subr.mxu0 0.0
  %5742 = vmatpush1.msra.mxu0 0.0
  %5743 = vmatprep.subr.mxu0 0.0
  %5744 = vmatpush1.msra.mxu0 0.0
  %5745 = vmatprep.subr.mxu0 0.0
  %5746 = vmatpush1.msra.mxu0 0.0
  %5747 = vmatprep.subr.mxu0 0.0
  %5748 = vmatpush1.msra.mxu0 0.0
  %5749 = vmatprep.subr.mxu0 0.0
  %5750 = vmatpush1.msra.mxu0 0.0
  %5751 = vmatprep.subr.mxu0 0.0
  %5752 = vmatpush1.msra.mxu0 0.0
  %5753 = vmatprep.subr.mxu0 0.0
  %5754 = vmatpush1.msra.mxu0 0.0
  %5755 = vmatprep.subr.mxu0 0.0
  %5756 = vmatpush1.msra.mxu0 0.0
  %5757 = vmatprep.subr.mxu0 0.0
  %5758 = vmatpush1.msra.mxu0 0.0
  %5759 = vmatprep.subr.mxu0 0.0
  %5760 = vmatpush1.msra.mxu0 0.0
  %5761 = vmatprep.subr.mxu0 %v5664
  %5762 = vmatpush1.msra.mxu0 %v5661
  %5763 = vmatprep.subr.mxu0 %v5479
  %5764 = vmatpush1.msra.mxu0 %v5478
  %5765 = vmatprep.subr.mxu0 %v5475
  %5766 = vmatpush1.msra.mxu0 %v5474
  %5767 = vmatprep.subr.mxu0 %v5471
  %5768 = vmatpush1.msra.mxu0 %v5470
  %5769 = vmatprep.subr.mxu0 0.0
  %5770 = vmatpush2.msra.mxu0 0.0
  %5771 = vmatprep.subr.mxu0 0.0
  %5772 = vmatpush2.msra.mxu0 0.0
  %5773 = vmatprep.subr.mxu0 0.0
  %5774 = vmatpush2.msra.mxu0 0.0
  %5775 = vmatprep.subr.mxu0 0.0
  %5776 = vmatpush2.msra.mxu0 0.0
  %5777 = vmatprep.subr.mxu0 0.0
  %5778 = vmatpush2.msra.mxu0 0.0
  %5779 = vmatprep.subr.mxu0 0.0
  %5780 = vmatpush2.msra.mxu0 0.0
  %5781 = vmatprep.subr.mxu0 0.0
  %5782 = vmatpush2.msra.mxu0 0.0
  %5783 = vmatprep.subr.mxu0 0.0
  %5784 = vmatpush2.msra.mxu0 0.0
  %5785 = vmatprep.subr.mxu0 0.0
  %5786 = vmatpush2.msra.mxu0 0.0
  %5787 = vmatprep.subr.mxu0 0.0
  %5788 = vmatpush2.msra.mxu0 0.0
  %5789 = vmatprep.subr.mxu0 0.0
  %5790 = vmatpush2.msra.mxu0 0.0
  %5791 = vmatprep.subr.mxu0 0.0
  %5792 = vmatpush2.msra.mxu0 0.0
  %5793 = vmatprep.subr.mxu0 0.0
  %5794 = vmatpush2.msra.mxu0 0.0
  %5795 = vmatprep.subr.mxu0 0.0
  %5796 = vmatpush2.msra.mxu0 0.0
  %5797 = vmatprep.subr.mxu0 0.0
  %5798 = vmatpush2.msra.mxu0 0.0
  %5799 = vmatprep.subr.mxu0 0.0
  %5800 = vmatpush2.msra.mxu0 0.0
  %5801 = vmatprep.mubr.f32.mxu0 0.0
  %5802 = vmatmul.mubr.f32.gmra.mxu0 %v4698
  %v5803 = vpop.f32.mrf.mxu0
  %v5804 = vadd.f32 %v5650, %v5803
  %v5805 = vpop.f32.mrf.mxu0
  %v5806 = vadd.f32 %v5652, %v5805
  %5807 = vdwg.mxu0
  %v5808 = vld [vmem:[%s1335] sm:$0xff]
  %v5809 = vld [vmem:[%s1335 + $0x8] sm:$0xff]
  %v5810 = vld [vmem:[%s1335 + $0x10] sm:$0xff]
  %v5811 = vld [vmem:[%s1335 + $0x18] sm:$0xff]
  %v5812 = vld [vmem:[%s1335 + $0x20] sm:$0xff]
  %v5813 = vld [vmem:[%s1335 + $0x28] sm:$0xff]
  %v5814 = vld [vmem:[%s1335 + $0x30] sm:$0xff]
  %v5815 = vld [vmem:[%s1335 + $0x38] sm:$0xff]
  %v5816 = vld [vmem:[%s1335 + $0x40] sm:$0xff]
  %v5817 = vld [vmem:[%s1335 + $0x48] sm:$0xff]
  %v5818 = vld [vmem:[%s1335 + $0x50] sm:$0xff]
  %v5819 = vld [vmem:[%s1335 + $0x58] sm:$0xff]
  %v5820 = vld [vmem:[%s1335 + $0x60] sm:$0xf]
  %v5821 = vld [vmem:[%s1335 + $0x68] sm:$0xf]
  %v5822 = vld [vmem:[%s1335 + $0x70] sm:$0xf]
  %v5823 = vld [vmem:[%s1335 + $0x78] sm:$0xf]
  %v5825 = vsel %vm66, %v5820, 0
  %v5828 = vsel %vm66, %v5821, 0
  %v5831 = vsel %vm66, %v5822, 0
  %v5834 = vsel %vm66, %v5823, 0
  %5836 = vmatprep.subr.mxu0 0.0
  %5837 = vmatpush1.msra.mxu0 0.0
  %5838 = vmatprep.subr.mxu0 0.0
  %5839 = vmatpush1.msra.mxu0 0.0
  %5840 = vmatprep.subr.mxu0 0.0
  %5841 = vmatpush1.msra.mxu0 0.0
  %5842 = vmatprep.subr.mxu0 0.0
  %5843 = vmatpush1.msra.mxu0 0.0
  %5844 = vmatprep.subr.mxu0 0.0
  %5845 = vmatpush1.msra.mxu0 0.0
  %5846 = vmatprep.subr.mxu0 0.0
  %5847 = vmatpush1.msra.mxu0 0.0
  %5848 = vmatprep.subr.mxu0 0.0
  %5849 = vmatpush1.msra.mxu0 0.0
  %5850 = vmatprep.subr.mxu0 0.0
  %5851 = vmatpush1.msra.mxu0 0.0
  %5852 = vmatprep.subr.mxu0 0.0
  %5853 = vmatpush1.msra.mxu0 0.0
  %5854 = vmatprep.subr.mxu0 0.0
  %5855 = vmatpush1.msra.mxu0 0.0
  %5856 = vmatprep.subr.mxu0 0.0
  %5857 = vmatpush1.msra.mxu0 0.0
  %5858 = vmatprep.subr.mxu0 0.0
  %5859 = vmatpush1.msra.mxu0 0.0
  %5860 = vmatprep.subr.mxu0 %v5828
  %5861 = vmatpush1.msra.mxu0 %v5825
  %5862 = vmatprep.subr.mxu0 %v5817
  %5863 = vmatpush1.msra.mxu0 %v5816
  %5864 = vmatprep.subr.mxu0 %v5813
  %5865 = vmatpush1.msra.mxu0 %v5812
  %5866 = vmatprep.subr.mxu0 %v5809
  %5867 = vmatpush1.msra.mxu0 %v5808
  %5868 = vmatprep.subr.mxu0 0.0
  %5869 = vmatpush2.msra.mxu0 0.0
  %5870 = vmatprep.subr.mxu0 0.0
  %5871 = vmatpush2.msra.mxu0 0.0
  %5872 = vmatprep.subr.mxu0 0.0
  %5873 = vmatpush2.msra.mxu0 0.0
  %5874 = vmatprep.subr.mxu0 0.0
  %5875 = vmatpush2.msra.mxu0 0.0
  %5876 = vmatprep.subr.mxu0 0.0
  %5877 = vmatpush2.msra.mxu0 0.0
  %5878 = vmatprep.subr.mxu0 0.0
  %5879 = vmatpush2.msra.mxu0 0.0
  %5880 = vmatprep.subr.mxu0 0.0
  %5881 = vmatpush2.msra.mxu0 0.0
  %5882 = vmatprep.subr.mxu0 0.0
  %5883 = vmatpush2.msra.mxu0 0.0
  %5884 = vmatprep.subr.mxu0 0.0
  %5885 = vmatpush2.msra.mxu0 0.0
  %5886 = vmatprep.subr.mxu0 0.0
  %5887 = vmatpush2.msra.mxu0 0.0
  %5888 = vmatprep.subr.mxu0 0.0
  %5889 = vmatpush2.msra.mxu0 0.0
  %5890 = vmatprep.subr.mxu0 0.0
  %5891 = vmatpush2.msra.mxu0 0.0
  %5892 = vmatprep.subr.mxu0 0.0
  %5893 = vmatpush2.msra.mxu0 0.0
  %5894 = vmatprep.subr.mxu0 0.0
  %5895 = vmatpush2.msra.mxu0 0.0
  %5896 = vmatprep.subr.mxu0 0.0
  %5897 = vmatpush2.msra.mxu0 0.0
  %5898 = vmatprep.subr.mxu0 0.0
  %5899 = vmatpush2.msra.mxu0 0.0
  %5900 = vmatprep.mubr.f32.mxu0 0.0
  %5901 = vmatmul.mubr.f32.gmra.mxu0 %v4871
  %v5902 = vpop.f32.mrf.mxu0
  %v5903 = vadd.f32 0.0, %v5902
  %v5904 = vpop.f32.mrf.mxu0
  %v5905 = vadd.f32 0.0, %v5904
  %5906 = vdwg.mxu0
  %5907 = vmatprep.subr.mxu0 0.0
  %5908 = vmatpush1.msra.mxu0 0.0
  %5909 = vmatprep.subr.mxu0 0.0
  %5910 = vmatpush1.msra.mxu0 0.0
  %5911 = vmatprep.subr.mxu0 0.0
  %5912 = vmatpush1.msra.mxu0 0.0
  %5913 = vmatprep.subr.mxu0 0.0
  %5914 = vmatpush1.msra.mxu0 0.0
  %5915 = vmatprep.subr.mxu0 0.0
  %5916 = vmatpush1.msra.mxu0 0.0
  %5917 = vmatprep.subr.mxu0 0.0
  %5918 = vmatpush1.msra.mxu0 0.0
  %5919 = vmatprep.subr.mxu0 0.0
  %5920 = vmatpush1.msra.mxu0 0.0
  %5921 = vmatprep.subr.mxu0 0.0
  %5922 = vmatpush1.msra.mxu0 0.0
  %5923 = vmatprep.subr.mxu0 0.0
  %5924 = vmatpush1.msra.mxu0 0.0
  %5925 = vmatprep.subr.mxu0 0.0
  %5926 = vmatpush1.msra.mxu0 0.0
  %5927 = vmatprep.subr.mxu0 0.0
  %5928 = vmatpush1.msra.mxu0 0.0
  %5929 = vmatprep.subr.mxu0 0.0
  %5930 = vmatpush1.msra.mxu0 0.0
  %5931 = vmatprep.subr.mxu0 %v5834
  %5932 = vmatpush1.msra.mxu0 %v5831
  %5933 = vmatprep.subr.mxu0 %v5819
  %5934 = vmatpush1.msra.mxu0 %v5818
  %5935 = vmatprep.subr.mxu0 %v5815
  %5936 = vmatpush1.msra.mxu0 %v5814
  %5937 = vmatprep.subr.mxu0 %v5811
  %5938 = vmatpush1.msra.mxu0 %v5810
  %5939 = vmatprep.subr.mxu0 0.0
  %5940 = vmatpush2.msra.mxu0 0.0
  %5941 = vmatprep.subr.mxu0 0.0
  %5942 = vmatpush2.msra.mxu0 0.0
  %5943 = vmatprep.subr.mxu0 0.0
  %5944 = vmatpush2.msra.mxu0 0.0
  %5945 = vmatprep.subr.mxu0 0.0
  %5946 = vmatpush2.msra.mxu0 0.0
  %5947 = vmatprep.subr.mxu0 0.0
  %5948 = vmatpush2.msra.mxu0 0.0
  %5949 = vmatprep.subr.mxu0 0.0
  %5950 = vmatpush2.msra.mxu0 0.0
  %5951 = vmatprep.subr.mxu0 0.0
  %5952 = vmatpush2.msra.mxu0 0.0
  %5953 = vmatprep.subr.mxu0 0.0
  %5954 = vmatpush2.msra.mxu0 0.0
  %5955 = vmatprep.subr.mxu0 0.0
  %5956 = vmatpush2.msra.mxu0 0.0
  %5957 = vmatprep.subr.mxu0 0.0
  %5958 = vmatpush2.msra.mxu0 0.0
  %5959 = vmatprep.subr.mxu0 0.0
  %5960 = vmatpush2.msra.mxu0 0.0
  %5961 = vmatprep.subr.mxu0 0.0
  %5962 = vmatpush2.msra.mxu0 0.0
  %5963 = vmatprep.subr.mxu0 0.0
  %5964 = vmatpush2.msra.mxu0 0.0
  %5965 = vmatprep.subr.mxu0 0.0
  %5966 = vmatpush2.msra.mxu0 0.0
  %5967 = vmatprep.subr.mxu0 0.0
  %5968 = vmatpush2.msra.mxu0 0.0
  %5969 = vmatprep.subr.mxu0 0.0
  %5970 = vmatpush2.msra.mxu0 0.0
  %5971 = vmatprep.mubr.f32.mxu0 0.0
  %5972 = vmatmul.mubr.f32.gmra.mxu0 %v4871
  %v5973 = vpop.f32.mrf.mxu0
  %v5974 = vadd.f32 0.0, %v5973
  %v5975 = vpop.f32.mrf.mxu0
  %v5976 = vadd.f32 0.0, %v5975
  %5977 = vdwg.mxu0
  %v5978 = vadd.f32 %v5733, %v5903
  %v5979 = vadd.f32 %v5735, %v5905
  %v5980 = vadd.f32 %v5804, %v5974
  %v5981 = vadd.f32 %v5806, %v5976
  %5982 = vmatprep.subr.mxu0 0.0
  %5983 = vmatpush1.msra.mxu0 0.0
  %5984 = vmatprep.subr.mxu0 0.0
  %5985 = vmatpush1.msra.mxu0 0.0
  %5986 = vmatprep.subr.mxu0 0.0
  %5987 = vmatpush1.msra.mxu0 0.0
  %5988 = vmatprep.subr.mxu0 0.0
  %5989 = vmatpush1.msra.mxu0 0.0
  %5990 = vmatprep.subr.mxu0 0.0
  %5991 = vmatpush1.msra.mxu0 0.0
  %5992 = vmatprep.subr.mxu0 0.0
  %5993 = vmatpush1.msra.mxu0 0.0
  %5994 = vmatprep.subr.mxu0 0.0
  %5995 = vmatpush1.msra.mxu0 0.0
  %5996 = vmatprep.subr.mxu0 0.0
  %5997 = vmatpush1.msra.mxu0 0.0
  %5998 = vmatprep.subr.mxu0 0.0
  %5999 = vmatpush1.msra.mxu0 0.0
  %6000 = vmatprep.subr.mxu0 0.0
  %6001 = vmatpush1.msra.mxu0 0.0
  %6002 = vmatprep.subr.mxu0 0.0
  %6003 = vmatpush1.msra.mxu0 0.0
  %6004 = vmatprep.subr.mxu0 0.0
  %6005 = vmatpush1.msra.mxu0 0.0
  %6006 = vmatprep.subr.mxu0 %v5504
  %6007 = vmatpush1.msra.mxu0 %v5501
  %6008 = vmatprep.subr.mxu0 %v5493
  %6009 = vmatpush1.msra.mxu0 %v5492
  %6010 = vmatprep.subr.mxu0 %v5489
  %6011 = vmatpush1.msra.mxu0 %v5488
  %6012 = vmatprep.subr.mxu0 %v5485
  %6013 = vmatpush1.msra.mxu0 %v5484
  %6014 = vmatprep.subr.mxu0 0.0
  %6015 = vmatpush2.msra.mxu0 0.0
  %6016 = vmatprep.subr.mxu0 0.0
  %6017 = vmatpush2.msra.mxu0 0.0
  %6018 = vmatprep.subr.mxu0 0.0
  %6019 = vmatpush2.msra.mxu0 0.0
  %6020 = vmatprep.subr.mxu0 0.0
  %6021 = vmatpush2.msra.mxu0 0.0
  %6022 = vmatprep.subr.mxu0 0.0
  %6023 = vmatpush2.msra.mxu0 0.0
  %6024 = vmatprep.subr.mxu0 0.0
  %6025 = vmatpush2.msra.mxu0 0.0
  %6026 = vmatprep.subr.mxu0 0.0
  %6027 = vmatpush2.msra.mxu0 0.0
  %6028 = vmatprep.subr.mxu0 0.0
  %6029 = vmatpush2.msra.mxu0 0.0
  %6030 = vmatprep.subr.mxu0 0.0
  %6031 = vmatpush2.msra.mxu0 0.0
  %6032 = vmatprep.subr.mxu0 0.0
  %6033 = vmatpush2.msra.mxu0 0.0
  %6034 = vmatprep.subr.mxu0 0.0
  %6035 = vmatpush2.msra.mxu0 0.0
  %6036 = vmatprep.subr.mxu0 0.0
  %6037 = vmatpush2.msra.mxu0 0.0
  %6038 = vmatprep.subr.mxu0 0.0
  %6039 = vmatpush2.msra.mxu0 0.0
  %6040 = vmatprep.subr.mxu0 0.0
  %6041 = vmatpush2.msra.mxu0 0.0
  %6042 = vmatprep.subr.mxu0 0.0
  %6043 = vmatpush2.msra.mxu0 0.0
  %6044 = vmatprep.subr.mxu0 0.0
  %6045 = vmatpush2.msra.mxu0 0.0
  %6046 = vmatprep.mubr.f32.mxu0 0.0
  %6047 = vmatmul.mubr.f32.gmra.mxu0 %v4871
  %v6048 = vpop.f32.mrf.mxu0
  %v6049 = vadd.f32 0.0, %v6048
  %v6050 = vpop.f32.mrf.mxu0
  %v6051 = vadd.f32 0.0, %v6050
  %6052 = vdwg.mxu0
  %6053 = vmatprep.subr.mxu0 0.0
  %6054 = vmatpush1.msra.mxu0 0.0
  %6055 = vmatprep.subr.mxu0 0.0
  %6056 = vmatpush1.msra.mxu0 0.0
  %6057 = vmatprep.subr.mxu0 0.0
  %6058 = vmatpush1.msra.mxu0 0.0
  %6059 = vmatprep.subr.mxu0 0.0
  %6060 = vmatpush1.msra.mxu0 0.0
  %6061 = vmatprep.subr.mxu0 0.0
  %6062 = vmatpush1.msra.mxu0 0.0
  %6063 = vmatprep.subr.mxu0 0.0
  %6064 = vmatpush1.msra.mxu0 0.0
  %6065 = vmatprep.subr.mxu0 0.0
  %6066 = vmatpush1.msra.mxu0 0.0
  %6067 = vmatprep.subr.mxu0 0.0
  %6068 = vmatpush1.msra.mxu0 0.0
  %6069 = vmatprep.subr.mxu0 0.0
  %6070 = vmatpush1.msra.mxu0 0.0
  %6071 = vmatprep.subr.mxu0 0.0
  %6072 = vmatpush1.msra.mxu0 0.0
  %6073 = vmatprep.subr.mxu0 0.0
  %6074 = vmatpush1.msra.mxu0 0.0
  %6075 = vmatprep.subr.mxu0 0.0
  %6076 = vmatpush1.msra.mxu0 0.0
  %6077 = vmatprep.subr.mxu0 %v5510
  %6078 = vmatpush1.msra.mxu0 %v5507
  %6079 = vmatprep.subr.mxu0 %v5495
  %6080 = vmatpush1.msra.mxu0 %v5494
  %6081 = vmatprep.subr.mxu0 %v5491
  %6082 = vmatpush1.msra.mxu0 %v5490
  %6083 = vmatprep.subr.mxu0 %v5487
  %6084 = vmatpush1.msra.mxu0 %v5486
  %6085 = vmatprep.subr.mxu0 0.0
  %6086 = vmatpush2.msra.mxu0 0.0
  %6087 = vmatprep.subr.mxu0 0.0
  %6088 = vmatpush2.msra.mxu0 0.0
  %6089 = vmatprep.subr.mxu0 0.0
  %6090 = vmatpush2.msra.mxu0 0.0
  %6091 = vmatprep.subr.mxu0 0.0
  %6092 = vmatpush2.msra.mxu0 0.0
  %6093 = vmatprep.subr.mxu0 0.0
  %6094 = vmatpush2.msra.mxu0 0.0
  %6095 = vmatprep.subr.mxu0 0.0
  %6096 = vmatpush2.msra.mxu0 0.0
  %6097 = vmatprep.subr.mxu0 0.0
  %6098 = vmatpush2.msra.mxu0 0.0
  %6099 = vmatprep.subr.mxu0 0.0
  %6100 = vmatpush2.msra.mxu0 0.0
  %6101 = vmatprep.subr.mxu0 0.0
  %6102 = vmatpush2.msra.mxu0 0.0
  %6103 = vmatprep.subr.mxu0 0.0
  %6104 = vmatpush2.msra.mxu0 0.0
  %6105 = vmatprep.subr.mxu0 0.0
  %6106 = vmatpush2.msra.mxu0 0.0
  %6107 = vmatprep.subr.mxu0 0.0
  %6108 = vmatpush2.msra.mxu0 0.0
  %6109 = vmatprep.subr.mxu0 0.0
  %6110 = vmatpush2.msra.mxu0 0.0
  %6111 = vmatprep.subr.mxu0 0.0
  %6112 = vmatpush2.msra.mxu0 0.0
  %6113 = vmatprep.subr.mxu0 0.0
  %6114 = vmatpush2.msra.mxu0 0.0
  %6115 = vmatprep.subr.mxu0 0.0
  %6116 = vmatpush2.msra.mxu0 0.0
  %6117 = vmatprep.mubr.f32.mxu0 0.0
  %6118 = vmatmul.mubr.f32.gmra.mxu0 %v4871
  %v6119 = vpop.f32.mrf.mxu0
  %v6120 = vadd.f32 0.0, %v6119
  %v6121 = vpop.f32.mrf.mxu0
  %v6122 = vadd.f32 0.0, %v6121
  %6123 = vdwg.mxu0
  %6124 = vmatprep.subr.mxu0 0.0
  %6125 = vmatpush1.msra.mxu0 0.0
  %6126 = vmatprep.subr.mxu0 0.0
  %6127 = vmatpush1.msra.mxu0 0.0
  %6128 = vmatprep.subr.mxu0 0.0
  %6129 = vmatpush1.msra.mxu0 0.0
  %6130 = vmatprep.subr.mxu0 0.0
  %6131 = vmatpush1.msra.mxu0 0.0
  %6132 = vmatprep.subr.mxu0 0.0
  %6133 = vmatpush1.msra.mxu0 0.0
  %6134 = vmatprep.subr.mxu0 0.0
  %6135 = vmatpush1.msra.mxu0 0.0
  %6136 = vmatprep.subr.mxu0 0.0
  %6137 = vmatpush1.msra.mxu0 0.0
  %6138 = vmatprep.subr.mxu0 0.0
  %6139 = vmatpush1.msra.mxu0 0.0
  %6140 = vmatprep.subr.mxu0 0.0
  %6141 = vmatpush1.msra.mxu0 0.0
  %6142 = vmatprep.subr.mxu0 0.0
  %6143 = vmatpush1.msra.mxu0 0.0
  %6144 = vmatprep.subr.mxu0 0.0
  %6145 = vmatpush1.msra.mxu0 0.0
  %6146 = vmatprep.subr.mxu0 0.0
  %6147 = vmatpush1.msra.mxu0 0.0
  %6148 = vmatprep.subr.mxu0 %v5658
  %6149 = vmatpush1.msra.mxu0 %v5655
  %6150 = vmatprep.subr.mxu0 %v5477
  %6151 = vmatpush1.msra.mxu0 %v5476
  %6152 = vmatprep.subr.mxu0 %v5473
  %6153 = vmatpush1.msra.mxu0 %v5472
  %6154 = vmatprep.subr.mxu0 %v5469
  %6155 = vmatpush1.msra.mxu0 %v5468
  %6156 = vmatprep.subr.mxu0 0.0
  %6157 = vmatpush2.msra.mxu0 0.0
  %6158 = vmatprep.subr.mxu0 0.0
  %6159 = vmatpush2.msra.mxu0 0.0
  %6160 = vmatprep.subr.mxu0 0.0
  %6161 = vmatpush2.msra.mxu0 0.0
  %6162 = vmatprep.subr.mxu0 0.0
  %6163 = vmatpush2.msra.mxu0 0.0
  %6164 = vmatprep.subr.mxu0 0.0
  %6165 = vmatpush2.msra.mxu0 0.0
  %6166 = vmatprep.subr.mxu0 0.0
  %6167 = vmatpush2.msra.mxu0 0.0
  %6168 = vmatprep.subr.mxu0 0.0
  %6169 = vmatpush2.msra.mxu0 0.0
  %6170 = vmatprep.subr.mxu0 0.0
  %6171 = vmatpush2.msra.mxu0 0.0
  %6172 = vmatprep.subr.mxu0 0.0
  %6173 = vmatpush2.msra.mxu0 0.0
  %6174 = vmatprep.subr.mxu0 0.0
  %6175 = vmatpush2.msra.mxu0 0.0
  %6176 = vmatprep.subr.mxu0 0.0
  %6177 = vmatpush2.msra.mxu0 0.0
  %6178 = vmatprep.subr.mxu0 0.0
  %6179 = vmatpush2.msra.mxu0 0.0
  %6180 = vmatprep.subr.mxu0 0.0
  %6181 = vmatpush2.msra.mxu0 0.0
  %6182 = vmatprep.subr.mxu0 0.0
  %6183 = vmatpush2.msra.mxu0 0.0
  %6184 = vmatprep.subr.mxu0 0.0
  %6185 = vmatpush2.msra.mxu0 0.0
  %6186 = vmatprep.subr.mxu0 0.0
  %6187 = vmatpush2.msra.mxu0 0.0
  %6188 = vmatprep.mubr.f32.mxu0 0.0
  %6189 = vmatmul.mubr.f32.gmra.mxu0 %v4541
  %v6190 = vpop.f32.mrf.mxu0
  %v6191 = vadd.f32 %v6049, %v6190
  %v6192 = vpop.f32.mrf.mxu0
  %v6193 = vadd.f32 %v6051, %v6192
  %6194 = vdwg.mxu0
  %6195 = vmatprep.subr.mxu0 0.0
  %6196 = vmatpush1.msra.mxu0 0.0
  %6197 = vmatprep.subr.mxu0 0.0
  %6198 = vmatpush1.msra.mxu0 0.0
  %6199 = vmatprep.subr.mxu0 0.0
  %6200 = vmatpush1.msra.mxu0 0.0
  %6201 = vmatprep.subr.mxu0 0.0
  %6202 = vmatpush1.msra.mxu0 0.0
  %6203 = vmatprep.subr.mxu0 0.0
  %6204 = vmatpush1.msra.mxu0 0.0
  %6205 = vmatprep.subr.mxu0 0.0
  %6206 = vmatpush1.msra.mxu0 0.0
  %6207 = vmatprep.subr.mxu0 0.0
  %6208 = vmatpush1.msra.mxu0 0.0
  %6209 = vmatprep.subr.mxu0 0.0
  %6210 = vmatpush1.msra.mxu0 0.0
  %6211 = vmatprep.subr.mxu0 0.0
  %6212 = vmatpush1.msra.mxu0 0.0
  %6213 = vmatprep.subr.mxu0 0.0
  %6214 = vmatpush1.msra.mxu0 0.0
  %6215 = vmatprep.subr.mxu0 0.0
  %6216 = vmatpush1.msra.mxu0 0.0
  %6217 = vmatprep.subr.mxu0 0.0
  %6218 = vmatpush1.msra.mxu0 0.0
  %6219 = vmatprep.subr.mxu0 %v5664
  %6220 = vmatpush1.msra.mxu0 %v5661
  %6221 = vmatprep.subr.mxu0 %v5479
  %6222 = vmatpush1.msra.mxu0 %v5478
  %6223 = vmatprep.subr.mxu0 %v5475
  %6224 = vmatpush1.msra.mxu0 %v5474
  %6225 = vmatprep.subr.mxu0 %v5471
  %6226 = vmatpush1.msra.mxu0 %v5470
  %6227 = vmatprep.subr.mxu0 0.0
  %6228 = vmatpush2.msra.mxu0 0.0
  %6229 = vmatprep.subr.mxu0 0.0
  %6230 = vmatpush2.msra.mxu0 0.0
  %6231 = vmatprep.subr.mxu0 0.0
  %6232 = vmatpush2.msra.mxu0 0.0
  %6233 = vmatprep.subr.mxu0 0.0
  %6234 = vmatpush2.msra.mxu0 0.0
  %6235 = vmatprep.subr.mxu0 0.0
  %6236 = vmatpush2.msra.mxu0 0.0
  %6237 = vmatprep.subr.mxu0 0.0
  %6238 = vmatpush2.msra.mxu0 0.0
  %6239 = vmatprep.subr.mxu0 0.0
  %6240 = vmatpush2.msra.mxu0 0.0
  %6241 = vmatprep.subr.mxu0 0.0
  %6242 = vmatpush2.msra.mxu0 0.0
  %6243 = vmatprep.subr.mxu0 0.0
  %6244 = vmatpush2.msra.mxu0 0.0
  %6245 = vmatprep.subr.mxu0 0.0
  %6246 = vmatpush2.msra.mxu0 0.0
  %6247 = vmatprep.subr.mxu0 0.0
  %6248 = vmatpush2.msra.mxu0 0.0
  %6249 = vmatprep.subr.mxu0 0.0
  %6250 = vmatpush2.msra.mxu0 0.0
  %6251 = vmatprep.subr.mxu0 0.0
  %6252 = vmatpush2.msra.mxu0 0.0
  %6253 = vmatprep.subr.mxu0 0.0
  %6254 = vmatpush2.msra.mxu0 0.0
  %6255 = vmatprep.subr.mxu0 0.0
  %6256 = vmatpush2.msra.mxu0 0.0
  %6257 = vmatprep.subr.mxu0 0.0
  %6258 = vmatpush2.msra.mxu0 0.0
  %6259 = vmatprep.mubr.f32.mxu0 0.0
  %6260 = vmatmul.mubr.f32.gmra.mxu0 %v4541
  %v6261 = vpop.f32.mrf.mxu0
  %v6262 = vadd.f32 %v6120, %v6261
  %v6263 = vpop.f32.mrf.mxu0
  %v6264 = vadd.f32 %v6122, %v6263
  %6265 = vdwg.mxu0
  %6266 = vmatprep.subr.mxu0 0.0
  %6267 = vmatpush1.msra.mxu0 0.0
  %6268 = vmatprep.subr.mxu0 0.0
  %6269 = vmatpush1.msra.mxu0 0.0
  %6270 = vmatprep.subr.mxu0 0.0
  %6271 = vmatpush1.msra.mxu0 0.0
  %6272 = vmatprep.subr.mxu0 0.0
  %6273 = vmatpush1.msra.mxu0 0.0
  %6274 = vmatprep.subr.mxu0 0.0
  %6275 = vmatpush1.msra.mxu0 0.0
  %6276 = vmatprep.subr.mxu0 0.0
  %6277 = vmatpush1.msra.mxu0 0.0
  %6278 = vmatprep.subr.mxu0 0.0
  %6279 = vmatpush1.msra.mxu0 0.0
  %6280 = vmatprep.subr.mxu0 0.0
  %6281 = vmatpush1.msra.mxu0 0.0
  %6282 = vmatprep.subr.mxu0 0.0
  %6283 = vmatpush1.msra.mxu0 0.0
  %6284 = vmatprep.subr.mxu0 0.0
  %6285 = vmatpush1.msra.mxu0 0.0
  %6286 = vmatprep.subr.mxu0 0.0
  %6287 = vmatpush1.msra.mxu0 0.0
  %6288 = vmatprep.subr.mxu0 0.0
  %6289 = vmatpush1.msra.mxu0 0.0
  %6290 = vmatprep.subr.mxu0 %v5828
  %6291 = vmatpush1.msra.mxu0 %v5825
  %6292 = vmatprep.subr.mxu0 %v5817
  %6293 = vmatpush1.msra.mxu0 %v5816
  %6294 = vmatprep.subr.mxu0 %v5813
  %6295 = vmatpush1.msra.mxu0 %v5812
  %6296 = vmatprep.subr.mxu0 %v5809
  %6297 = vmatpush1.msra.mxu0 %v5808
  %6298 = vmatprep.subr.mxu0 0.0
  %6299 = vmatpush2.msra.mxu0 0.0
  %6300 = vmatprep.subr.mxu0 0.0
  %6301 = vmatpush2.msra.mxu0 0.0
  %6302 = vmatprep.subr.mxu0 0.0
  %6303 = vmatpush2.msra.mxu0 0.0
  %6304 = vmatprep.subr.mxu0 0.0
  %6305 = vmatpush2.msra.mxu0 0.0
  %6306 = vmatprep.subr.mxu0 0.0
  %6307 = vmatpush2.msra.mxu0 0.0
  %6308 = vmatprep.subr.mxu0 0.0
  %6309 = vmatpush2.msra.mxu0 0.0
  %6310 = vmatprep.subr.mxu0 0.0
  %6311 = vmatpush2.msra.mxu0 0.0
  %6312 = vmatprep.subr.mxu0 0.0
  %6313 = vmatpush2.msra.mxu0 0.0
  %6314 = vmatprep.subr.mxu0 0.0
  %6315 = vmatpush2.msra.mxu0 0.0
  %6316 = vmatprep.subr.mxu0 0.0
  %6317 = vmatpush2.msra.mxu0 0.0
  %6318 = vmatprep.subr.mxu0 0.0
  %6319 = vmatpush2.msra.mxu0 0.0
  %6320 = vmatprep.subr.mxu0 0.0
  %6321 = vmatpush2.msra.mxu0 0.0
  %6322 = vmatprep.subr.mxu0 0.0
  %6323 = vmatpush2.msra.mxu0 0.0
  %6324 = vmatprep.subr.mxu0 0.0
  %6325 = vmatpush2.msra.mxu0 0.0
  %6326 = vmatprep.subr.mxu0 0.0
  %6327 = vmatpush2.msra.mxu0 0.0
  %6328 = vmatprep.subr.mxu0 0.0
  %6329 = vmatpush2.msra.mxu0 0.0
  %6330 = vmatprep.mubr.f32.mxu0 0.0
  %6331 = vmatmul.mubr.f32.gmra.mxu0 %v5316
  %v6332 = vpop.f32.mrf.mxu0
  %v6333 = vadd.f32 0.0, %v6332
  %v6334 = vpop.f32.mrf.mxu0
  %v6335 = vadd.f32 0.0, %v6334
  %6336 = vdwg.mxu0
  %6337 = vmatprep.subr.mxu0 0.0
  %6338 = vmatpush1.msra.mxu0 0.0
  %6339 = vmatprep.subr.mxu0 0.0
  %6340 = vmatpush1.msra.mxu0 0.0
  %6341 = vmatprep.subr.mxu0 0.0
  %6342 = vmatpush1.msra.mxu0 0.0
  %6343 = vmatprep.subr.mxu0 0.0
  %6344 = vmatpush1.msra.mxu0 0.0
  %6345 = vmatprep.subr.mxu0 0.0
  %6346 = vmatpush1.msra.mxu0 0.0
  %6347 = vmatprep.subr.mxu0 0.0
  %6348 = vmatpush1.msra.mxu0 0.0
  %6349 = vmatprep.subr.mxu0 0.0
  %6350 = vmatpush1.msra.mxu0 0.0
  %6351 = vmatprep.subr.mxu0 0.0
  %6352 = vmatpush1.msra.mxu0 0.0
  %6353 = vmatprep.subr.mxu0 0.0
  %6354 = vmatpush1.msra.mxu0 0.0
  %6355 = vmatprep.subr.mxu0 0.0
  %6356 = vmatpush1.msra.mxu0 0.0
  %6357 = vmatprep.subr.mxu0 0.0
  %6358 = vmatpush1.msra.mxu0 0.0
  %6359 = vmatprep.subr.mxu0 0.0
  %6360 = vmatpush1.msra.mxu0 0.0
  %6361 = vmatprep.subr.mxu0 %v5834
  %6362 = vmatpush1.msra.mxu0 %v5831
  %6363 = vmatprep.subr.mxu0 %v5819
  %6364 = vmatpush1.msra.mxu0 %v5818
  %6365 = vmatprep.subr.mxu0 %v5815
  %6366 = vmatpush1.msra.mxu0 %v5814
  %6367 = vmatprep.subr.mxu0 %v5811
  %6368 = vmatpush1.msra.mxu0 %v5810
  %6369 = vmatprep.subr.mxu0 0.0
  %6370 = vmatpush2.msra.mxu0 0.0
  %6371 = vmatprep.subr.mxu0 0.0
  %6372 = vmatpush2.msra.mxu0 0.0
  %6373 = vmatprep.subr.mxu0 0.0
  %6374 = vmatpush2.msra.mxu0 0.0
  %6375 = vmatprep.subr.mxu0 0.0
  %6376 = vmatpush2.msra.mxu0 0.0
  %6377 = vmatprep.subr.mxu0 0.0
  %6378 = vmatpush2.msra.mxu0 0.0
  %6379 = vmatprep.subr.mxu0 0.0
  %6380 = vmatpush2.msra.mxu0 0.0
  %6381 = vmatprep.subr.mxu0 0.0
  %6382 = vmatpush2.msra.mxu0 0.0
  %6383 = vmatprep.subr.mxu0 0.0
  %6384 = vmatpush2.msra.mxu0 0.0
  %6385 = vmatprep.subr.mxu0 0.0
  %6386 = vmatpush2.msra.mxu0 0.0
  %6387 = vmatprep.subr.mxu0 0.0
  %6388 = vmatpush2.msra.mxu0 0.0
  %6389 = vmatprep.subr.mxu0 0.0
  %6390 = vmatpush2.msra.mxu0 0.0
  %6391 = vmatprep.subr.mxu0 0.0
  %6392 = vmatpush2.msra.mxu0 0.0
  %6393 = vmatprep.subr.mxu0 0.0
  %6394 = vmatpush2.msra.mxu0 0.0
  %6395 = vmatprep.subr.mxu0 0.0
  %6396 = vmatpush2.msra.mxu0 0.0
  %6397 = vmatprep.subr.mxu0 0.0
  %6398 = vmatpush2.msra.mxu0 0.0
  %6399 = vmatprep.subr.mxu0 0.0
  %6400 = vmatpush2.msra.mxu0 0.0
  %6401 = vmatprep.mubr.f32.mxu0 0.0
  %6402 = vmatmul.mubr.f32.gmra.mxu0 %v5316
  %v6403 = vpop.f32.mrf.mxu0
  %v6404 = vadd.f32 0.0, %v6403
  %v6405 = vpop.f32.mrf.mxu0
  %v6406 = vadd.f32 0.0, %v6405
  %6407 = vdwg.mxu0
  %v6408 = vadd.f32 %v6191, %v6333
  %v6409 = vadd.f32 %v6193, %v6335
  %v6410 = vadd.f32 %v6262, %v6404
  %v6411 = vadd.f32 %v6264, %v6406
  %v6412 = vmax.f32 %v5978, %v6408
  %v6413 = vmax.f32 %v5979, %v6409
  %v6414 = vmax.f32 %v5980, %v6410
  %v6415 = vmax.f32 %v5981, %v6411
  %v6416 = vmax.f32 %v5464, %v6412
  %v6417 = vmax.f32 %v5465, %v6413
  %v6418 = vmax.f32 %v5466, %v6414
  %v6419 = vmax.f32 %v5467, %v6415
  %v6420 = vadd.f32 %v6416, %v1952
  %v6421 = vadd.f32 %v6417, %v1956
  %v6422 = vadd.f32 %v6418, %v1960
  %v6423 = vadd.f32 %v6419, %v1964
  %v6424 = vmax.f32 %v6420, 0.0
  %v6425 = vmax.f32 %v6421, 0.0
  %v6426 = vmax.f32 %v6422, 0.0
  %v6427 = vmax.f32 %v6423, 0.0
  %6428 = vmatprep.subr.mxu0 0.0
  %6429 = vmatpush1.msra.mxu0 0.0
  %6430 = vmatprep.subr.mxu0 0.0
  %6431 = vmatpush1.msra.mxu0 0.0
  %6432 = vmatprep.subr.mxu0 0.0
  %6433 = vmatpush1.msra.mxu0 0.0
  %6434 = vmatprep.subr.mxu0 0.0
  %6435 = vmatpush1.msra.mxu0 0.0
  %6436 = vmatprep.subr.mxu0 0.0
  %6437 = vmatpush1.msra.mxu0 0.0
  %6438 = vmatprep.subr.mxu0 0.0
  %6439 = vmatpush1.msra.mxu0 0.0
  %6440 = vmatprep.subr.mxu0 0.0
  %6441 = vmatpush1.msra.mxu0 0.0
  %6442 = vmatprep.subr.mxu0 0.0
  %6443 = vmatpush1.msra.mxu0 0.0
  %6444 = vmatprep.subr.mxu0 0.0
  %6445 = vmatpush1.msra.mxu0 0.0
  %6446 = vmatprep.subr.mxu0 0.0
  %6447 = vmatpush1.msra.mxu0 0.0
  %6448 = vmatprep.subr.mxu0 0.0
  %6449 = vmatpush1.msra.mxu0 0.0
  %6450 = vmatprep.subr.mxu0 0.0
  %6451 = vmatpush1.msra.mxu0 0.0
  %6452 = vmatprep.subr.mxu0 %v4547
  %6453 = vmatpush1.msra.mxu0 %v4544
  %6454 = vmatprep.subr.mxu0 %v4533
  %6455 = vmatpush1.msra.mxu0 %v4532
  %6456 = vmatprep.subr.mxu0 %v4529
  %6457 = vmatpush1.msra.mxu0 %v4528
  %6458 = vmatprep.subr.mxu0 %v4525
  %6459 = vmatpush1.msra.mxu0 %v4524
  %6460 = vmatprep.subr.mxu0 0.0
  %6461 = vmatpush2.msra.mxu0 0.0
  %6462 = vmatprep.subr.mxu0 0.0
  %6463 = vmatpush2.msra.mxu0 0.0
  %6464 = vmatprep.subr.mxu0 0.0
  %6465 = vmatpush2.msra.mxu0 0.0
  %6466 = vmatprep.subr.mxu0 0.0
  %6467 = vmatpush2.msra.mxu0 0.0
  %6468 = vmatprep.subr.mxu0 0.0
  %6469 = vmatpush2.msra.mxu0 0.0
  %6470 = vmatprep.subr.mxu0 0.0
  %6471 = vmatpush2.msra.mxu0 0.0
  %6472 = vmatprep.subr.mxu0 0.0
  %6473 = vmatpush2.msra.mxu0 0.0
  %6474 = vmatprep.subr.mxu0 0.0
  %6475 = vmatpush2.msra.mxu0 0.0
  %6476 = vmatprep.subr.mxu0 0.0
  %6477 = vmatpush2.msra.mxu0 0.0
  %6478 = vmatprep.subr.mxu0 0.0
  %6479 = vmatpush2.msra.mxu0 0.0
  %6480 = vmatprep.subr.mxu0 0.0
  %6481 = vmatpush2.msra.mxu0 0.0
  %6482 = vmatprep.subr.mxu0 0.0
  %6483 = vmatpush2.msra.mxu0 0.0
  %6484 = vmatprep.subr.mxu0 0.0
  %6485 = vmatpush2.msra.mxu0 0.0
  %6486 = vmatprep.subr.mxu0 0.0
  %6487 = vmatpush2.msra.mxu0 0.0
  %6488 = vmatprep.subr.mxu0 0.0
  %6489 = vmatpush2.msra.mxu0 0.0
  %6490 = vmatprep.subr.mxu0 0.0
  %6491 = vmatpush2.msra.mxu0 0.0
  %6492 = vmatprep.mubr.f32.mxu0 0.0
  %6493 = vmatmul.mubr.f32.gmra.mxu0 %v5316
  %v6494 = vpop.f32.mrf.mxu0
  %v6495 = vadd.f32 0.0, %v6494
  %v6496 = vpop.f32.mrf.mxu0
  %v6497 = vadd.f32 0.0, %v6496
  %6498 = vdwg.mxu0
  %6499 = vmatprep.subr.mxu0 0.0
  %6500 = vmatpush1.msra.mxu0 0.0
  %6501 = vmatprep.subr.mxu0 0.0
  %6502 = vmatpush1.msra.mxu0 0.0
  %6503 = vmatprep.subr.mxu0 0.0
  %6504 = vmatpush1.msra.mxu0 0.0
  %6505 = vmatprep.subr.mxu0 0.0
  %6506 = vmatpush1.msra.mxu0 0.0
  %6507 = vmatprep.subr.mxu0 0.0
  %6508 = vmatpush1.msra.mxu0 0.0
  %6509 = vmatprep.subr.mxu0 0.0
  %6510 = vmatpush1.msra.mxu0 0.0
  %6511 = vmatprep.subr.mxu0 0.0
  %6512 = vmatpush1.msra.mxu0 0.0
  %6513 = vmatprep.subr.mxu0 0.0
  %6514 = vmatpush1.msra.mxu0 0.0
  %6515 = vmatprep.subr.mxu0 0.0
  %6516 = vmatpush1.msra.mxu0 0.0
  %6517 = vmatprep.subr.mxu0 0.0
  %6518 = vmatpush1.msra.mxu0 0.0
  %6519 = vmatprep.subr.mxu0 0.0
  %6520 = vmatpush1.msra.mxu0 0.0
  %6521 = vmatprep.subr.mxu0 0.0
  %6522 = vmatpush1.msra.mxu0 0.0
  %6523 = vmatprep.subr.mxu0 %v4553
  %6524 = vmatpush1.msra.mxu0 %v4550
  %6525 = vmatprep.subr.mxu0 %v4535
  %6526 = vmatpush1.msra.mxu0 %v4534
  %6527 = vmatprep.subr.mxu0 %v4531
  %6528 = vmatpush1.msra.mxu0 %v4530
  %6529 = vmatprep.subr.mxu0 %v4527
  %6530 = vmatpush1.msra.mxu0 %v4526
  %6531 = vmatprep.subr.mxu0 0.0
  %6532 = vmatpush2.msra.mxu0 0.0
  %6533 = vmatprep.subr.mxu0 0.0
  %6534 = vmatpush2.msra.mxu0 0.0
  %6535 = vmatprep.subr.mxu0 0.0
  %6536 = vmatpush2.msra.mxu0 0.0
  %6537 = vmatprep.subr.mxu0 0.0
  %6538 = vmatpush2.msra.mxu0 0.0
  %6539 = vmatprep.subr.mxu0 0.0
  %6540 = vmatpush2.msra.mxu0 0.0
  %6541 = vmatprep.subr.mxu0 0.0
  %6542 = vmatpush2.msra.mxu0 0.0
  %6543 = vmatprep.subr.mxu0 0.0
  %6544 = vmatpush2.msra.mxu0 0.0
  %6545 = vmatprep.subr.mxu0 0.0
  %6546 = vmatpush2.msra.mxu0 0.0
  %6547 = vmatprep.subr.mxu0 0.0
  %6548 = vmatpush2.msra.mxu0 0.0
  %6549 = vmatprep.subr.mxu0 0.0
  %6550 = vmatpush2.msra.mxu0 0.0
  %6551 = vmatprep.subr.mxu0 0.0
  %6552 = vmatpush2.msra.mxu0 0.0
  %6553 = vmatprep.subr.mxu0 0.0
  %6554 = vmatpush2.msra.mxu0 0.0
  %6555 = vmatprep.subr.mxu0 0.0
  %6556 = vmatpush2.msra.mxu0 0.0
  %6557 = vmatprep.subr.mxu0 0.0
  %6558 = vmatpush2.msra.mxu0 0.0
  %6559 = vmatprep.subr.mxu0 0.0
  %6560 = vmatpush2.msra.mxu0 0.0
  %6561 = vmatprep.subr.mxu0 0.0
  %6562 = vmatpush2.msra.mxu0 0.0
  %6563 = vmatprep.mubr.f32.mxu0 0.0
  %6564 = vmatmul.mubr.f32.gmra.mxu0 %v5316
  %v6565 = vpop.f32.mrf.mxu0
  %v6566 = vadd.f32 0.0, %v6565
  %v6567 = vpop.f32.mrf.mxu0
  %v6568 = vadd.f32 0.0, %v6567
  %6569 = vdwg.mxu0
  %6570 = vmatprep.subr.mxu0 0.0
  %6571 = vmatpush1.msra.mxu0 0.0
  %6572 = vmatprep.subr.mxu0 0.0
  %6573 = vmatpush1.msra.mxu0 0.0
  %6574 = vmatprep.subr.mxu0 0.0
  %6575 = vmatpush1.msra.mxu0 0.0
  %6576 = vmatprep.subr.mxu0 0.0
  %6577 = vmatpush1.msra.mxu0 0.0
  %6578 = vmatprep.subr.mxu0 0.0
  %6579 = vmatpush1.msra.mxu0 0.0
  %6580 = vmatprep.subr.mxu0 0.0
  %6581 = vmatpush1.msra.mxu0 0.0
  %6582 = vmatprep.subr.mxu0 0.0
  %6583 = vmatpush1.msra.mxu0 0.0
  %6584 = vmatprep.subr.mxu0 0.0
  %6585 = vmatpush1.msra.mxu0 0.0
  %6586 = vmatprep.subr.mxu0 0.0
  %6587 = vmatpush1.msra.mxu0 0.0
  %6588 = vmatprep.subr.mxu0 0.0
  %6589 = vmatpush1.msra.mxu0 0.0
  %6590 = vmatprep.subr.mxu0 0.0
  %6591 = vmatpush1.msra.mxu0 0.0
  %6592 = vmatprep.subr.mxu0 0.0
  %6593 = vmatpush1.msra.mxu0 0.0
  %6594 = vmatprep.subr.mxu0 %v4704
  %6595 = vmatpush1.msra.mxu0 %v4701
  %6596 = vmatprep.subr.mxu0 %v4517
  %6597 = vmatpush1.msra.mxu0 %v4516
  %6598 = vmatprep.subr.mxu0 %v4513
  %6599 = vmatpush1.msra.mxu0 %v4512
  %6600 = vmatprep.subr.mxu0 %v4509
  %6601 = vmatpush1.msra.mxu0 %v4508
  %6602 = vmatprep.subr.mxu0 0.0
  %6603 = vmatpush2.msra.mxu0 0.0
  %6604 = vmatprep.subr.mxu0 0.0
  %6605 = vmatpush2.msra.mxu0 0.0
  %6606 = vmatprep.subr.mxu0 0.0
  %6607 = vmatpush2.msra.mxu0 0.0
  %6608 = vmatprep.subr.mxu0 0.0
  %6609 = vmatpush2.msra.mxu0 0.0
  %6610 = vmatprep.subr.mxu0 0.0
  %6611 = vmatpush2.msra.mxu0 0.0
  %6612 = vmatprep.subr.mxu0 0.0
  %6613 = vmatpush2.msra.mxu0 0.0
  %6614 = vmatprep.subr.mxu0 0.0
  %6615 = vmatpush2.msra.mxu0 0.0
  %6616 = vmatprep.subr.mxu0 0.0
  %6617 = vmatpush2.msra.mxu0 0.0
  %6618 = vmatprep.subr.mxu0 0.0
  %6619 = vmatpush2.msra.mxu0 0.0
  %6620 = vmatprep.subr.mxu0 0.0
  %6621 = vmatpush2.msra.mxu0 0.0
  %6622 = vmatprep.subr.mxu0 0.0
  %6623 = vmatpush2.msra.mxu0 0.0
  %6624 = vmatprep.subr.mxu0 0.0
  %6625 = vmatpush2.msra.mxu0 0.0
  %6626 = vmatprep.subr.mxu0 0.0
  %6627 = vmatpush2.msra.mxu0 0.0
  %6628 = vmatprep.subr.mxu0 0.0
  %6629 = vmatpush2.msra.mxu0 0.0
  %6630 = vmatprep.subr.mxu0 0.0
  %6631 = vmatpush2.msra.mxu0 0.0
  %6632 = vmatprep.subr.mxu0 0.0
  %6633 = vmatpush2.msra.mxu0 0.0
  %6634 = vmatprep.mubr.f32.mxu0 0.0
  %6635 = vmatmul.mubr.f32.gmra.mxu0 %v4871
  %v6636 = vpop.f32.mrf.mxu0
  %v6637 = vadd.f32 %v6495, %v6636
  %v6638 = vpop.f32.mrf.mxu0
  %v6639 = vadd.f32 %v6497, %v6638
  %6640 = vdwg.mxu0
  %6641 = vmatprep.subr.mxu0 0.0
  %6642 = vmatpush1.msra.mxu0 0.0
  %6643 = vmatprep.subr.mxu0 0.0
  %6644 = vmatpush1.msra.mxu0 0.0
  %6645 = vmatprep.subr.mxu0 0.0
  %6646 = vmatpush1.msra.mxu0 0.0
  %6647 = vmatprep.subr.mxu0 0.0
  %6648 = vmatpush1.msra.mxu0 0.0
  %6649 = vmatprep.subr.mxu0 0.0
  %6650 = vmatpush1.msra.mxu0 0.0
  %6651 = vmatprep.subr.mxu0 0.0
  %6652 = vmatpush1.msra.mxu0 0.0
  %6653 = vmatprep.subr.mxu0 0.0
  %6654 = vmatpush1.msra.mxu0 0.0
  %6655 = vmatprep.subr.mxu0 0.0
  %6656 = vmatpush1.msra.mxu0 0.0
  %6657 = vmatprep.subr.mxu0 0.0
  %6658 = vmatpush1.msra.mxu0 0.0
  %6659 = vmatprep.subr.mxu0 0.0
  %6660 = vmatpush1.msra.mxu0 0.0
  %6661 = vmatprep.subr.mxu0 0.0
  %6662 = vmatpush1.msra.mxu0 0.0
  %6663 = vmatprep.subr.mxu0 0.0
  %6664 = vmatpush1.msra.mxu0 0.0
  %6665 = vmatprep.subr.mxu0 %v4710
  %6666 = vmatpush1.msra.mxu0 %v4707
  %6667 = vmatprep.subr.mxu0 %v4519
  %6668 = vmatpush1.msra.mxu0 %v4518
  %6669 = vmatprep.subr.mxu0 %v4515
  %6670 = vmatpush1.msra.mxu0 %v4514
  %6671 = vmatprep.subr.mxu0 %v4511
  %6672 = vmatpush1.msra.mxu0 %v4510
  %6673 = vmatprep.subr.mxu0 0.0
  %6674 = vmatpush2.msra.mxu0 0.0
  %6675 = vmatprep.subr.mxu0 0.0
  %6676 = vmatpush2.msra.mxu0 0.0
  %6677 = vmatprep.subr.mxu0 0.0
  %6678 = vmatpush2.msra.mxu0 0.0
  %6679 = vmatprep.subr.mxu0 0.0
  %6680 = vmatpush2.msra.mxu0 0.0
  %6681 = vmatprep.subr.mxu0 0.0
  %6682 = vmatpush2.msra.mxu0 0.0
  %6683 = vmatprep.subr.mxu0 0.0
  %6684 = vmatpush2.msra.mxu0 0.0
  %6685 = vmatprep.subr.mxu0 0.0
  %6686 = vmatpush2.msra.mxu0 0.0
  %6687 = vmatprep.subr.mxu0 0.0
  %6688 = vmatpush2.msra.mxu0 0.0
  %6689 = vmatprep.subr.mxu0 0.0
  %6690 = vmatpush2.msra.mxu0 0.0
  %6691 = vmatprep.subr.mxu0 0.0
  %6692 = vmatpush2.msra.mxu0 0.0
  %6693 = vmatprep.subr.mxu0 0.0
  %6694 = vmatpush2.msra.mxu0 0.0
  %6695 = vmatprep.subr.mxu0 0.0
  %6696 = vmatpush2.msra.mxu0 0.0
  %6697 = vmatprep.subr.mxu0 0.0
  %6698 = vmatpush2.msra.mxu0 0.0
  %6699 = vmatprep.subr.mxu0 0.0
  %6700 = vmatpush2.msra.mxu0 0.0
  %6701 = vmatprep.subr.mxu0 0.0
  %6702 = vmatpush2.msra.mxu0 0.0
  %6703 = vmatprep.subr.mxu0 0.0
  %6704 = vmatpush2.msra.mxu0 0.0
  %6705 = vmatprep.mubr.f32.mxu0 0.0
  %6706 = vmatmul.mubr.f32.gmra.mxu0 %v4871
  %v6707 = vpop.f32.mrf.mxu0
  %v6708 = vadd.f32 %v6566, %v6707
  %v6709 = vpop.f32.mrf.mxu0
  %v6710 = vadd.f32 %v6568, %v6709
  %6711 = vdwg.mxu0
  %v6712 = vrot.slane %v4501, 1
  %v6713 = vsel %vm62, %v6712, 0
  %6715 = vmatprep.subr.mxu0 0.0
  %6716 = vmatpush1.msra.mxu0 0.0
  %6717 = vmatprep.subr.mxu0 0.0
  %6718 = vmatpush1.msra.mxu0 0.0
  %6719 = vmatprep.subr.mxu0 0.0
  %6720 = vmatpush1.msra.mxu0 0.0
  %6721 = vmatprep.subr.mxu0 0.0
  %6722 = vmatpush1.msra.mxu0 0.0
  %6723 = vmatprep.subr.mxu0 0.0
  %6724 = vmatpush1.msra.mxu0 0.0
  %6725 = vmatprep.subr.mxu0 0.0
  %6726 = vmatpush1.msra.mxu0 0.0
  %6727 = vmatprep.subr.mxu0 0.0
  %6728 = vmatpush1.msra.mxu0 0.0
  %6729 = vmatprep.subr.mxu0 0.0
  %6730 = vmatpush1.msra.mxu0 0.0
  %6731 = vmatprep.subr.mxu0 0.0
  %6732 = vmatpush1.msra.mxu0 0.0
  %6733 = vmatprep.subr.mxu0 0.0
  %6734 = vmatpush1.msra.mxu0 0.0
  %6735 = vmatprep.subr.mxu0 0.0
  %6736 = vmatpush1.msra.mxu0 0.0
  %6737 = vmatprep.subr.mxu0 0.0
  %6738 = vmatpush1.msra.mxu0 0.0
  %6739 = vmatprep.subr.mxu0 %v4877
  %6740 = vmatpush1.msra.mxu0 %v4874
  %6741 = vmatprep.subr.mxu0 %v4863
  %6742 = vmatpush1.msra.mxu0 %v4862
  %6743 = vmatprep.subr.mxu0 %v4859
  %6744 = vmatpush1.msra.mxu0 %v4858
  %6745 = vmatprep.subr.mxu0 %v4855
  %6746 = vmatpush1.msra.mxu0 %v4854
  %6747 = vmatprep.subr.mxu0 0.0
  %6748 = vmatpush2.msra.mxu0 0.0
  %6749 = vmatprep.subr.mxu0 0.0
  %6750 = vmatpush2.msra.mxu0 0.0
  %6751 = vmatprep.subr.mxu0 0.0
  %6752 = vmatpush2.msra.mxu0 0.0
  %6753 = vmatprep.subr.mxu0 0.0
  %6754 = vmatpush2.msra.mxu0 0.0
  %6755 = vmatprep.subr.mxu0 0.0
  %6756 = vmatpush2.msra.mxu0 0.0
  %6757 = vmatprep.subr.mxu0 0.0
  %6758 = vmatpush2.msra.mxu0 0.0
  %6759 = vmatprep.subr.mxu0 0.0
  %6760 = vmatpush2.msra.mxu0 0.0
  %6761 = vmatprep.subr.mxu0 0.0
  %6762 = vmatpush2.msra.mxu0 0.0
  %6763 = vmatprep.subr.mxu0 0.0
  %6764 = vmatpush2.msra.mxu0 0.0
  %6765 = vmatprep.subr.mxu0 0.0
  %6766 = vmatpush2.msra.mxu0 0.0
  %6767 = vmatprep.subr.mxu0 0.0
  %6768 = vmatpush2.msra.mxu0 0.0
  %6769 = vmatprep.subr.mxu0 0.0
  %6770 = vmatpush2.msra.mxu0 0.0
  %6771 = vmatprep.subr.mxu0 0.0
  %6772 = vmatpush2.msra.mxu0 0.0
  %6773 = vmatprep.subr.mxu0 0.0
  %6774 = vmatpush2.msra.mxu0 0.0
  %6775 = vmatprep.subr.mxu0 0.0
  %6776 = vmatpush2.msra.mxu0 0.0
  %6777 = vmatprep.subr.mxu0 0.0
  %6778 = vmatpush2.msra.mxu0 0.0
  %6779 = vmatprep.mubr.f32.mxu0 0.0
  %6780 = vmatmul.mubr.f32.gmra.mxu0 %v6713
  %v6781 = vpop.f32.mrf.mxu0
  %v6782 = vadd.f32 0.0, %v6781
  %v6783 = vpop.f32.mrf.mxu0
  %v6784 = vadd.f32 0.0, %v6783
  %6785 = vdwg.mxu0
  %6786 = vmatprep.subr.mxu0 0.0
  %6787 = vmatpush1.msra.mxu0 0.0
  %6788 = vmatprep.subr.mxu0 0.0
  %6789 = vmatpush1.msra.mxu0 0.0
  %6790 = vmatprep.subr.mxu0 0.0
  %6791 = vmatpush1.msra.mxu0 0.0
  %6792 = vmatprep.subr.mxu0 0.0
  %6793 = vmatpush1.msra.mxu0 0.0
  %6794 = vmatprep.subr.mxu0 0.0
  %6795 = vmatpush1.msra.mxu0 0.0
  %6796 = vmatprep.subr.mxu0 0.0
  %6797 = vmatpush1.msra.mxu0 0.0
  %6798 = vmatprep.subr.mxu0 0.0
  %6799 = vmatpush1.msra.mxu0 0.0
  %6800 = vmatprep.subr.mxu0 0.0
  %6801 = vmatpush1.msra.mxu0 0.0
  %6802 = vmatprep.subr.mxu0 0.0
  %6803 = vmatpush1.msra.mxu0 0.0
  %6804 = vmatprep.subr.mxu0 0.0
  %6805 = vmatpush1.msra.mxu0 0.0
  %6806 = vmatprep.subr.mxu0 0.0
  %6807 = vmatpush1.msra.mxu0 0.0
  %6808 = vmatprep.subr.mxu0 0.0
  %6809 = vmatpush1.msra.mxu0 0.0
  %6810 = vmatprep.subr.mxu0 %v4883
  %6811 = vmatpush1.msra.mxu0 %v4880
  %6812 = vmatprep.subr.mxu0 %v4865
  %6813 = vmatpush1.msra.mxu0 %v4864
  %6814 = vmatprep.subr.mxu0 %v4861
  %6815 = vmatpush1.msra.mxu0 %v4860
  %6816 = vmatprep.subr.mxu0 %v4857
  %6817 = vmatpush1.msra.mxu0 %v4856
  %6818 = vmatprep.subr.mxu0 0.0
  %6819 = vmatpush2.msra.mxu0 0.0
  %6820 = vmatprep.subr.mxu0 0.0
  %6821 = vmatpush2.msra.mxu0 0.0
  %6822 = vmatprep.subr.mxu0 0.0
  %6823 = vmatpush2.msra.mxu0 0.0
  %6824 = vmatprep.subr.mxu0 0.0
  %6825 = vmatpush2.msra.mxu0 0.0
  %6826 = vmatprep.subr.mxu0 0.0
  %6827 = vmatpush2.msra.mxu0 0.0
  %6828 = vmatprep.subr.mxu0 0.0
  %6829 = vmatpush2.msra.mxu0 0.0
  %6830 = vmatprep.subr.mxu0 0.0
  %6831 = vmatpush2.msra.mxu0 0.0
  %6832 = vmatprep.subr.mxu0 0.0
  %6833 = vmatpush2.msra.mxu0 0.0
  %6834 = vmatprep.subr.mxu0 0.0
  %6835 = vmatpush2.msra.mxu0 0.0
  %6836 = vmatprep.subr.mxu0 0.0
  %6837 = vmatpush2.msra.mxu0 0.0
  %6838 = vmatprep.subr.mxu0 0.0
  %6839 = vmatpush2.msra.mxu0 0.0
  %6840 = vmatprep.subr.mxu0 0.0
  %6841 = vmatpush2.msra.mxu0 0.0
  %6842 = vmatprep.subr.mxu0 0.0
  %6843 = vmatpush2.msra.mxu0 0.0
  %6844 = vmatprep.subr.mxu0 0.0
  %6845 = vmatpush2.msra.mxu0 0.0
  %6846 = vmatprep.subr.mxu0 0.0
  %6847 = vmatpush2.msra.mxu0 0.0
  %6848 = vmatprep.subr.mxu0 0.0
  %6849 = vmatpush2.msra.mxu0 0.0
  %6850 = vmatprep.mubr.f32.mxu0 0.0
  %6851 = vmatmul.mubr.f32.gmra.mxu0 %v6713
  %v6852 = vpop.f32.mrf.mxu0
  %v6853 = vadd.f32 0.0, %v6852
  %v6854 = vpop.f32.mrf.mxu0
  %v6855 = vadd.f32 0.0, %v6854
  %6856 = vdwg.mxu0
  %v6857 = vadd.f32 %v6637, %v6782
  %v6858 = vadd.f32 %v6639, %v6784
  %v6859 = vadd.f32 %v6708, %v6853
  %v6860 = vadd.f32 %v6710, %v6855
  %6861 = vmatprep.subr.mxu0 0.0
  %6862 = vmatpush1.msra.mxu0 0.0
  %6863 = vmatprep.subr.mxu0 0.0
  %6864 = vmatpush1.msra.mxu0 0.0
  %6865 = vmatprep.subr.mxu0 0.0
  %6866 = vmatpush1.msra.mxu0 0.0
  %6867 = vmatprep.subr.mxu0 0.0
  %6868 = vmatpush1.msra.mxu0 0.0
  %6869 = vmatprep.subr.mxu0 0.0
  %6870 = vmatpush1.msra.mxu0 0.0
  %6871 = vmatprep.subr.mxu0 0.0
  %6872 = vmatpush1.msra.mxu0 0.0
  %6873 = vmatprep.subr.mxu0 0.0
  %6874 = vmatpush1.msra.mxu0 0.0
  %6875 = vmatprep.subr.mxu0 0.0
  %6876 = vmatpush1.msra.mxu0 0.0
  %6877 = vmatprep.subr.mxu0 0.0
  %6878 = vmatpush1.msra.mxu0 0.0
  %6879 = vmatprep.subr.mxu0 0.0
  %6880 = vmatpush1.msra.mxu0 0.0
  %6881 = vmatprep.subr.mxu0 0.0
  %6882 = vmatpush1.msra.mxu0 0.0
  %6883 = vmatprep.subr.mxu0 0.0
  %6884 = vmatpush1.msra.mxu0 0.0
  %6885 = vmatprep.subr.mxu0 %v4547
  %6886 = vmatpush1.msra.mxu0 %v4544
  %6887 = vmatprep.subr.mxu0 %v4533
  %6888 = vmatpush1.msra.mxu0 %v4532
  %6889 = vmatprep.subr.mxu0 %v4529
  %6890 = vmatpush1.msra.mxu0 %v4528
  %6891 = vmatprep.subr.mxu0 %v4525
  %6892 = vmatpush1.msra.mxu0 %v4524
  %6893 = vmatprep.subr.mxu0 0.0
  %6894 = vmatpush2.msra.mxu0 0.0
  %6895 = vmatprep.subr.mxu0 0.0
  %6896 = vmatpush2.msra.mxu0 0.0
  %6897 = vmatprep.subr.mxu0 0.0
  %6898 = vmatpush2.msra.mxu0 0.0
  %6899 = vmatprep.subr.mxu0 0.0
  %6900 = vmatpush2.msra.mxu0 0.0
  %6901 = vmatprep.subr.mxu0 0.0
  %6902 = vmatpush2.msra.mxu0 0.0
  %6903 = vmatprep.subr.mxu0 0.0
  %6904 = vmatpush2.msra.mxu0 0.0
  %6905 = vmatprep.subr.mxu0 0.0
  %6906 = vmatpush2.msra.mxu0 0.0
  %6907 = vmatprep.subr.mxu0 0.0
  %6908 = vmatpush2.msra.mxu0 0.0
  %6909 = vmatprep.subr.mxu0 0.0
  %6910 = vmatpush2.msra.mxu0 0.0
  %6911 = vmatprep.subr.mxu0 0.0
  %6912 = vmatpush2.msra.mxu0 0.0
  %6913 = vmatprep.subr.mxu0 0.0
  %6914 = vmatpush2.msra.mxu0 0.0
  %6915 = vmatprep.subr.mxu0 0.0
  %6916 = vmatpush2.msra.mxu0 0.0
  %6917 = vmatprep.subr.mxu0 0.0
  %6918 = vmatpush2.msra.mxu0 0.0
  %6919 = vmatprep.subr.mxu0 0.0
  %6920 = vmatpush2.msra.mxu0 0.0
  %6921 = vmatprep.subr.mxu0 0.0
  %6922 = vmatpush2.msra.mxu0 0.0
  %6923 = vmatprep.subr.mxu0 0.0
  %6924 = vmatpush2.msra.mxu0 0.0
  %6925 = vmatprep.mubr.f32.mxu0 0.0
  %6926 = vmatmul.mubr.f32.gmra.mxu0 %v6713
  %v6927 = vpop.f32.mrf.mxu0
  %v6928 = vadd.f32 0.0, %v6927
  %v6929 = vpop.f32.mrf.mxu0
  %v6930 = vadd.f32 0.0, %v6929
  %6931 = vdwg.mxu0
  %6932 = vmatprep.subr.mxu0 0.0
  %6933 = vmatpush1.msra.mxu0 0.0
  %6934 = vmatprep.subr.mxu0 0.0
  %6935 = vmatpush1.msra.mxu0 0.0
  %6936 = vmatprep.subr.mxu0 0.0
  %6937 = vmatpush1.msra.mxu0 0.0
  %6938 = vmatprep.subr.mxu0 0.0
  %6939 = vmatpush1.msra.mxu0 0.0
  %6940 = vmatprep.subr.mxu0 0.0
  %6941 = vmatpush1.msra.mxu0 0.0
  %6942 = vmatprep.subr.mxu0 0.0
  %6943 = vmatpush1.msra.mxu0 0.0
  %6944 = vmatprep.subr.mxu0 0.0
  %6945 = vmatpush1.msra.mxu0 0.0
  %6946 = vmatprep.subr.mxu0 0.0
  %6947 = vmatpush1.msra.mxu0 0.0
  %6948 = vmatprep.subr.mxu0 0.0
  %6949 = vmatpush1.msra.mxu0 0.0
  %6950 = vmatprep.subr.mxu0 0.0
  %6951 = vmatpush1.msra.mxu0 0.0
  %6952 = vmatprep.subr.mxu0 0.0
  %6953 = vmatpush1.msra.mxu0 0.0
  %6954 = vmatprep.subr.mxu0 0.0
  %6955 = vmatpush1.msra.mxu0 0.0
  %6956 = vmatprep.subr.mxu0 %v4553
  %6957 = vmatpush1.msra.mxu0 %v4550
  %6958 = vmatprep.subr.mxu0 %v4535
  %6959 = vmatpush1.msra.mxu0 %v4534
  %6960 = vmatprep.subr.mxu0 %v4531
  %6961 = vmatpush1.msra.mxu0 %v4530
  %6962 = vmatprep.subr.mxu0 %v4527
  %6963 = vmatpush1.msra.mxu0 %v4526
  %6964 = vmatprep.subr.mxu0 0.0
  %6965 = vmatpush2.msra.mxu0 0.0
  %6966 = vmatprep.subr.mxu0 0.0
  %6967 = vmatpush2.msra.mxu0 0.0
  %6968 = vmatprep.subr.mxu0 0.0
  %6969 = vmatpush2.msra.mxu0 0.0
  %6970 = vmatprep.subr.mxu0 0.0
  %6971 = vmatpush2.msra.mxu0 0.0
  %6972 = vmatprep.subr.mxu0 0.0
  %6973 = vmatpush2.msra.mxu0 0.0
  %6974 = vmatprep.subr.mxu0 0.0
  %6975 = vmatpush2.msra.mxu0 0.0
  %6976 = vmatprep.subr.mxu0 0.0
  %6977 = vmatpush2.msra.mxu0 0.0
  %6978 = vmatprep.subr.mxu0 0.0
  %6979 = vmatpush2.msra.mxu0 0.0
  %6980 = vmatprep.subr.mxu0 0.0
  %6981 = vmatpush2.msra.mxu0 0.0
  %6982 = vmatprep.subr.mxu0 0.0
  %6983 = vmatpush2.msra.mxu0 0.0
  %6984 = vmatprep.subr.mxu0 0.0
  %6985 = vmatpush2.msra.mxu0 0.0
  %6986 = vmatprep.subr.mxu0 0.0
  %6987 = vmatpush2.msra.mxu0 0.0
  %6988 = vmatprep.subr.mxu0 0.0
  %6989 = vmatpush2.msra.mxu0 0.0
  %6990 = vmatprep.subr.mxu0 0.0
  %6991 = vmatpush2.msra.mxu0 0.0
  %6992 = vmatprep.subr.mxu0 0.0
  %6993 = vmatpush2.msra.mxu0 0.0
  %6994 = vmatprep.subr.mxu0 0.0
  %6995 = vmatpush2.msra.mxu0 0.0
  %6996 = vmatprep.mubr.f32.mxu0 0.0
  %6997 = vmatmul.mubr.f32.gmra.mxu0 %v6713
  %v6998 = vpop.f32.mrf.mxu0
  %v6999 = vadd.f32 0.0, %v6998
  %v7000 = vpop.f32.mrf.mxu0
  %v7001 = vadd.f32 0.0, %v7000
  %7002 = vdwg.mxu0
  %7003 = vmatprep.subr.mxu0 0.0
  %7004 = vmatpush1.msra.mxu0 0.0
  %7005 = vmatprep.subr.mxu0 0.0
  %7006 = vmatpush1.msra.mxu0 0.0
  %7007 = vmatprep.subr.mxu0 0.0
  %7008 = vmatpush1.msra.mxu0 0.0
  %7009 = vmatprep.subr.mxu0 0.0
  %7010 = vmatpush1.msra.mxu0 0.0
  %7011 = vmatprep.subr.mxu0 0.0
  %7012 = vmatpush1.msra.mxu0 0.0
  %7013 = vmatprep.subr.mxu0 0.0
  %7014 = vmatpush1.msra.mxu0 0.0
  %7015 = vmatprep.subr.mxu0 0.0
  %7016 = vmatpush1.msra.mxu0 0.0
  %7017 = vmatprep.subr.mxu0 0.0
  %7018 = vmatpush1.msra.mxu0 0.0
  %7019 = vmatprep.subr.mxu0 0.0
  %7020 = vmatpush1.msra.mxu0 0.0
  %7021 = vmatprep.subr.mxu0 0.0
  %7022 = vmatpush1.msra.mxu0 0.0
  %7023 = vmatprep.subr.mxu0 0.0
  %7024 = vmatpush1.msra.mxu0 0.0
  %7025 = vmatprep.subr.mxu0 0.0
  %7026 = vmatpush1.msra.mxu0 0.0
  %7027 = vmatprep.subr.mxu0 %v4704
  %7028 = vmatpush1.msra.mxu0 %v4701
  %7029 = vmatprep.subr.mxu0 %v4517
  %7030 = vmatpush1.msra.mxu0 %v4516
  %7031 = vmatprep.subr.mxu0 %v4513
  %7032 = vmatpush1.msra.mxu0 %v4512
  %7033 = vmatprep.subr.mxu0 %v4509
  %7034 = vmatpush1.msra.mxu0 %v4508
  %7035 = vmatprep.subr.mxu0 0.0
  %7036 = vmatpush2.msra.mxu0 0.0
  %7037 = vmatprep.subr.mxu0 0.0
  %7038 = vmatpush2.msra.mxu0 0.0
  %7039 = vmatprep.subr.mxu0 0.0
  %7040 = vmatpush2.msra.mxu0 0.0
  %7041 = vmatprep.subr.mxu0 0.0
  %7042 = vmatpush2.msra.mxu0 0.0
  %7043 = vmatprep.subr.mxu0 0.0
  %7044 = vmatpush2.msra.mxu0 0.0
  %7045 = vmatprep.subr.mxu0 0.0
  %7046 = vmatpush2.msra.mxu0 0.0
  %7047 = vmatprep.subr.mxu0 0.0
  %7048 = vmatpush2.msra.mxu0 0.0
  %7049 = vmatprep.subr.mxu0 0.0
  %7050 = vmatpush2.msra.mxu0 0.0
  %7051 = vmatprep.subr.mxu0 0.0
  %7052 = vmatpush2.msra.mxu0 0.0
  %7053 = vmatprep.subr.mxu0 0.0
  %7054 = vmatpush2.msra.mxu0 0.0
  %7055 = vmatprep.subr.mxu0 0.0
  %7056 = vmatpush2.msra.mxu0 0.0
  %7057 = vmatprep.subr.mxu0 0.0
  %7058 = vmatpush2.msra.mxu0 0.0
  %7059 = vmatprep.subr.mxu0 0.0
  %7060 = vmatpush2.msra.mxu0 0.0
  %7061 = vmatprep.subr.mxu0 0.0
  %7062 = vmatpush2.msra.mxu0 0.0
  %7063 = vmatprep.subr.mxu0 0.0
  %7064 = vmatpush2.msra.mxu0 0.0
  %7065 = vmatprep.subr.mxu0 0.0
  %7066 = vmatpush2.msra.mxu0 0.0
  %7067 = vmatprep.mubr.f32.mxu0 0.0
  %7068 = vmatmul.mubr.f32.gmra.mxu0 %v5316
  %v7069 = vpop.f32.mrf.mxu0
  %v7070 = vadd.f32 %v6928, %v7069
  %v7071 = vpop.f32.mrf.mxu0
  %v7072 = vadd.f32 %v6930, %v7071
  %7073 = vdwg.mxu0
  %7074 = vmatprep.subr.mxu0 0.0
  %7075 = vmatpush1.msra.mxu0 0.0
  %7076 = vmatprep.subr.mxu0 0.0
  %7077 = vmatpush1.msra.mxu0 0.0
  %7078 = vmatprep.subr.mxu0 0.0
  %7079 = vmatpush1.msra.mxu0 0.0
  %7080 = vmatprep.subr.mxu0 0.0
  %7081 = vmatpush1.msra.mxu0 0.0
  %7082 = vmatprep.subr.mxu0 0.0
  %7083 = vmatpush1.msra.mxu0 0.0
  %7084 = vmatprep.subr.mxu0 0.0
  %7085 = vmatpush1.msra.mxu0 0.0
  %7086 = vmatprep.subr.mxu0 0.0
  %7087 = vmatpush1.msra.mxu0 0.0
  %7088 = vmatprep.subr.mxu0 0.0
  %7089 = vmatpush1.msra.mxu0 0.0
  %7090 = vmatprep.subr.mxu0 0.0
  %7091 = vmatpush1.msra.mxu0 0.0
  %7092 = vmatprep.subr.mxu0 0.0
  %7093 = vmatpush1.msra.mxu0 0.0
  %7094 = vmatprep.subr.mxu0 0.0
  %7095 = vmatpush1.msra.mxu0 0.0
  %7096 = vmatprep.subr.mxu0 0.0
  %7097 = vmatpush1.msra.mxu0 0.0
  %7098 = vmatprep.subr.mxu0 %v4710
  %7099 = vmatpush1.msra.mxu0 %v4707
  %7100 = vmatprep.subr.mxu0 %v4519
  %7101 = vmatpush1.msra.mxu0 %v4518
  %7102 = vmatprep.subr.mxu0 %v4515
  %7103 = vmatpush1.msra.mxu0 %v4514
  %7104 = vmatprep.subr.mxu0 %v4511
  %7105 = vmatpush1.msra.mxu0 %v4510
  %7106 = vmatprep.subr.mxu0 0.0
  %7107 = vmatpush2.msra.mxu0 0.0
  %7108 = vmatprep.subr.mxu0 0.0
  %7109 = vmatpush2.msra.mxu0 0.0
  %7110 = vmatprep.subr.mxu0 0.0
  %7111 = vmatpush2.msra.mxu0 0.0
  %7112 = vmatprep.subr.mxu0 0.0
  %7113 = vmatpush2.msra.mxu0 0.0
  %7114 = vmatprep.subr.mxu0 0.0
  %7115 = vmatpush2.msra.mxu0 0.0
  %7116 = vmatprep.subr.mxu0 0.0
  %7117 = vmatpush2.msra.mxu0 0.0
  %7118 = vmatprep.subr.mxu0 0.0
  %7119 = vmatpush2.msra.mxu0 0.0
  %7120 = vmatprep.subr.mxu0 0.0
  %7121 = vmatpush2.msra.mxu0 0.0
  %7122 = vmatprep.subr.mxu0 0.0
  %7123 = vmatpush2.msra.mxu0 0.0
  %7124 = vmatprep.subr.mxu0 0.0
  %7125 = vmatpush2.msra.mxu0 0.0
  %7126 = vmatprep.subr.mxu0 0.0
  %7127 = vmatpush2.msra.mxu0 0.0
  %7128 = vmatprep.subr.mxu0 0.0
  %7129 = vmatpush2.msra.mxu0 0.0
  %7130 = vmatprep.subr.mxu0 0.0
  %7131 = vmatpush2.msra.mxu0 0.0
  %7132 = vmatprep.subr.mxu0 0.0
  %7133 = vmatpush2.msra.mxu0 0.0
  %7134 = vmatprep.subr.mxu0 0.0
  %7135 = vmatpush2.msra.mxu0 0.0
  %7136 = vmatprep.subr.mxu0 0.0
  %7137 = vmatpush2.msra.mxu0 0.0
  %7138 = vmatprep.mubr.f32.mxu0 0.0
  %7139 = vmatmul.mubr.f32.gmra.mxu0 %v5316
  %v7140 = vpop.f32.mrf.mxu0
  %v7141 = vadd.f32 %v6999, %v7140
  %v7142 = vpop.f32.mrf.mxu0
  %v7143 = vadd.f32 %v7001, %v7142
  %7144 = vdwg.mxu0
  %v7145 = vrot.slane %v4503, 1
  %v7146 = vsel %vm62, %v7145, 0
  %7148 = vmatprep.subr.mxu0 0.0
  %7149 = vmatpush1.msra.mxu0 0.0
  %7150 = vmatprep.subr.mxu0 0.0
  %7151 = vmatpush1.msra.mxu0 0.0
  %7152 = vmatprep.subr.mxu0 0.0
  %7153 = vmatpush1.msra.mxu0 0.0
  %7154 = vmatprep.subr.mxu0 0.0
  %7155 = vmatpush1.msra.mxu0 0.0
  %7156 = vmatprep.subr.mxu0 0.0
  %7157 = vmatpush1.msra.mxu0 0.0
  %7158 = vmatprep.subr.mxu0 0.0
  %7159 = vmatpush1.msra.mxu0 0.0
  %7160 = vmatprep.subr.mxu0 0.0
  %7161 = vmatpush1.msra.mxu0 0.0
  %7162 = vmatprep.subr.mxu0 0.0
  %7163 = vmatpush1.msra.mxu0 0.0
  %7164 = vmatprep.subr.mxu0 0.0
  %7165 = vmatpush1.msra.mxu0 0.0
  %7166 = vmatprep.subr.mxu0 0.0
  %7167 = vmatpush1.msra.mxu0 0.0
  %7168 = vmatprep.subr.mxu0 0.0
  %7169 = vmatpush1.msra.mxu0 0.0
  %7170 = vmatprep.subr.mxu0 0.0
  %7171 = vmatpush1.msra.mxu0 0.0
  %7172 = vmatprep.subr.mxu0 %v4877
  %7173 = vmatpush1.msra.mxu0 %v4874
  %7174 = vmatprep.subr.mxu0 %v4863
  %7175 = vmatpush1.msra.mxu0 %v4862
  %7176 = vmatprep.subr.mxu0 %v4859
  %7177 = vmatpush1.msra.mxu0 %v4858
  %7178 = vmatprep.subr.mxu0 %v4855
  %7179 = vmatpush1.msra.mxu0 %v4854
  %7180 = vmatprep.subr.mxu0 0.0
  %7181 = vmatpush2.msra.mxu0 0.0
  %7182 = vmatprep.subr.mxu0 0.0
  %7183 = vmatpush2.msra.mxu0 0.0
  %7184 = vmatprep.subr.mxu0 0.0
  %7185 = vmatpush2.msra.mxu0 0.0
  %7186 = vmatprep.subr.mxu0 0.0
  %7187 = vmatpush2.msra.mxu0 0.0
  %7188 = vmatprep.subr.mxu0 0.0
  %7189 = vmatpush2.msra.mxu0 0.0
  %7190 = vmatprep.subr.mxu0 0.0
  %7191 = vmatpush2.msra.mxu0 0.0
  %7192 = vmatprep.subr.mxu0 0.0
  %7193 = vmatpush2.msra.mxu0 0.0
  %7194 = vmatprep.subr.mxu0 0.0
  %7195 = vmatpush2.msra.mxu0 0.0
  %7196 = vmatprep.subr.mxu0 0.0
  %7197 = vmatpush2.msra.mxu0 0.0
  %7198 = vmatprep.subr.mxu0 0.0
  %7199 = vmatpush2.msra.mxu0 0.0
  %7200 = vmatprep.subr.mxu0 0.0
  %7201 = vmatpush2.msra.mxu0 0.0
  %7202 = vmatprep.subr.mxu0 0.0
  %7203 = vmatpush2.msra.mxu0 0.0
  %7204 = vmatprep.subr.mxu0 0.0
  %7205 = vmatpush2.msra.mxu0 0.0
  %7206 = vmatprep.subr.mxu0 0.0
  %7207 = vmatpush2.msra.mxu0 0.0
  %7208 = vmatprep.subr.mxu0 0.0
  %7209 = vmatpush2.msra.mxu0 0.0
  %7210 = vmatprep.subr.mxu0 0.0
  %7211 = vmatpush2.msra.mxu0 0.0
  %7212 = vmatprep.mubr.f32.mxu0 0.0
  %7213 = vmatmul.mubr.f32.gmra.mxu0 %v7146
  %v7214 = vpop.f32.mrf.mxu0
  %v7215 = vadd.f32 0.0, %v7214
  %v7216 = vpop.f32.mrf.mxu0
  %v7217 = vadd.f32 0.0, %v7216
  %7218 = vdwg.mxu0
  %7219 = vmatprep.subr.mxu0 0.0
  %7220 = vmatpush1.msra.mxu0 0.0
  %7221 = vmatprep.subr.mxu0 0.0
  %7222 = vmatpush1.msra.mxu0 0.0
  %7223 = vmatprep.subr.mxu0 0.0
  %7224 = vmatpush1.msra.mxu0 0.0
  %7225 = vmatprep.subr.mxu0 0.0
  %7226 = vmatpush1.msra.mxu0 0.0
  %7227 = vmatprep.subr.mxu0 0.0
  %7228 = vmatpush1.msra.mxu0 0.0
  %7229 = vmatprep.subr.mxu0 0.0
  %7230 = vmatpush1.msra.mxu0 0.0
  %7231 = vmatprep.subr.mxu0 0.0
  %7232 = vmatpush1.msra.mxu0 0.0
  %7233 = vmatprep.subr.mxu0 0.0
  %7234 = vmatpush1.msra.mxu0 0.0
  %7235 = vmatprep.subr.mxu0 0.0
  %7236 = vmatpush1.msra.mxu0 0.0
  %7237 = vmatprep.subr.mxu0 0.0
  %7238 = vmatpush1.msra.mxu0 0.0
  %7239 = vmatprep.subr.mxu0 0.0
  %7240 = vmatpush1.msra.mxu0 0.0
  %7241 = vmatprep.subr.mxu0 0.0
  %7242 = vmatpush1.msra.mxu0 0.0
  %7243 = vmatprep.subr.mxu0 %v4883
  %7244 = vmatpush1.msra.mxu0 %v4880
  %7245 = vmatprep.subr.mxu0 %v4865
  %7246 = vmatpush1.msra.mxu0 %v4864
  %7247 = vmatprep.subr.mxu0 %v4861
  %7248 = vmatpush1.msra.mxu0 %v4860
  %7249 = vmatprep.subr.mxu0 %v4857
  %7250 = vmatpush1.msra.mxu0 %v4856
  %7251 = vmatprep.subr.mxu0 0.0
  %7252 = vmatpush2.msra.mxu0 0.0
  %7253 = vmatprep.subr.mxu0 0.0
  %7254 = vmatpush2.msra.mxu0 0.0
  %7255 = vmatprep.subr.mxu0 0.0
  %7256 = vmatpush2.msra.mxu0 0.0
  %7257 = vmatprep.subr.mxu0 0.0
  %7258 = vmatpush2.msra.mxu0 0.0
  %7259 = vmatprep.subr.mxu0 0.0
  %7260 = vmatpush2.msra.mxu0 0.0
  %7261 = vmatprep.subr.mxu0 0.0
  %7262 = vmatpush2.msra.mxu0 0.0
  %7263 = vmatprep.subr.mxu0 0.0
  %7264 = vmatpush2.msra.mxu0 0.0
  %7265 = vmatprep.subr.mxu0 0.0
  %7266 = vmatpush2.msra.mxu0 0.0
  %7267 = vmatprep.subr.mxu0 0.0
  %7268 = vmatpush2.msra.mxu0 0.0
  %7269 = vmatprep.subr.mxu0 0.0
  %7270 = vmatpush2.msra.mxu0 0.0
  %7271 = vmatprep.subr.mxu0 0.0
  %7272 = vmatpush2.msra.mxu0 0.0
  %7273 = vmatprep.subr.mxu0 0.0
  %7274 = vmatpush2.msra.mxu0 0.0
  %7275 = vmatprep.subr.mxu0 0.0
  %7276 = vmatpush2.msra.mxu0 0.0
  %7277 = vmatprep.subr.mxu0 0.0
  %7278 = vmatpush2.msra.mxu0 0.0
  %7279 = vmatprep.subr.mxu0 0.0
  %7280 = vmatpush2.msra.mxu0 0.0
  %7281 = vmatprep.subr.mxu0 0.0
  %7282 = vmatpush2.msra.mxu0 0.0
  %7283 = vmatprep.mubr.f32.mxu0 0.0
  %7284 = vmatmul.mubr.f32.gmra.mxu0 %v7146
  %v7285 = vpop.f32.mrf.mxu0
  %v7286 = vadd.f32 0.0, %v7285
  %v7287 = vpop.f32.mrf.mxu0
  %v7288 = vadd.f32 0.0, %v7287
  %7289 = vdwg.mxu0
  %v7290 = vadd.f32 %v7070, %v7215
  %v7291 = vadd.f32 %v7072, %v7217
  %v7292 = vadd.f32 %v7141, %v7286
  %v7293 = vadd.f32 %v7143, %v7288
  %v7294 = vmax.f32 %v6857, %v7290
  %v7295 = vmax.f32 %v6858, %v7291
  %v7296 = vmax.f32 %v6859, %v7292
  %v7297 = vmax.f32 %v6860, %v7293
  %7298 = vmatprep.subr.mxu0 0.0
  %7299 = vmatpush1.msra.mxu0 0.0
  %7300 = vmatprep.subr.mxu0 0.0
  %7301 = vmatpush1.msra.mxu0 0.0
  %7302 = vmatprep.subr.mxu0 0.0
  %7303 = vmatpush1.msra.mxu0 0.0
  %7304 = vmatprep.subr.mxu0 0.0
  %7305 = vmatpush1.msra.mxu0 0.0
  %7306 = vmatprep.subr.mxu0 0.0
  %7307 = vmatpush1.msra.mxu0 0.0
  %7308 = vmatprep.subr.mxu0 0.0
  %7309 = vmatpush1.msra.mxu0 0.0
  %7310 = vmatprep.subr.mxu0 0.0
  %7311 = vmatpush1.msra.mxu0 0.0
  %7312 = vmatprep.subr.mxu0 0.0
  %7313 = vmatpush1.msra.mxu0 0.0
  %7314 = vmatprep.subr.mxu0 0.0
  %7315 = vmatpush1.msra.mxu0 0.0
  %7316 = vmatprep.subr.mxu0 0.0
  %7317 = vmatpush1.msra.mxu0 0.0
  %7318 = vmatprep.subr.mxu0 0.0
  %7319 = vmatpush1.msra.mxu0 0.0
  %7320 = vmatprep.subr.mxu0 0.0
  %7321 = vmatpush1.msra.mxu0 0.0
  %7322 = vmatprep.subr.mxu0 %v5504
  %7323 = vmatpush1.msra.mxu0 %v5501
  %7324 = vmatprep.subr.mxu0 %v5493
  %7325 = vmatpush1.msra.mxu0 %v5492
  %7326 = vmatprep.subr.mxu0 %v5489
  %7327 = vmatpush1.msra.mxu0 %v5488
  %7328 = vmatprep.subr.mxu0 %v5485
  %7329 = vmatpush1.msra.mxu0 %v5484
  %7330 = vmatprep.subr.mxu0 0.0
  %7331 = vmatpush2.msra.mxu0 0.0
  %7332 = vmatprep.subr.mxu0 0.0
  %7333 = vmatpush2.msra.mxu0 0.0
  %7334 = vmatprep.subr.mxu0 0.0
  %7335 = vmatpush2.msra.mxu0 0.0
  %7336 = vmatprep.subr.mxu0 0.0
  %7337 = vmatpush2.msra.mxu0 0.0
  %7338 = vmatprep.subr.mxu0 0.0
  %7339 = vmatpush2.msra.mxu0 0.0
  %7340 = vmatprep.subr.mxu0 0.0
  %7341 = vmatpush2.msra.mxu0 0.0
  %7342 = vmatprep.subr.mxu0 0.0
  %7343 = vmatpush2.msra.mxu0 0.0
  %7344 = vmatprep.subr.mxu0 0.0
  %7345 = vmatpush2.msra.mxu0 0.0
  %7346 = vmatprep.subr.mxu0 0.0
  %7347 = vmatpush2.msra.mxu0 0.0
  %7348 = vmatprep.subr.mxu0 0.0
  %7349 = vmatpush2.msra.mxu0 0.0
  %7350 = vmatprep.subr.mxu0 0.0
  %7351 = vmatpush2.msra.mxu0 0.0
  %7352 = vmatprep.subr.mxu0 0.0
  %7353 = vmatpush2.msra.mxu0 0.0
  %7354 = vmatprep.subr.mxu0 0.0
  %7355 = vmatpush2.msra.mxu0 0.0
  %7356 = vmatprep.subr.mxu0 0.0
  %7357 = vmatpush2.msra.mxu0 0.0
  %7358 = vmatprep.subr.mxu0 0.0
  %7359 = vmatpush2.msra.mxu0 0.0
  %7360 = vmatprep.subr.mxu0 0.0
  %7361 = vmatpush2.msra.mxu0 0.0
  %7362 = vmatprep.mubr.f32.mxu0 0.0
  %7363 = vmatmul.mubr.f32.gmra.mxu0 %v5316
  %v7364 = vpop.f32.mrf.mxu0
  %v7365 = vadd.f32 0.0, %v7364
  %v7366 = vpop.f32.mrf.mxu0
  %v7367 = vadd.f32 0.0, %v7366
  %7368 = vdwg.mxu0
  %7369 = vmatprep.subr.mxu0 0.0
  %7370 = vmatpush1.msra.mxu0 0.0
  %7371 = vmatprep.subr.mxu0 0.0
  %7372 = vmatpush1.msra.mxu0 0.0
  %7373 = vmatprep.subr.mxu0 0.0
  %7374 = vmatpush1.msra.mxu0 0.0
  %7375 = vmatprep.subr.mxu0 0.0
  %7376 = vmatpush1.msra.mxu0 0.0
  %7377 = vmatprep.subr.mxu0 0.0
  %7378 = vmatpush1.msra.mxu0 0.0
  %7379 = vmatprep.subr.mxu0 0.0
  %7380 = vmatpush1.msra.mxu0 0.0
  %7381 = vmatprep.subr.mxu0 0.0
  %7382 = vmatpush1.msra.mxu0 0.0
  %7383 = vmatprep.subr.mxu0 0.0
  %7384 = vmatpush1.msra.mxu0 0.0
  %7385 = vmatprep.subr.mxu0 0.0
  %7386 = vmatpush1.msra.mxu0 0.0
  %7387 = vmatprep.subr.mxu0 0.0
  %7388 = vmatpush1.msra.mxu0 0.0
  %7389 = vmatprep.subr.mxu0 0.0
  %7390 = vmatpush1.msra.mxu0 0.0
  %7391 = vmatprep.subr.mxu0 0.0
  %7392 = vmatpush1.msra.mxu0 0.0
  %7393 = vmatprep.subr.mxu0 %v5510
  %7394 = vmatpush1.msra.mxu0 %v5507
  %7395 = vmatprep.subr.mxu0 %v5495
  %7396 = vmatpush1.msra.mxu0 %v5494
  %7397 = vmatprep.subr.mxu0 %v5491
  %7398 = vmatpush1.msra.mxu0 %v5490
  %7399 = vmatprep.subr.mxu0 %v5487
  %7400 = vmatpush1.msra.mxu0 %v5486
  %7401 = vmatprep.subr.mxu0 0.0
  %7402 = vmatpush2.msra.mxu0 0.0
  %7403 = vmatprep.subr.mxu0 0.0
  %7404 = vmatpush2.msra.mxu0 0.0
  %7405 = vmatprep.subr.mxu0 0.0
  %7406 = vmatpush2.msra.mxu0 0.0
  %7407 = vmatprep.subr.mxu0 0.0
  %7408 = vmatpush2.msra.mxu0 0.0
  %7409 = vmatprep.subr.mxu0 0.0
  %7410 = vmatpush2.msra.mxu0 0.0
  %7411 = vmatprep.subr.mxu0 0.0
  %7412 = vmatpush2.msra.mxu0 0.0
  %7413 = vmatprep.subr.mxu0 0.0
  %7414 = vmatpush2.msra.mxu0 0.0
  %7415 = vmatprep.subr.mxu0 0.0
  %7416 = vmatpush2.msra.mxu0 0.0
  %7417 = vmatprep.subr.mxu0 0.0
  %7418 = vmatpush2.msra.mxu0 0.0
  %7419 = vmatprep.subr.mxu0 0.0
  %7420 = vmatpush2.msra.mxu0 0.0
  %7421 = vmatprep.subr.mxu0 0.0
  %7422 = vmatpush2.msra.mxu0 0.0
  %7423 = vmatprep.subr.mxu0 0.0
  %7424 = vmatpush2.msra.mxu0 0.0
  %7425 = vmatprep.subr.mxu0 0.0
  %7426 = vmatpush2.msra.mxu0 0.0
  %7427 = vmatprep.subr.mxu0 0.0
  %7428 = vmatpush2.msra.mxu0 0.0
  %7429 = vmatprep.subr.mxu0 0.0
  %7430 = vmatpush2.msra.mxu0 0.0
  %7431 = vmatprep.subr.mxu0 0.0
  %7432 = vmatpush2.msra.mxu0 0.0
  %7433 = vmatprep.mubr.f32.mxu0 0.0
  %7434 = vmatmul.mubr.f32.gmra.mxu0 %v5316
  %v7435 = vpop.f32.mrf.mxu0
  %v7436 = vadd.f32 0.0, %v7435
  %v7437 = vpop.f32.mrf.mxu0
  %v7438 = vadd.f32 0.0, %v7437
  %7439 = vdwg.mxu0
  %7440 = vmatprep.subr.mxu0 0.0
  %7441 = vmatpush1.msra.mxu0 0.0
  %7442 = vmatprep.subr.mxu0 0.0
  %7443 = vmatpush1.msra.mxu0 0.0
  %7444 = vmatprep.subr.mxu0 0.0
  %7445 = vmatpush1.msra.mxu0 0.0
  %7446 = vmatprep.subr.mxu0 0.0
  %7447 = vmatpush1.msra.mxu0 0.0
  %7448 = vmatprep.subr.mxu0 0.0
  %7449 = vmatpush1.msra.mxu0 0.0
  %7450 = vmatprep.subr.mxu0 0.0
  %7451 = vmatpush1.msra.mxu0 0.0
  %7452 = vmatprep.subr.mxu0 0.0
  %7453 = vmatpush1.msra.mxu0 0.0
  %7454 = vmatprep.subr.mxu0 0.0
  %7455 = vmatpush1.msra.mxu0 0.0
  %7456 = vmatprep.subr.mxu0 0.0
  %7457 = vmatpush1.msra.mxu0 0.0
  %7458 = vmatprep.subr.mxu0 0.0
  %7459 = vmatpush1.msra.mxu0 0.0
  %7460 = vmatprep.subr.mxu0 0.0
  %7461 = vmatpush1.msra.mxu0 0.0
  %7462 = vmatprep.subr.mxu0 0.0
  %7463 = vmatpush1.msra.mxu0 0.0
  %7464 = vmatprep.subr.mxu0 %v5658
  %7465 = vmatpush1.msra.mxu0 %v5655
  %7466 = vmatprep.subr.mxu0 %v5477
  %7467 = vmatpush1.msra.mxu0 %v5476
  %7468 = vmatprep.subr.mxu0 %v5473
  %7469 = vmatpush1.msra.mxu0 %v5472
  %7470 = vmatprep.subr.mxu0 %v5469
  %7471 = vmatpush1.msra.mxu0 %v5468
  %7472 = vmatprep.subr.mxu0 0.0
  %7473 = vmatpush2.msra.mxu0 0.0
  %7474 = vmatprep.subr.mxu0 0.0
  %7475 = vmatpush2.msra.mxu0 0.0
  %7476 = vmatprep.subr.mxu0 0.0
  %7477 = vmatpush2.msra.mxu0 0.0
  %7478 = vmatprep.subr.mxu0 0.0
  %7479 = vmatpush2.msra.mxu0 0.0
  %7480 = vmatprep.subr.mxu0 0.0
  %7481 = vmatpush2.msra.mxu0 0.0
  %7482 = vmatprep.subr.mxu0 0.0
  %7483 = vmatpush2.msra.mxu0 0.0
  %7484 = vmatprep.subr.mxu0 0.0
  %7485 = vmatpush2.msra.mxu0 0.0
  %7486 = vmatprep.subr.mxu0 0.0
  %7487 = vmatpush2.msra.mxu0 0.0
  %7488 = vmatprep.subr.mxu0 0.0
  %7489 = vmatpush2.msra.mxu0 0.0
  %7490 = vmatprep.subr.mxu0 0.0
  %7491 = vmatpush2.msra.mxu0 0.0
  %7492 = vmatprep.subr.mxu0 0.0
  %7493 = vmatpush2.msra.mxu0 0.0
  %7494 = vmatprep.subr.mxu0 0.0
  %7495 = vmatpush2.msra.mxu0 0.0
  %7496 = vmatprep.subr.mxu0 0.0
  %7497 = vmatpush2.msra.mxu0 0.0
  %7498 = vmatprep.subr.mxu0 0.0
  %7499 = vmatpush2.msra.mxu0 0.0
  %7500 = vmatprep.subr.mxu0 0.0
  %7501 = vmatpush2.msra.mxu0 0.0
  %7502 = vmatprep.subr.mxu0 0.0
  %7503 = vmatpush2.msra.mxu0 0.0
  %7504 = vmatprep.mubr.f32.mxu0 0.0
  %7505 = vmatmul.mubr.f32.gmra.mxu0 %v4871
  %v7506 = vpop.f32.mrf.mxu0
  %v7507 = vadd.f32 %v7365, %v7506
  %v7508 = vpop.f32.mrf.mxu0
  %v7509 = vadd.f32 %v7367, %v7508
  %7510 = vdwg.mxu0
  %7511 = vmatprep.subr.mxu0 0.0
  %7512 = vmatpush1.msra.mxu0 0.0
  %7513 = vmatprep.subr.mxu0 0.0
  %7514 = vmatpush1.msra.mxu0 0.0
  %7515 = vmatprep.subr.mxu0 0.0
  %7516 = vmatpush1.msra.mxu0 0.0
  %7517 = vmatprep.subr.mxu0 0.0
  %7518 = vmatpush1.msra.mxu0 0.0
  %7519 = vmatprep.subr.mxu0 0.0
  %7520 = vmatpush1.msra.mxu0 0.0
  %7521 = vmatprep.subr.mxu0 0.0
  %7522 = vmatpush1.msra.mxu0 0.0
  %7523 = vmatprep.subr.mxu0 0.0
  %7524 = vmatpush1.msra.mxu0 0.0
  %7525 = vmatprep.subr.mxu0 0.0
  %7526 = vmatpush1.msra.mxu0 0.0
  %7527 = vmatprep.subr.mxu0 0.0
  %7528 = vmatpush1.msra.mxu0 0.0
  %7529 = vmatprep.subr.mxu0 0.0
  %7530 = vmatpush1.msra.mxu0 0.0
  %7531 = vmatprep.subr.mxu0 0.0
  %7532 = vmatpush1.msra.mxu0 0.0
  %7533 = vmatprep.subr.mxu0 0.0
  %7534 = vmatpush1.msra.mxu0 0.0
  %7535 = vmatprep.subr.mxu0 %v5664
  %7536 = vmatpush1.msra.mxu0 %v5661
  %7537 = vmatprep.subr.mxu0 %v5479
  %7538 = vmatpush1.msra.mxu0 %v5478
  %7539 = vmatprep.subr.mxu0 %v5475
  %7540 = vmatpush1.msra.mxu0 %v5474
  %7541 = vmatprep.subr.mxu0 %v5471
  %7542 = vmatpush1.msra.mxu0 %v5470
  %7543 = vmatprep.subr.mxu0 0.0
  %7544 = vmatpush2.msra.mxu0 0.0
  %7545 = vmatprep.subr.mxu0 0.0
  %7546 = vmatpush2.msra.mxu0 0.0
  %7547 = vmatprep.subr.mxu0 0.0
  %7548 = vmatpush2.msra.mxu0 0.0
  %7549 = vmatprep.subr.mxu0 0.0
  %7550 = vmatpush2.msra.mxu0 0.0
  %7551 = vmatprep.subr.mxu0 0.0
  %7552 = vmatpush2.msra.mxu0 0.0
  %7553 = vmatprep.subr.mxu0 0.0
  %7554 = vmatpush2.msra.mxu0 0.0
  %7555 = vmatprep.subr.mxu0 0.0
  %7556 = vmatpush2.msra.mxu0 0.0
  %7557 = vmatprep.subr.mxu0 0.0
  %7558 = vmatpush2.msra.mxu0 0.0
  %7559 = vmatprep.subr.mxu0 0.0
  %7560 = vmatpush2.msra.mxu0 0.0
  %7561 = vmatprep.subr.mxu0 0.0
  %7562 = vmatpush2.msra.mxu0 0.0
  %7563 = vmatprep.subr.mxu0 0.0
  %7564 = vmatpush2.msra.mxu0 0.0
  %7565 = vmatprep.subr.mxu0 0.0
  %7566 = vmatpush2.msra.mxu0 0.0
  %7567 = vmatprep.subr.mxu0 0.0
  %7568 = vmatpush2.msra.mxu0 0.0
  %7569 = vmatprep.subr.mxu0 0.0
  %7570 = vmatpush2.msra.mxu0 0.0
  %7571 = vmatprep.subr.mxu0 0.0
  %7572 = vmatpush2.msra.mxu0 0.0
  %7573 = vmatprep.subr.mxu0 0.0
  %7574 = vmatpush2.msra.mxu0 0.0
  %7575 = vmatprep.mubr.f32.mxu0 0.0
  %7576 = vmatmul.mubr.f32.gmra.mxu0 %v4871
  %v7577 = vpop.f32.mrf.mxu0
  %v7578 = vadd.f32 %v7436, %v7577
  %v7579 = vpop.f32.mrf.mxu0
  %v7580 = vadd.f32 %v7438, %v7579
  %7581 = vdwg.mxu0
  %7582 = vmatprep.subr.mxu0 0.0
  %7583 = vmatpush1.msra.mxu0 0.0
  %7584 = vmatprep.subr.mxu0 0.0
  %7585 = vmatpush1.msra.mxu0 0.0
  %7586 = vmatprep.subr.mxu0 0.0
  %7587 = vmatpush1.msra.mxu0 0.0
  %7588 = vmatprep.subr.mxu0 0.0
  %7589 = vmatpush1.msra.mxu0 0.0
  %7590 = vmatprep.subr.mxu0 0.0
  %7591 = vmatpush1.msra.mxu0 0.0
  %7592 = vmatprep.subr.mxu0 0.0
  %7593 = vmatpush1.msra.mxu0 0.0
  %7594 = vmatprep.subr.mxu0 0.0
  %7595 = vmatpush1.msra.mxu0 0.0
  %7596 = vmatprep.subr.mxu0 0.0
  %7597 = vmatpush1.msra.mxu0 0.0
  %7598 = vmatprep.subr.mxu0 0.0
  %7599 = vmatpush1.msra.mxu0 0.0
  %7600 = vmatprep.subr.mxu0 0.0
  %7601 = vmatpush1.msra.mxu0 0.0
  %7602 = vmatprep.subr.mxu0 0.0
  %7603 = vmatpush1.msra.mxu0 0.0
  %7604 = vmatprep.subr.mxu0 0.0
  %7605 = vmatpush1.msra.mxu0 0.0
  %7606 = vmatprep.subr.mxu0 %v5828
  %7607 = vmatpush1.msra.mxu0 %v5825
  %7608 = vmatprep.subr.mxu0 %v5817
  %7609 = vmatpush1.msra.mxu0 %v5816
  %7610 = vmatprep.subr.mxu0 %v5813
  %7611 = vmatpush1.msra.mxu0 %v5812
  %7612 = vmatprep.subr.mxu0 %v5809
  %7613 = vmatpush1.msra.mxu0 %v5808
  %7614 = vmatprep.subr.mxu0 0.0
  %7615 = vmatpush2.msra.mxu0 0.0
  %7616 = vmatprep.subr.mxu0 0.0
  %7617 = vmatpush2.msra.mxu0 0.0
  %7618 = vmatprep.subr.mxu0 0.0
  %7619 = vmatpush2.msra.mxu0 0.0
  %7620 = vmatprep.subr.mxu0 0.0
  %7621 = vmatpush2.msra.mxu0 0.0
  %7622 = vmatprep.subr.mxu0 0.0
  %7623 = vmatpush2.msra.mxu0 0.0
  %7624 = vmatprep.subr.mxu0 0.0
  %7625 = vmatpush2.msra.mxu0 0.0
  %7626 = vmatprep.subr.mxu0 0.0
  %7627 = vmatpush2.msra.mxu0 0.0
  %7628 = vmatprep.subr.mxu0 0.0
  %7629 = vmatpush2.msra.mxu0 0.0
  %7630 = vmatprep.subr.mxu0 0.0
  %7631 = vmatpush2.msra.mxu0 0.0
  %7632 = vmatprep.subr.mxu0 0.0
  %7633 = vmatpush2.msra.mxu0 0.0
  %7634 = vmatprep.subr.mxu0 0.0
  %7635 = vmatpush2.msra.mxu0 0.0
  %7636 = vmatprep.subr.mxu0 0.0
  %7637 = vmatpush2.msra.mxu0 0.0
  %7638 = vmatprep.subr.mxu0 0.0
  %7639 = vmatpush2.msra.mxu0 0.0
  %7640 = vmatprep.subr.mxu0 0.0
  %7641 = vmatpush2.msra.mxu0 0.0
  %7642 = vmatprep.subr.mxu0 0.0
  %7643 = vmatpush2.msra.mxu0 0.0
  %7644 = vmatprep.subr.mxu0 0.0
  %7645 = vmatpush2.msra.mxu0 0.0
  %7646 = vmatprep.mubr.f32.mxu0 0.0
  %7647 = vmatmul.mubr.f32.gmra.mxu0 %v6713
  %v7648 = vpop.f32.mrf.mxu0
  %v7649 = vadd.f32 0.0, %v7648
  %v7650 = vpop.f32.mrf.mxu0
  %v7651 = vadd.f32 0.0, %v7650
  %7652 = vdwg.mxu0
  %7653 = vmatprep.subr.mxu0 0.0
  %7654 = vmatpush1.msra.mxu0 0.0
  %7655 = vmatprep.subr.mxu0 0.0
  %7656 = vmatpush1.msra.mxu0 0.0
  %7657 = vmatprep.subr.mxu0 0.0
  %7658 = vmatpush1.msra.mxu0 0.0
  %7659 = vmatprep.subr.mxu0 0.0
  %7660 = vmatpush1.msra.mxu0 0.0
  %7661 = vmatprep.subr.mxu0 0.0
  %7662 = vmatpush1.msra.mxu0 0.0
  %7663 = vmatprep.subr.mxu0 0.0
  %7664 = vmatpush1.msra.mxu0 0.0
  %7665 = vmatprep.subr.mxu0 0.0
  %7666 = vmatpush1.msra.mxu0 0.0
  %7667 = vmatprep.subr.mxu0 0.0
  %7668 = vmatpush1.msra.mxu0 0.0
  %7669 = vmatprep.subr.mxu0 0.0
  %7670 = vmatpush1.msra.mxu0 0.0
  %7671 = vmatprep.subr.mxu0 0.0
  %7672 = vmatpush1.msra.mxu0 0.0
  %7673 = vmatprep.subr.mxu0 0.0
  %7674 = vmatpush1.msra.mxu0 0.0
  %7675 = vmatprep.subr.mxu0 0.0
  %7676 = vmatpush1.msra.mxu0 0.0
  %7677 = vmatprep.subr.mxu0 %v5834
  %7678 = vmatpush1.msra.mxu0 %v5831
  %7679 = vmatprep.subr.mxu0 %v5819
  %7680 = vmatpush1.msra.mxu0 %v5818
  %7681 = vmatprep.subr.mxu0 %v5815
  %7682 = vmatpush1.msra.mxu0 %v5814
  %7683 = vmatprep.subr.mxu0 %v5811
  %7684 = vmatpush1.msra.mxu0 %v5810
  %7685 = vmatprep.subr.mxu0 0.0
  %7686 = vmatpush2.msra.mxu0 0.0
  %7687 = vmatprep.subr.mxu0 0.0
  %7688 = vmatpush2.msra.mxu0 0.0
  %7689 = vmatprep.subr.mxu0 0.0
  %7690 = vmatpush2.msra.mxu0 0.0
  %7691 = vmatprep.subr.mxu0 0.0
  %7692 = vmatpush2.msra.mxu0 0.0
  %7693 = vmatprep.subr.mxu0 0.0
  %7694 = vmatpush2.msra.mxu0 0.0
  %7695 = vmatprep.subr.mxu0 0.0
  %7696 = vmatpush2.msra.mxu0 0.0
  %7697 = vmatprep.subr.mxu0 0.0
  %7698 = vmatpush2.msra.mxu0 0.0
  %7699 = vmatprep.subr.mxu0 0.0
  %7700 = vmatpush2.msra.mxu0 0.0
  %7701 = vmatprep.subr.mxu0 0.0
  %7702 = vmatpush2.msra.mxu0 0.0
  %7703 = vmatprep.subr.mxu0 0.0
  %7704 = vmatpush2.msra.mxu0 0.0
  %7705 = vmatprep.subr.mxu0 0.0
  %7706 = vmatpush2.msra.mxu0 0.0
  %7707 = vmatprep.subr.mxu0 0.0
  %7708 = vmatpush2.msra.mxu0 0.0
  %7709 = vmatprep.subr.mxu0 0.0
  %7710 = vmatpush2.msra.mxu0 0.0
  %7711 = vmatprep.subr.mxu0 0.0
  %7712 = vmatpush2.msra.mxu0 0.0
  %7713 = vmatprep.subr.mxu0 0.0
  %7714 = vmatpush2.msra.mxu0 0.0
  %7715 = vmatprep.subr.mxu0 0.0
  %7716 = vmatpush2.msra.mxu0 0.0
  %7717 = vmatprep.mubr.f32.mxu0 0.0
  %7718 = vmatmul.mubr.f32.gmra.mxu0 %v6713
  %v7719 = vpop.f32.mrf.mxu0
  %v7720 = vadd.f32 0.0, %v7719
  %v7721 = vpop.f32.mrf.mxu0
  %v7722 = vadd.f32 0.0, %v7721
  %7723 = vdwg.mxu0
  %v7724 = vadd.f32 %v7507, %v7649
  %v7725 = vadd.f32 %v7509, %v7651
  %v7726 = vadd.f32 %v7578, %v7720
  %v7727 = vadd.f32 %v7580, %v7722
  %7728 = vmatprep.subr.mxu0 0.0
  %7729 = vmatpush1.msra.mxu0 0.0
  %7730 = vmatprep.subr.mxu0 0.0
  %7731 = vmatpush1.msra.mxu0 0.0
  %7732 = vmatprep.subr.mxu0 0.0
  %7733 = vmatpush1.msra.mxu0 0.0
  %7734 = vmatprep.subr.mxu0 0.0
  %7735 = vmatpush1.msra.mxu0 0.0
  %7736 = vmatprep.subr.mxu0 0.0
  %7737 = vmatpush1.msra.mxu0 0.0
  %7738 = vmatprep.subr.mxu0 0.0
  %7739 = vmatpush1.msra.mxu0 0.0
  %7740 = vmatprep.subr.mxu0 0.0
  %7741 = vmatpush1.msra.mxu0 0.0
  %7742 = vmatprep.subr.mxu0 0.0
  %7743 = vmatpush1.msra.mxu0 0.0
  %7744 = vmatprep.subr.mxu0 0.0
  %7745 = vmatpush1.msra.mxu0 0.0
  %7746 = vmatprep.subr.mxu0 0.0
  %7747 = vmatpush1.msra.mxu0 0.0
  %7748 = vmatprep.subr.mxu0 0.0
  %7749 = vmatpush1.msra.mxu0 0.0
  %7750 = vmatprep.subr.mxu0 0.0
  %7751 = vmatpush1.msra.mxu0 0.0
  %7752 = vmatprep.subr.mxu0 %v5504
  %7753 = vmatpush1.msra.mxu0 %v5501
  %7754 = vmatprep.subr.mxu0 %v5493
  %7755 = vmatpush1.msra.mxu0 %v5492
  %7756 = vmatprep.subr.mxu0 %v5489
  %7757 = vmatpush1.msra.mxu0 %v5488
  %7758 = vmatprep.subr.mxu0 %v5485
  %7759 = vmatpush1.msra.mxu0 %v5484
  %7760 = vmatprep.subr.mxu0 0.0
  %7761 = vmatpush2.msra.mxu0 0.0
  %7762 = vmatprep.subr.mxu0 0.0
  %7763 = vmatpush2.msra.mxu0 0.0
  %7764 = vmatprep.subr.mxu0 0.0
  %7765 = vmatpush2.msra.mxu0 0.0
  %7766 = vmatprep.subr.mxu0 0.0
  %7767 = vmatpush2.msra.mxu0 0.0
  %7768 = vmatprep.subr.mxu0 0.0
  %7769 = vmatpush2.msra.mxu0 0.0
  %7770 = vmatprep.subr.mxu0 0.0
  %7771 = vmatpush2.msra.mxu0 0.0
  %7772 = vmatprep.subr.mxu0 0.0
  %7773 = vmatpush2.msra.mxu0 0.0
  %7774 = vmatprep.subr.mxu0 0.0
  %7775 = vmatpush2.msra.mxu0 0.0
  %7776 = vmatprep.subr.mxu0 0.0
  %7777 = vmatpush2.msra.mxu0 0.0
  %7778 = vmatprep.subr.mxu0 0.0
  %7779 = vmatpush2.msra.mxu0 0.0
  %7780 = vmatprep.subr.mxu0 0.0
  %7781 = vmatpush2.msra.mxu0 0.0
  %7782 = vmatprep.subr.mxu0 0.0
  %7783 = vmatpush2.msra.mxu0 0.0
  %7784 = vmatprep.subr.mxu0 0.0
  %7785 = vmatpush2.msra.mxu0 0.0
  %7786 = vmatprep.subr.mxu0 0.0
  %7787 = vmatpush2.msra.mxu0 0.0
  %7788 = vmatprep.subr.mxu0 0.0
  %7789 = vmatpush2.msra.mxu0 0.0
  %7790 = vmatprep.subr.mxu0 0.0
  %7791 = vmatpush2.msra.mxu0 0.0
  %7792 = vmatprep.mubr.f32.mxu0 0.0
  %7793 = vmatmul.mubr.f32.gmra.mxu0 %v6713
  %v7794 = vpop.f32.mrf.mxu0
  %v7795 = vadd.f32 0.0, %v7794
  %v7796 = vpop.f32.mrf.mxu0
  %v7797 = vadd.f32 0.0, %v7796
  %7798 = vdwg.mxu0
  %7799 = vmatprep.subr.mxu0 0.0
  %7800 = vmatpush1.msra.mxu0 0.0
  %7801 = vmatprep.subr.mxu0 0.0
  %7802 = vmatpush1.msra.mxu0 0.0
  %7803 = vmatprep.subr.mxu0 0.0
  %7804 = vmatpush1.msra.mxu0 0.0
  %7805 = vmatprep.subr.mxu0 0.0
  %7806 = vmatpush1.msra.mxu0 0.0
  %7807 = vmatprep.subr.mxu0 0.0
  %7808 = vmatpush1.msra.mxu0 0.0
  %7809 = vmatprep.subr.mxu0 0.0
  %7810 = vmatpush1.msra.mxu0 0.0
  %7811 = vmatprep.subr.mxu0 0.0
  %7812 = vmatpush1.msra.mxu0 0.0
  %7813 = vmatprep.subr.mxu0 0.0
  %7814 = vmatpush1.msra.mxu0 0.0
  %7815 = vmatprep.subr.mxu0 0.0
  %7816 = vmatpush1.msra.mxu0 0.0
  %7817 = vmatprep.subr.mxu0 0.0
  %7818 = vmatpush1.msra.mxu0 0.0
  %7819 = vmatprep.subr.mxu0 0.0
  %7820 = vmatpush1.msra.mxu0 0.0
  %7821 = vmatprep.subr.mxu0 0.0
  %7822 = vmatpush1.msra.mxu0 0.0
  %7823 = vmatprep.subr.mxu0 %v5510
  %7824 = vmatpush1.msra.mxu0 %v5507
  %7825 = vmatprep.subr.mxu0 %v5495
  %7826 = vmatpush1.msra.mxu0 %v5494
  %7827 = vmatprep.subr.mxu0 %v5491
  %7828 = vmatpush1.msra.mxu0 %v5490
  %7829 = vmatprep.subr.mxu0 %v5487
  %7830 = vmatpush1.msra.mxu0 %v5486
  %7831 = vmatprep.subr.mxu0 0.0
  %7832 = vmatpush2.msra.mxu0 0.0
  %7833 = vmatprep.subr.mxu0 0.0
  %7834 = vmatpush2.msra.mxu0 0.0
  %7835 = vmatprep.subr.mxu0 0.0
  %7836 = vmatpush2.msra.mxu0 0.0
  %7837 = vmatprep.subr.mxu0 0.0
  %7838 = vmatpush2.msra.mxu0 0.0
  %7839 = vmatprep.subr.mxu0 0.0
  %7840 = vmatpush2.msra.mxu0 0.0
  %7841 = vmatprep.subr.mxu0 0.0
  %7842 = vmatpush2.msra.mxu0 0.0
  %7843 = vmatprep.subr.mxu0 0.0
  %7844 = vmatpush2.msra.mxu0 0.0
  %7845 = vmatprep.subr.mxu0 0.0
  %7846 = vmatpush2.msra.mxu0 0.0
  %7847 = vmatprep.subr.mxu0 0.0
  %7848 = vmatpush2.msra.mxu0 0.0
  %7849 = vmatprep.subr.mxu0 0.0
  %7850 = vmatpush2.msra.mxu0 0.0
  %7851 = vmatprep.subr.mxu0 0.0
  %7852 = vmatpush2.msra.mxu0 0.0
  %7853 = vmatprep.subr.mxu0 0.0
  %7854 = vmatpush2.msra.mxu0 0.0
  %7855 = vmatprep.subr.mxu0 0.0
  %7856 = vmatpush2.msra.mxu0 0.0
  %7857 = vmatprep.subr.mxu0 0.0
  %7858 = vmatpush2.msra.mxu0 0.0
  %7859 = vmatprep.subr.mxu0 0.0
  %7860 = vmatpush2.msra.mxu0 0.0
  %7861 = vmatprep.subr.mxu0 0.0
  %7862 = vmatpush2.msra.mxu0 0.0
  %7863 = vmatprep.mubr.f32.mxu0 0.0
  %7864 = vmatmul.mubr.f32.gmra.mxu0 %v6713
  %v7865 = vpop.f32.mrf.mxu0
  %v7866 = vadd.f32 0.0, %v7865
  %v7867 = vpop.f32.mrf.mxu0
  %v7868 = vadd.f32 0.0, %v7867
  %7869 = vdwg.mxu0
  %7870 = vmatprep.subr.mxu0 0.0
  %7871 = vmatpush1.msra.mxu0 0.0
  %7872 = vmatprep.subr.mxu0 0.0
  %7873 = vmatpush1.msra.mxu0 0.0
  %7874 = vmatprep.subr.mxu0 0.0
  %7875 = vmatpush1.msra.mxu0 0.0
  %7876 = vmatprep.subr.mxu0 0.0
  %7877 = vmatpush1.msra.mxu0 0.0
  %7878 = vmatprep.subr.mxu0 0.0
  %7879 = vmatpush1.msra.mxu0 0.0
  %7880 = vmatprep.subr.mxu0 0.0
  %7881 = vmatpush1.msra.mxu0 0.0
  %7882 = vmatprep.subr.mxu0 0.0
  %7883 = vmatpush1.msra.mxu0 0.0
  %7884 = vmatprep.subr.mxu0 0.0
  %7885 = vmatpush1.msra.mxu0 0.0
  %7886 = vmatprep.subr.mxu0 0.0
  %7887 = vmatpush1.msra.mxu0 0.0
  %7888 = vmatprep.subr.mxu0 0.0
  %7889 = vmatpush1.msra.mxu0 0.0
  %7890 = vmatprep.subr.mxu0 0.0
  %7891 = vmatpush1.msra.mxu0 0.0
  %7892 = vmatprep.subr.mxu0 0.0
  %7893 = vmatpush1.msra.mxu0 0.0
  %7894 = vmatprep.subr.mxu0 %v5658
  %7895 = vmatpush1.msra.mxu0 %v5655
  %7896 = vmatprep.subr.mxu0 %v5477
  %7897 = vmatpush1.msra.mxu0 %v5476
  %7898 = vmatprep.subr.mxu0 %v5473
  %7899 = vmatpush1.msra.mxu0 %v5472
  %7900 = vmatprep.subr.mxu0 %v5469
  %7901 = vmatpush1.msra.mxu0 %v5468
  %7902 = vmatprep.subr.mxu0 0.0
  %7903 = vmatpush2.msra.mxu0 0.0
  %7904 = vmatprep.subr.mxu0 0.0
  %7905 = vmatpush2.msra.mxu0 0.0
  %7906 = vmatprep.subr.mxu0 0.0
  %7907 = vmatpush2.msra.mxu0 0.0
  %7908 = vmatprep.subr.mxu0 0.0
  %7909 = vmatpush2.msra.mxu0 0.0
  %7910 = vmatprep.subr.mxu0 0.0
  %7911 = vmatpush2.msra.mxu0 0.0
  %7912 = vmatprep.subr.mxu0 0.0
  %7913 = vmatpush2.msra.mxu0 0.0
  %7914 = vmatprep.subr.mxu0 0.0
  %7915 = vmatpush2.msra.mxu0 0.0
  %7916 = vmatprep.subr.mxu0 0.0
  %7917 = vmatpush2.msra.mxu0 0.0
  %7918 = vmatprep.subr.mxu0 0.0
  %7919 = vmatpush2.msra.mxu0 0.0
  %7920 = vmatprep.subr.mxu0 0.0
  %7921 = vmatpush2.msra.mxu0 0.0
  %7922 = vmatprep.subr.mxu0 0.0
  %7923 = vmatpush2.msra.mxu0 0.0
  %7924 = vmatprep.subr.mxu0 0.0
  %7925 = vmatpush2.msra.mxu0 0.0
  %7926 = vmatprep.subr.mxu0 0.0
  %7927 = vmatpush2.msra.mxu0 0.0
  %7928 = vmatprep.subr.mxu0 0.0
  %7929 = vmatpush2.msra.mxu0 0.0
  %7930 = vmatprep.subr.mxu0 0.0
  %7931 = vmatpush2.msra.mxu0 0.0
  %7932 = vmatprep.subr.mxu0 0.0
  %7933 = vmatpush2.msra.mxu0 0.0
  %7934 = vmatprep.mubr.f32.mxu0 0.0
  %7935 = vmatmul.mubr.f32.gmra.mxu0 %v5316
  %v7936 = vpop.f32.mrf.mxu0
  %v7937 = vadd.f32 %v7795, %v7936
  %v7938 = vpop.f32.mrf.mxu0
  %v7939 = vadd.f32 %v7797, %v7938
  %7940 = vdwg.mxu0
  %7941 = vmatprep.subr.mxu0 0.0
  %7942 = vmatpush1.msra.mxu0 0.0
  %7943 = vmatprep.subr.mxu0 0.0
  %7944 = vmatpush1.msra.mxu0 0.0
  %7945 = vmatprep.subr.mxu0 0.0
  %7946 = vmatpush1.msra.mxu0 0.0
  %7947 = vmatprep.subr.mxu0 0.0
  %7948 = vmatpush1.msra.mxu0 0.0
  %7949 = vmatprep.subr.mxu0 0.0
  %7950 = vmatpush1.msra.mxu0 0.0
  %7951 = vmatprep.subr.mxu0 0.0
  %7952 = vmatpush1.msra.mxu0 0.0
  %7953 = vmatprep.subr.mxu0 0.0
  %7954 = vmatpush1.msra.mxu0 0.0
  %7955 = vmatprep.subr.mxu0 0.0
  %7956 = vmatpush1.msra.mxu0 0.0
  %7957 = vmatprep.subr.mxu0 0.0
  %7958 = vmatpush1.msra.mxu0 0.0
  %7959 = vmatprep.subr.mxu0 0.0
  %7960 = vmatpush1.msra.mxu0 0.0
  %7961 = vmatprep.subr.mxu0 0.0
  %7962 = vmatpush1.msra.mxu0 0.0
  %7963 = vmatprep.subr.mxu0 0.0
  %7964 = vmatpush1.msra.mxu0 0.0
  %7965 = vmatprep.subr.mxu0 %v5664
  %7966 = vmatpush1.msra.mxu0 %v5661
  %7967 = vmatprep.subr.mxu0 %v5479
  %7968 = vmatpush1.msra.mxu0 %v5478
  %7969 = vmatprep.subr.mxu0 %v5475
  %7970 = vmatpush1.msra.mxu0 %v5474
  %7971 = vmatprep.subr.mxu0 %v5471
  %7972 = vmatpush1.msra.mxu0 %v5470
  %7973 = vmatprep.subr.mxu0 0.0
  %7974 = vmatpush2.msra.mxu0 0.0
  %7975 = vmatprep.subr.mxu0 0.0
  %7976 = vmatpush2.msra.mxu0 0.0
  %7977 = vmatprep.subr.mxu0 0.0
  %7978 = vmatpush2.msra.mxu0 0.0
  %7979 = vmatprep.subr.mxu0 0.0
  %7980 = vmatpush2.msra.mxu0 0.0
  %7981 = vmatprep.subr.mxu0 0.0
  %7982 = vmatpush2.msra.mxu0 0.0
  %7983 = vmatprep.subr.mxu0 0.0
  %7984 = vmatpush2.msra.mxu0 0.0
  %7985 = vmatprep.subr.mxu0 0.0
  %7986 = vmatpush2.msra.mxu0 0.0
  %7987 = vmatprep.subr.mxu0 0.0
  %7988 = vmatpush2.msra.mxu0 0.0
  %7989 = vmatprep.subr.mxu0 0.0
  %7990 = vmatpush2.msra.mxu0 0.0
  %7991 = vmatprep.subr.mxu0 0.0
  %7992 = vmatpush2.msra.mxu0 0.0
  %7993 = vmatprep.subr.mxu0 0.0
  %7994 = vmatpush2.msra.mxu0 0.0
  %7995 = vmatprep.subr.mxu0 0.0
  %7996 = vmatpush2.msra.mxu0 0.0
  %7997 = vmatprep.subr.mxu0 0.0
  %7998 = vmatpush2.msra.mxu0 0.0
  %7999 = vmatprep.subr.mxu0 0.0
  %8000 = vmatpush2.msra.mxu0 0.0
  %8001 = vmatprep.subr.mxu0 0.0
  %8002 = vmatpush2.msra.mxu0 0.0
  %8003 = vmatprep.subr.mxu0 0.0
  %8004 = vmatpush2.msra.mxu0 0.0
  %8005 = vmatprep.mubr.f32.mxu0 0.0
  %8006 = vmatmul.mubr.f32.gmra.mxu0 %v5316
  %v8007 = vpop.f32.mrf.mxu0
  %v8008 = vadd.f32 %v7866, %v8007
  %v8009 = vpop.f32.mrf.mxu0
  %v8010 = vadd.f32 %v7868, %v8009
  %8011 = vdwg.mxu0
  %8012 = vmatprep.subr.mxu0 0.0
  %8013 = vmatpush1.msra.mxu0 0.0
  %8014 = vmatprep.subr.mxu0 0.0
  %8015 = vmatpush1.msra.mxu0 0.0
  %8016 = vmatprep.subr.mxu0 0.0
  %8017 = vmatpush1.msra.mxu0 0.0
  %8018 = vmatprep.subr.mxu0 0.0
  %8019 = vmatpush1.msra.mxu0 0.0
  %8020 = vmatprep.subr.mxu0 0.0
  %8021 = vmatpush1.msra.mxu0 0.0
  %8022 = vmatprep.subr.mxu0 0.0
  %8023 = vmatpush1.msra.mxu0 0.0
  %8024 = vmatprep.subr.mxu0 0.0
  %8025 = vmatpush1.msra.mxu0 0.0
  %8026 = vmatprep.subr.mxu0 0.0
  %8027 = vmatpush1.msra.mxu0 0.0
  %8028 = vmatprep.subr.mxu0 0.0
  %8029 = vmatpush1.msra.mxu0 0.0
  %8030 = vmatprep.subr.mxu0 0.0
  %8031 = vmatpush1.msra.mxu0 0.0
  %8032 = vmatprep.subr.mxu0 0.0
  %8033 = vmatpush1.msra.mxu0 0.0
  %8034 = vmatprep.subr.mxu0 0.0
  %8035 = vmatpush1.msra.mxu0 0.0
  %8036 = vmatprep.subr.mxu0 %v5828
  %8037 = vmatpush1.msra.mxu0 %v5825
  %8038 = vmatprep.subr.mxu0 %v5817
  %8039 = vmatpush1.msra.mxu0 %v5816
  %8040 = vmatprep.subr.mxu0 %v5813
  %8041 = vmatpush1.msra.mxu0 %v5812
  %8042 = vmatprep.subr.mxu0 %v5809
  %8043 = vmatpush1.msra.mxu0 %v5808
  %8044 = vmatprep.subr.mxu0 0.0
  %8045 = vmatpush2.msra.mxu0 0.0
  %8046 = vmatprep.subr.mxu0 0.0
  %8047 = vmatpush2.msra.mxu0 0.0
  %8048 = vmatprep.subr.mxu0 0.0
  %8049 = vmatpush2.msra.mxu0 0.0
  %8050 = vmatprep.subr.mxu0 0.0
  %8051 = vmatpush2.msra.mxu0 0.0
  %8052 = vmatprep.subr.mxu0 0.0
  %8053 = vmatpush2.msra.mxu0 0.0
  %8054 = vmatprep.subr.mxu0 0.0
  %8055 = vmatpush2.msra.mxu0 0.0
  %8056 = vmatprep.subr.mxu0 0.0
  %8057 = vmatpush2.msra.mxu0 0.0
  %8058 = vmatprep.subr.mxu0 0.0
  %8059 = vmatpush2.msra.mxu0 0.0
  %8060 = vmatprep.subr.mxu0 0.0
  %8061 = vmatpush2.msra.mxu0 0.0
  %8062 = vmatprep.subr.mxu0 0.0
  %8063 = vmatpush2.msra.mxu0 0.0
  %8064 = vmatprep.subr.mxu0 0.0
  %8065 = vmatpush2.msra.mxu0 0.0
  %8066 = vmatprep.subr.mxu0 0.0
  %8067 = vmatpush2.msra.mxu0 0.0
  %8068 = vmatprep.subr.mxu0 0.0
  %8069 = vmatpush2.msra.mxu0 0.0
  %8070 = vmatprep.subr.mxu0 0.0
  %8071 = vmatpush2.msra.mxu0 0.0
  %8072 = vmatprep.subr.mxu0 0.0
  %8073 = vmatpush2.msra.mxu0 0.0
  %8074 = vmatprep.subr.mxu0 0.0
  %8075 = vmatpush2.msra.mxu0 0.0
  %8076 = vmatprep.mubr.f32.mxu0 0.0
  %8077 = vmatmul.mubr.f32.gmra.mxu0 %v7146
  %v8078 = vpop.f32.mrf.mxu0
  %v8079 = vadd.f32 0.0, %v8078
  %v8080 = vpop.f32.mrf.mxu0
  %v8081 = vadd.f32 0.0, %v8080
  %8082 = vdwg.mxu0
  %8083 = vmatprep.subr.mxu0 0.0
  %8084 = vmatpush1.msra.mxu0 0.0
  %8085 = vmatprep.subr.mxu0 0.0
  %8086 = vmatpush1.msra.mxu0 0.0
  %8087 = vmatprep.subr.mxu0 0.0
  %8088 = vmatpush1.msra.mxu0 0.0
  %8089 = vmatprep.subr.mxu0 0.0
  %8090 = vmatpush1.msra.mxu0 0.0
  %8091 = vmatprep.subr.mxu0 0.0
  %8092 = vmatpush1.msra.mxu0 0.0
  %8093 = vmatprep.subr.mxu0 0.0
  %8094 = vmatpush1.msra.mxu0 0.0
  %8095 = vmatprep.subr.mxu0 0.0
  %8096 = vmatpush1.msra.mxu0 0.0
  %8097 = vmatprep.subr.mxu0 0.0
  %8098 = vmatpush1.msra.mxu0 0.0
  %8099 = vmatprep.subr.mxu0 0.0
  %8100 = vmatpush1.msra.mxu0 0.0
  %8101 = vmatprep.subr.mxu0 0.0
  %8102 = vmatpush1.msra.mxu0 0.0
  %8103 = vmatprep.subr.mxu0 0.0
  %8104 = vmatpush1.msra.mxu0 0.0
  %8105 = vmatprep.subr.mxu0 0.0
  %8106 = vmatpush1.msra.mxu0 0.0
  %8107 = vmatprep.subr.mxu0 %v5834
  %8108 = vmatpush1.msra.mxu0 %v5831
  %8109 = vmatprep.subr.mxu0 %v5819
  %8110 = vmatpush1.msra.mxu0 %v5818
  %8111 = vmatprep.subr.mxu0 %v5815
  %8112 = vmatpush1.msra.mxu0 %v5814
  %8113 = vmatprep.subr.mxu0 %v5811
  %8114 = vmatpush1.msra.mxu0 %v5810
  %8115 = vmatprep.subr.mxu0 0.0
  %8116 = vmatpush2.msra.mxu0 0.0
  %8117 = vmatprep.subr.mxu0 0.0
  %8118 = vmatpush2.msra.mxu0 0.0
  %8119 = vmatprep.subr.mxu0 0.0
  %8120 = vmatpush2.msra.mxu0 0.0
  %8121 = vmatprep.subr.mxu0 0.0
  %8122 = vmatpush2.msra.mxu0 0.0
  %8123 = vmatprep.subr.mxu0 0.0
  %8124 = vmatpush2.msra.mxu0 0.0
  %8125 = vmatprep.subr.mxu0 0.0
  %8126 = vmatpush2.msra.mxu0 0.0
  %8127 = vmatprep.subr.mxu0 0.0
  %8128 = vmatpush2.msra.mxu0 0.0
  %8129 = vmatprep.subr.mxu0 0.0
  %8130 = vmatpush2.msra.mxu0 0.0
  %8131 = vmatprep.subr.mxu0 0.0
  %8132 = vmatpush2.msra.mxu0 0.0
  %8133 = vmatprep.subr.mxu0 0.0
  %8134 = vmatpush2.msra.mxu0 0.0
  %8135 = vmatprep.subr.mxu0 0.0
  %8136 = vmatpush2.msra.mxu0 0.0
  %8137 = vmatprep.subr.mxu0 0.0
  %8138 = vmatpush2.msra.mxu0 0.0
  %8139 = vmatprep.subr.mxu0 0.0
  %8140 = vmatpush2.msra.mxu0 0.0
  %8141 = vmatprep.subr.mxu0 0.0
  %8142 = vmatpush2.msra.mxu0 0.0
  %8143 = vmatprep.subr.mxu0 0.0
  %8144 = vmatpush2.msra.mxu0 0.0
  %8145 = vmatprep.subr.mxu0 0.0
  %8146 = vmatpush2.msra.mxu0 0.0
  %8147 = vmatprep.mubr.f32.mxu0 0.0
  %8148 = vmatmul.mubr.f32.gmra.mxu0 %v7146
  %v8149 = vpop.f32.mrf.mxu0
  %v8150 = vadd.f32 0.0, %v8149
  %v8151 = vpop.f32.mrf.mxu0
  %v8152 = vadd.f32 0.0, %v8151
  %8153 = vdwg.mxu0
  %v8154 = vadd.f32 %v7937, %v8079
  %v8155 = vadd.f32 %v7939, %v8081
  %v8156 = vadd.f32 %v8008, %v8150
  %v8157 = vadd.f32 %v8010, %v8152
  %v8158 = vmax.f32 %v7724, %v8154
  %v8159 = vmax.f32 %v7725, %v8155
  %v8160 = vmax.f32 %v7726, %v8156
  %v8161 = vmax.f32 %v7727, %v8157
  %v8162 = vmax.f32 %v7294, %v8158
  %v8163 = vmax.f32 %v7295, %v8159
  %v8164 = vmax.f32 %v7296, %v8160
  %v8165 = vmax.f32 %v7297, %v8161
  %v8166 = vadd.f32 %v8162, %v1952
  %v8167 = vadd.f32 %v8163, %v1956
  %v8168 = vadd.f32 %v8164, %v1960
  %v8169 = vadd.f32 %v8165, %v1964
  %v8170 = vmax.f32 %v8166, 0.0
  %v8171 = vmax.f32 %v8167, 0.0
  %v8172 = vmax.f32 %v8168, 0.0
  %v8173 = vmax.f32 %v8169, 0.0
  %v8174 = vld [vmem:[%s3] sm:$0xff]
  %v8175 = vld [vmem:[%s3 + $0x8] sm:$0xff]
  %v8176 = vld [vmem:[%s3 + $0x10] sm:$0xff]
  %v8177 = vld [vmem:[%s3 + $0x18] sm:$0xff]
  %v8178 = vld [vmem:[%s3 + $0x20] sm:$0xff]
  %v8179 = vld [vmem:[%s3 + $0x28] sm:$0xff]
  %v8180 = vld [vmem:[%s3 + $0x30] sm:$0xff]
  %v8181 = vld [vmem:[%s3 + $0x38] sm:$0xff]
  %v8182 = vld [vmem:[%s3 + $0x40] sm:$0xff]
  %v8183 = vld [vmem:[%s3 + $0x48] sm:$0xff]
  %v8184 = vld [vmem:[%s3 + $0x50] sm:$0xff]
  %v8185 = vld [vmem:[%s3 + $0x58] sm:$0xff]
  %v8186 = vld [vmem:[%s3 + $0x60] sm:$0xff]
  %v8187 = vld [vmem:[%s3 + $0x68] sm:$0xff]
  %v8188 = vld [vmem:[%s3 + $0x70] sm:$0xff]
  %v8189 = vld [vmem:[%s3 + $0x78] sm:$0xff]
  %v8190 = vld [vmem:[%s3 + $0x80] sm:$0xff]
  %v8191 = vld [vmem:[%s3 + $0x88] sm:$0xff]
  %v8192 = vld [vmem:[%s3 + $0x90] sm:$0xff]
  %v8193 = vld [vmem:[%s3 + $0x98] sm:$0xff]
  %v8194 = vld [vmem:[%s3 + $0xa0] sm:$0xff]
  %v8195 = vld [vmem:[%s3 + $0xa8] sm:$0xff]
  %v8196 = vld [vmem:[%s3 + $0xb0] sm:$0xff]
  %v8197 = vld [vmem:[%s3 + $0xb8] sm:$0xff]
  %v8198 = vld [vmem:[%s3 + $0xc0] sm:$0xff]
  %v8199 = vld [vmem:[%s3 + $0xc8] sm:$0xff]
  %v8200 = vld [vmem:[%s3 + $0xd0] sm:$0xff]
  %v8201 = vld [vmem:[%s3 + $0xd8] sm:$0xff]
  %v8202 = vld [vmem:[%s3 + $0xe0] sm:$0xff]
  %v8203 = vld [vmem:[%s3 + $0xe8] sm:$0xff]
  %v8204 = vld [vmem:[%s3 + $0xf0] sm:$0xff]
  %v8205 = vld [vmem:[%s3 + $0xf8] sm:$0xff]
  %v8206 = vld [vmem:[%s3 + $0x100] sm:$0xff]
  %v8207 = vld [vmem:[%s3 + $0x108] sm:$0xff]
  %v8208 = vld [vmem:[%s3 + $0x110] sm:$0xff]
  %v8209 = vld [vmem:[%s3 + $0x118] sm:$0xff]
  %v8210 = vld [vmem:[%s3 + $0x120] sm:$0xff]
  %v8211 = vld [vmem:[%s3 + $0x128] sm:$0xff]
  %v8212 = vld [vmem:[%s3 + $0x130] sm:$0xff]
  %v8213 = vld [vmem:[%s3 + $0x138] sm:$0xff]
  %v8214 = vld [vmem:[%s3 + $0x140] sm:$0xff]
  %v8215 = vld [vmem:[%s3 + $0x148] sm:$0xff]
  %v8216 = vld [vmem:[%s3 + $0x150] sm:$0xff]
  %v8217 = vld [vmem:[%s3 + $0x158] sm:$0xff]
  %v8218 = vld [vmem:[%s3 + $0x160] sm:$0xff]
  %v8219 = vld [vmem:[%s3 + $0x168] sm:$0xff]
  %v8220 = vld [vmem:[%s3 + $0x170] sm:$0xff]
  %v8221 = vld [vmem:[%s3 + $0x178] sm:$0xff]
  %v8222 = vld [vmem:[%s3 + $0x180] sm:$0xff]
  %v8223 = vld [vmem:[%s3 + $0x188] sm:$0xff]
  %v8224 = vld [vmem:[%s3 + $0x190] sm:$0xff]
  %v8225 = vld [vmem:[%s3 + $0x198] sm:$0xff]
  %v8226 = vld [vmem:[%s3 + $0x1a0] sm:$0xff]
  %v8227 = vld [vmem:[%s3 + $0x1a8] sm:$0xff]
  %v8228 = vld [vmem:[%s3 + $0x1b0] sm:$0xff]
  %v8229 = vld [vmem:[%s3 + $0x1b8] sm:$0xff]
  %v8230 = vld [vmem:[%s3 + $0x1c0] sm:$0xff]
  %v8231 = vld [vmem:[%s3 + $0x1c8] sm:$0xff]
  %v8232 = vld [vmem:[%s3 + $0x1d0] sm:$0xff]
  %v8233 = vld [vmem:[%s3 + $0x1d8] sm:$0xff]
  %v8234 = vld [vmem:[%s3 + $0x1e0] sm:$0xff]
  %v8235 = vld [vmem:[%s3 + $0x1e8] sm:$0xff]
  %v8236 = vld [vmem:[%s3 + $0x1f0] sm:$0xff]
  %v8237 = vld [vmem:[%s3 + $0x1f8] sm:$0xff]
  %v8238 = vld [vmem:[%s3 + $0x200] sm:$0xff]
  %v8239 = vld [vmem:[%s3 + $0x208] sm:$0xff]
  %v8240 = vld [vmem:[%s3 + $0x210] sm:$0xff]
  %v8241 = vld [vmem:[%s3 + $0x218] sm:$0xff]
  %v8242 = vld [vmem:[%s3 + $0x220] sm:$0xff]
  %v8243 = vld [vmem:[%s3 + $0x228] sm:$0xff]
  %v8244 = vld [vmem:[%s3 + $0x230] sm:$0xff]
  %v8245 = vld [vmem:[%s3 + $0x238] sm:$0xff]
  %v8246 = vld [vmem:[%s3 + $0x240] sm:$0xff]
  %v8247 = vld [vmem:[%s3 + $0x248] sm:$0xff]
  %v8248 = vld [vmem:[%s3 + $0x250] sm:$0xff]
  %v8249 = vld [vmem:[%s3 + $0x258] sm:$0xff]
  %v8250 = vld [vmem:[%s3 + $0x260] sm:$0xff]
  %v8251 = vld [vmem:[%s3 + $0x268] sm:$0xff]
  %v8252 = vld [vmem:[%s3 + $0x270] sm:$0xff]
  %v8253 = vld [vmem:[%s3 + $0x278] sm:$0xff]
  %v8254 = vld [vmem:[%s3 + $0x280] sm:$0xff]
  %v8255 = vld [vmem:[%s3 + $0x288] sm:$0xff]
  %v8256 = vld [vmem:[%s3 + $0x290] sm:$0xff]
  %v8257 = vld [vmem:[%s3 + $0x298] sm:$0xff]
  %v8258 = vld [vmem:[%s3 + $0x2a0] sm:$0xff]
  %v8259 = vld [vmem:[%s3 + $0x2a8] sm:$0xff]
  %v8260 = vld [vmem:[%s3 + $0x2b0] sm:$0xff]
  %v8261 = vld [vmem:[%s3 + $0x2b8] sm:$0xff]
  %v8262 = vld [vmem:[%s3 + $0x2c0] sm:$0xff]
  %v8263 = vld [vmem:[%s3 + $0x2c8] sm:$0xff]
  %v8264 = vld [vmem:[%s3 + $0x2d0] sm:$0xff]
  %v8265 = vld [vmem:[%s3 + $0x2d8] sm:$0xff]
  %v8266 = vld [vmem:[%s3 + $0x2e0] sm:$0xff]
  %v8267 = vld [vmem:[%s3 + $0x2e8] sm:$0xff]
  %v8268 = vld [vmem:[%s3 + $0x2f0] sm:$0xff]
  %v8269 = vld [vmem:[%s3 + $0x2f8] sm:$0xff]
  %v8270 = vld [vmem:[%s3 + $0x300] sm:$0xff]
  %v8271 = vld [vmem:[%s3 + $0x308] sm:$0xff]
  %v8272 = vld [vmem:[%s3 + $0x310] sm:$0xff]
  %v8273 = vld [vmem:[%s3 + $0x318] sm:$0xff]
  %v8274 = vld [vmem:[%s3 + $0x320] sm:$0xff]
  %v8275 = vld [vmem:[%s3 + $0x328] sm:$0xff]
  %v8276 = vld [vmem:[%s3 + $0x330] sm:$0xff]
  %v8277 = vld [vmem:[%s3 + $0x338] sm:$0xff]
  %v8278 = vld [vmem:[%s3827] sm:$0xff]
  %v8279 = vld [vmem:[%s3827 + $0x8] sm:$0xff]
  %v8280 = vld [vmem:[%s3827 + $0x10] sm:$0xff]
  %v8281 = vld [vmem:[%s3827 + $0x18] sm:$0xff]
  %v8282 = vld [vmem:[%s3827 + $0x20] sm:$0xff]
  %v8283 = vld [vmem:[%s3827 + $0x28] sm:$0xff]
  %v8284 = vld [vmem:[%s3827 + $0x30] sm:$0xff]
  %v8285 = vld [vmem:[%s3827 + $0x38] sm:$0xff]
  %v8286 = vld [vmem:[%s3827 + $0x40] sm:$0xff]
  %v8287 = vld [vmem:[%s3827 + $0x48] sm:$0xff]
  %v8288 = vld [vmem:[%s3827 + $0x50] sm:$0xff]
  %v8289 = vld [vmem:[%s3827 + $0x58] sm:$0xff]
  %v8290 = vld [vmem:[%s3827 + $0x60] sm:$0xff]
  %v8291 = vld [vmem:[%s3827 + $0x68] sm:$0xff]
  %v8292 = vld [vmem:[%s3827 + $0x70] sm:$0xff]
  %v8293 = vld [vmem:[%s3827 + $0x78] sm:$0xff]
  %v8294 = vld [vmem:[%s3827 + $0x80] sm:$0xff]
  %v8295 = vld [vmem:[%s3827 + $0x88] sm:$0xff]
  %v8296 = vld [vmem:[%s3827 + $0x90] sm:$0xff]
  %v8297 = vld [vmem:[%s3827 + $0x98] sm:$0xff]
  %v8298 = vld [vmem:[%s3827 + $0xa0] sm:$0xff]
  %v8299 = vld [vmem:[%s3827 + $0xa8] sm:$0xff]
  %v8300 = vld [vmem:[%s3827 + $0xb0] sm:$0xff]
  %v8301 = vld [vmem:[%s3827 + $0xb8] sm:$0xff]
  %v8302 = vld [vmem:[%s3827 + $0xc0] sm:$0xff]
  %v8303 = vld [vmem:[%s3827 + $0xc8] sm:$0xff]
  %v8304 = vld [vmem:[%s3827 + $0xd0] sm:$0xff]
  %v8305 = vld [vmem:[%s3827 + $0xd8] sm:$0xff]
  %v8306 = vld [vmem:[%s3827 + $0xe0] sm:$0xff]
  %v8307 = vld [vmem:[%s3827 + $0xe8] sm:$0xff]
  %v8308 = vld [vmem:[%s3827 + $0xf0] sm:$0xff]
  %v8309 = vld [vmem:[%s3827 + $0xf8] sm:$0xff]
  %v8310 = vld [vmem:[%s3827 + $0x100] sm:$0xff]
  %v8311 = vld [vmem:[%s3827 + $0x108] sm:$0xff]
  %v8312 = vld [vmem:[%s3827 + $0x110] sm:$0xff]
  %v8313 = vld [vmem:[%s3827 + $0x118] sm:$0xff]
  %v8314 = vld [vmem:[%s3827 + $0x120] sm:$0xff]
  %v8315 = vld [vmem:[%s3827 + $0x128] sm:$0xff]
  %v8316 = vld [vmem:[%s3827 + $0x130] sm:$0xff]
  %v8317 = vld [vmem:[%s3827 + $0x138] sm:$0xff]
  %v8318 = vld [vmem:[%s3827 + $0x140] sm:$0xff]
  %v8319 = vld [vmem:[%s3827 + $0x148] sm:$0xff]
  %v8320 = vld [vmem:[%s3827 + $0x150] sm:$0xff]
  %v8321 = vld [vmem:[%s3827 + $0x158] sm:$0xff]
  %v8322 = vld [vmem:[%s3827 + $0x160] sm:$0xff]
  %v8323 = vld [vmem:[%s3827 + $0x168] sm:$0xff]
  %v8324 = vld [vmem:[%s3827 + $0x170] sm:$0xff]
  %v8325 = vld [vmem:[%s3827 + $0x178] sm:$0xff]
  %v8326 = vld [vmem:[%s3827 + $0x180] sm:$0xff]
  %v8327 = vld [vmem:[%s3827 + $0x188] sm:$0xff]
  %v8328 = vld [vmem:[%s3827 + $0x190] sm:$0xff]
  %v8329 = vld [vmem:[%s3827 + $0x198] sm:$0xff]
  %v8330 = vld [vmem:[%s3827 + $0x1a0] sm:$0xff]
  %v8331 = vld [vmem:[%s3827 + $0x1a8] sm:$0xff]
  %v8332 = vld [vmem:[%s3827 + $0x1b0] sm:$0xff]
  %v8333 = vld [vmem:[%s3827 + $0x1b8] sm:$0xff]
  %v8334 = vld [vmem:[%s3827 + $0x1c0] sm:$0xff]
  %v8335 = vld [vmem:[%s3827 + $0x1c8] sm:$0xff]
  %v8336 = vld [vmem:[%s3827 + $0x1d0] sm:$0xff]
  %v8337 = vld [vmem:[%s3827 + $0x1d8] sm:$0xff]
  %v8338 = vld [vmem:[%s3827 + $0x1e0] sm:$0xff]
  %v8339 = vld [vmem:[%s3827 + $0x1e8] sm:$0xff]
  %v8340 = vld [vmem:[%s3827 + $0x1f0] sm:$0xff]
  %v8341 = vld [vmem:[%s3827 + $0x1f8] sm:$0xff]
  %v8342 = vld [vmem:[%s3827 + $0x200] sm:$0xff]
  %v8343 = vld [vmem:[%s3827 + $0x208] sm:$0xff]
  %v8344 = vld [vmem:[%s3827 + $0x210] sm:$0xff]
  %v8345 = vld [vmem:[%s3827 + $0x218] sm:$0xff]
  %v8346 = vld [vmem:[%s3827 + $0x220] sm:$0xff]
  %v8347 = vld [vmem:[%s3827 + $0x228] sm:$0xff]
  %v8348 = vld [vmem:[%s3827 + $0x230] sm:$0xff]
  %v8349 = vld [vmem:[%s3827 + $0x238] sm:$0xff]
  %v8350 = vld [vmem:[%s3827 + $0x240] sm:$0xff]
  %v8351 = vld [vmem:[%s3827 + $0x248] sm:$0xff]
  %v8352 = vld [vmem:[%s3827 + $0x250] sm:$0xff]
  %v8353 = vld [vmem:[%s3827 + $0x258] sm:$0xff]
  %v8354 = vld [vmem:[%s3827 + $0x260] sm:$0xff]
  %v8355 = vld [vmem:[%s3827 + $0x268] sm:$0xff]
  %v8356 = vld [vmem:[%s3827 + $0x270] sm:$0xff]
  %v8357 = vld [vmem:[%s3827 + $0x278] sm:$0xff]
  %v8358 = vld [vmem:[%s3827 + $0x280] sm:$0xff]
  %v8359 = vld [vmem:[%s3827 + $0x288] sm:$0xff]
  %v8360 = vld [vmem:[%s3827 + $0x290] sm:$0xff]
  %v8361 = vld [vmem:[%s3827 + $0x298] sm:$0xff]
  %v8362 = vld [vmem:[%s3827 + $0x2a0] sm:$0xff]
  %v8363 = vld [vmem:[%s3827 + $0x2a8] sm:$0xff]
  %v8364 = vld [vmem:[%s3827 + $0x2b0] sm:$0xff]
  %v8365 = vld [vmem:[%s3827 + $0x2b8] sm:$0xff]
  %v8366 = vld [vmem:[%s3827 + $0x2c0] sm:$0xff]
  %v8367 = vld [vmem:[%s3827 + $0x2c8] sm:$0xff]
  %v8368 = vld [vmem:[%s3827 + $0x2d0] sm:$0xff]
  %v8369 = vld [vmem:[%s3827 + $0x2d8] sm:$0xff]
  %v8370 = vld [vmem:[%s3827 + $0x2e0] sm:$0xff]
  %v8371 = vld [vmem:[%s3827 + $0x2e8] sm:$0xff]
  %v8372 = vld [vmem:[%s3827 + $0x2f0] sm:$0xff]
  %v8373 = vld [vmem:[%s3827 + $0x2f8] sm:$0xff]
  %v8374 = vld [vmem:[%s3827 + $0x300] sm:$0xff]
  %v8375 = vld [vmem:[%s3827 + $0x308] sm:$0xff]
  %v8376 = vld [vmem:[%s3827 + $0x310] sm:$0xff]
  %v8377 = vld [vmem:[%s3827 + $0x318] sm:$0xff]
  %v8378 = vld [vmem:[%s3827 + $0x320] sm:$0xff]
  %v8379 = vld [vmem:[%s3827 + $0x328] sm:$0xff]
  %v8380 = vld [vmem:[%s3827 + $0x330] sm:$0xff]
  %v8381 = vld [vmem:[%s3827 + $0x338] sm:$0xff]
  %v8383 = vsel %vm3932, %v8173, 0
  %8385 = vmatprep.subr.mxu0 %v8309
  %8386 = vmatpush1.msra.mxu0 %v8308
  %8387 = vmatprep.subr.mxu0 %v8307
  %8388 = vmatpush1.msra.mxu0 %v8306
  %8389 = vmatprep.subr.mxu0 %v8305
  %8390 = vmatpush1.msra.mxu0 %v8304
  %8391 = vmatprep.subr.mxu0 %v8303
  %8392 = vmatpush1.msra.mxu0 %v8302
  %8393 = vmatprep.subr.mxu0 %v8301
  %8394 = vmatpush1.msra.mxu0 %v8300
  %8395 = vmatprep.subr.mxu0 %v8299
  %8396 = vmatpush1.msra.mxu0 %v8298
  %8397 = vmatprep.subr.mxu0 %v8297
  %8398 = vmatpush1.msra.mxu0 %v8296
  %8399 = vmatprep.subr.mxu0 %v8295
  %8400 = vmatpush1.msra.mxu0 %v8294
  %8401 = vmatprep.subr.mxu0 %v8293
  %8402 = vmatpush1.msra.mxu0 %v8292
  %8403 = vmatprep.subr.mxu0 %v8291
  %8404 = vmatpush1.msra.mxu0 %v8290
  %8405 = vmatprep.subr.mxu0 %v8289
  %8406 = vmatpush1.msra.mxu0 %v8288
  %8407 = vmatprep.subr.mxu0 %v8287
  %8408 = vmatpush1.msra.mxu0 %v8286
  %8409 = vmatprep.subr.mxu0 %v8285
  %8410 = vmatpush1.msra.mxu0 %v8284
  %8411 = vmatprep.subr.mxu0 %v8283
  %8412 = vmatpush1.msra.mxu0 %v8282
  %8413 = vmatprep.subr.mxu0 %v8281
  %8414 = vmatpush1.msra.mxu0 %v8280
  %8415 = vmatprep.subr.mxu0 %v8279
  %8416 = vmatpush1.msra.mxu0 %v8278
  %8417 = vmatprep.subr.mxu0 %v8341
  %8418 = vmatpush2.msra.mxu0 %v8340
  %8419 = vmatprep.subr.mxu0 %v8339
  %8420 = vmatpush2.msra.mxu0 %v8338
  %8421 = vmatprep.subr.mxu0 %v8337
  %8422 = vmatpush2.msra.mxu0 %v8336
  %8423 = vmatprep.subr.mxu0 %v8335
  %8424 = vmatpush2.msra.mxu0 %v8334
  %8425 = vmatprep.subr.mxu0 %v8333
  %8426 = vmatpush2.msra.mxu0 %v8332
  %8427 = vmatprep.subr.mxu0 %v8331
  %8428 = vmatpush2.msra.mxu0 %v8330
  %8429 = vmatprep.subr.mxu0 %v8329
  %8430 = vmatpush2.msra.mxu0 %v8328
  %8431 = vmatprep.subr.mxu0 %v8327
  %8432 = vmatpush2.msra.mxu0 %v8326
  %8433 = vmatprep.subr.mxu0 %v8325
  %8434 = vmatpush2.msra.mxu0 %v8324
  %8435 = vmatprep.subr.mxu0 %v8323
  %8436 = vmatpush2.msra.mxu0 %v8322
  %8437 = vmatprep.subr.mxu0 %v8321
  %8438 = vmatpush2.msra.mxu0 %v8320
  %8439 = vmatprep.subr.mxu0 %v8319
  %8440 = vmatpush2.msra.mxu0 %v8318
  %8441 = vmatprep.subr.mxu0 %v8317
  %8442 = vmatpush2.msra.mxu0 %v8316
  %8443 = vmatprep.subr.mxu0 %v8315
  %8444 = vmatpush2.msra.mxu0 %v8314
  %8445 = vmatprep.subr.mxu0 %v8313
  %8446 = vmatpush2.msra.mxu0 %v8312
  %8447 = vmatprep.subr.mxu0 %v8311
  %8448 = vmatpush2.msra.mxu0 %v8310
  %8449 = vmatprep.mubr.f32.mxu0 %v8171
  %8450 = vmatmul.mubr.f32.gmra.mxu0 %v8170
  %v8451 = vpop.f32.mrf.mxu0
  %v8452 = vadd.f32 0.0, %v8451
  %v8453 = vpop.f32.mrf.mxu0
  %v8454 = vadd.f32 0.0, %v8453
  %8455 = vdwg.mxu0
  %8456 = vmatprep.subr.mxu0 %v8373
  %8457 = vmatpush1.msra.mxu0 %v8372
  %8458 = vmatprep.subr.mxu0 %v8371
  %8459 = vmatpush1.msra.mxu0 %v8370
  %8460 = vmatprep.subr.mxu0 %v8369
  %8461 = vmatpush1.msra.mxu0 %v8368
  %8462 = vmatprep.subr.mxu0 %v8367
  %8463 = vmatpush1.msra.mxu0 %v8366
  %8464 = vmatprep.subr.mxu0 %v8365
  %8465 = vmatpush1.msra.mxu0 %v8364
  %8466 = vmatprep.subr.mxu0 %v8363
  %8467 = vmatpush1.msra.mxu0 %v8362
  %8468 = vmatprep.subr.mxu0 %v8361
  %8469 = vmatpush1.msra.mxu0 %v8360
  %8470 = vmatprep.subr.mxu0 %v8359
  %8471 = vmatpush1.msra.mxu0 %v8358
  %8472 = vmatprep.subr.mxu0 %v8357
  %8473 = vmatpush1.msra.mxu0 %v8356
  %8474 = vmatprep.subr.mxu0 %v8355
  %8475 = vmatpush1.msra.mxu0 %v8354
  %8476 = vmatprep.subr.mxu0 %v8353
  %8477 = vmatpush1.msra.mxu0 %v8352
  %8478 = vmatprep.subr.mxu0 %v8351
  %8479 = vmatpush1.msra.mxu0 %v8350
  %8480 = vmatprep.subr.mxu0 %v8349
  %8481 = vmatpush1.msra.mxu0 %v8348
  %8482 = vmatprep.subr.mxu0 %v8347
  %8483 = vmatpush1.msra.mxu0 %v8346
  %8484 = vmatprep.subr.mxu0 %v8345
  %8485 = vmatpush1.msra.mxu0 %v8344
  %8486 = vmatprep.subr.mxu0 %v8343
  %8487 = vmatpush1.msra.mxu0 %v8342
  %8488 = vmatprep.subr.mxu0 0.0
  %8489 = vmatpush2.msra.mxu0 0.0
  %8490 = vmatprep.subr.mxu0 0.0
  %8491 = vmatpush2.msra.mxu0 0.0
  %8492 = vmatprep.subr.mxu0 0.0
  %8493 = vmatpush2.msra.mxu0 0.0
  %8494 = vmatprep.subr.mxu0 0.0
  %8495 = vmatpush2.msra.mxu0 0.0
  %8496 = vmatprep.subr.mxu0 0.0
  %8497 = vmatpush2.msra.mxu0 0.0
  %8498 = vmatprep.subr.mxu0 0.0
  %8499 = vmatpush2.msra.mxu0 0.0
  %8500 = vmatprep.subr.mxu0 0.0
  %8501 = vmatpush2.msra.mxu0 0.0
  %8502 = vmatprep.subr.mxu0 0.0
  %8503 = vmatpush2.msra.mxu0 0.0
  %8504 = vmatprep.subr.mxu0 0.0
  %8505 = vmatpush2.msra.mxu0 0.0
  %8506 = vmatprep.subr.mxu0 0.0
  %8507 = vmatpush2.msra.mxu0 0.0
  %8508 = vmatprep.subr.mxu0 0.0
  %8509 = vmatpush2.msra.mxu0 0.0
  %8510 = vmatprep.subr.mxu0 0.0
  %8511 = vmatpush2.msra.mxu0 0.0
  %8512 = vmatprep.subr.mxu0 %v8381
  %8513 = vmatpush2.msra.mxu0 %v8380
  %8514 = vmatprep.subr.mxu0 %v8379
  %8515 = vmatpush2.msra.mxu0 %v8378
  %8516 = vmatprep.subr.mxu0 %v8377
  %8517 = vmatpush2.msra.mxu0 %v8376
  %8518 = vmatprep.subr.mxu0 %v8375
  %8519 = vmatpush2.msra.mxu0 %v8374
  %8520 = vmatprep.mubr.f32.mxu0 %v8383
  %8521 = vmatmul.mubr.f32.gmra.mxu0 %v8172
  %v8522 = vpop.f32.mrf.mxu0
  %v8523 = vadd.f32 %v8452, %v8522
  %v8524 = vpop.f32.mrf.mxu0
  %v8525 = vadd.f32 %v8454, %v8524
  %8526 = vdwg.mxu0
  %v8528 = vsel %vm3932, %v6427, 0
  %8530 = vmatprep.subr.mxu0 %v8205
  %8531 = vmatpush1.msra.mxu0 %v8204
  %8532 = vmatprep.subr.mxu0 %v8203
  %8533 = vmatpush1.msra.mxu0 %v8202
  %8534 = vmatprep.subr.mxu0 %v8201
  %8535 = vmatpush1.msra.mxu0 %v8200
  %8536 = vmatprep.subr.mxu0 %v8199
  %8537 = vmatpush1.msra.mxu0 %v8198
  %8538 = vmatprep.subr.mxu0 %v8197
  %8539 = vmatpush1.msra.mxu0 %v8196
  %8540 = vmatprep.subr.mxu0 %v8195
  %8541 = vmatpush1.msra.mxu0 %v8194
  %8542 = vmatprep.subr.mxu0 %v8193
  %8543 = vmatpush1.msra.mxu0 %v8192
  %8544 = vmatprep.subr.mxu0 %v8191
  %8545 = vmatpush1.msra.mxu0 %v8190
  %8546 = vmatprep.subr.mxu0 %v8189
  %8547 = vmatpush1.msra.mxu0 %v8188
  %8548 = vmatprep.subr.mxu0 %v8187
  %8549 = vmatpush1.msra.mxu0 %v8186
  %8550 = vmatprep.subr.mxu0 %v8185
  %8551 = vmatpush1.msra.mxu0 %v8184
  %8552 = vmatprep.subr.mxu0 %v8183
  %8553 = vmatpush1.msra.mxu0 %v8182
  %8554 = vmatprep.subr.mxu0 %v8181
  %8555 = vmatpush1.msra.mxu0 %v8180
  %8556 = vmatprep.subr.mxu0 %v8179
  %8557 = vmatpush1.msra.mxu0 %v8178
  %8558 = vmatprep.subr.mxu0 %v8177
  %8559 = vmatpush1.msra.mxu0 %v8176
  %8560 = vmatprep.subr.mxu0 %v8175
  %8561 = vmatpush1.msra.mxu0 %v8174
  %8562 = vmatprep.subr.mxu0 %v8237
  %8563 = vmatpush2.msra.mxu0 %v8236
  %8564 = vmatprep.subr.mxu0 %v8235
  %8565 = vmatpush2.msra.mxu0 %v8234
  %8566 = vmatprep.subr.mxu0 %v8233
  %8567 = vmatpush2.msra.mxu0 %v8232
  %8568 = vmatprep.subr.mxu0 %v8231
  %8569 = vmatpush2.msra.mxu0 %v8230
  %8570 = vmatprep.subr.mxu0 %v8229
  %8571 = vmatpush2.msra.mxu0 %v8228
  %8572 = vmatprep.subr.mxu0 %v8227
  %8573 = vmatpush2.msra.mxu0 %v8226
  %8574 = vmatprep.subr.mxu0 %v8225
  %8575 = vmatpush2.msra.mxu0 %v8224
  %8576 = vmatprep.subr.mxu0 %v8223
  %8577 = vmatpush2.msra.mxu0 %v8222
  %8578 = vmatprep.subr.mxu0 %v8221
  %8579 = vmatpush2.msra.mxu0 %v8220
  %8580 = vmatprep.subr.mxu0 %v8219
  %8581 = vmatpush2.msra.mxu0 %v8218
  %8582 = vmatprep.subr.mxu0 %v8217
  %8583 = vmatpush2.msra.mxu0 %v8216
  %8584 = vmatprep.subr.mxu0 %v8215
  %8585 = vmatpush2.msra.mxu0 %v8214
  %8586 = vmatprep.subr.mxu0 %v8213
  %8587 = vmatpush2.msra.mxu0 %v8212
  %8588 = vmatprep.subr.mxu0 %v8211
  %8589 = vmatpush2.msra.mxu0 %v8210
  %8590 = vmatprep.subr.mxu0 %v8209
  %8591 = vmatpush2.msra.mxu0 %v8208
  %8592 = vmatprep.subr.mxu0 %v8207
  %8593 = vmatpush2.msra.mxu0 %v8206
  %8594 = vmatprep.mubr.f32.mxu0 %v6425
  %8595 = vmatmul.mubr.f32.gmra.mxu0 %v6424
  %v8596 = vpop.f32.mrf.mxu0
  %v8597 = vadd.f32 %v8523, %v8596
  %v8598 = vpop.f32.mrf.mxu0
  %v8599 = vadd.f32 %v8525, %v8598
  %8600 = vdwg.mxu0
  %8601 = vmatprep.subr.mxu0 %v8269
  %8602 = vmatpush1.msra.mxu0 %v8268
  %8603 = vmatprep.subr.mxu0 %v8267
  %8604 = vmatpush1.msra.mxu0 %v8266
  %8605 = vmatprep.subr.mxu0 %v8265
  %8606 = vmatpush1.msra.mxu0 %v8264
  %8607 = vmatprep.subr.mxu0 %v8263
  %8608 = vmatpush1.msra.mxu0 %v8262
  %8609 = vmatprep.subr.mxu0 %v8261
  %8610 = vmatpush1.msra.mxu0 %v8260
  %8611 = vmatprep.subr.mxu0 %v8259
  %8612 = vmatpush1.msra.mxu0 %v8258
  %8613 = vmatprep.subr.mxu0 %v8257
  %8614 = vmatpush1.msra.mxu0 %v8256
  %8615 = vmatprep.subr.mxu0 %v8255
  %8616 = vmatpush1.msra.mxu0 %v8254
  %8617 = vmatprep.subr.mxu0 %v8253
  %8618 = vmatpush1.msra.mxu0 %v8252
  %8619 = vmatprep.subr.mxu0 %v8251
  %8620 = vmatpush1.msra.mxu0 %v8250
  %8621 = vmatprep.subr.mxu0 %v8249
  %8622 = vmatpush1.msra.mxu0 %v8248
  %8623 = vmatprep.subr.mxu0 %v8247
  %8624 = vmatpush1.msra.mxu0 %v8246
  %8625 = vmatprep.subr.mxu0 %v8245
  %8626 = vmatpush1.msra.mxu0 %v8244
  %8627 = vmatprep.subr.mxu0 %v8243
  %8628 = vmatpush1.msra.mxu0 %v8242
  %8629 = vmatprep.subr.mxu0 %v8241
  %8630 = vmatpush1.msra.mxu0 %v8240
  %8631 = vmatprep.subr.mxu0 %v8239
  %8632 = vmatpush1.msra.mxu0 %v8238
  %8633 = vmatprep.subr.mxu0 0.0
  %8634 = vmatpush2.msra.mxu0 0.0
  %8635 = vmatprep.subr.mxu0 0.0
  %8636 = vmatpush2.msra.mxu0 0.0
  %8637 = vmatprep.subr.mxu0 0.0
  %8638 = vmatpush2.msra.mxu0 0.0
  %8639 = vmatprep.subr.mxu0 0.0
  %8640 = vmatpush2.msra.mxu0 0.0
  %8641 = vmatprep.subr.mxu0 0.0
  %8642 = vmatpush2.msra.mxu0 0.0
  %8643 = vmatprep.subr.mxu0 0.0
  %8644 = vmatpush2.msra.mxu0 0.0
  %8645 = vmatprep.subr.mxu0 0.0
  %8646 = vmatpush2.msra.mxu0 0.0
  %8647 = vmatprep.subr.mxu0 0.0
  %8648 = vmatpush2.msra.mxu0 0.0
  %8649 = vmatprep.subr.mxu0 0.0
  %8650 = vmatpush2.msra.mxu0 0.0
  %8651 = vmatprep.subr.mxu0 0.0
  %8652 = vmatpush2.msra.mxu0 0.0
  %8653 = vmatprep.subr.mxu0 0.0
  %8654 = vmatpush2.msra.mxu0 0.0
  %8655 = vmatprep.subr.mxu0 0.0
  %8656 = vmatpush2.msra.mxu0 0.0
  %8657 = vmatprep.subr.mxu0 %v8277
  %8658 = vmatpush2.msra.mxu0 %v8276
  %8659 = vmatprep.subr.mxu0 %v8275
  %8660 = vmatpush2.msra.mxu0 %v8274
  %8661 = vmatprep.subr.mxu0 %v8273
  %8662 = vmatpush2.msra.mxu0 %v8272
  %8663 = vmatprep.subr.mxu0 %v8271
  %8664 = vmatpush2.msra.mxu0 %v8270
  %8665 = vmatprep.mubr.f32.mxu0 %v8528
  %8666 = vmatmul.mubr.f32.gmra.mxu0 %v6426
  %v8667 = vpop.f32.mrf.mxu0
  %v8668 = vadd.f32 %v8597, %v8667
  %v8669 = vpop.f32.mrf.mxu0
  %v8670 = vadd.f32 %v8599, %v8669
  %8671 = vdwg.mxu0
  %v8672 = vld [vmem:[%s4223] sm:$0xff]
  %v8673 = vld [vmem:[%s4223 + $0x8] sm:$0xff]
  %v8674 = vld [vmem:[%s4223 + $0x10] sm:$0xff]
  %v8675 = vld [vmem:[%s4223 + $0x18] sm:$0xff]
  %v8676 = vld [vmem:[%s4223 + $0x20] sm:$0xff]
  %v8677 = vld [vmem:[%s4223 + $0x28] sm:$0xff]
  %v8678 = vld [vmem:[%s4223 + $0x30] sm:$0xff]
  %v8679 = vld [vmem:[%s4223 + $0x38] sm:$0xff]
  %v8680 = vld [vmem:[%s4223 + $0x40] sm:$0xff]
  %v8681 = vld [vmem:[%s4223 + $0x48] sm:$0xff]
  %v8682 = vld [vmem:[%s4223 + $0x50] sm:$0xff]
  %v8683 = vld [vmem:[%s4223 + $0x58] sm:$0xff]
  %v8684 = vld [vmem:[%s4223 + $0x60] sm:$0xff]
  %v8685 = vld [vmem:[%s4223 + $0x68] sm:$0xff]
  %v8686 = vld [vmem:[%s4223 + $0x70] sm:$0xff]
  %v8687 = vld [vmem:[%s4223 + $0x78] sm:$0xff]
  %v8688 = vld [vmem:[%s4223 + $0x80] sm:$0xff]
  %v8689 = vld [vmem:[%s4223 + $0x88] sm:$0xff]
  %v8690 = vld [vmem:[%s4223 + $0x90] sm:$0xff]
  %v8691 = vld [vmem:[%s4223 + $0x98] sm:$0xff]
  %v8692 = vld [vmem:[%s4223 + $0xa0] sm:$0xff]
  %v8693 = vld [vmem:[%s4223 + $0xa8] sm:$0xff]
  %v8694 = vld [vmem:[%s4223 + $0xb0] sm:$0xff]
  %v8695 = vld [vmem:[%s4223 + $0xb8] sm:$0xff]
  %v8696 = vld [vmem:[%s4223 + $0xc0] sm:$0xff]
  %v8697 = vld [vmem:[%s4223 + $0xc8] sm:$0xff]
  %v8698 = vld [vmem:[%s4223 + $0xd0] sm:$0xff]
  %v8699 = vld [vmem:[%s4223 + $0xd8] sm:$0xff]
  %v8700 = vld [vmem:[%s4223 + $0xe0] sm:$0xff]
  %v8701 = vld [vmem:[%s4223 + $0xe8] sm:$0xff]
  %v8702 = vld [vmem:[%s4223 + $0xf0] sm:$0xff]
  %v8703 = vld [vmem:[%s4223 + $0xf8] sm:$0xff]
  %v8704 = vld [vmem:[%s4223 + $0x100] sm:$0xff]
  %v8705 = vld [vmem:[%s4223 + $0x108] sm:$0xff]
  %v8706 = vld [vmem:[%s4223 + $0x110] sm:$0xff]
  %v8707 = vld [vmem:[%s4223 + $0x118] sm:$0xff]
  %v8708 = vld [vmem:[%s4223 + $0x120] sm:$0xff]
  %v8709 = vld [vmem:[%s4223 + $0x128] sm:$0xff]
  %v8710 = vld [vmem:[%s4223 + $0x130] sm:$0xff]
  %v8711 = vld [vmem:[%s4223 + $0x138] sm:$0xff]
  %v8712 = vld [vmem:[%s4223 + $0x140] sm:$0xff]
  %v8713 = vld [vmem:[%s4223 + $0x148] sm:$0xff]
  %v8714 = vld [vmem:[%s4223 + $0x150] sm:$0xff]
  %v8715 = vld [vmem:[%s4223 + $0x158] sm:$0xff]
  %v8716 = vld [vmem:[%s4223 + $0x160] sm:$0xff]
  %v8717 = vld [vmem:[%s4223 + $0x168] sm:$0xff]
  %v8718 = vld [vmem:[%s4223 + $0x170] sm:$0xff]
  %v8719 = vld [vmem:[%s4223 + $0x178] sm:$0xff]
  %v8720 = vld [vmem:[%s4223 + $0x180] sm:$0xff]
  %v8721 = vld [vmem:[%s4223 + $0x188] sm:$0xff]
  %v8722 = vld [vmem:[%s4223 + $0x190] sm:$0xff]
  %v8723 = vld [vmem:[%s4223 + $0x198] sm:$0xff]
  %v8724 = vld [vmem:[%s4223 + $0x1a0] sm:$0xff]
  %v8725 = vld [vmem:[%s4223 + $0x1a8] sm:$0xff]
  %v8726 = vld [vmem:[%s4223 + $0x1b0] sm:$0xff]
  %v8727 = vld [vmem:[%s4223 + $0x1b8] sm:$0xff]
  %v8728 = vld [vmem:[%s4223 + $0x1c0] sm:$0xff]
  %v8729 = vld [vmem:[%s4223 + $0x1c8] sm:$0xff]
  %v8730 = vld [vmem:[%s4223 + $0x1d0] sm:$0xff]
  %v8731 = vld [vmem:[%s4223 + $0x1d8] sm:$0xff]
  %v8732 = vld [vmem:[%s4223 + $0x1e0] sm:$0xff]
  %v8733 = vld [vmem:[%s4223 + $0x1e8] sm:$0xff]
  %v8734 = vld [vmem:[%s4223 + $0x1f0] sm:$0xff]
  %v8735 = vld [vmem:[%s4223 + $0x1f8] sm:$0xff]
  %v8736 = vld [vmem:[%s4223 + $0x200] sm:$0xff]
  %v8737 = vld [vmem:[%s4223 + $0x208] sm:$0xff]
  %v8738 = vld [vmem:[%s4223 + $0x210] sm:$0xff]
  %v8739 = vld [vmem:[%s4223 + $0x218] sm:$0xff]
  %v8740 = vld [vmem:[%s4223 + $0x220] sm:$0xff]
  %v8741 = vld [vmem:[%s4223 + $0x228] sm:$0xff]
  %v8742 = vld [vmem:[%s4223 + $0x230] sm:$0xff]
  %v8743 = vld [vmem:[%s4223 + $0x238] sm:$0xff]
  %v8744 = vld [vmem:[%s4223 + $0x240] sm:$0xff]
  %v8745 = vld [vmem:[%s4223 + $0x248] sm:$0xff]
  %v8746 = vld [vmem:[%s4223 + $0x250] sm:$0xff]
  %v8747 = vld [vmem:[%s4223 + $0x258] sm:$0xff]
  %v8748 = vld [vmem:[%s4223 + $0x260] sm:$0xff]
  %v8749 = vld [vmem:[%s4223 + $0x268] sm:$0xff]
  %v8750 = vld [vmem:[%s4223 + $0x270] sm:$0xff]
  %v8751 = vld [vmem:[%s4223 + $0x278] sm:$0xff]
  %v8752 = vld [vmem:[%s4223 + $0x280] sm:$0xff]
  %v8753 = vld [vmem:[%s4223 + $0x288] sm:$0xff]
  %v8754 = vld [vmem:[%s4223 + $0x290] sm:$0xff]
  %v8755 = vld [vmem:[%s4223 + $0x298] sm:$0xff]
  %v8756 = vld [vmem:[%s4223 + $0x2a0] sm:$0xff]
  %v8757 = vld [vmem:[%s4223 + $0x2a8] sm:$0xff]
  %v8758 = vld [vmem:[%s4223 + $0x2b0] sm:$0xff]
  %v8759 = vld [vmem:[%s4223 + $0x2b8] sm:$0xff]
  %v8760 = vld [vmem:[%s4223 + $0x2c0] sm:$0xff]
  %v8761 = vld [vmem:[%s4223 + $0x2c8] sm:$0xff]
  %v8762 = vld [vmem:[%s4223 + $0x2d0] sm:$0xff]
  %v8763 = vld [vmem:[%s4223 + $0x2d8] sm:$0xff]
  %v8764 = vld [vmem:[%s4223 + $0x2e0] sm:$0xff]
  %v8765 = vld [vmem:[%s4223 + $0x2e8] sm:$0xff]
  %v8766 = vld [vmem:[%s4223 + $0x2f0] sm:$0xff]
  %v8767 = vld [vmem:[%s4223 + $0x2f8] sm:$0xff]
  %v8768 = vld [vmem:[%s4223 + $0x300] sm:$0xff]
  %v8769 = vld [vmem:[%s4223 + $0x308] sm:$0xff]
  %v8770 = vld [vmem:[%s4223 + $0x310] sm:$0xff]
  %v8771 = vld [vmem:[%s4223 + $0x318] sm:$0xff]
  %v8772 = vld [vmem:[%s4223 + $0x320] sm:$0xff]
  %v8773 = vld [vmem:[%s4223 + $0x328] sm:$0xff]
  %v8774 = vld [vmem:[%s4223 + $0x330] sm:$0xff]
  %v8775 = vld [vmem:[%s4223 + $0x338] sm:$0xff]
  %v8779 = vrot.slane %v6424, 1
  %v8780 = vrot.slane %v6425, 1
  %v8781 = vrot.slane %v6426, 1
  %v8782 = vrot.slane %v6427, 1
  %v8786 = vsel %vm3932, %v8782, 0
  %8788 = vmatprep.subr.mxu0 %v8703
  %8789 = vmatpush1.msra.mxu0 %v8702
  %8790 = vmatprep.subr.mxu0 %v8701
  %8791 = vmatpush1.msra.mxu0 %v8700
  %8792 = vmatprep.subr.mxu0 %v8699
  %8793 = vmatpush1.msra.mxu0 %v8698
  %8794 = vmatprep.subr.mxu0 %v8697
  %8795 = vmatpush1.msra.mxu0 %v8696
  %8796 = vmatprep.subr.mxu0 %v8695
  %8797 = vmatpush1.msra.mxu0 %v8694
  %8798 = vmatprep.subr.mxu0 %v8693
  %8799 = vmatpush1.msra.mxu0 %v8692
  %8800 = vmatprep.subr.mxu0 %v8691
  %8801 = vmatpush1.msra.mxu0 %v8690
  %8802 = vmatprep.subr.mxu0 %v8689
  %8803 = vmatpush1.msra.mxu0 %v8688
  %8804 = vmatprep.subr.mxu0 %v8687
  %8805 = vmatpush1.msra.mxu0 %v8686
  %8806 = vmatprep.subr.mxu0 %v8685
  %8807 = vmatpush1.msra.mxu0 %v8684
  %8808 = vmatprep.subr.mxu0 %v8683
  %8809 = vmatpush1.msra.mxu0 %v8682
  %8810 = vmatprep.subr.mxu0 %v8681
  %8811 = vmatpush1.msra.mxu0 %v8680
  %8812 = vmatprep.subr.mxu0 %v8679
  %8813 = vmatpush1.msra.mxu0 %v8678
  %8814 = vmatprep.subr.mxu0 %v8677
  %8815 = vmatpush1.msra.mxu0 %v8676
  %8816 = vmatprep.subr.mxu0 %v8675
  %8817 = vmatpush1.msra.mxu0 %v8674
  %8818 = vmatprep.subr.mxu0 %v8673
  %8819 = vmatpush1.msra.mxu0 %v8672
  %8820 = vmatprep.subr.mxu0 %v8735
  %8821 = vmatpush2.msra.mxu0 %v8734
  %8822 = vmatprep.subr.mxu0 %v8733
  %8823 = vmatpush2.msra.mxu0 %v8732
  %8824 = vmatprep.subr.mxu0 %v8731
  %8825 = vmatpush2.msra.mxu0 %v8730
  %8826 = vmatprep.subr.mxu0 %v8729
  %8827 = vmatpush2.msra.mxu0 %v8728
  %8828 = vmatprep.subr.mxu0 %v8727
  %8829 = vmatpush2.msra.mxu0 %v8726
  %8830 = vmatprep.subr.mxu0 %v8725
  %8831 = vmatpush2.msra.mxu0 %v8724
  %8832 = vmatprep.subr.mxu0 %v8723
  %8833 = vmatpush2.msra.mxu0 %v8722
  %8834 = vmatprep.subr.mxu0 %v8721
  %8835 = vmatpush2.msra.mxu0 %v8720
  %8836 = vmatprep.subr.mxu0 %v8719
  %8837 = vmatpush2.msra.mxu0 %v8718
  %8838 = vmatprep.subr.mxu0 %v8717
  %8839 = vmatpush2.msra.mxu0 %v8716
  %8840 = vmatprep.subr.mxu0 %v8715
  %8841 = vmatpush2.msra.mxu0 %v8714
  %8842 = vmatprep.subr.mxu0 %v8713
  %8843 = vmatpush2.msra.mxu0 %v8712
  %8844 = vmatprep.subr.mxu0 %v8711
  %8845 = vmatpush2.msra.mxu0 %v8710
  %8846 = vmatprep.subr.mxu0 %v8709
  %8847 = vmatpush2.msra.mxu0 %v8708
  %8848 = vmatprep.subr.mxu0 %v8707
  %8849 = vmatpush2.msra.mxu0 %v8706
  %8850 = vmatprep.subr.mxu0 %v8705
  %8851 = vmatpush2.msra.mxu0 %v8704
  %8852 = vmatprep.mubr.f32.mxu0 %v8780
  %8853 = vmatmul.mubr.f32.gmra.mxu0 %v8779
  %v8854 = vpop.f32.mrf.mxu0
  %v8855 = vadd.f32 0.0, %v8854
  %v8856 = vpop.f32.mrf.mxu0
  %v8857 = vadd.f32 0.0, %v8856
  %8858 = vdwg.mxu0
  %8859 = vmatprep.subr.mxu0 %v8767
  %8860 = vmatpush1.msra.mxu0 %v8766
  %8861 = vmatprep.subr.mxu0 %v8765
  %8862 = vmatpush1.msra.mxu0 %v8764
  %8863 = vmatprep.subr.mxu0 %v8763
  %8864 = vmatpush1.msra.mxu0 %v8762
  %8865 = vmatprep.subr.mxu0 %v8761
  %8866 = vmatpush1.msra.mxu0 %v8760
  %8867 = vmatprep.subr.mxu0 %v8759
  %8868 = vmatpush1.msra.mxu0 %v8758
  %8869 = vmatprep.subr.mxu0 %v8757
  %8870 = vmatpush1.msra.mxu0 %v8756
  %8871 = vmatprep.subr.mxu0 %v8755
  %8872 = vmatpush1.msra.mxu0 %v8754
  %8873 = vmatprep.subr.mxu0 %v8753
  %8874 = vmatpush1.msra.mxu0 %v8752
  %8875 = vmatprep.subr.mxu0 %v8751
  %8876 = vmatpush1.msra.mxu0 %v8750
  %8877 = vmatprep.subr.mxu0 %v8749
  %8878 = vmatpush1.msra.mxu0 %v8748
  %8879 = vmatprep.subr.mxu0 %v8747
  %8880 = vmatpush1.msra.mxu0 %v8746
  %8881 = vmatprep.subr.mxu0 %v8745
  %8882 = vmatpush1.msra.mxu0 %v8744
  %8883 = vmatprep.subr.mxu0 %v8743
  %8884 = vmatpush1.msra.mxu0 %v8742
  %8885 = vmatprep.subr.mxu0 %v8741
  %8886 = vmatpush1.msra.mxu0 %v8740
  %8887 = vmatprep.subr.mxu0 %v8739
  %8888 = vmatpush1.msra.mxu0 %v8738
  %8889 = vmatprep.subr.mxu0 %v8737
  %8890 = vmatpush1.msra.mxu0 %v8736
  %8891 = vmatprep.subr.mxu0 0.0
  %8892 = vmatpush2.msra.mxu0 0.0
  %8893 = vmatprep.subr.mxu0 0.0
  %8894 = vmatpush2.msra.mxu0 0.0
  %8895 = vmatprep.subr.mxu0 0.0
  %8896 = vmatpush2.msra.mxu0 0.0
  %8897 = vmatprep.subr.mxu0 0.0
  %8898 = vmatpush2.msra.mxu0 0.0
  %8899 = vmatprep.subr.mxu0 0.0
  %8900 = vmatpush2.msra.mxu0 0.0
  %8901 = vmatprep.subr.mxu0 0.0
  %8902 = vmatpush2.msra.mxu0 0.0
  %8903 = vmatprep.subr.mxu0 0.0
  %8904 = vmatpush2.msra.mxu0 0.0
  %8905 = vmatprep.subr.mxu0 0.0
  %8906 = vmatpush2.msra.mxu0 0.0
  %8907 = vmatprep.subr.mxu0 0.0
  %8908 = vmatpush2.msra.mxu0 0.0
  %8909 = vmatprep.subr.mxu0 0.0
  %8910 = vmatpush2.msra.mxu0 0.0
  %8911 = vmatprep.subr.mxu0 0.0
  %8912 = vmatpush2.msra.mxu0 0.0
  %8913 = vmatprep.subr.mxu0 0.0
  %8914 = vmatpush2.msra.mxu0 0.0
  %8915 = vmatprep.subr.mxu0 %v8775
  %8916 = vmatpush2.msra.mxu0 %v8774
  %8917 = vmatprep.subr.mxu0 %v8773
  %8918 = vmatpush2.msra.mxu0 %v8772
  %8919 = vmatprep.subr.mxu0 %v8771
  %8920 = vmatpush2.msra.mxu0 %v8770
  %8921 = vmatprep.subr.mxu0 %v8769
  %8922 = vmatpush2.msra.mxu0 %v8768
  %8923 = vmatprep.mubr.f32.mxu0 %v8786
  %8924 = vmatmul.mubr.f32.gmra.mxu0 %v8781
  %v8925 = vpop.f32.mrf.mxu0
  %v8926 = vadd.f32 %v8855, %v8925
  %v8927 = vpop.f32.mrf.mxu0
  %v8928 = vadd.f32 %v8857, %v8927
  %8929 = vdwg.mxu0
  %v8930 = vadd.f32 %v8668, %v8926
  %v8931 = vadd.f32 %v8670, %v8928
  %v8932 = vadd.f32 %v8930, %v4488
  %v8933 = vadd.f32 %v8931, %v4492
  %s8934 = scalar_lea.vmem %s5, 16
  %8935 = vst [vmem:[%s8934] sm:$0x3f] %v8932
  %8936 = vst.msk [vmem:[%s8934 + $0x8] sm:$0x3f] %vm4498, %v8933
  // Predicated region
  $region22: #{mnist_net_forward.2} parent=0 // pred_check
    _
  $region23: #{mnist_net_forward.2} parent=0 // pred_check_branch
    %8938 = sbr.rel (0) target = $region25
  $region24: #{mnist_net_forward.2} parent=0 // pred_region
    _
  $region25: #{mnist_net_forward.2} parent=0 // pred_fallthru
    _
  // Predicated region
  $region26: #{mnist_net_forward.2} parent=0 // pred_check
    _
  $region27: #{mnist_net_forward.2} parent=0 // pred_check_branch
    %8940 = sbr.rel (0) target = $region29
  $region28: #{mnist_net_forward.2} parent=0 // pred_region
    _
  $region29: #{mnist_net_forward.2} parent=0 // pred_fallthru
    _

</llo_original>
